<compile_context>
chip_gen: v5e
topology: v5e:2x2
jax: 0.10.0
libtpu: 0.0.40
codegen_flags: <defaults>
</compile_context>

<pallas_src>
import numpy as np

import jax
import jax.numpy as jnp
from jax import lax
from jax.experimental import pallas as pl
from jax.experimental.pallas import tpu as pltpu

EPS = 1e-5
COMPUTE_DTYPE = jnp.bfloat16   # MXU operand dtype (epilogues stay float32)

_NROW = 288          # 9 conv3 taps * 32 rows (25 conv3 positions padded to 32)
_K1 = 9 * 27         # conv1 contraction: 9 conv2 taps * 27-value patch
_K1P = 256           # lane-padded conv1 contraction
_ZROW = 43 * 43      # index of the all-zero patch row appended to the im2col


# ----------------------- static index / fold tables ------------------------ #
def _build_tables():
    """Row table for x1 and validity masks (all static numpy).

    Row s2' = t2*32 + p3c:
      t2 = conv3 tap (kh2*3+kw2), p3c = conv3 output position (oh3*5+ow3),
      rows with p3c >= 25 are alignment padding.
    The row refers to the padded conv2-output position (hp2, wp2); for each
    conv2 tap t1 it further refers to a padded conv1-output position (hp1, wp1).
    valid(t1, s2') <=> both positions are real (not zero padding).
    """
    s2 = np.arange(_NROW)
    t2, p3 = s2 // 32, s2 % 32
    oh3, ow3 = p3 // 5, p3 % 5
    kh2, kw2 = t2 // 3, t2 % 3
    hp2 = 3 * oh3 + kh2
    wp2 = 3 * ow3 + kw2
    row_real = (p3 < 25) & (hp2 >= 1) & (wp2 >= 1)

    t1 = np.arange(9)
    kh1, kw1 = t1 // 3, t1 % 3
    hp1 = 3 * (hp2[:, None] - 1) + kh1[None, :]
    wp1 = 3 * (wp2[:, None] - 1) + kw1[None, :]
    valid = row_real[:, None] & (hp1 >= 1) & (wp1 >= 1)
    src = np.where(valid, (hp1 - 1) * 43 + (wp1 - 1), _ZROW).astype(np.int32)
    return (src.reshape(-1),                        # (288*9,) gather indices
            (~valid).astype(np.float32),            # (288, 9) invalid-tap flag
            row_real.astype(np.float32)[:, None])   # (288, 1)


_SRC, _INVALID, _ROWREAL = _build_tables()


# ------------------------------ Pallas kernel ------------------------------ #
def _net_s_kernel(x1_ref, w1_ref, sc1_ref, bi1_ref,
                  w2_ref, sc2_ref, bi2_ref,
                  w3_ref, sc3_ref, bi3_ref,
                  wf1_ref, scf1_ref, bif1_ref,
                  wf2_ref, bif2_ref,
                  o_ref, y2_scr):
    f32 = jnp.float32
    cdt = w1_ref.dtype                      # bfloat16 MXU operands
    n_img = x1_ref.shape[0]                 # images per grid step (static)

    # loop-invariant epilogue vectors (hoisted out of the tap loop)
    sc1 = sc1_ref[...]
    bi1 = bi1_ref[...]
    sc2 = sc2_ref[...]

    for b in range(n_img):
        # conv1 (block-diag, K=256) + conv2 (K=288): one 32-row tap group at a
        # time so intermediates stay in vregs; conv3's LHS is built in scratch.
        for t2 in range(9):
            xc = x1_ref[b, pl.ds(32 * t2, 32), :]                      # (32,256)
            z1 = jnp.dot(xc, w1_ref[...], preferred_element_type=f32)  # (32,288)
            a1 = jnp.maximum(z1 * sc1 + bi1, 0.0).astype(cdt)
            b2 = jnp.dot(a1, w2_ref[...], preferred_element_type=f32)  # (32,64)
            y2 = jnp.maximum(b2 * sc2 + bi2_ref[pl.ds(32 * t2, 32), :], 0.0)
            y2_scr[:, pl.ds(64 * t2, 64)] = y2

        # conv3: single (32,576) @ (576,64) matmul + BN/ReLU epilogue.
        z3 = jnp.dot(y2_scr[...].astype(cdt), w3_ref[...],
                     preferred_element_type=f32)                       # (32,64)
        y3 = jnp.maximum(z3 * sc3_ref[...] + bi3_ref[...], 0.0)

        # fc1 over the 25 real spatial positions (NCHW flatten folded into wf1).
        accs = [jnp.zeros((1, 128), f32) for _ in range(5)]
        for p3 in range(25):
            accs[p3 % 5] = accs[p3 % 5] + jnp.dot(
                y3[p3:p3 + 1, :].astype(cdt), wf1_ref[p3],
                preferred_element_type=f32)
        h = accs[0] + accs[1] + accs[2] + accs[3] + accs[4]
        h = jnp.maximum(h * scf1_ref[...] + bif1_ref[...], 0.0)        # (1,128)

        # fc2 (output channels zero-padded to a lane-dense 128-wide store).
        logits = jnp.dot(h.astype(cdt), wf2_ref[...],
                         preferred_element_type=f32) + bif2_ref[...]
        o_ref[b] = logits


# -------------------------------- JAX glue ---------------------------------- #
def _bn_scale_bias(p):
    """Fold eval-mode BatchNorm + preceding layer bias into (scale, bias)."""
    scale = p["gamma"] / jnp.sqrt(p["var"] + EPS)
    bias = (p["b"] - p["mean"]) * scale + p["beta"]
    return scale.astype(jnp.float32), bias.astype(jnp.float32)


def _prep_x1(x):
    """(N,3,128,128) f32 -> (N, 288, 256) bf16 per-image activation stream."""
    n = x.shape[0]
    xb = x.astype(COMPUTE_DTYPE)
    xp = jnp.pad(xb, ((0, 0), (0, 0), (1, 0), (1, 0)))            # (N,3,129,129)
    cols = xp.reshape(n, 3, 43, 3, 43, 3).transpose(0, 2, 4, 1, 3, 5)
    cols = cols.reshape(n, 43 * 43, 27)                           # (N,1849,27)
    colsz = jnp.concatenate(
        [cols, jnp.zeros((n, 1, 27), cols.dtype)], axis=1)        # zero patch row
    x1 = jnp.take(colsz, jnp.asarray(_SRC), axis=1)               # (N,2592,27)
    x1 = x1.reshape(n, _NROW, _K1)
    return jnp.pad(x1, ((0, 0), (0, 0), (0, _K1P - _K1)))         # (N,288,256)


def net_s_forward(x, params):
    """Fused Pallas forward for Net_S. x: (N, 3, 128, 128) float32 (NCHW)."""
    n = x.shape[0]
    f32 = jnp.float32
    cdt = COMPUTE_DTYPE

    x1 = _prep_x1(x)                                              # (N,288,256) bf16

    b_blk = max(1, min(4, n // 2))        # batch block; keep >=2 grid steps
    n_pad = -(-n // b_blk) * b_blk
    if n_pad != n:
        x1 = jnp.pad(x1, ((0, n_pad - n), (0, 0), (0, 0)))

    # ---- weight layout + BN folding (cheap, wrapper-side) ----
    p = params["conv1"]
    w1 = p["w"].reshape(32, 27).T.astype(f32)                     # (27, 32)
    w1bd = jnp.pad(jnp.kron(jnp.eye(9, dtype=f32), w1),
                   ((0, _K1P - _K1), (0, 0))).astype(cdt)         # (256, 288)
    sc1, bi1 = _bn_scale_bias(p)
    sc1t = jnp.tile(sc1, 9)[None, :]                              # (1, 288)
    bi1t = jnp.tile(bi1, 9)[None, :]

    p = params["conv2"]
    w2t = p["w"].transpose(2, 3, 1, 0).reshape(9, 32, 64)         # (tap, ci, co)
    w2r = w2t.reshape(288, 64).astype(cdt)
    sc2, bi2 = _bn_scale_bias(p)
    # Fold conv1's zero padding (and conv2's own padding / alignment rows)
    # into a per-row conv2 bias: invalid taps contribute relu(bi1) @ w2[tap].
    ctap = jnp.einsum("c,tco->to", jnp.maximum(bi1, 0.0).astype(cdt),
                      w2t.astype(cdt), preferred_element_type=f32)    # (9, 64)
    corr = jnp.asarray(_INVALID) @ ctap                               # (288, 64)
    bi2e = jnp.asarray(_ROWREAL) * bi2[None, :] - sc2[None, :] * corr

    p = params["conv3"]
    w3r = p["w"].transpose(2, 3, 1, 0).reshape(576, 64).astype(cdt)
    sc3, bi3 = _bn_scale_bias(p)

    p = params["fc1"]
    wf1 = p["w"].reshape(128, 64, 25).transpose(2, 1, 0).astype(cdt)  # (25,64,128)
    scf1, bif1 = _bn_scale_bias(p)

    p = params["fc2"]
    wf2 = jnp.pad(p["w"].T, ((0, 0), (0, 118))).astype(cdt)           # (128,128)
    bif2 = jnp.pad(p["b"], (0, 118))[None, :].astype(f32)             # (1,128)

    grid_spec = pltpu.PrefetchScalarGridSpec(
        num_scalar_prefetch=0,
        grid=(n_pad // b_blk,),
        in_specs=[
            pl.BlockSpec((b_blk, _NROW, _K1P), lambda i: (i, 0, 0)),   # x1
            pl.BlockSpec((_K1P, 288), lambda i: (0, 0)),               # w1bd
            pl.BlockSpec((1, 288), lambda i: (0, 0)),                  # sc1t
            pl.BlockSpec((1, 288), lambda i: (0, 0)),                  # bi1t
            pl.BlockSpec((288, 64), lambda i: (0, 0)),                 # w2r
            pl.BlockSpec((1, 64), lambda i: (0, 0)),                   # sc2
            pl.BlockSpec((_NROW, 64), lambda i: (0, 0)),               # bi2e
            pl.BlockSpec((576, 64), lambda i: (0, 0)),                 # w3r
            pl.BlockSpec((1, 64), lambda i: (0, 0)),                   # sc3
            pl.BlockSpec((1, 64), lambda i: (0, 0)),                   # bi3
            pl.BlockSpec((25, 64, 128), lambda i: (0, 0, 0)),          # wf1
            pl.BlockSpec((1, 128), lambda i: (0, 0)),                  # scf1
            pl.BlockSpec((1, 128), lambda i: (0, 0)),                  # bif1
            pl.BlockSpec((128, 128), lambda i: (0, 0)),                # wf2
            pl.BlockSpec((1, 128), lambda i: (0, 0)),                  # bif2
        ],
        out_specs=pl.BlockSpec((b_blk, 1, 128), lambda i: (i, 0, 0)),
        scratch_shapes=[pltpu.VMEM((32, 576), jnp.float32)],
    )

    out = pl.pallas_call(
        _net_s_kernel,
        out_shape=jax.ShapeDtypeStruct((n_pad, 1, 128), f32),
        grid_spec=grid_spec,
        compiler_params=pltpu.CompilerParams(
            dimension_semantics=("parallel",)),
    )(x1, w1bd, sc1t, bi1t, w2r, sc2[None, :], bi2e,
      w3r, sc3[None, :], bi3[None, :],
      wf1, scf1[None, :], bif1[None, :], wf2, bif2)

    return out[:n, 0, :10]                                        # (N, 10) logits


# ----------------------- pure-JAX reference (for checking) ------------------ #
def net_s_reference(x, params):
    """Eval-mode reference; matmul operands rounded to bf16 like the kernel."""
    cdt = COMPUTE_DTYPE
    h = x
    for name in ("conv1", "conv2", "conv3"):
        p = params[name]
        scale, bias = _bn_scale_bias(p)
        y = lax.conv_general_dilated(
            h.astype(cdt), p["w"].astype(cdt),
            window_strides=(3, 3), padding=((1, 1), (1, 1)),
            dimension_numbers=("NCHW", "OIHW", "NCHW"),
            preferred_element_type=jnp.float32)
        h = jnp.maximum(y * scale[None, :, None, None]
                        + bias[None, :, None, None], 0.0)
    h = h.reshape(h.shape[0], -1)                                 # NCHW flatten
    p = params["fc1"]
    scale, bias = _bn_scale_bias(p)
    h = jnp.dot(h.astype(cdt), p["w"].T.astype(cdt),
                preferred_element_type=jnp.float32)
    h = jnp.maximum(h * scale + bias, 0.0)
    p = params["fc2"]
    h = jnp.dot(h.astype(cdt), p["w"].T.astype(cdt),
                preferred_element_type=jnp.float32)
    return h + p["b"]


# --------------------------- deterministic params --------------------------- #
def init_params(key):
    keys = jax.random.split(key, 5)

    def conv_p(k, cin, cout):
        k1, k2, k3, k4, k5, k6 = jax.random.split(k, 6)
        return dict(
            w=jax.random.normal(k1, (cout, cin, 3, 3), jnp.float32) * 0.05,
            b=jax.random.normal(k2, (cout,), jnp.float32) * 0.05,
            gamma=jax.random.uniform(k3, (cout,), jnp.float32, minval=0.5, maxval=1.5),
            beta=jax.random.normal(k4, (cout,), jnp.float32) * 0.05,
            mean=jax.random.normal(k5, (cout,), jnp.float32) * 0.05,
            var=jax.random.uniform(k6, (cout,), jnp.float32, minval=0.5, maxval=1.5),
        )

    def lin_bn_p(k, din, dout):
        k1, k2, k3, k4, k5, k6 = jax.random.split(k, 6)
        return dict(
            w=jax.random.normal(k1, (dout, din), jnp.float32) * 0.02,
            b=jax.random.normal(k2, (dout,), jnp.float32) * 0.02,
            gamma=jax.random.uniform(k3, (dout,), jnp.float32, minval=0.5, maxval=1.5),
            beta=jax.random.normal(k4, (dout,), jnp.float32) * 0.02,
            mean=jax.random.normal(k5, (dout,), jnp.float32) * 0.02,
            var=jax.random.uniform(k6, (dout,), jnp.float32, minval=0.5, maxval=1.5),
        )

    def lin_p(k, din, dout):
        k1, k2 = jax.random.split(k, 2)
        return dict(
            w=jax.random.normal(k1, (dout, din), jnp.float32) * 0.02,
            b=jax.random.normal(k2, (dout,), jnp.float32) * 0.02,
        )

    return dict(
        conv1=conv_p(keys[0], 3, 32),
        conv2=conv_p(keys[1], 32, 64),
        conv3=conv_p(keys[2], 64, 64),
        fc1=lin_bn_p(keys[3], 64 * 5 * 5, 128),
        fc2=lin_p(keys[4], 128, 10),
    )


if __name__ == "__main__":
    key = jax.random.PRNGKey(0)
    kp, kx = jax.random.split(key)
    params = init_params(kp)
    # 128x128 spatial input is what the 64*5*5 classifier flatten implies
    # (128 -> 43 -> 15 -> 5 under three k=3, s=3, p=1 convs).
    x = jax.random.normal(kx, (2, 3, 128, 128), jnp.float32)

    out = jax.block_until_ready(jax.jit(net_s_forward)(x, params))
    assert out.shape == (2, 10) and out.dtype == jnp.float32

    ref = jax.block_until_ready(jax.jit(net_s_reference)(x, params))
    err = float(jnp.max(jnp.abs(out - ref)))
    assert err < 1e-2, f"kernel/reference mismatch: max |diff| = {err}"
    print("KERNEL_OK")
</pallas_src>

<mosaic_0001>
module attributes {stable_mosaic.version = 11 : i64} {
  func.func @_net_s_kernel(%arg0: i32, %arg1: memref<1x288x256xbf16, #tpu.memory_space<vmem>>, %arg2: memref<256x288xbf16, #tpu.memory_space<vmem>>, %arg3: memref<1x288xf32, #tpu.memory_space<vmem>>, %arg4: memref<1x288xf32, #tpu.memory_space<vmem>>, %arg5: memref<288x64xbf16, #tpu.memory_space<vmem>>, %arg6: memref<1x64xf32, #tpu.memory_space<vmem>>, %arg7: memref<288x64xf32, #tpu.memory_space<vmem>>, %arg8: memref<576x64xbf16, #tpu.memory_space<vmem>>, %arg9: memref<1x64xf32, #tpu.memory_space<vmem>>, %arg10: memref<1x64xf32, #tpu.memory_space<vmem>>, %arg11: memref<25x64x128xbf16, #tpu.memory_space<vmem>>, %arg12: memref<1x128xf32, #tpu.memory_space<vmem>>, %arg13: memref<1x128xf32, #tpu.memory_space<vmem>>, %arg14: memref<128x128xbf16, #tpu.memory_space<vmem>>, %arg15: memref<1x128xf32, #tpu.memory_space<vmem>>, %arg16: memref<1x1x128xf32, #tpu.memory_space<vmem>>, %arg17: memref<32x576xf32, #tpu.memory_space<vmem>>) attributes {dimension_semantics = [#tpu.dimension_semantics<parallel>], iteration_bounds = array<i64: 2>, scalar_prefetch = 0 : i64, scratch_operands = 1 : i64, tpu.core_type = #tpu.core_type<tc>, window_params = [{transform_indices = @transform_0, window_bounds = array<i64: 1, 288, 256>}, {pipeline_mode = #tpu.pipeline_mode<synchronous>, transform_indices = @transform_1, window_bounds = array<i64: 256, 288>}, {pipeline_mode = #tpu.pipeline_mode<synchronous>, transform_indices = @transform_2, window_bounds = array<i64: 1, 288>}, {pipeline_mode = #tpu.pipeline_mode<synchronous>, transform_indices = @transform_3, window_bounds = array<i64: 1, 288>}, {pipeline_mode = #tpu.pipeline_mode<synchronous>, transform_indices = @transform_4, window_bounds = array<i64: 288, 64>}, {pipeline_mode = #tpu.pipeline_mode<synchronous>, transform_indices = @transform_5, window_bounds = array<i64: 1, 64>}, {pipeline_mode = #tpu.pipeline_mode<synchronous>, transform_indices = @transform_6, window_bounds = array<i64: 288, 64>}, {pipeline_mode = #tpu.pipeline_mode<synchronous>, transform_indices = @transform_7, window_bounds = array<i64: 576, 64>}, {pipeline_mode = #tpu.pipeline_mode<synchronous>, transform_indices = @transform_8, window_bounds = array<i64: 1, 64>}, {pipeline_mode = #tpu.pipeline_mode<synchronous>, transform_indices = @transform_9, window_bounds = array<i64: 1, 64>}, {pipeline_mode = #tpu.pipeline_mode<synchronous>, transform_indices = @transform_10, window_bounds = array<i64: 25, 64, 128>}, {pipeline_mode = #tpu.pipeline_mode<synchronous>, transform_indices = @transform_11, window_bounds = array<i64: 1, 128>}, {pipeline_mode = #tpu.pipeline_mode<synchronous>, transform_indices = @transform_12, window_bounds = array<i64: 1, 128>}, {pipeline_mode = #tpu.pipeline_mode<synchronous>, transform_indices = @transform_13, window_bounds = array<i64: 128, 128>}, {pipeline_mode = #tpu.pipeline_mode<synchronous>, transform_indices = @transform_14, window_bounds = array<i64: 1, 128>}, {transform_indices = @transform_15, window_bounds = array<i64: 1, 1, 128>}]} {
    %c0 = arith.constant 0 : index
    %c0_0 = arith.constant 0 : index
    %0 = vector.load %arg3[%c0, %c0_0] : memref<1x288xf32, #tpu.memory_space<vmem>>, vector<1x288xf32>
    %c0_1 = arith.constant 0 : index
    %c0_2 = arith.constant 0 : index
    %1 = vector.load %arg4[%c0_1, %c0_2] : memref<1x288xf32, #tpu.memory_space<vmem>>, vector<1x288xf32>
    %c0_3 = arith.constant 0 : index
    %c0_4 = arith.constant 0 : index
    %2 = vector.load %arg6[%c0_3, %c0_4] : memref<1x64xf32, #tpu.memory_space<vmem>>, vector<1x64xf32>
    %c0_5 = arith.constant 0 : index
    %c0_6 = arith.constant 0 : index
    %c0_7 = arith.constant 0 : index
    %3 = vector.load %arg1[%c0_5, %c0_6, %c0_7] : memref<1x288x256xbf16, #tpu.memory_space<vmem>>, vector<1x32x256xbf16>
    %4 = vector.shape_cast %3 : vector<1x32x256xbf16> to vector<32x256xbf16>
    %c0_8 = arith.constant 0 : index
    %c0_9 = arith.constant 0 : index
    %5 = vector.load %arg2[%c0_8, %c0_9] : memref<256x288xbf16, #tpu.memory_space<vmem>>, vector<256x288xbf16>
    %cst = arith.constant dense<0.000000e+00> : vector<32x288xf32>
    %6 = tpu.matmul %4, %5, %cst {dimension_numbers = #tpu.dot_dimension_numbers<[1], [0], [0], [1], [0, 0, 1, 1], [], []>} : vector<32x256xbf16>, vector<256x288xbf16>, vector<32x288xf32> -> vector<32x288xf32>
    %7 = vector.broadcast %0 : vector<1x288xf32> to vector<32x288xf32>
    %8 = arith.mulf %6, %7 : vector<32x288xf32>
    %9 = vector.broadcast %1 : vector<1x288xf32> to vector<32x288xf32>
    %10 = arith.addf %8, %9 : vector<32x288xf32>
    %cst_10 = arith.constant 0.000000e+00 : f32
    %11 = vector.broadcast %cst_10 : f32 to vector<32x288xf32>
    %12 = arith.maximumf %10, %11 : vector<32x288xf32>
    %13 = arith.truncf %12 : vector<32x288xf32> to vector<32x288xbf16>
    %c0_11 = arith.constant 0 : index
    %c0_12 = arith.constant 0 : index
    %14 = vector.load %arg5[%c0_11, %c0_12] : memref<288x64xbf16, #tpu.memory_space<vmem>>, vector<288x64xbf16>
    %cst_13 = arith.constant dense<0.000000e+00> : vector<32x64xf32>
    %15 = tpu.matmul %13, %14, %cst_13 {dimension_numbers = #tpu.dot_dimension_numbers<[1], [0], [0], [1], [0, 0, 1, 1], [], []>} : vector<32x288xbf16>, vector<288x64xbf16>, vector<32x64xf32> -> vector<32x64xf32>
    %16 = vector.broadcast %2 : vector<1x64xf32> to vector<32x64xf32>
    %17 = arith.mulf %15, %16 : vector<32x64xf32>
    %c0_14 = arith.constant 0 : index
    %c0_15 = arith.constant 0 : index
    %18 = vector.load %arg7[%c0_14, %c0_15] : memref<288x64xf32, #tpu.memory_space<vmem>>, vector<32x64xf32>
    %19 = arith.addf %17, %18 : vector<32x64xf32>
    %cst_16 = arith.constant 0.000000e+00 : f32
    %20 = vector.broadcast %cst_16 : f32 to vector<32x64xf32>
    %21 = arith.maximumf %19, %20 : vector<32x64xf32>
    %c0_17 = arith.constant 0 : index
    %c0_18 = arith.constant 0 : index
    %22 = vector.load %arg17[%c0_17, %c0_18] : memref<32x576xf32, #tpu.memory_space<vmem>>, vector<32x64xf32>
    tpu.vector_store %arg17[%c0_17, %c0_18], %21 {strides = array<i32>} : memref<32x576xf32, #tpu.memory_space<vmem>>, vector<32x64xf32>,
    %c0_19 = arith.constant 0 : index
    %c32 = arith.constant 32 : index
    %c0_20 = arith.constant 0 : index
    %23 = vector.load %arg1[%c0_19, %c32, %c0_20] : memref<1x288x256xbf16, #tpu.memory_space<vmem>>, vector<1x32x256xbf16>
    %24 = vector.shape_cast %23 : vector<1x32x256xbf16> to vector<32x256xbf16>
    %c0_21 = arith.constant 0 : index
    %c0_22 = arith.constant 0 : index
    %25 = vector.load %arg2[%c0_21, %c0_22] : memref<256x288xbf16, #tpu.memory_space<vmem>>, vector<256x288xbf16>
    %cst_23 = arith.constant dense<0.000000e+00> : vector<32x288xf32>
    %26 = tpu.matmul %24, %25, %cst_23 {dimension_numbers = #tpu.dot_dimension_numbers<[1], [0], [0], [1], [0, 0, 1, 1], [], []>} : vector<32x256xbf16>, vector<256x288xbf16>, vector<32x288xf32> -> vector<32x288xf32>
    %27 = vector.broadcast %0 : vector<1x288xf32> to vector<32x288xf32>
    %28 = arith.mulf %26, %27 : vector<32x288xf32>
    %29 = vector.broadcast %1 : vector<1x288xf32> to vector<32x288xf32>
    %30 = arith.addf %28, %29 : vector<32x288xf32>
    %cst_24 = arith.constant 0.000000e+00 : f32
    %31 = vector.broadcast %cst_24 : f32 to vector<32x288xf32>
    %32 = arith.maximumf %30, %31 : vector<32x288xf32>
    %33 = arith.truncf %32 : vector<32x288xf32> to vector<32x288xbf16>
    %c0_25 = arith.constant 0 : index
    %c0_26 = arith.constant 0 : index
    %34 = vector.load %arg5[%c0_25, %c0_26] : memref<288x64xbf16, #tpu.memory_space<vmem>>, vector<288x64xbf16>
    %cst_27 = arith.constant dense<0.000000e+00> : vector<32x64xf32>
    %35 = tpu.matmul %33, %34, %cst_27 {dimension_numbers = #tpu.dot_dimension_numbers<[1], [0], [0], [1], [0, 0, 1, 1], [], []>} : vector<32x288xbf16>, vector<288x64xbf16>, vector<32x64xf32> -> vector<32x64xf32>
    %36 = vector.broadcast %2 : vector<1x64xf32> to vector<32x64xf32>
    %37 = arith.mulf %35, %36 : vector<32x64xf32>
    %c32_28 = arith.constant 32 : index
    %c0_29 = arith.constant 0 : index
    %38 = vector.load %arg7[%c32_28, %c0_29] : memref<288x64xf32, #tpu.memory_space<vmem>>, vector<32x64xf32>
    %39 = arith.addf %37, %38 : vector<32x64xf32>
    %cst_30 = arith.constant 0.000000e+00 : f32
    %40 = vector.broadcast %cst_30 : f32 to vector<32x64xf32>
    %41 = arith.maximumf %39, %40 : vector<32x64xf32>
    %c0_31 = arith.constant 0 : index
    %c64 = arith.constant 64 : index
    %42 = vector.load %arg17[%c0_31, %c64] : memref<32x576xf32, #tpu.memory_space<vmem>>, vector<32x64xf32>
    tpu.vector_store %arg17[%c0_31, %c64], %41 {strides = array<i32>} : memref<32x576xf32, #tpu.memory_space<vmem>>, vector<32x64xf32>,
    %c0_32 = arith.constant 0 : index
    %c64_33 = arith.constant 64 : index
    %c0_34 = arith.constant 0 : index
    %43 = vector.load %arg1[%c0_32, %c64_33, %c0_34] : memref<1x288x256xbf16, #tpu.memory_space<vmem>>, vector<1x32x256xbf16>
    %44 = vector.shape_cast %43 : vector<1x32x256xbf16> to vector<32x256xbf16>
    %c0_35 = arith.constant 0 : index
    %c0_36 = arith.constant 0 : index
    %45 = vector.load %arg2[%c0_35, %c0_36] : memref<256x288xbf16, #tpu.memory_space<vmem>>, vector<256x288xbf16>
    %cst_37 = arith.constant dense<0.000000e+00> : vector<32x288xf32>
    %46 = tpu.matmul %44, %45, %cst_37 {dimension_numbers = #tpu.dot_dimension_numbers<[1], [0], [0], [1], [0, 0, 1, 1], [], []>} : vector<32x256xbf16>, vector<256x288xbf16>, vector<32x288xf32> -> vector<32x288xf32>
    %47 = vector.broadcast %0 : vector<1x288xf32> to vector<32x288xf32>
    %48 = arith.mulf %46, %47 : vector<32x288xf32>
    %49 = vector.broadcast %1 : vector<1x288xf32> to vector<32x288xf32>
    %50 = arith.addf %48, %49 : vector<32x288xf32>
    %cst_38 = arith.constant 0.000000e+00 : f32
    %51 = vector.broadcast %cst_38 : f32 to vector<32x288xf32>
    %52 = arith.maximumf %50, %51 : vector<32x288xf32>
    %53 = arith.truncf %52 : vector<32x288xf32> to vector<32x288xbf16>
    %c0_39 = arith.constant 0 : index
    %c0_40 = arith.constant 0 : index
    %54 = vector.load %arg5[%c0_39, %c0_40] : memref<288x64xbf16, #tpu.memory_space<vmem>>, vector<288x64xbf16>
    %cst_41 = arith.constant dense<0.000000e+00> : vector<32x64xf32>
    %55 = tpu.matmul %53, %54, %cst_41 {dimension_numbers = #tpu.dot_dimension_numbers<[1], [0], [0], [1], [0, 0, 1, 1], [], []>} : vector<32x288xbf16>, vector<288x64xbf16>, vector<32x64xf32> -> vector<32x64xf32>
    %56 = vector.broadcast %2 : vector<1x64xf32> to vector<32x64xf32>
    %57 = arith.mulf %55, %56 : vector<32x64xf32>
    %c64_42 = arith.constant 64 : index
    %c0_43 = arith.constant 0 : index
    %58 = vector.load %arg7[%c64_42, %c0_43] : memref<288x64xf32, #tpu.memory_space<vmem>>, vector<32x64xf32>
    %59 = arith.addf %57, %58 : vector<32x64xf32>
    %cst_44 = arith.constant 0.000000e+00 : f32
    %60 = vector.broadcast %cst_44 : f32 to vector<32x64xf32>
    %61 = arith.maximumf %59, %60 : vector<32x64xf32>
    %c0_45 = arith.constant 0 : index
    %c128 = arith.constant 128 : index
    %62 = vector.load %arg17[%c0_45, %c128] : memref<32x576xf32, #tpu.memory_space<vmem>>, vector<32x64xf32>
    tpu.vector_store %arg17[%c0_45, %c128], %61 {strides = array<i32>} : memref<32x576xf32, #tpu.memory_space<vmem>>, vector<32x64xf32>,
    %c0_46 = arith.constant 0 : index
    %c96 = arith.constant 96 : index
    %c0_47 = arith.constant 0 : index
    %63 = vector.load %arg1[%c0_46, %c96, %c0_47] : memref<1x288x256xbf16, #tpu.memory_space<vmem>>, vector<1x32x256xbf16>
    %64 = vector.shape_cast %63 : vector<1x32x256xbf16> to vector<32x256xbf16>
    %c0_48 = arith.constant 0 : index
    %c0_49 = arith.constant 0 : index
    %65 = vector.load %arg2[%c0_48, %c0_49] : memref<256x288xbf16, #tpu.memory_space<vmem>>, vector<256x288xbf16>
    %cst_50 = arith.constant dense<0.000000e+00> : vector<32x288xf32>
    %66 = tpu.matmul %64, %65, %cst_50 {dimension_numbers = #tpu.dot_dimension_numbers<[1], [0], [0], [1], [0, 0, 1, 1], [], []>} : vector<32x256xbf16>, vector<256x288xbf16>, vector<32x288xf32> -> vector<32x288xf32>
    %67 = vector.broadcast %0 : vector<1x288xf32> to vector<32x288xf32>
    %68 = arith.mulf %66, %67 : vector<32x288xf32>
    %69 = vector.broadcast %1 : vector<1x288xf32> to vector<32x288xf32>
    %70 = arith.addf %68, %69 : vector<32x288xf32>
    %cst_51 = arith.constant 0.000000e+00 : f32
    %71 = vector.broadcast %cst_51 : f32 to vector<32x288xf32>
    %72 = arith.maximumf %70, %71 : vector<32x288xf32>
    %73 = arith.truncf %72 : vector<32x288xf32> to vector<32x288xbf16>
    %c0_52 = arith.constant 0 : index
    %c0_53 = arith.constant 0 : index
    %74 = vector.load %arg5[%c0_52, %c0_53] : memref<288x64xbf16, #tpu.memory_space<vmem>>, vector<288x64xbf16>
    %cst_54 = arith.constant dense<0.000000e+00> : vector<32x64xf32>
    %75 = tpu.matmul %73, %74, %cst_54 {dimension_numbers = #tpu.dot_dimension_numbers<[1], [0], [0], [1], [0, 0, 1, 1], [], []>} : vector<32x288xbf16>, vector<288x64xbf16>, vector<32x64xf32> -> vector<32x64xf32>
    %76 = vector.broadcast %2 : vector<1x64xf32> to vector<32x64xf32>
    %77 = arith.mulf %75, %76 : vector<32x64xf32>
    %c96_55 = arith.constant 96 : index
    %c0_56 = arith.constant 0 : index
    %78 = vector.load %arg7[%c96_55, %c0_56] : memref<288x64xf32, #tpu.memory_space<vmem>>, vector<32x64xf32>
    %79 = arith.addf %77, %78 : vector<32x64xf32>
    %cst_57 = arith.constant 0.000000e+00 : f32
    %80 = vector.broadcast %cst_57 : f32 to vector<32x64xf32>
    %81 = arith.maximumf %79, %80 : vector<32x64xf32>
    %c0_58 = arith.constant 0 : index
    %c192 = arith.constant 192 : index
    %82 = vector.load %arg17[%c0_58, %c192] : memref<32x576xf32, #tpu.memory_space<vmem>>, vector<32x64xf32>
    tpu.vector_store %arg17[%c0_58, %c192], %81 {strides = array<i32>} : memref<32x576xf32, #tpu.memory_space<vmem>>, vector<32x64xf32>,
    %c0_59 = arith.constant 0 : index
    %c128_60 = arith.constant 128 : index
    %c0_61 = arith.constant 0 : index
    %83 = vector.load %arg1[%c0_59, %c128_60, %c0_61] : memref<1x288x256xbf16, #tpu.memory_space<vmem>>, vector<1x32x256xbf16>
    %84 = vector.shape_cast %83 : vector<1x32x256xbf16> to vector<32x256xbf16>
    %c0_62 = arith.constant 0 : index
    %c0_63 = arith.constant 0 : index
    %85 = vector.load %arg2[%c0_62, %c0_63] : memref<256x288xbf16, #tpu.memory_space<vmem>>, vector<256x288xbf16>
    %cst_64 = arith.constant dense<0.000000e+00> : vector<32x288xf32>
    %86 = tpu.matmul %84, %85, %cst_64 {dimension_numbers = #tpu.dot_dimension_numbers<[1], [0], [0], [1], [0, 0, 1, 1], [], []>} : vector<32x256xbf16>, vector<256x288xbf16>, vector<32x288xf32> -> vector<32x288xf32>
    %87 = vector.broadcast %0 : vector<1x288xf32> to vector<32x288xf32>
    %88 = arith.mulf %86, %87 : vector<32x288xf32>
    %89 = vector.broadcast %1 : vector<1x288xf32> to vector<32x288xf32>
    %90 = arith.addf %88, %89 : vector<32x288xf32>
    %cst_65 = arith.constant 0.000000e+00 : f32
    %91 = vector.broadcast %cst_65 : f32 to vector<32x288xf32>
    %92 = arith.maximumf %90, %91 : vector<32x288xf32>
    %93 = arith.truncf %92 : vector<32x288xf32> to vector<32x288xbf16>
    %c0_66 = arith.constant 0 : index
    %c0_67 = arith.constant 0 : index
    %94 = vector.load %arg5[%c0_66, %c0_67] : memref<288x64xbf16, #tpu.memory_space<vmem>>, vector<288x64xbf16>
    %cst_68 = arith.constant dense<0.000000e+00> : vector<32x64xf32>
    %95 = tpu.matmul %93, %94, %cst_68 {dimension_numbers = #tpu.dot_dimension_numbers<[1], [0], [0], [1], [0, 0, 1, 1], [], []>} : vector<32x288xbf16>, vector<288x64xbf16>, vector<32x64xf32> -> vector<32x64xf32>
    %96 = vector.broadcast %2 : vector<1x64xf32> to vector<32x64xf32>
    %97 = arith.mulf %95, %96 : vector<32x64xf32>
    %c128_69 = arith.constant 128 : index
    %c0_70 = arith.constant 0 : index
    %98 = vector.load %arg7[%c128_69, %c0_70] : memref<288x64xf32, #tpu.memory_space<vmem>>, vector<32x64xf32>
    %99 = arith.addf %97, %98 : vector<32x64xf32>
    %cst_71 = arith.constant 0.000000e+00 : f32
    %100 = vector.broadcast %cst_71 : f32 to vector<32x64xf32>
    %101 = arith.maximumf %99, %100 : vector<32x64xf32>
    %c0_72 = arith.constant 0 : index
    %c256 = arith.constant 256 : index
    %102 = vector.load %arg17[%c0_72, %c256] : memref<32x576xf32, #tpu.memory_space<vmem>>, vector<32x64xf32>
    tpu.vector_store %arg17[%c0_72, %c256], %101 {strides = array<i32>} : memref<32x576xf32, #tpu.memory_space<vmem>>, vector<32x64xf32>,
    %c0_73 = arith.constant 0 : index
    %c160 = arith.constant 160 : index
    %c0_74 = arith.constant 0 : index
    %103 = vector.load %arg1[%c0_73, %c160, %c0_74] : memref<1x288x256xbf16, #tpu.memory_space<vmem>>, vector<1x32x256xbf16>
    %104 = vector.shape_cast %103 : vector<1x32x256xbf16> to vector<32x256xbf16>
    %c0_75 = arith.constant 0 : index
    %c0_76 = arith.constant 0 : index
    %105 = vector.load %arg2[%c0_75, %c0_76] : memref<256x288xbf16, #tpu.memory_space<vmem>>, vector<256x288xbf16>
    %cst_77 = arith.constant dense<0.000000e+00> : vector<32x288xf32>
    %106 = tpu.matmul %104, %105, %cst_77 {dimension_numbers = #tpu.dot_dimension_numbers<[1], [0], [0], [1], [0, 0, 1, 1], [], []>} : vector<32x256xbf16>, vector<256x288xbf16>, vector<32x288xf32> -> vector<32x288xf32>
    %107 = vector.broadcast %0 : vector<1x288xf32> to vector<32x288xf32>
    %108 = arith.mulf %106, %107 : vector<32x288xf32>
    %109 = vector.broadcast %1 : vector<1x288xf32> to vector<32x288xf32>
    %110 = arith.addf %108, %109 : vector<32x288xf32>
    %cst_78 = arith.constant 0.000000e+00 : f32
    %111 = vector.broadcast %cst_78 : f32 to vector<32x288xf32>
    %112 = arith.maximumf %110, %111 : vector<32x288xf32>
    %113 = arith.truncf %112 : vector<32x288xf32> to vector<32x288xbf16>
    %c0_79 = arith.constant 0 : index
    %c0_80 = arith.constant 0 : index
    %114 = vector.load %arg5[%c0_79, %c0_80] : memref<288x64xbf16, #tpu.memory_space<vmem>>, vector<288x64xbf16>
    %cst_81 = arith.constant dense<0.000000e+00> : vector<32x64xf32>
    %115 = tpu.matmul %113, %114, %cst_81 {dimension_numbers = #tpu.dot_dimension_numbers<[1], [0], [0], [1], [0, 0, 1, 1], [], []>} : vector<32x288xbf16>, vector<288x64xbf16>, vector<32x64xf32> -> vector<32x64xf32>
    %116 = vector.broadcast %2 : vector<1x64xf32> to vector<32x64xf32>
    %117 = arith.mulf %115, %116 : vector<32x64xf32>
    %c160_82 = arith.constant 160 : index
    %c0_83 = arith.constant 0 : index
    %118 = vector.load %arg7[%c160_82, %c0_83] : memref<288x64xf32, #tpu.memory_space<vmem>>, vector<32x64xf32>
    %119 = arith.addf %117, %118 : vector<32x64xf32>
    %cst_84 = arith.constant 0.000000e+00 : f32
    %120 = vector.broadcast %cst_84 : f32 to vector<32x64xf32>
    %121 = arith.maximumf %119, %120 : vector<32x64xf32>
    %c0_85 = arith.constant 0 : index
    %c320 = arith.constant 320 : index
    %122 = vector.load %arg17[%c0_85, %c320] : memref<32x576xf32, #tpu.memory_space<vmem>>, vector<32x64xf32>
    tpu.vector_store %arg17[%c0_85, %c320], %121 {strides = array<i32>} : memref<32x576xf32, #tpu.memory_space<vmem>>, vector<32x64xf32>,
    %c0_86 = arith.constant 0 : index
    %c192_87 = arith.constant 192 : index
    %c0_88 = arith.constant 0 : index
    %123 = vector.load %arg1[%c0_86, %c192_87, %c0_88] : memref<1x288x256xbf16, #tpu.memory_space<vmem>>, vector<1x32x256xbf16>
    %124 = vector.shape_cast %123 : vector<1x32x256xbf16> to vector<32x256xbf16>
    %c0_89 = arith.constant 0 : index
    %c0_90 = arith.constant 0 : index
    %125 = vector.load %arg2[%c0_89, %c0_90] : memref<256x288xbf16, #tpu.memory_space<vmem>>, vector<256x288xbf16>
    %cst_91 = arith.constant dense<0.000000e+00> : vector<32x288xf32>
    %126 = tpu.matmul %124, %125, %cst_91 {dimension_numbers = #tpu.dot_dimension_numbers<[1], [0], [0], [1], [0, 0, 1, 1], [], []>} : vector<32x256xbf16>, vector<256x288xbf16>, vector<32x288xf32> -> vector<32x288xf32>
    %127 = vector.broadcast %0 : vector<1x288xf32> to vector<32x288xf32>
    %128 = arith.mulf %126, %127 : vector<32x288xf32>
    %129 = vector.broadcast %1 : vector<1x288xf32> to vector<32x288xf32>
    %130 = arith.addf %128, %129 : vector<32x288xf32>
    %cst_92 = arith.constant 0.000000e+00 : f32
    %131 = vector.broadcast %cst_92 : f32 to vector<32x288xf32>
    %132 = arith.maximumf %130, %131 : vector<32x288xf32>
    %133 = arith.truncf %132 : vector<32x288xf32> to vector<32x288xbf16>
    %c0_93 = arith.constant 0 : index
    %c0_94 = arith.constant 0 : index
    %134 = vector.load %arg5[%c0_93, %c0_94] : memref<288x64xbf16, #tpu.memory_space<vmem>>, vector<288x64xbf16>
    %cst_95 = arith.constant dense<0.000000e+00> : vector<32x64xf32>
    %135 = tpu.matmul %133, %134, %cst_95 {dimension_numbers = #tpu.dot_dimension_numbers<[1], [0], [0], [1], [0, 0, 1, 1], [], []>} : vector<32x288xbf16>, vector<288x64xbf16>, vector<32x64xf32> -> vector<32x64xf32>
    %136 = vector.broadcast %2 : vector<1x64xf32> to vector<32x64xf32>
    %137 = arith.mulf %135, %136 : vector<32x64xf32>
    %c192_96 = arith.constant 192 : index
    %c0_97 = arith.constant 0 : index
    %138 = vector.load %arg7[%c192_96, %c0_97] : memref<288x64xf32, #tpu.memory_space<vmem>>, vector<32x64xf32>
    %139 = arith.addf %137, %138 : vector<32x64xf32>
    %cst_98 = arith.constant 0.000000e+00 : f32
    %140 = vector.broadcast %cst_98 : f32 to vector<32x64xf32>
    %141 = arith.maximumf %139, %140 : vector<32x64xf32>
    %c0_99 = arith.constant 0 : index
    %c384 = arith.constant 384 : index
    %142 = vector.load %arg17[%c0_99, %c384] : memref<32x576xf32, #tpu.memory_space<vmem>>, vector<32x64xf32>
    tpu.vector_store %arg17[%c0_99, %c384], %141 {strides = array<i32>} : memref<32x576xf32, #tpu.memory_space<vmem>>, vector<32x64xf32>,
    %c0_100 = arith.constant 0 : index
    %c224 = arith.constant 224 : index
    %c0_101 = arith.constant 0 : index
    %143 = vector.load %arg1[%c0_100, %c224, %c0_101] : memref<1x288x256xbf16, #tpu.memory_space<vmem>>, vector<1x32x256xbf16>
    %144 = vector.shape_cast %143 : vector<1x32x256xbf16> to vector<32x256xbf16>
    %c0_102 = arith.constant 0 : index
    %c0_103 = arith.constant 0 : index
    %145 = vector.load %arg2[%c0_102, %c0_103] : memref<256x288xbf16, #tpu.memory_space<vmem>>, vector<256x288xbf16>
    %cst_104 = arith.constant dense<0.000000e+00> : vector<32x288xf32>
    %146 = tpu.matmul %144, %145, %cst_104 {dimension_numbers = #tpu.dot_dimension_numbers<[1], [0], [0], [1], [0, 0, 1, 1], [], []>} : vector<32x256xbf16>, vector<256x288xbf16>, vector<32x288xf32> -> vector<32x288xf32>
    %147 = vector.broadcast %0 : vector<1x288xf32> to vector<32x288xf32>
    %148 = arith.mulf %146, %147 : vector<32x288xf32>
    %149 = vector.broadcast %1 : vector<1x288xf32> to vector<32x288xf32>
    %150 = arith.addf %148, %149 : vector<32x288xf32>
    %cst_105 = arith.constant 0.000000e+00 : f32
    %151 = vector.broadcast %cst_105 : f32 to vector<32x288xf32>
    %152 = arith.maximumf %150, %151 : vector<32x288xf32>
    %153 = arith.truncf %152 : vector<32x288xf32> to vector<32x288xbf16>
    %c0_106 = arith.constant 0 : index
    %c0_107 = arith.constant 0 : index
    %154 = vector.load %arg5[%c0_106, %c0_107] : memref<288x64xbf16, #tpu.memory_space<vmem>>, vector<288x64xbf16>
    %cst_108 = arith.constant dense<0.000000e+00> : vector<32x64xf32>
    %155 = tpu.matmul %153, %154, %cst_108 {dimension_numbers = #tpu.dot_dimension_numbers<[1], [0], [0], [1], [0, 0, 1, 1], [], []>} : vector<32x288xbf16>, vector<288x64xbf16>, vector<32x64xf32> -> vector<32x64xf32>
    %156 = vector.broadcast %2 : vector<1x64xf32> to vector<32x64xf32>
    %157 = arith.mulf %155, %156 : vector<32x64xf32>
    %c224_109 = arith.constant 224 : index
    %c0_110 = arith.constant 0 : index
    %158 = vector.load %arg7[%c224_109, %c0_110] : memref<288x64xf32, #tpu.memory_space<vmem>>, vector<32x64xf32>
    %159 = arith.addf %157, %158 : vector<32x64xf32>
    %cst_111 = arith.constant 0.000000e+00 : f32
    %160 = vector.broadcast %cst_111 : f32 to vector<32x64xf32>
    %161 = arith.maximumf %159, %160 : vector<32x64xf32>
    %c0_112 = arith.constant 0 : index
    %c448 = arith.constant 448 : index
    %162 = vector.load %arg17[%c0_112, %c448] : memref<32x576xf32, #tpu.memory_space<vmem>>, vector<32x64xf32>
    tpu.vector_store %arg17[%c0_112, %c448], %161 {strides = array<i32>} : memref<32x576xf32, #tpu.memory_space<vmem>>, vector<32x64xf32>,
    %c0_113 = arith.constant 0 : index
    %c256_114 = arith.constant 256 : index
    %c0_115 = arith.constant 0 : index
    %163 = vector.load %arg1[%c0_113, %c256_114, %c0_115] : memref<1x288x256xbf16, #tpu.memory_space<vmem>>, vector<1x32x256xbf16>
    %164 = vector.shape_cast %163 : vector<1x32x256xbf16> to vector<32x256xbf16>
    %c0_116 = arith.constant 0 : index
    %c0_117 = arith.constant 0 : index
    %165 = vector.load %arg2[%c0_116, %c0_117] : memref<256x288xbf16, #tpu.memory_space<vmem>>, vector<256x288xbf16>
    %cst_118 = arith.constant dense<0.000000e+00> : vector<32x288xf32>
    %166 = tpu.matmul %164, %165, %cst_118 {dimension_numbers = #tpu.dot_dimension_numbers<[1], [0], [0], [1], [0, 0, 1, 1], [], []>} : vector<32x256xbf16>, vector<256x288xbf16>, vector<32x288xf32> -> vector<32x288xf32>
    %167 = vector.broadcast %0 : vector<1x288xf32> to vector<32x288xf32>
    %168 = arith.mulf %166, %167 : vector<32x288xf32>
    %169 = vector.broadcast %1 : vector<1x288xf32> to vector<32x288xf32>
    %170 = arith.addf %168, %169 : vector<32x288xf32>
    %cst_119 = arith.constant 0.000000e+00 : f32
    %171 = vector.broadcast %cst_119 : f32 to vector<32x288xf32>
    %172 = arith.maximumf %170, %171 : vector<32x288xf32>
    %173 = arith.truncf %172 : vector<32x288xf32> to vector<32x288xbf16>
    %c0_120 = arith.constant 0 : index
    %c0_121 = arith.constant 0 : index
    %174 = vector.load %arg5[%c0_120, %c0_121] : memref<288x64xbf16, #tpu.memory_space<vmem>>, vector<288x64xbf16>
    %cst_122 = arith.constant dense<0.000000e+00> : vector<32x64xf32>
    %175 = tpu.matmul %173, %174, %cst_122 {dimension_numbers = #tpu.dot_dimension_numbers<[1], [0], [0], [1], [0, 0, 1, 1], [], []>} : vector<32x288xbf16>, vector<288x64xbf16>, vector<32x64xf32> -> vector<32x64xf32>
    %176 = vector.broadcast %2 : vector<1x64xf32> to vector<32x64xf32>
    %177 = arith.mulf %175, %176 : vector<32x64xf32>
    %c256_123 = arith.constant 256 : index
    %c0_124 = arith.constant 0 : index
    %178 = vector.load %arg7[%c256_123, %c0_124] : memref<288x64xf32, #tpu.memory_space<vmem>>, vector<32x64xf32>
    %179 = arith.addf %177, %178 : vector<32x64xf32>
    %cst_125 = arith.constant 0.000000e+00 : f32
    %180 = vector.broadcast %cst_125 : f32 to vector<32x64xf32>
    %181 = arith.maximumf %179, %180 : vector<32x64xf32>
    %c0_126 = arith.constant 0 : index
    %c512 = arith.constant 512 : index
    %182 = vector.load %arg17[%c0_126, %c512] : memref<32x576xf32, #tpu.memory_space<vmem>>, vector<32x64xf32>
    tpu.vector_store %arg17[%c0_126, %c512], %181 {strides = array<i32>} : memref<32x576xf32, #tpu.memory_space<vmem>>, vector<32x64xf32>,
    %c0_127 = arith.constant 0 : index
    %c0_128 = arith.constant 0 : index
    %183 = vector.load %arg17[%c0_127, %c0_128] : memref<32x576xf32, #tpu.memory_space<vmem>>, vector<32x576xf32>
    %184 = arith.truncf %183 : vector<32x576xf32> to vector<32x576xbf16>
    %c0_129 = arith.constant 0 : index
    %c0_130 = arith.constant 0 : index
    %185 = vector.load %arg8[%c0_129, %c0_130] : memref<576x64xbf16, #tpu.memory_space<vmem>>, vector<576x64xbf16>
    %cst_131 = arith.constant dense<0.000000e+00> : vector<32x64xf32>
    %186 = tpu.matmul %184, %185, %cst_131 {dimension_numbers = #tpu.dot_dimension_numbers<[1], [0], [0], [1], [0, 0, 1, 1], [], []>} : vector<32x576xbf16>, vector<576x64xbf16>, vector<32x64xf32> -> vector<32x64xf32>
    %c0_132 = arith.constant 0 : index
    %c0_133 = arith.constant 0 : index
    %187 = vector.load %arg9[%c0_132, %c0_133] : memref<1x64xf32, #tpu.memory_space<vmem>>, vector<1x64xf32>
    %188 = vector.broadcast %187 : vector<1x64xf32> to vector<32x64xf32>
    %189 = arith.mulf %186, %188 : vector<32x64xf32>
    %c0_134 = arith.constant 0 : index
    %c0_135 = arith.constant 0 : index
    %190 = vector.load %arg10[%c0_134, %c0_135] : memref<1x64xf32, #tpu.memory_space<vmem>>, vector<1x64xf32>
    %191 = vector.broadcast %190 : vector<1x64xf32> to vector<32x64xf32>
    %192 = arith.addf %189, %191 : vector<32x64xf32>
    %cst_136 = arith.constant 0.000000e+00 : f32
    %193 = vector.broadcast %cst_136 : f32 to vector<32x64xf32>
    %194 = arith.maximumf %192, %193 : vector<32x64xf32>
    %cst_137 = arith.constant 0.000000e+00 : f32
    %195 = vector.broadcast %cst_137 : f32 to vector<1x128xf32>
    %cst_138 = arith.constant 0.000000e+00 : f32
    %196 = vector.broadcast %cst_138 : f32 to vector<1x128xf32>
    %cst_139 = arith.constant 0.000000e+00 : f32
    %197 = vector.broadcast %cst_139 : f32 to vector<1x128xf32>
    %cst_140 = arith.constant 0.000000e+00 : f32
    %198 = vector.broadcast %cst_140 : f32 to vector<1x128xf32>
    %cst_141 = arith.constant 0.000000e+00 : f32
    %199 = vector.broadcast %cst_141 : f32 to vector<1x128xf32>
    %200 = vector.extract_strided_slice %194 {offsets = [0, 0], sizes = [1, 64], strides = [1, 1]} : vector<32x64xf32> to vector<1x64xf32>
    %201 = arith.truncf %200 : vector<1x64xf32> to vector<1x64xbf16>
    %c0_142 = arith.constant 0 : index
    %c0_143 = arith.constant 0 : index
    %c0_144 = arith.constant 0 : index
    %202 = vector.load %arg11[%c0_142, %c0_143, %c0_144] : memref<25x64x128xbf16, #tpu.memory_space<vmem>>, vector<1x64x128xbf16>
    %203 = vector.shape_cast %202 : vector<1x64x128xbf16> to vector<64x128xbf16>
    %cst_145 = arith.constant dense<0.000000e+00> : vector<1x128xf32>
    %204 = tpu.matmul %201, %203, %cst_145 {dimension_numbers = #tpu.dot_dimension_numbers<[1], [0], [0], [1], [0, 0, 1, 1], [], []>} : vector<1x64xbf16>, vector<64x128xbf16>, vector<1x128xf32> -> vector<1x128xf32>
    %205 = arith.addf %195, %204 : vector<1x128xf32>
    %206 = vector.extract_strided_slice %194 {offsets = [1, 0], sizes = [1, 64], strides = [1, 1]} : vector<32x64xf32> to vector<1x64xf32>
    %207 = arith.truncf %206 : vector<1x64xf32> to vector<1x64xbf16>
    %c1 = arith.constant 1 : index
    %c0_146 = arith.constant 0 : index
    %c0_147 = arith.constant 0 : index
    %208 = vector.load %arg11[%c1, %c0_146, %c0_147] : memref<25x64x128xbf16, #tpu.memory_space<vmem>>, vector<1x64x128xbf16>
    %209 = vector.shape_cast %208 : vector<1x64x128xbf16> to vector<64x128xbf16>
    %cst_148 = arith.constant dense<0.000000e+00> : vector<1x128xf32>
    %210 = tpu.matmul %207, %209, %cst_148 {dimension_numbers = #tpu.dot_dimension_numbers<[1], [0], [0], [1], [0, 0, 1, 1], [], []>} : vector<1x64xbf16>, vector<64x128xbf16>, vector<1x128xf32> -> vector<1x128xf32>
    %211 = arith.addf %196, %210 : vector<1x128xf32>
    %212 = vector.extract_strided_slice %194 {offsets = [2, 0], sizes = [1, 64], strides = [1, 1]} : vector<32x64xf32> to vector<1x64xf32>
    %213 = arith.truncf %212 : vector<1x64xf32> to vector<1x64xbf16>
    %c2 = arith.constant 2 : index
    %c0_149 = arith.constant 0 : index
    %c0_150 = arith.constant 0 : index
    %214 = vector.load %arg11[%c2, %c0_149, %c0_150] : memref<25x64x128xbf16, #tpu.memory_space<vmem>>, vector<1x64x128xbf16>
    %215 = vector.shape_cast %214 : vector<1x64x128xbf16> to vector<64x128xbf16>
    %cst_151 = arith.constant dense<0.000000e+00> : vector<1x128xf32>
    %216 = tpu.matmul %213, %215, %cst_151 {dimension_numbers = #tpu.dot_dimension_numbers<[1], [0], [0], [1], [0, 0, 1, 1], [], []>} : vector<1x64xbf16>, vector<64x128xbf16>, vector<1x128xf32> -> vector<1x128xf32>
    %217 = arith.addf %197, %216 : vector<1x128xf32>
    %218 = vector.extract_strided_slice %194 {offsets = [3, 0], sizes = [1, 64], strides = [1, 1]} : vector<32x64xf32> to vector<1x64xf32>
    %219 = arith.truncf %218 : vector<1x64xf32> to vector<1x64xbf16>
    %c3 = arith.constant 3 : index
    %c0_152 = arith.constant 0 : index
    %c0_153 = arith.constant 0 : index
    %220 = vector.load %arg11[%c3, %c0_152, %c0_153] : memref<25x64x128xbf16, #tpu.memory_space<vmem>>, vector<1x64x128xbf16>
    %221 = vector.shape_cast %220 : vector<1x64x128xbf16> to vector<64x128xbf16>
    %cst_154 = arith.constant dense<0.000000e+00> : vector<1x128xf32>
    %222 = tpu.matmul %219, %221, %cst_154 {dimension_numbers = #tpu.dot_dimension_numbers<[1], [0], [0], [1], [0, 0, 1, 1], [], []>} : vector<1x64xbf16>, vector<64x128xbf16>, vector<1x128xf32> -> vector<1x128xf32>
    %223 = arith.addf %198, %222 : vector<1x128xf32>
    %224 = vector.extract_strided_slice %194 {offsets = [4, 0], sizes = [1, 64], strides = [1, 1]} : vector<32x64xf32> to vector<1x64xf32>
    %225 = arith.truncf %224 : vector<1x64xf32> to vector<1x64xbf16>
    %c4 = arith.constant 4 : index
    %c0_155 = arith.constant 0 : index
    %c0_156 = arith.constant 0 : index
    %226 = vector.load %arg11[%c4, %c0_155, %c0_156] : memref<25x64x128xbf16, #tpu.memory_space<vmem>>, vector<1x64x128xbf16>
    %227 = vector.shape_cast %226 : vector<1x64x128xbf16> to vector<64x128xbf16>
    %cst_157 = arith.constant dense<0.000000e+00> : vector<1x128xf32>
    %228 = tpu.matmul %225, %227, %cst_157 {dimension_numbers = #tpu.dot_dimension_numbers<[1], [0], [0], [1], [0, 0, 1, 1], [], []>} : vector<1x64xbf16>, vector<64x128xbf16>, vector<1x128xf32> -> vector<1x128xf32>
    %229 = arith.addf %199, %228 : vector<1x128xf32>
    %230 = vector.extract_strided_slice %194 {offsets = [5, 0], sizes = [1, 64], strides = [1, 1]} : vector<32x64xf32> to vector<1x64xf32>
    %231 = arith.truncf %230 : vector<1x64xf32> to vector<1x64xbf16>
    %c5 = arith.constant 5 : index
    %c0_158 = arith.constant 0 : index
    %c0_159 = arith.constant 0 : index
    %232 = vector.load %arg11[%c5, %c0_158, %c0_159] : memref<25x64x128xbf16, #tpu.memory_space<vmem>>, vector<1x64x128xbf16>
    %233 = vector.shape_cast %232 : vector<1x64x128xbf16> to vector<64x128xbf16>
    %cst_160 = arith.constant dense<0.000000e+00> : vector<1x128xf32>
    %234 = tpu.matmul %231, %233, %cst_160 {dimension_numbers = #tpu.dot_dimension_numbers<[1], [0], [0], [1], [0, 0, 1, 1], [], []>} : vector<1x64xbf16>, vector<64x128xbf16>, vector<1x128xf32> -> vector<1x128xf32>
    %235 = arith.addf %205, %234 : vector<1x128xf32>
    %236 = vector.extract_strided_slice %194 {offsets = [6, 0], sizes = [1, 64], strides = [1, 1]} : vector<32x64xf32> to vector<1x64xf32>
    %237 = arith.truncf %236 : vector<1x64xf32> to vector<1x64xbf16>
    %c6 = arith.constant 6 : index
    %c0_161 = arith.constant 0 : index
    %c0_162 = arith.constant 0 : index
    %238 = vector.load %arg11[%c6, %c0_161, %c0_162] : memref<25x64x128xbf16, #tpu.memory_space<vmem>>, vector<1x64x128xbf16>
    %239 = vector.shape_cast %238 : vector<1x64x128xbf16> to vector<64x128xbf16>
    %cst_163 = arith.constant dense<0.000000e+00> : vector<1x128xf32>
    %240 = tpu.matmul %237, %239, %cst_163 {dimension_numbers = #tpu.dot_dimension_numbers<[1], [0], [0], [1], [0, 0, 1, 1], [], []>} : vector<1x64xbf16>, vector<64x128xbf16>, vector<1x128xf32> -> vector<1x128xf32>
    %241 = arith.addf %211, %240 : vector<1x128xf32>
    %242 = vector.extract_strided_slice %194 {offsets = [7, 0], sizes = [1, 64], strides = [1, 1]} : vector<32x64xf32> to vector<1x64xf32>
    %243 = arith.truncf %242 : vector<1x64xf32> to vector<1x64xbf16>
    %c7 = arith.constant 7 : index
    %c0_164 = arith.constant 0 : index
    %c0_165 = arith.constant 0 : index
    %244 = vector.load %arg11[%c7, %c0_164, %c0_165] : memref<25x64x128xbf16, #tpu.memory_space<vmem>>, vector<1x64x128xbf16>
    %245 = vector.shape_cast %244 : vector<1x64x128xbf16> to vector<64x128xbf16>
    %cst_166 = arith.constant dense<0.000000e+00> : vector<1x128xf32>
    %246 = tpu.matmul %243, %245, %cst_166 {dimension_numbers = #tpu.dot_dimension_numbers<[1], [0], [0], [1], [0, 0, 1, 1], [], []>} : vector<1x64xbf16>, vector<64x128xbf16>, vector<1x128xf32> -> vector<1x128xf32>
    %247 = arith.addf %217, %246 : vector<1x128xf32>
    %248 = vector.extract_strided_slice %194 {offsets = [8, 0], sizes = [1, 64], strides = [1, 1]} : vector<32x64xf32> to vector<1x64xf32>
    %249 = arith.truncf %248 : vector<1x64xf32> to vector<1x64xbf16>
    %c8 = arith.constant 8 : index
    %c0_167 = arith.constant 0 : index
    %c0_168 = arith.constant 0 : index
    %250 = vector.load %arg11[%c8, %c0_167, %c0_168] : memref<25x64x128xbf16, #tpu.memory_space<vmem>>, vector<1x64x128xbf16>
    %251 = vector.shape_cast %250 : vector<1x64x128xbf16> to vector<64x128xbf16>
    %cst_169 = arith.constant dense<0.000000e+00> : vector<1x128xf32>
    %252 = tpu.matmul %249, %251, %cst_169 {dimension_numbers = #tpu.dot_dimension_numbers<[1], [0], [0], [1], [0, 0, 1, 1], [], []>} : vector<1x64xbf16>, vector<64x128xbf16>, vector<1x128xf32> -> vector<1x128xf32>
    %253 = arith.addf %223, %252 : vector<1x128xf32>
    %254 = vector.extract_strided_slice %194 {offsets = [9, 0], sizes = [1, 64], strides = [1, 1]} : vector<32x64xf32> to vector<1x64xf32>
    %255 = arith.truncf %254 : vector<1x64xf32> to vector<1x64xbf16>
    %c9 = arith.constant 9 : index
    %c0_170 = arith.constant 0 : index
    %c0_171 = arith.constant 0 : index
    %256 = vector.load %arg11[%c9, %c0_170, %c0_171] : memref<25x64x128xbf16, #tpu.memory_space<vmem>>, vector<1x64x128xbf16>
    %257 = vector.shape_cast %256 : vector<1x64x128xbf16> to vector<64x128xbf16>
    %cst_172 = arith.constant dense<0.000000e+00> : vector<1x128xf32>
    %258 = tpu.matmul %255, %257, %cst_172 {dimension_numbers = #tpu.dot_dimension_numbers<[1], [0], [0], [1], [0, 0, 1, 1], [], []>} : vector<1x64xbf16>, vector<64x128xbf16>, vector<1x128xf32> -> vector<1x128xf32>
    %259 = arith.addf %229, %258 : vector<1x128xf32>
    %260 = vector.extract_strided_slice %194 {offsets = [10, 0], sizes = [1, 64], strides = [1, 1]} : vector<32x64xf32> to vector<1x64xf32>
    %261 = arith.truncf %260 : vector<1x64xf32> to vector<1x64xbf16>
    %c10 = arith.constant 10 : index
    %c0_173 = arith.constant 0 : index
    %c0_174 = arith.constant 0 : index
    %262 = vector.load %arg11[%c10, %c0_173, %c0_174] : memref<25x64x128xbf16, #tpu.memory_space<vmem>>, vector<1x64x128xbf16>
    %263 = vector.shape_cast %262 : vector<1x64x128xbf16> to vector<64x128xbf16>
    %cst_175 = arith.constant dense<0.000000e+00> : vector<1x128xf32>
    %264 = tpu.matmul %261, %263, %cst_175 {dimension_numbers = #tpu.dot_dimension_numbers<[1], [0], [0], [1], [0, 0, 1, 1], [], []>} : vector<1x64xbf16>, vector<64x128xbf16>, vector<1x128xf32> -> vector<1x128xf32>
    %265 = arith.addf %235, %264 : vector<1x128xf32>
    %266 = vector.extract_strided_slice %194 {offsets = [11, 0], sizes = [1, 64], strides = [1, 1]} : vector<32x64xf32> to vector<1x64xf32>
    %267 = arith.truncf %266 : vector<1x64xf32> to vector<1x64xbf16>
    %c11 = arith.constant 11 : index
    %c0_176 = arith.constant 0 : index
    %c0_177 = arith.constant 0 : index
    %268 = vector.load %arg11[%c11, %c0_176, %c0_177] : memref<25x64x128xbf16, #tpu.memory_space<vmem>>, vector<1x64x128xbf16>
    %269 = vector.shape_cast %268 : vector<1x64x128xbf16> to vector<64x128xbf16>
    %cst_178 = arith.constant dense<0.000000e+00> : vector<1x128xf32>
    %270 = tpu.matmul %267, %269, %cst_178 {dimension_numbers = #tpu.dot_dimension_numbers<[1], [0], [0], [1], [0, 0, 1, 1], [], []>} : vector<1x64xbf16>, vector<64x128xbf16>, vector<1x128xf32> -> vector<1x128xf32>
    %271 = arith.addf %241, %270 : vector<1x128xf32>
    %272 = vector.extract_strided_slice %194 {offsets = [12, 0], sizes = [1, 64], strides = [1, 1]} : vector<32x64xf32> to vector<1x64xf32>
    %273 = arith.truncf %272 : vector<1x64xf32> to vector<1x64xbf16>
    %c12 = arith.constant 12 : index
    %c0_179 = arith.constant 0 : index
    %c0_180 = arith.constant 0 : index
    %274 = vector.load %arg11[%c12, %c0_179, %c0_180] : memref<25x64x128xbf16, #tpu.memory_space<vmem>>, vector<1x64x128xbf16>
    %275 = vector.shape_cast %274 : vector<1x64x128xbf16> to vector<64x128xbf16>
    %cst_181 = arith.constant dense<0.000000e+00> : vector<1x128xf32>
    %276 = tpu.matmul %273, %275, %cst_181 {dimension_numbers = #tpu.dot_dimension_numbers<[1], [0], [0], [1], [0, 0, 1, 1], [], []>} : vector<1x64xbf16>, vector<64x128xbf16>, vector<1x128xf32> -> vector<1x128xf32>
    %277 = arith.addf %247, %276 : vector<1x128xf32>
    %278 = vector.extract_strided_slice %194 {offsets = [13, 0], sizes = [1, 64], strides = [1, 1]} : vector<32x64xf32> to vector<1x64xf32>
    %279 = arith.truncf %278 : vector<1x64xf32> to vector<1x64xbf16>
    %c13 = arith.constant 13 : index
    %c0_182 = arith.constant 0 : index
    %c0_183 = arith.constant 0 : index
    %280 = vector.load %arg11[%c13, %c0_182, %c0_183] : memref<25x64x128xbf16, #tpu.memory_space<vmem>>, vector<1x64x128xbf16>
    %281 = vector.shape_cast %280 : vector<1x64x128xbf16> to vector<64x128xbf16>
    %cst_184 = arith.constant dense<0.000000e+00> : vector<1x128xf32>
    %282 = tpu.matmul %279, %281, %cst_184 {dimension_numbers = #tpu.dot_dimension_numbers<[1], [0], [0], [1], [0, 0, 1, 1], [], []>} : vector<1x64xbf16>, vector<64x128xbf16>, vector<1x128xf32> -> vector<1x128xf32>
    %283 = arith.addf %253, %282 : vector<1x128xf32>
    %284 = vector.extract_strided_slice %194 {offsets = [14, 0], sizes = [1, 64], strides = [1, 1]} : vector<32x64xf32> to vector<1x64xf32>
    %285 = arith.truncf %284 : vector<1x64xf32> to vector<1x64xbf16>
    %c14 = arith.constant 14 : index
    %c0_185 = arith.constant 0 : index
    %c0_186 = arith.constant 0 : index
    %286 = vector.load %arg11[%c14, %c0_185, %c0_186] : memref<25x64x128xbf16, #tpu.memory_space<vmem>>, vector<1x64x128xbf16>
    %287 = vector.shape_cast %286 : vector<1x64x128xbf16> to vector<64x128xbf16>
    %cst_187 = arith.constant dense<0.000000e+00> : vector<1x128xf32>
    %288 = tpu.matmul %285, %287, %cst_187 {dimension_numbers = #tpu.dot_dimension_numbers<[1], [0], [0], [1], [0, 0, 1, 1], [], []>} : vector<1x64xbf16>, vector<64x128xbf16>, vector<1x128xf32> -> vector<1x128xf32>
    %289 = arith.addf %259, %288 : vector<1x128xf32>
    %290 = vector.extract_strided_slice %194 {offsets = [15, 0], sizes = [1, 64], strides = [1, 1]} : vector<32x64xf32> to vector<1x64xf32>
    %291 = arith.truncf %290 : vector<1x64xf32> to vector<1x64xbf16>
    %c15 = arith.constant 15 : index
    %c0_188 = arith.constant 0 : index
    %c0_189 = arith.constant 0 : index
    %292 = vector.load %arg11[%c15, %c0_188, %c0_189] : memref<25x64x128xbf16, #tpu.memory_space<vmem>>, vector<1x64x128xbf16>
    %293 = vector.shape_cast %292 : vector<1x64x128xbf16> to vector<64x128xbf16>
    %cst_190 = arith.constant dense<0.000000e+00> : vector<1x128xf32>
    %294 = tpu.matmul %291, %293, %cst_190 {dimension_numbers = #tpu.dot_dimension_numbers<[1], [0], [0], [1], [0, 0, 1, 1], [], []>} : vector<1x64xbf16>, vector<64x128xbf16>, vector<1x128xf32> -> vector<1x128xf32>
    %295 = arith.addf %265, %294 : vector<1x128xf32>
    %296 = vector.extract_strided_slice %194 {offsets = [16, 0], sizes = [1, 64], strides = [1, 1]} : vector<32x64xf32> to vector<1x64xf32>
    %297 = arith.truncf %296 : vector<1x64xf32> to vector<1x64xbf16>
    %c16 = arith.constant 16 : index
    %c0_191 = arith.constant 0 : index
    %c0_192 = arith.constant 0 : index
    %298 = vector.load %arg11[%c16, %c0_191, %c0_192] : memref<25x64x128xbf16, #tpu.memory_space<vmem>>, vector<1x64x128xbf16>
    %299 = vector.shape_cast %298 : vector<1x64x128xbf16> to vector<64x128xbf16>
    %cst_193 = arith.constant dense<0.000000e+00> : vector<1x128xf32>
    %300 = tpu.matmul %297, %299, %cst_193 {dimension_numbers = #tpu.dot_dimension_numbers<[1], [0], [0], [1], [0, 0, 1, 1], [], []>} : vector<1x64xbf16>, vector<64x128xbf16>, vector<1x128xf32> -> vector<1x128xf32>
    %301 = arith.addf %271, %300 : vector<1x128xf32>
    %302 = vector.extract_strided_slice %194 {offsets = [17, 0], sizes = [1, 64], strides = [1, 1]} : vector<32x64xf32> to vector<1x64xf32>
    %303 = arith.truncf %302 : vector<1x64xf32> to vector<1x64xbf16>
    %c17 = arith.constant 17 : index
    %c0_194 = arith.constant 0 : index
    %c0_195 = arith.constant 0 : index
    %304 = vector.load %arg11[%c17, %c0_194, %c0_195] : memref<25x64x128xbf16, #tpu.memory_space<vmem>>, vector<1x64x128xbf16>
    %305 = vector.shape_cast %304 : vector<1x64x128xbf16> to vector<64x128xbf16>
    %cst_196 = arith.constant dense<0.000000e+00> : vector<1x128xf32>
    %306 = tpu.matmul %303, %305, %cst_196 {dimension_numbers = #tpu.dot_dimension_numbers<[1], [0], [0], [1], [0, 0, 1, 1], [], []>} : vector<1x64xbf16>, vector<64x128xbf16>, vector<1x128xf32> -> vector<1x128xf32>
    %307 = arith.addf %277, %306 : vector<1x128xf32>
    %308 = vector.extract_strided_slice %194 {offsets = [18, 0], sizes = [1, 64], strides = [1, 1]} : vector<32x64xf32> to vector<1x64xf32>
    %309 = arith.truncf %308 : vector<1x64xf32> to vector<1x64xbf16>
    %c18 = arith.constant 18 : index
    %c0_197 = arith.constant 0 : index
    %c0_198 = arith.constant 0 : index
    %310 = vector.load %arg11[%c18, %c0_197, %c0_198] : memref<25x64x128xbf16, #tpu.memory_space<vmem>>, vector<1x64x128xbf16>
    %311 = vector.shape_cast %310 : vector<1x64x128xbf16> to vector<64x128xbf16>
    %cst_199 = arith.constant dense<0.000000e+00> : vector<1x128xf32>
    %312 = tpu.matmul %309, %311, %cst_199 {dimension_numbers = #tpu.dot_dimension_numbers<[1], [0], [0], [1], [0, 0, 1, 1], [], []>} : vector<1x64xbf16>, vector<64x128xbf16>, vector<1x128xf32> -> vector<1x128xf32>
    %313 = arith.addf %283, %312 : vector<1x128xf32>
    %314 = vector.extract_strided_slice %194 {offsets = [19, 0], sizes = [1, 64], strides = [1, 1]} : vector<32x64xf32> to vector<1x64xf32>
    %315 = arith.truncf %314 : vector<1x64xf32> to vector<1x64xbf16>
    %c19 = arith.constant 19 : index
    %c0_200 = arith.constant 0 : index
    %c0_201 = arith.constant 0 : index
    %316 = vector.load %arg11[%c19, %c0_200, %c0_201] : memref<25x64x128xbf16, #tpu.memory_space<vmem>>, vector<1x64x128xbf16>
    %317 = vector.shape_cast %316 : vector<1x64x128xbf16> to vector<64x128xbf16>
    %cst_202 = arith.constant dense<0.000000e+00> : vector<1x128xf32>
    %318 = tpu.matmul %315, %317, %cst_202 {dimension_numbers = #tpu.dot_dimension_numbers<[1], [0], [0], [1], [0, 0, 1, 1], [], []>} : vector<1x64xbf16>, vector<64x128xbf16>, vector<1x128xf32> -> vector<1x128xf32>
    %319 = arith.addf %289, %318 : vector<1x128xf32>
    %320 = vector.extract_strided_slice %194 {offsets = [20, 0], sizes = [1, 64], strides = [1, 1]} : vector<32x64xf32> to vector<1x64xf32>
    %321 = arith.truncf %320 : vector<1x64xf32> to vector<1x64xbf16>
    %c20 = arith.constant 20 : index
    %c0_203 = arith.constant 0 : index
    %c0_204 = arith.constant 0 : index
    %322 = vector.load %arg11[%c20, %c0_203, %c0_204] : memref<25x64x128xbf16, #tpu.memory_space<vmem>>, vector<1x64x128xbf16>
    %323 = vector.shape_cast %322 : vector<1x64x128xbf16> to vector<64x128xbf16>
    %cst_205 = arith.constant dense<0.000000e+00> : vector<1x128xf32>
    %324 = tpu.matmul %321, %323, %cst_205 {dimension_numbers = #tpu.dot_dimension_numbers<[1], [0], [0], [1], [0, 0, 1, 1], [], []>} : vector<1x64xbf16>, vector<64x128xbf16>, vector<1x128xf32> -> vector<1x128xf32>
    %325 = arith.addf %295, %324 : vector<1x128xf32>
    %326 = vector.extract_strided_slice %194 {offsets = [21, 0], sizes = [1, 64], strides = [1, 1]} : vector<32x64xf32> to vector<1x64xf32>
    %327 = arith.truncf %326 : vector<1x64xf32> to vector<1x64xbf16>
    %c21 = arith.constant 21 : index
    %c0_206 = arith.constant 0 : index
    %c0_207 = arith.constant 0 : index
    %328 = vector.load %arg11[%c21, %c0_206, %c0_207] : memref<25x64x128xbf16, #tpu.memory_space<vmem>>, vector<1x64x128xbf16>
    %329 = vector.shape_cast %328 : vector<1x64x128xbf16> to vector<64x128xbf16>
    %cst_208 = arith.constant dense<0.000000e+00> : vector<1x128xf32>
    %330 = tpu.matmul %327, %329, %cst_208 {dimension_numbers = #tpu.dot_dimension_numbers<[1], [0], [0], [1], [0, 0, 1, 1], [], []>} : vector<1x64xbf16>, vector<64x128xbf16>, vector<1x128xf32> -> vector<1x128xf32>
    %331 = arith.addf %301, %330 : vector<1x128xf32>
    %332 = vector.extract_strided_slice %194 {offsets = [22, 0], sizes = [1, 64], strides = [1, 1]} : vector<32x64xf32> to vector<1x64xf32>
    %333 = arith.truncf %332 : vector<1x64xf32> to vector<1x64xbf16>
    %c22 = arith.constant 22 : index
    %c0_209 = arith.constant 0 : index
    %c0_210 = arith.constant 0 : index
    %334 = vector.load %arg11[%c22, %c0_209, %c0_210] : memref<25x64x128xbf16, #tpu.memory_space<vmem>>, vector<1x64x128xbf16>
    %335 = vector.shape_cast %334 : vector<1x64x128xbf16> to vector<64x128xbf16>
    %cst_211 = arith.constant dense<0.000000e+00> : vector<1x128xf32>
    %336 = tpu.matmul %333, %335, %cst_211 {dimension_numbers = #tpu.dot_dimension_numbers<[1], [0], [0], [1], [0, 0, 1, 1], [], []>} : vector<1x64xbf16>, vector<64x128xbf16>, vector<1x128xf32> -> vector<1x128xf32>
    %337 = arith.addf %307, %336 : vector<1x128xf32>
    %338 = vector.extract_strided_slice %194 {offsets = [23, 0], sizes = [1, 64], strides = [1, 1]} : vector<32x64xf32> to vector<1x64xf32>
    %339 = arith.truncf %338 : vector<1x64xf32> to vector<1x64xbf16>
    %c23 = arith.constant 23 : index
    %c0_212 = arith.constant 0 : index
    %c0_213 = arith.constant 0 : index
    %340 = vector.load %arg11[%c23, %c0_212, %c0_213] : memref<25x64x128xbf16, #tpu.memory_space<vmem>>, vector<1x64x128xbf16>
    %341 = vector.shape_cast %340 : vector<1x64x128xbf16> to vector<64x128xbf16>
    %cst_214 = arith.constant dense<0.000000e+00> : vector<1x128xf32>
    %342 = tpu.matmul %339, %341, %cst_214 {dimension_numbers = #tpu.dot_dimension_numbers<[1], [0], [0], [1], [0, 0, 1, 1], [], []>} : vector<1x64xbf16>, vector<64x128xbf16>, vector<1x128xf32> -> vector<1x128xf32>
    %343 = arith.addf %313, %342 : vector<1x128xf32>
    %344 = vector.extract_strided_slice %194 {offsets = [24, 0], sizes = [1, 64], strides = [1, 1]} : vector<32x64xf32> to vector<1x64xf32>
    %345 = arith.truncf %344 : vector<1x64xf32> to vector<1x64xbf16>
    %c24 = arith.constant 24 : index
    %c0_215 = arith.constant 0 : index
    %c0_216 = arith.constant 0 : index
    %346 = vector.load %arg11[%c24, %c0_215, %c0_216] : memref<25x64x128xbf16, #tpu.memory_space<vmem>>, vector<1x64x128xbf16>
    %347 = vector.shape_cast %346 : vector<1x64x128xbf16> to vector<64x128xbf16>
    %cst_217 = arith.constant dense<0.000000e+00> : vector<1x128xf32>
    %348 = tpu.matmul %345, %347, %cst_217 {dimension_numbers = #tpu.dot_dimension_numbers<[1], [0], [0], [1], [0, 0, 1, 1], [], []>} : vector<1x64xbf16>, vector<64x128xbf16>, vector<1x128xf32> -> vector<1x128xf32>
    %349 = arith.addf %319, %348 : vector<1x128xf32>
    %350 = arith.addf %325, %331 : vector<1x128xf32>
    %351 = arith.addf %350, %337 : vector<1x128xf32>
    %352 = arith.addf %351, %343 : vector<1x128xf32>
    %353 = arith.addf %352, %349 : vector<1x128xf32>
    %c0_218 = arith.constant 0 : index
    %c0_219 = arith.constant 0 : index
    %354 = vector.load %arg12[%c0_218, %c0_219] : memref<1x128xf32, #tpu.memory_space<vmem>>, vector<1x128xf32>
    %355 = arith.mulf %353, %354 : vector<1x128xf32>
    %c0_220 = arith.constant 0 : index
    %c0_221 = arith.constant 0 : index
    %356 = vector.load %arg13[%c0_220, %c0_221] : memref<1x128xf32, #tpu.memory_space<vmem>>, vector<1x128xf32>
    %357 = arith.addf %355, %356 : vector<1x128xf32>
    %cst_222 = arith.constant 0.000000e+00 : f32
    %358 = vector.broadcast %cst_222 : f32 to vector<1x128xf32>
    %359 = arith.maximumf %357, %358 : vector<1x128xf32>
    %360 = arith.truncf %359 : vector<1x128xf32> to vector<1x128xbf16>
    %c0_223 = arith.constant 0 : index
    %c0_224 = arith.constant 0 : index
    %361 = vector.load %arg14[%c0_223, %c0_224] : memref<128x128xbf16, #tpu.memory_space<vmem>>, vector<128x128xbf16>
    %cst_225 = arith.constant dense<0.000000e+00> : vector<1x128xf32>
    %362 = tpu.matmul %360, %361, %cst_225 {dimension_numbers = #tpu.dot_dimension_numbers<[1], [0], [0], [1], [0, 0, 1, 1], [], []>} : vector<1x128xbf16>, vector<128x128xbf16>, vector<1x128xf32> -> vector<1x128xf32>
    %c0_226 = arith.constant 0 : index
    %c0_227 = arith.constant 0 : index
    %363 = vector.load %arg15[%c0_226, %c0_227] : memref<1x128xf32, #tpu.memory_space<vmem>>, vector<1x128xf32>
    %364 = arith.addf %362, %363 : vector<1x128xf32>
    %c0_228 = arith.constant 0 : index
    %c0_229 = arith.constant 0 : index
    %c0_230 = arith.constant 0 : index
    %365 = vector.load %arg16[%c0_228, %c0_229, %c0_230] : memref<1x1x128xf32, #tpu.memory_space<vmem>>, vector<1x1x128xf32>
    %366 = vector.shape_cast %365 : vector<1x1x128xf32> to vector<1x128xf32>
    %367 = vector.shape_cast %364 : vector<1x128xf32> to vector<1x1x128xf32>
    tpu.vector_store %arg16[%c0_228, %c0_229, %c0_230], %367 {strides = array<i32>} : memref<1x1x128xf32, #tpu.memory_space<vmem>>, vector<1x1x128xf32>,
    return
  }
  func.func @transform_0(%arg0: i32) -> (i32, i32, i32) {
    %c0_i32 = arith.constant 0 : i32
    %c0_i32_0 = arith.constant 0 : i32
    %c0_i32_1 = arith.constant 0 : i32
    return %arg0, %c0_i32, %c0_i32_0 : i32, i32, i32
  }
  func.func @transform_1(%arg0: i32) -> (i32, i32) {
    %c0_i32 = arith.constant 0 : i32
    %c0_i32_0 = arith.constant 0 : i32
    %c0_i32_1 = arith.constant 0 : i32
    return %c0_i32, %c0_i32_0 : i32, i32
  }
  func.func @transform_2(%arg0: i32) -> (i32, i32) {
    %c0_i32 = arith.constant 0 : i32
    %c0_i32_0 = arith.constant 0 : i32
    %c0_i32_1 = arith.constant 0 : i32
    return %c0_i32, %c0_i32_0 : i32, i32
  }
  func.func @transform_3(%arg0: i32) -> (i32, i32) {
    %c0_i32 = arith.constant 0 : i32
    %c0_i32_0 = arith.constant 0 : i32
    %c0_i32_1 = arith.constant 0 : i32
    return %c0_i32, %c0_i32_0 : i32, i32
  }
  func.func @transform_4(%arg0: i32) -> (i32, i32) {
    %c0_i32 = arith.constant 0 : i32
    %c0_i32_0 = arith.constant 0 : i32
    %c0_i32_1 = arith.constant 0 : i32
    return %c0_i32, %c0_i32_0 : i32, i32
  }
  func.func @transform_5(%arg0: i32) -> (i32, i32) {
    %c0_i32 = arith.constant 0 : i32
    %c0_i32_0 = arith.constant 0 : i32
    %c0_i32_1 = arith.constant 0 : i32
    return %c0_i32, %c0_i32_0 : i32, i32
  }
  func.func @transform_6(%arg0: i32) -> (i32, i32) {
    %c0_i32 = arith.constant 0 : i32
    %c0_i32_0 = arith.constant 0 : i32
    %c0_i32_1 = arith.constant 0 : i32
    return %c0_i32, %c0_i32_0 : i32, i32
  }
  func.func @transform_7(%arg0: i32) -> (i32, i32) {
    %c0_i32 = arith.constant 0 : i32
    %c0_i32_0 = arith.constant 0 : i32
    %c0_i32_1 = arith.constant 0 : i32
    return %c0_i32, %c0_i32_0 : i32, i32
  }
  func.func @transform_8(%arg0: i32) -> (i32, i32) {
    %c0_i32 = arith.constant 0 : i32
    %c0_i32_0 = arith.constant 0 : i32
    %c0_i32_1 = arith.constant 0 : i32
    return %c0_i32, %c0_i32_0 : i32, i32
  }
  func.func @transform_9(%arg0: i32) -> (i32, i32) {
    %c0_i32 = arith.constant 0 : i32
    %c0_i32_0 = arith.constant 0 : i32
    %c0_i32_1 = arith.constant 0 : i32
    return %c0_i32, %c0_i32_0 : i32, i32
  }
  func.func @transform_10(%arg0: i32) -> (i32, i32, i32) {
    %c0_i32 = arith.constant 0 : i32
    %c0_i32_0 = arith.constant 0 : i32
    %c0_i32_1 = arith.constant 0 : i32
    %c0_i32_2 = arith.constant 0 : i32
    return %c0_i32, %c0_i32_0, %c0_i32_1 : i32, i32, i32
  }
  func.func @transform_11(%arg0: i32) -> (i32, i32) {
    %c0_i32 = arith.constant 0 : i32
    %c0_i32_0 = arith.constant 0 : i32
    %c0_i32_1 = arith.constant 0 : i32
    return %c0_i32, %c0_i32_0 : i32, i32
  }
  func.func @transform_12(%arg0: i32) -> (i32, i32) {
    %c0_i32 = arith.constant 0 : i32
    %c0_i32_0 = arith.constant 0 : i32
    %c0_i32_1 = arith.constant 0 : i32
    return %c0_i32, %c0_i32_0 : i32, i32
  }
  func.func @transform_13(%arg0: i32) -> (i32, i32) {
    %c0_i32 = arith.constant 0 : i32
    %c0_i32_0 = arith.constant 0 : i32
    %c0_i32_1 = arith.constant 0 : i32
    return %c0_i32, %c0_i32_0 : i32, i32
  }
  func.func @transform_14(%arg0: i32) -> (i32, i32) {
    %c0_i32 = arith.constant 0 : i32
    %c0_i32_0 = arith.constant 0 : i32
    %c0_i32_1 = arith.constant 0 : i32
    return %c0_i32, %c0_i32_0 : i32, i32
  }
  func.func @transform_15(%arg0: i32) -> (i32, i32, i32) {
    %c0_i32 = arith.constant 0 : i32
    %c0_i32_0 = arith.constant 0 : i32
    %c0_i32_1 = arith.constant 0 : i32
    return %arg0, %c0_i32, %c0_i32_0 : i32, i32, i32
  }
}

</mosaic_0001>

<llo_original>
// kernel: tile.13
$region0: #{tile.13}
  #allocation0 [shape = 's32[1]{0}', space=sflag, size = 0x4, scoped, tag = 'scoped memory for tile.13']
  %s0 = inlined_call_operand.vmem [shape: f32[32], index: 0, kind: input, shape index: {}]
  %s1 = inlined_call_operand.vmem [shape: f32[9,32], index: 1, kind: output, shape index: {}]
  // Predicated region
  $region2: #{tile.13} parent=0 // pred_check
    _
  $region3: #{tile.13} parent=0 // pred_check_branch
    %3 = sbr.rel (0) target = $region5
  $region4: #{tile.13} parent=0 // pred_region
    _
  $region5: #{tile.13} parent=0 // pred_fallthru
    _
  %v4 = vld [vmem:[%s0] ss:$0 sm:$0xff]
  %5 = vst [vmem:[%s1] sm:$0xff] %v4
  %s6 = scalar_lea.vmem %s1, 8
  %7 = vst [vmem:[%s6] sm:$0xff] %v4

// kernel: tile.14
$region0: #{tile.14}
  %s0 = inlined_call_operand.vmem [shape: f32[9,32], index: 0, kind: input, shape index: {}]
  %s1 = inlined_call_operand.vmem [shape: f32[1,288], index: 1, kind: output, shape index: {}]
  $region1: #{tile.14} parent=0
    #allocation0 [shape = 'u8[12288]{0}', space=vmem, size = 0x3000, scoped, tag = 'scoped mem for output reshape']
    %v2 = vld [vmem:[%s0] ss:$4 sm:$0x7]
    %vm3 = vcmask 261120
    %4 = vst.msk [vmem:[#allocation0] ss:$8 sm:$0x7] %vm3, %v2
    %s5 = scalar_lea.vmem %s0, 3
    %s6 = smov 3
    %v7 = vld [vmem:[%s5] ss:$4 sm:%s6]
    %8 = vrot.lane.b32.xlu0 %v7, 96
    %v9 = vpop.permute.xlu0 %8
    %vm10 = vcmask 1048320
    %11 = vst.msk [vmem:[#allocation0] ss:$8 sm:$0x3] %vm10, %v9
    %s12 = scalar_lea.vmem %s0, 2
    %s13 = smov 3
    %v14 = vld [vmem:[%s12] ss:$4 sm:%s13]
    %15 = vrot.lane.b32.xlu0 %v14, 64
    %v16 = vpop.permute.xlu0 %15
    %vm17 = vcmask 785920
    %18 = vst.msk [vmem:[#allocation0] ss:$8 sm:$0x3] %vm17, %v16
    %s19 = scalar_lea.vmem %s0, 1
    %s20 = smov 3
    %v21 = vld [vmem:[%s19] ss:$4 sm:%s20]
    %22 = vrot.lane.b32.xlu0 %v21, 32
    %v23 = vpop.permute.xlu0 %22
    %vm24 = vcmask 523520
    %25 = vst.msk [vmem:[#allocation0] ss:$8 sm:$0x3] %vm24, %v23
    %s27 = ssub.s32 2, 1
    %v28 = vld [vmem:[#allocation0] sm:%s27]
    %s30 = ssub.s32 2, 1
    %31 = vst [vmem:[%s1] sm:%s30] %v28
    %s32 = scalar_lea.vmem [#allocation0], 8
    %v33 = vld [vmem:[%s32] sm:%s27]
    %s35 = ssub.s32 2, 1
    %s36 = scalar_lea.vmem %s1, 1
    %37 = vst [vmem:[%s36] sm:%s35] %v33
    %s38 = scalar_lea.vmem [#allocation0], 16
    %v39 = vld [vmem:[%s38] sm:%s27]
    %s41 = ssub.s32 2, 1
    %s42 = scalar_lea.vmem %s1, 2
    %43 = vst [vmem:[%s42] sm:%s41] %v39

// kernel: net_s_forward.1
$region0: #{net_s_forward.1}
  #allocation0 [shape = 'u32[]', space=smem, size = 0x4, offset = 0x4, fixed_abs, tag = 'smem constant byte address 0x4 - core index']
  #allocation1 [shape = 'u32[72,128]{1,0:T(1,128)}', space=vmem, size = 0x9000, scoped, tag = 'internal scratch']
  #allocation2 [shape = 'f32[32,576]{1,0:T(8,128)}', space=vmem, size = 0x14000, scoped, tag = 'scratch operand']
  %s0 = inlined_call_operand.vmem [shape: bf16[2,288,256], index: 0, kind: input, shape index: {}]
  %s1 = inlined_call_operand.vmem [shape: bf16[256,288], index: 1, kind: input, shape index: {}]
  %s2 = inlined_call_operand.vmem [shape: f32[1,288], index: 2, kind: input, shape index: {}]
  %s3 = inlined_call_operand.vmem [shape: f32[1,288], index: 3, kind: input, shape index: {}]
  %s4 = inlined_call_operand.vmem [shape: bf16[288,64], index: 4, kind: input, shape index: {}]
  %s5 = inlined_call_operand.vmem [shape: f32[1,64], index: 5, kind: input, shape index: {}]
  %s6 = inlined_call_operand.vmem [shape: f32[288,64], index: 6, kind: input, shape index: {}]
  %s7 = inlined_call_operand.vmem [shape: bf16[576,64], index: 7, kind: input, shape index: {}]
  %s8 = inlined_call_operand.vmem [shape: f32[1,64], index: 8, kind: input, shape index: {}]
  %s9 = inlined_call_operand.vmem [shape: f32[1,64], index: 9, kind: input, shape index: {}]
  %s10 = inlined_call_operand.vmem [shape: bf16[25,64,128], index: 10, kind: input, shape index: {}]
  %s11 = inlined_call_operand.vmem [shape: f32[1,128], index: 11, kind: input, shape index: {}]
  %s12 = inlined_call_operand.vmem [shape: f32[1,128], index: 12, kind: input, shape index: {}]
  %s13 = inlined_call_operand.vmem [shape: bf16[128,128], index: 13, kind: input, shape index: {}]
  %s14 = inlined_call_operand.vmem [shape: f32[1,128], index: 14, kind: input, shape index: {}]
  %s15 = inlined_call_operand.hbm [shape: f32[2,1,128], index: 15, kind: output, shape index: {}]
  %s16 = sld [smem:[#allocation0]]
  $region93: #{net_s_forward.1} parent=0
    _
  %s18 = ssub.s32 1, %s16
  %s19 = scalar_select 0, %s18, %s16
  $region1: #{net_s_forward.1} parent=0
    #allocation3 [shape = 'u8[1024]{0}', space=vmem, size = 0x400, scoped, tag = 'output window, operand 0']
    #allocation4 [shape = 's32[2]{0}', space=sflag, size = 0x8, scoped, tag = 'scoped memory for net_s_forward.1']
    %20 = vsyncpa [#allocation4], 0
    %s21 = scalar_lea.sflag [#allocation4], 1
    %22 = vsyncpa %s21, 0
    loop: start=0, step=1, limit=4
    $region2: #{net_s_forward.1} parent=1 // loop_pre_header
      _
    $region3: #{net_s_forward.1} parent=1 // loop_header
      %s24 = sphi 0, %s28
      %p25 = scmp.ge.s32.totalorder %s24, 4
      %s34 = sphi 0, %s36
      %s37 = sphi 0, %s34
      %s38 = sphi 0, %s37
      %s54 = sphi 0, %s38
      %s58 = sphi 0, %s58
      %s60 = sphi 0, %s58
      %s61 = sphi 0, %s60
      %s75 = sphi 0, %s61
      %s79 = sphi 0, %s79
      %s81 = sphi 0, %s79
      %s82 = sphi 0, %s81
      %s96 = sphi 0, %s82
      %s100 = sphi 0, %s100
      %s102 = sphi 0, %s100
      %s103 = sphi 0, %s102
      %s117 = sphi 0, %s103
      %s121 = sphi 0, %s121
      %s123 = sphi 0, %s121
      %s124 = sphi 0, %s123
      %s138 = sphi 0, %s124
      %s142 = sphi 0, %s142
      %s144 = sphi 0, %s142
      %s145 = sphi 0, %s144
      %s159 = sphi 0, %s145
      %s163 = sphi 0, %s163
      %s165 = sphi 0, %s163
      %s166 = sphi 0, %s165
      %s180 = sphi 0, %s166
      %s184 = sphi 0, %s184
      %s186 = sphi 0, %s184
      %s187 = sphi 0, %s186
      %s201 = sphi 0, %s187
      %s205 = sphi 0, %s205
      %s207 = sphi 0, %s205
      %s208 = sphi 0, %s207
      %s222 = sphi 0, %s208
      %s226 = sphi 0, %s226
      %s228 = sphi 0, %s226
      %s229 = sphi 0, %s228
      %s243 = sphi 0, %s229
      %s247 = sphi 0, %s247
      %s249 = sphi 0, %s247
      %s250 = sphi 0, %s249
      %s264 = sphi 0, %s250
      %s268 = sphi 0, %s268
      %s270 = sphi 0, %s268
      %s271 = sphi 0, %s270
      %s285 = sphi 0, %s271
      %s289 = sphi 0, %s289
      %s291 = sphi 0, %s289
      %s292 = sphi 0, %s291
      %s306 = sphi 0, %s292
      %s310 = sphi 0, %s310
      %s312 = sphi 0, %s310
      %s313 = sphi 0, %s312
      %s327 = sphi 0, %s313
      %s331 = sphi 0, %s331
      %s333 = sphi 0, %s331
      %s334 = sphi 0, %s333
      %s348 = sphi 0, %s334
      %s354 = sphi 0, %s356
      %s357 = sphi 0, %s354
      %s358 = sphi 0, %s357
      %s374 = sphi 0, %s358
    $region4: #{net_s_forward.1} parent=1 // loop_header_branch
      %27 = sbr.rel (%p25) target = $region8
    $region5: #{net_s_forward.1} parent=1 // loop_body
      %s29 = ssub.s32 %s24, 1
      %s30 = ssub.s32 %s24, 2
      %s31 = sadd.s32 %s24, 1
      %s32 = ssub.s32 %s24, %s31
      %p33 = scmp.eq.s32.totalorder %s32, 0
      %s35 = sadd.s32 %s34, 1
      %s36 = scalar_select %p33, %s34, %s35
      %p39 = pneg %p33
      %p40 = scmp.eq.s32.totalorder %s24, 1
      %p41 = por %p39, %p40
      %p42 = scmp.ne.s32.totalorder %s34, %s37
      %p43 = scmp.eq.s32.totalorder %s24, 0
      %p44 = por %p42, %p43
      %p45 = scmp.ne.s32.totalorder %s34, %s37
      %p46 = scmp.eq.s32.totalorder %s29, 1
      %p47 = por %p45, %p46
      %p48 = scmp.ne.s32.totalorder %s37, %s38
      %p49 = scmp.eq.s32.totalorder %s29, 0
      %p50 = por %p48, %p49
      %p51 = scmp.ne.s32.totalorder %s37, %s38
      %p52 = scmp.eq.s32.totalorder %s30, 1
      %p53 = por %p51, %p52
      %p55 = scmp.ne.s32.totalorder %s38, %s54
      %p56 = scmp.eq.s32.totalorder %s30, 0
      %p57 = por %p55, %p56
      %s59 = sadd.s32 %s58, 1
      %p62 = scmp.eq.s32.totalorder %s24, 1
      %p63 = scmp.ne.s32.totalorder %s58, %s60
      %p64 = scmp.eq.s32.totalorder %s24, 0
      %p65 = por %p63, %p64
      %p66 = scmp.ne.s32.totalorder %s58, %s60
      %p67 = scmp.eq.s32.totalorder %s29, 1
      %p68 = por %p66, %p67
      %p69 = scmp.ne.s32.totalorder %s60, %s61
      %p70 = scmp.eq.s32.totalorder %s29, 0
      %p71 = por %p69, %p70
      %p72 = scmp.ne.s32.totalorder %s60, %s61
      %p73 = scmp.eq.s32.totalorder %s30, 1
      %p74 = por %p72, %p73
      %p76 = scmp.ne.s32.totalorder %s61, %s75
      %p77 = scmp.eq.s32.totalorder %s30, 0
      %p78 = por %p76, %p77
      %s80 = sadd.s32 %s79, 1
      %p83 = scmp.eq.s32.totalorder %s24, 1
      %p84 = scmp.ne.s32.totalorder %s79, %s81
      %p85 = scmp.eq.s32.totalorder %s24, 0
      %p86 = por %p84, %p85
      %p87 = scmp.ne.s32.totalorder %s79, %s81
      %p88 = scmp.eq.s32.totalorder %s29, 1
      %p89 = por %p87, %p88
      %p90 = scmp.ne.s32.totalorder %s81, %s82
      %p91 = scmp.eq.s32.totalorder %s29, 0
      %p92 = por %p90, %p91
      %p93 = scmp.ne.s32.totalorder %s81, %s82
      %p94 = scmp.eq.s32.totalorder %s30, 1
      %p95 = por %p93, %p94
      %p97 = scmp.ne.s32.totalorder %s82, %s96
      %p98 = scmp.eq.s32.totalorder %s30, 0
      %p99 = por %p97, %p98
      %s101 = sadd.s32 %s100, 1
      %p104 = scmp.eq.s32.totalorder %s24, 1
      %p105 = scmp.ne.s32.totalorder %s100, %s102
      %p106 = scmp.eq.s32.totalorder %s24, 0
      %p107 = por %p105, %p106
      %p108 = scmp.ne.s32.totalorder %s100, %s102
      %p109 = scmp.eq.s32.totalorder %s29, 1
      %p110 = por %p108, %p109
      %p111 = scmp.ne.s32.totalorder %s102, %s103
      %p112 = scmp.eq.s32.totalorder %s29, 0
      %p113 = por %p111, %p112
      %p114 = scmp.ne.s32.totalorder %s102, %s103
      %p115 = scmp.eq.s32.totalorder %s30, 1
      %p116 = por %p114, %p115
      %p118 = scmp.ne.s32.totalorder %s103, %s117
      %p119 = scmp.eq.s32.totalorder %s30, 0
      %p120 = por %p118, %p119
      %s122 = sadd.s32 %s121, 1
      %p125 = scmp.eq.s32.totalorder %s24, 1
      %p126 = scmp.ne.s32.totalorder %s121, %s123
      %p127 = scmp.eq.s32.totalorder %s24, 0
      %p128 = por %p126, %p127
      %p129 = scmp.ne.s32.totalorder %s121, %s123
      %p130 = scmp.eq.s32.totalorder %s29, 1
      %p131 = por %p129, %p130
      %p132 = scmp.ne.s32.totalorder %s123, %s124
      %p133 = scmp.eq.s32.totalorder %s29, 0
      %p134 = por %p132, %p133
      %p135 = scmp.ne.s32.totalorder %s123, %s124
      %p136 = scmp.eq.s32.totalorder %s30, 1
      %p137 = por %p135, %p136
      %p139 = scmp.ne.s32.totalorder %s124, %s138
      %p140 = scmp.eq.s32.totalorder %s30, 0
      %p141 = por %p139, %p140
      %s143 = sadd.s32 %s142, 1
      %p146 = scmp.eq.s32.totalorder %s24, 1
      %p147 = scmp.ne.s32.totalorder %s142, %s144
      %p148 = scmp.eq.s32.totalorder %s24, 0
      %p149 = por %p147, %p148
      %p150 = scmp.ne.s32.totalorder %s142, %s144
      %p151 = scmp.eq.s32.totalorder %s29, 1
      %p152 = por %p150, %p151
      %p153 = scmp.ne.s32.totalorder %s144, %s145
      %p154 = scmp.eq.s32.totalorder %s29, 0
      %p155 = por %p153, %p154
      %p156 = scmp.ne.s32.totalorder %s144, %s145
      %p157 = scmp.eq.s32.totalorder %s30, 1
      %p158 = por %p156, %p157
      %p160 = scmp.ne.s32.totalorder %s145, %s159
      %p161 = scmp.eq.s32.totalorder %s30, 0
      %p162 = por %p160, %p161
      %s164 = sadd.s32 %s163, 1
      %p167 = scmp.eq.s32.totalorder %s24, 1
      %p168 = scmp.ne.s32.totalorder %s163, %s165
      %p169 = scmp.eq.s32.totalorder %s24, 0
      %p170 = por %p168, %p169
      %p171 = scmp.ne.s32.totalorder %s163, %s165
      %p172 = scmp.eq.s32.totalorder %s29, 1
      %p173 = por %p171, %p172
      %p174 = scmp.ne.s32.totalorder %s165, %s166
      %p175 = scmp.eq.s32.totalorder %s29, 0
      %p176 = por %p174, %p175
      %p177 = scmp.ne.s32.totalorder %s165, %s166
      %p178 = scmp.eq.s32.totalorder %s30, 1
      %p179 = por %p177, %p178
      %p181 = scmp.ne.s32.totalorder %s166, %s180
      %p182 = scmp.eq.s32.totalorder %s30, 0
      %p183 = por %p181, %p182
      %s185 = sadd.s32 %s184, 1
      %p188 = scmp.eq.s32.totalorder %s24, 1
      %p189 = scmp.ne.s32.totalorder %s184, %s186
      %p190 = scmp.eq.s32.totalorder %s24, 0
      %p191 = por %p189, %p190
      %p192 = scmp.ne.s32.totalorder %s184, %s186
      %p193 = scmp.eq.s32.totalorder %s29, 1
      %p194 = por %p192, %p193
      %p195 = scmp.ne.s32.totalorder %s186, %s187
      %p196 = scmp.eq.s32.totalorder %s29, 0
      %p197 = por %p195, %p196
      %p198 = scmp.ne.s32.totalorder %s186, %s187
      %p199 = scmp.eq.s32.totalorder %s30, 1
      %p200 = por %p198, %p199
      %p202 = scmp.ne.s32.totalorder %s187, %s201
      %p203 = scmp.eq.s32.totalorder %s30, 0
      %p204 = por %p202, %p203
      %s206 = sadd.s32 %s205, 1
      %p209 = scmp.eq.s32.totalorder %s24, 1
      %p210 = scmp.ne.s32.totalorder %s205, %s207
      %p211 = scmp.eq.s32.totalorder %s24, 0
      %p212 = por %p210, %p211
      %p213 = scmp.ne.s32.totalorder %s205, %s207
      %p214 = scmp.eq.s32.totalorder %s29, 1
      %p215 = por %p213, %p214
      %p216 = scmp.ne.s32.totalorder %s207, %s208
      %p217 = scmp.eq.s32.totalorder %s29, 0
      %p218 = por %p216, %p217
      %p219 = scmp.ne.s32.totalorder %s207, %s208
      %p220 = scmp.eq.s32.totalorder %s30, 1
      %p221 = por %p219, %p220
      %p223 = scmp.ne.s32.totalorder %s208, %s222
      %p224 = scmp.eq.s32.totalorder %s30, 0
      %p225 = por %p223, %p224
      %s227 = sadd.s32 %s226, 1
      %p230 = scmp.eq.s32.totalorder %s24, 1
      %p231 = scmp.ne.s32.totalorder %s226, %s228
      %p232 = scmp.eq.s32.totalorder %s24, 0
      %p233 = por %p231, %p232
      %p234 = scmp.ne.s32.totalorder %s226, %s228
      %p235 = scmp.eq.s32.totalorder %s29, 1
      %p236 = por %p234, %p235
      %p237 = scmp.ne.s32.totalorder %s228, %s229
      %p238 = scmp.eq.s32.totalorder %s29, 0
      %p239 = por %p237, %p238
      %p240 = scmp.ne.s32.totalorder %s228, %s229
      %p241 = scmp.eq.s32.totalorder %s30, 1
      %p242 = por %p240, %p241
      %p244 = scmp.ne.s32.totalorder %s229, %s243
      %p245 = scmp.eq.s32.totalorder %s30, 0
      %p246 = por %p244, %p245
      %s248 = sadd.s32 %s247, 1
      %p251 = scmp.eq.s32.totalorder %s24, 1
      %p252 = scmp.ne.s32.totalorder %s247, %s249
      %p253 = scmp.eq.s32.totalorder %s24, 0
      %p254 = por %p252, %p253
      %p255 = scmp.ne.s32.totalorder %s247, %s249
      %p256 = scmp.eq.s32.totalorder %s29, 1
      %p257 = por %p255, %p256
      %p258 = scmp.ne.s32.totalorder %s249, %s250
      %p259 = scmp.eq.s32.totalorder %s29, 0
      %p260 = por %p258, %p259
      %p261 = scmp.ne.s32.totalorder %s249, %s250
      %p262 = scmp.eq.s32.totalorder %s30, 1
      %p263 = por %p261, %p262
      %p265 = scmp.ne.s32.totalorder %s250, %s264
      %p266 = scmp.eq.s32.totalorder %s30, 0
      %p267 = por %p265, %p266
      %s269 = sadd.s32 %s268, 1
      %p272 = scmp.eq.s32.totalorder %s24, 1
      %p273 = scmp.ne.s32.totalorder %s268, %s270
      %p274 = scmp.eq.s32.totalorder %s24, 0
      %p275 = por %p273, %p274
      %p276 = scmp.ne.s32.totalorder %s268, %s270
      %p277 = scmp.eq.s32.totalorder %s29, 1
      %p278 = por %p276, %p277
      %p279 = scmp.ne.s32.totalorder %s270, %s271
      %p280 = scmp.eq.s32.totalorder %s29, 0
      %p281 = por %p279, %p280
      %p282 = scmp.ne.s32.totalorder %s270, %s271
      %p283 = scmp.eq.s32.totalorder %s30, 1
      %p284 = por %p282, %p283
      %p286 = scmp.ne.s32.totalorder %s271, %s285
      %p287 = scmp.eq.s32.totalorder %s30, 0
      %p288 = por %p286, %p287
      %s290 = sadd.s32 %s289, 1
      %p293 = scmp.eq.s32.totalorder %s24, 1
      %p294 = scmp.ne.s32.totalorder %s289, %s291
      %p295 = scmp.eq.s32.totalorder %s24, 0
      %p296 = por %p294, %p295
      %p297 = scmp.ne.s32.totalorder %s289, %s291
      %p298 = scmp.eq.s32.totalorder %s29, 1
      %p299 = por %p297, %p298
      %p300 = scmp.ne.s32.totalorder %s291, %s292
      %p301 = scmp.eq.s32.totalorder %s29, 0
      %p302 = por %p300, %p301
      %p303 = scmp.ne.s32.totalorder %s291, %s292
      %p304 = scmp.eq.s32.totalorder %s30, 1
      %p305 = por %p303, %p304
      %p307 = scmp.ne.s32.totalorder %s292, %s306
      %p308 = scmp.eq.s32.totalorder %s30, 0
      %p309 = por %p307, %p308
      %s311 = sadd.s32 %s310, 1
      %p314 = scmp.eq.s32.totalorder %s24, 1
      %p315 = scmp.ne.s32.totalorder %s310, %s312
      %p316 = scmp.eq.s32.totalorder %s24, 0
      %p317 = por %p315, %p316
      %p318 = scmp.ne.s32.totalorder %s310, %s312
      %p319 = scmp.eq.s32.totalorder %s29, 1
      %p320 = por %p318, %p319
      %p321 = scmp.ne.s32.totalorder %s312, %s313
      %p322 = scmp.eq.s32.totalorder %s29, 0
      %p323 = por %p321, %p322
      %p324 = scmp.ne.s32.totalorder %s312, %s313
      %p325 = scmp.eq.s32.totalorder %s30, 1
      %p326 = por %p324, %p325
      %p328 = scmp.ne.s32.totalorder %s313, %s327
      %p329 = scmp.eq.s32.totalorder %s30, 0
      %p330 = por %p328, %p329
      %s332 = sadd.s32 %s331, 1
      %p335 = scmp.eq.s32.totalorder %s24, 1
      %p336 = scmp.ne.s32.totalorder %s331, %s333
      %p337 = scmp.eq.s32.totalorder %s24, 0
      %p338 = por %p336, %p337
      %p339 = scmp.ne.s32.totalorder %s331, %s333
      %p340 = scmp.eq.s32.totalorder %s29, 1
      %p341 = por %p339, %p340
      %p342 = scmp.ne.s32.totalorder %s333, %s334
      %p343 = scmp.eq.s32.totalorder %s29, 0
      %p344 = por %p342, %p343
      %p345 = scmp.ne.s32.totalorder %s333, %s334
      %p346 = scmp.eq.s32.totalorder %s30, 1
      %p347 = por %p345, %p346
      %p349 = scmp.ne.s32.totalorder %s334, %s348
      %p350 = scmp.eq.s32.totalorder %s30, 0
      %p351 = por %p349, %p350
      %s352 = ssub.s32 %s24, %s31
      %p353 = scmp.eq.s32.totalorder %s352, 0
      %s355 = sadd.s32 %s354, 1
      %s356 = scalar_select %p353, %s354, %s355
      %p359 = pneg %p353
      %p360 = scmp.eq.s32.totalorder %s24, 1
      %p361 = por %p359, %p360
      %p362 = scmp.ne.s32.totalorder %s354, %s357
      %p363 = scmp.eq.s32.totalorder %s24, 0
      %p364 = por %p362, %p363
      %p365 = scmp.ne.s32.totalorder %s354, %s357
      %p366 = scmp.eq.s32.totalorder %s29, 1
      %p367 = por %p365, %p366
      %p368 = scmp.ne.s32.totalorder %s357, %s358
      %p369 = scmp.eq.s32.totalorder %s29, 0
      %p370 = por %p368, %p369
      %p371 = scmp.ne.s32.totalorder %s357, %s358
      %p372 = scmp.eq.s32.totalorder %s30, 1
      %p373 = por %p371, %p372
      %p375 = scmp.ne.s32.totalorder %s358, %s374
      %p376 = scmp.eq.s32.totalorder %s30, 0
      %p377 = por %p375, %p376
      %p378 = scmp.le.s32.totalorder 1, %s24
      %p379 = scmp.lt.s32.totalorder %s24, 3
      %p380 = pnand %p378, %p379
      %p381 = pneg %p380
      // Predicated region
      $region9: #{net_s_forward.1} parent=5 // pred_check
        _
      $region10: #{net_s_forward.1} parent=5 // pred_check_branch
        %383 = sbr.rel (%p380) target = $region12
      $region11: #{net_s_forward.1} parent=5 // pred_region
        %s384 = ssub.s32 %s24, 1
        // Predicated region
        $region13: #{net_s_forward.1} parent=11 // pred_check
          %p385 = pneg %p71
        $region14: #{net_s_forward.1} parent=11 // pred_check_branch
          %387 = sbr.rel (%p385) target = $region16
        $region15: #{net_s_forward.1} parent=11 // pred_region
          _
        $region16: #{net_s_forward.1} parent=11 // pred_fallthru
          _
        // Predicated region
        $region17: #{net_s_forward.1} parent=11 // pred_check
          %p388 = pneg %p92
        $region18: #{net_s_forward.1} parent=11 // pred_check_branch
          %390 = sbr.rel (%p388) target = $region20
        $region19: #{net_s_forward.1} parent=11 // pred_region
          _
        $region20: #{net_s_forward.1} parent=11 // pred_fallthru
          _
        // Predicated region
        $region21: #{net_s_forward.1} parent=11 // pred_check
          %p391 = pneg %p113
        $region22: #{net_s_forward.1} parent=11 // pred_check_branch
          %393 = sbr.rel (%p391) target = $region24
        $region23: #{net_s_forward.1} parent=11 // pred_region
          _
        $region24: #{net_s_forward.1} parent=11 // pred_fallthru
          _
        // Predicated region
        $region25: #{net_s_forward.1} parent=11 // pred_check
          %p394 = pneg %p134
        $region26: #{net_s_forward.1} parent=11 // pred_check_branch
          %396 = sbr.rel (%p394) target = $region28
        $region27: #{net_s_forward.1} parent=11 // pred_region
          _
        $region28: #{net_s_forward.1} parent=11 // pred_fallthru
          _
        // Predicated region
        $region29: #{net_s_forward.1} parent=11 // pred_check
          %p397 = pneg %p155
        $region30: #{net_s_forward.1} parent=11 // pred_check_branch
          %399 = sbr.rel (%p397) target = $region32
        $region31: #{net_s_forward.1} parent=11 // pred_region
          _
        $region32: #{net_s_forward.1} parent=11 // pred_fallthru
          _
        // Predicated region
        $region33: #{net_s_forward.1} parent=11 // pred_check
          %p400 = pneg %p176
        $region34: #{net_s_forward.1} parent=11 // pred_check_branch
          %402 = sbr.rel (%p400) target = $region36
        $region35: #{net_s_forward.1} parent=11 // pred_region
          _
        $region36: #{net_s_forward.1} parent=11 // pred_fallthru
          _
        // Predicated region
        $region37: #{net_s_forward.1} parent=11 // pred_check
          %p403 = pneg %p197
        $region38: #{net_s_forward.1} parent=11 // pred_check_branch
          %405 = sbr.rel (%p403) target = $region40
        $region39: #{net_s_forward.1} parent=11 // pred_region
          _
        $region40: #{net_s_forward.1} parent=11 // pred_fallthru
          _
        // Predicated region
        $region41: #{net_s_forward.1} parent=11 // pred_check
          %p406 = pneg %p218
        $region42: #{net_s_forward.1} parent=11 // pred_check_branch
          %408 = sbr.rel (%p406) target = $region44
        $region43: #{net_s_forward.1} parent=11 // pred_region
          _
        $region44: #{net_s_forward.1} parent=11 // pred_fallthru
          _
        // Predicated region
        $region45: #{net_s_forward.1} parent=11 // pred_check
          %p409 = pneg %p239
        $region46: #{net_s_forward.1} parent=11 // pred_check_branch
          %411 = sbr.rel (%p409) target = $region48
        $region47: #{net_s_forward.1} parent=11 // pred_region
          _
        $region48: #{net_s_forward.1} parent=11 // pred_fallthru
          _
        // Predicated region
        $region49: #{net_s_forward.1} parent=11 // pred_check
          %p412 = pneg %p260
        $region50: #{net_s_forward.1} parent=11 // pred_check_branch
          %414 = sbr.rel (%p412) target = $region52
        $region51: #{net_s_forward.1} parent=11 // pred_region
          _
        $region52: #{net_s_forward.1} parent=11 // pred_fallthru
          _
        // Predicated region
        $region53: #{net_s_forward.1} parent=11 // pred_check
          %p415 = pneg %p281
        $region54: #{net_s_forward.1} parent=11 // pred_check_branch
          %417 = sbr.rel (%p415) target = $region56
        $region55: #{net_s_forward.1} parent=11 // pred_region
          _
        $region56: #{net_s_forward.1} parent=11 // pred_fallthru
          _
        // Predicated region
        $region57: #{net_s_forward.1} parent=11 // pred_check
          %p418 = pneg %p302
        $region58: #{net_s_forward.1} parent=11 // pred_check_branch
          %420 = sbr.rel (%p418) target = $region60
        $region59: #{net_s_forward.1} parent=11 // pred_region
          _
        $region60: #{net_s_forward.1} parent=11 // pred_fallthru
          _
        // Predicated region
        $region61: #{net_s_forward.1} parent=11 // pred_check
          %p421 = pneg %p323
        $region62: #{net_s_forward.1} parent=11 // pred_check_branch
          %423 = sbr.rel (%p421) target = $region64
        $region63: #{net_s_forward.1} parent=11 // pred_region
          _
        $region64: #{net_s_forward.1} parent=11 // pred_fallthru
          _
        // Predicated region
        $region65: #{net_s_forward.1} parent=11 // pred_check
          %p424 = pneg %p344
        $region66: #{net_s_forward.1} parent=11 // pred_check_branch
          %426 = sbr.rel (%p424) target = $region68
        $region67: #{net_s_forward.1} parent=11 // pred_region
          _
        $region68: #{net_s_forward.1} parent=11 // pred_fallthru
          _
      $region12: #{net_s_forward.1} parent=5 // pred_fallthru
        _
      %p427 = scmp.lt.s32.totalorder %s24, 2
      // Predicated region
      $region69: #{net_s_forward.1} parent=5 // pred_check
        %p428 = pneg %p427
      $region70: #{net_s_forward.1} parent=5 // pred_check_branch
        %430 = sbr.rel (%p428) target = $region72
      $region71: #{net_s_forward.1} parent=5 // pred_region
        // Predicated region
        $region73: #{net_s_forward.1} parent=71 // pred_check
          %p431 = pneg %p44
        $region74: #{net_s_forward.1} parent=71 // pred_check_branch
          %433 = sbr.rel (%p431) target = $region76
        $region75: #{net_s_forward.1} parent=71 // pred_region
          %p434 = scmp.lt.s32.totalorder %s24, 1
          %s435 = scalar_select %p434, %s24, 1
          %s436 = smul.addr %s435, 72
          %s437 = smul.addr %s436, 4
          %s438 = scalar_lea.vmem %s0, %s437
        $region76: #{net_s_forward.1} parent=71 // pred_fallthru
          _
      $region72: #{net_s_forward.1} parent=5 // pred_fallthru
        _
      %p439 = scmp.le.s32.totalorder 1, %s24
      %p440 = scmp.lt.s32.totalorder %s24, 3
      %p441 = pnand %p439, %p440
      %p442 = pneg %p441
      // Predicated region
      $region77: #{net_s_forward.1} parent=5 // pred_check
        _
      $region78: #{net_s_forward.1} parent=5 // pred_check_branch
        %444 = sbr.rel (%p441) target = $region80
      $region79: #{net_s_forward.1} parent=5 // pred_region
        %s445 = ssub.s32 %s24, 1
        %p446 = scmp.lt.s32.totalorder %s29, 1
        %s447 = scalar_select %p446, %s29, 1
        %s448 = smul.addr %s447, 72
        %s449 = smul.addr %s448, 4
        %s450 = scalar_lea.vmem %s0, %s449
        %p451 = pneg %p50
        %p452 = pneg %p47
        %p453 = pneg %p71
        %p454 = pneg %p68
        %p455 = pneg %p92
        %p456 = pneg %p89
        %p457 = pneg %p113
        %p458 = pneg %p110
        %p459 = pneg %p134
        %p460 = pneg %p131
        %p461 = pneg %p155
        %p462 = pneg %p152
        %p463 = pneg %p176
        %p464 = pneg %p173
        %p465 = pneg %p197
        %p466 = pneg %p194
        %p467 = pneg %p218
        %p468 = pneg %p215
        %p469 = pneg %p239
        %p470 = pneg %p236
        %p471 = pneg %p260
        %p472 = pneg %p257
        %p473 = pneg %p281
        %p474 = pneg %p278
        %p475 = pneg %p302
        %p476 = pneg %p299
        %p477 = pneg %p323
        %p478 = pneg %p320
        %p479 = pneg %p344
        %p480 = pneg %p341
        %p481 = pneg %p370
        %p482 = pneg %p367
        %s483 = sand.u32 %s357, 1
        %s484 = scalar_lea.sflag [#allocation4], %s483
        %s485 = sand.u32 %s357, 1
        %s486 = scalar_lea.vmem [#allocation3], %s485
        %p487 = scmp.lt.s32.totalorder %s29, 1
        %s488 = scalar_select %p487, %s29, 1
        %s489 = smul.addr %s488, 72
        %s490 = smul.addr %s489, 4
        %s491 = scalar_lea.vmem %s0, %s490
        %v493 = vld [vmem:[%s2] sm:$0x7]
        %v494 = vld [vmem:[%s3] sm:$0x7]
        %v495 = vld [vmem:[%s5] sm:$0x1]
        %v496 = vld [vmem:[%s491] sm:$0xff]
        %v497 = vld [vmem:[%s491 + $0x8] sm:$0xff]
        %v498 = vld [vmem:[%s491 + $0x10] sm:$0xff]
        %v499 = vld [vmem:[%s491 + $0x18] sm:$0xff]
        %v500 = vld [vmem:[%s1] sm:$0xff]
        %v501 = vld [vmem:[%s1 + $0x8] sm:$0xf]
        %v502 = vld [vmem:[%s1 + $0xc] sm:$0xff]
        %v503 = vld [vmem:[%s1 + $0x14] sm:$0xf]
        %v504 = vld [vmem:[%s1 + $0x18] sm:$0xff]
        %v505 = vld [vmem:[%s1 + $0x20] sm:$0xf]
        %v506 = vld [vmem:[%s1 + $0x24] sm:$0xff]
        %v507 = vld [vmem:[%s1 + $0x2c] sm:$0xf]
        %v508 = vld [vmem:[%s1 + $0x30] sm:$0xff]
        %v509 = vld [vmem:[%s1 + $0x38] sm:$0xf]
        %v510 = vld [vmem:[%s1 + $0x3c] sm:$0xff]
        %v511 = vld [vmem:[%s1 + $0x44] sm:$0xf]
        %v512 = vld [vmem:[%s1 + $0x48] sm:$0xff]
        %v513 = vld [vmem:[%s1 + $0x50] sm:$0xf]
        %v514 = vld [vmem:[%s1 + $0x54] sm:$0xff]
        %v515 = vld [vmem:[%s1 + $0x5c] sm:$0xf]
        %v516 = vld [vmem:[%s1 + $0x60] sm:$0xff]
        %v517 = vld [vmem:[%s1 + $0x68] sm:$0xf]
        %v518 = vld [vmem:[%s1 + $0x6c] sm:$0xff]
        %v519 = vld [vmem:[%s1 + $0x74] sm:$0xf]
        %v520 = vld [vmem:[%s1 + $0x78] sm:$0xff]
        %v521 = vld [vmem:[%s1 + $0x80] sm:$0xf]
        %v522 = vld [vmem:[%s1 + $0x84] sm:$0xff]
        %v523 = vld [vmem:[%s1 + $0x8c] sm:$0xf]
        %v524 = vld [vmem:[%s1 + $0x90] sm:$0xff]
        %v525 = vld [vmem:[%s1 + $0x98] sm:$0xf]
        %v526 = vld [vmem:[%s1 + $0x9c] sm:$0xff]
        %v527 = vld [vmem:[%s1 + $0xa4] sm:$0xf]
        %v528 = vld [vmem:[%s1 + $0xa8] sm:$0xff]
        %v529 = vld [vmem:[%s1 + $0xb0] sm:$0xf]
        %v530 = vld [vmem:[%s1 + $0xb4] sm:$0xff]
        %v531 = vld [vmem:[%s1 + $0xbc] sm:$0xf]
        %v532 = vld [vmem:[%s1 + $0xc0] sm:$0xff]
        %v533 = vld [vmem:[%s1 + $0xc8] sm:$0xf]
        %v534 = vld [vmem:[%s1 + $0xcc] sm:$0xff]
        %v535 = vld [vmem:[%s1 + $0xd4] sm:$0xf]
        %v536 = vld [vmem:[%s1 + $0xd8] sm:$0xff]
        %v537 = vld [vmem:[%s1 + $0xe0] sm:$0xf]
        %v538 = vld [vmem:[%s1 + $0xe4] sm:$0xff]
        %v539 = vld [vmem:[%s1 + $0xec] sm:$0xf]
        %v540 = vld [vmem:[%s1 + $0xf0] sm:$0xff]
        %v541 = vld [vmem:[%s1 + $0xf8] sm:$0xf]
        %v542 = vld [vmem:[%s1 + $0xfc] sm:$0xff]
        %v543 = vld [vmem:[%s1 + $0x104] sm:$0xf]
        %v544 = vld [vmem:[%s1 + $0x108] sm:$0xff]
        %v545 = vld [vmem:[%s1 + $0x110] sm:$0xf]
        %v546 = vld [vmem:[%s1 + $0x114] sm:$0xff]
        %v547 = vld [vmem:[%s1 + $0x11c] sm:$0xf]
        %v548 = vld [vmem:[%s1 + $0x120] sm:$0xff]
        %v549 = vld [vmem:[%s1 + $0x128] sm:$0xf]
        %v550 = vld [vmem:[%s1 + $0x12c] sm:$0xff]
        %v551 = vld [vmem:[%s1 + $0x134] sm:$0xf]
        %v552 = vld [vmem:[%s1 + $0x138] sm:$0xff]
        %v553 = vld [vmem:[%s1 + $0x140] sm:$0xf]
        %v554 = vld [vmem:[%s1 + $0x144] sm:$0xff]
        %v555 = vld [vmem:[%s1 + $0x14c] sm:$0xf]
        %v556 = vld [vmem:[%s1 + $0x150] sm:$0xff]
        %v557 = vld [vmem:[%s1 + $0x158] sm:$0xf]
        %v558 = vld [vmem:[%s1 + $0x15c] sm:$0xff]
        %v559 = vld [vmem:[%s1 + $0x164] sm:$0xf]
        %v560 = vld [vmem:[%s1 + $0x168] sm:$0xff]
        %v561 = vld [vmem:[%s1 + $0x170] sm:$0xf]
        %v562 = vld [vmem:[%s1 + $0x174] sm:$0xff]
        %v563 = vld [vmem:[%s1 + $0x17c] sm:$0xf]
        %v568 = vunpack.c.l.b16 %v496
        %v569 = vunpack.c.h.b16 %v496
        %v570 = vunpack.c.l.b16 %v497
        %v571 = vunpack.c.h.b16 %v497
        %v572 = vunpack.c.l.b16 %v498
        %v573 = vunpack.c.h.b16 %v498
        %v574 = vunpack.c.l.b16 %v499
        %v575 = vunpack.c.h.b16 %v499
        %v576 = vpack.c.b16 %v570, %v568
        %v577 = vpack.c.b16 %v571, %v569
        %v578 = vpack.c.b16 %v574, %v572
        %v579 = vpack.c.b16 %v575, %v573
        %v648 = vunpack.c.l.b16 %v500
        %v649 = vunpack.c.h.b16 %v500
        %v650 = vunpack.c.l.b16 %v501
        %v651 = vunpack.c.l.b16 %v502
        %v652 = vunpack.c.h.b16 %v502
        %v653 = vunpack.c.l.b16 %v503
        %v654 = vunpack.c.l.b16 %v504
        %v655 = vunpack.c.h.b16 %v504
        %v656 = vunpack.c.l.b16 %v505
        %v657 = vunpack.c.l.b16 %v506
        %v658 = vunpack.c.h.b16 %v506
        %v659 = vunpack.c.l.b16 %v507
        %v660 = vunpack.c.l.b16 %v508
        %v661 = vunpack.c.h.b16 %v508
        %v662 = vunpack.c.l.b16 %v509
        %v663 = vunpack.c.l.b16 %v510
        %v664 = vunpack.c.h.b16 %v510
        %v665 = vunpack.c.l.b16 %v511
        %v666 = vunpack.c.l.b16 %v512
        %v667 = vunpack.c.h.b16 %v512
        %v668 = vunpack.c.l.b16 %v513
        %v669 = vunpack.c.l.b16 %v514
        %v670 = vunpack.c.h.b16 %v514
        %v671 = vunpack.c.l.b16 %v515
        %v672 = vunpack.c.l.b16 %v516
        %v673 = vunpack.c.h.b16 %v516
        %v674 = vunpack.c.l.b16 %v517
        %v675 = vunpack.c.l.b16 %v518
        %v676 = vunpack.c.h.b16 %v518
        %v677 = vunpack.c.l.b16 %v519
        %v678 = vunpack.c.l.b16 %v520
        %v679 = vunpack.c.h.b16 %v520
        %v680 = vunpack.c.l.b16 %v521
        %v681 = vunpack.c.l.b16 %v522
        %v682 = vunpack.c.h.b16 %v522
        %v683 = vunpack.c.l.b16 %v523
        %v684 = vunpack.c.l.b16 %v524
        %v685 = vunpack.c.h.b16 %v524
        %v686 = vunpack.c.l.b16 %v525
        %v687 = vunpack.c.l.b16 %v526
        %v688 = vunpack.c.h.b16 %v526
        %v689 = vunpack.c.l.b16 %v527
        %v690 = vunpack.c.l.b16 %v528
        %v691 = vunpack.c.h.b16 %v528
        %v692 = vunpack.c.l.b16 %v529
        %v693 = vunpack.c.l.b16 %v530
        %v694 = vunpack.c.h.b16 %v530
        %v695 = vunpack.c.l.b16 %v531
        %v696 = vunpack.c.l.b16 %v532
        %v697 = vunpack.c.h.b16 %v532
        %v698 = vunpack.c.l.b16 %v533
        %v699 = vunpack.c.l.b16 %v534
        %v700 = vunpack.c.h.b16 %v534
        %v701 = vunpack.c.l.b16 %v535
        %v702 = vunpack.c.l.b16 %v536
        %v703 = vunpack.c.h.b16 %v536
        %v704 = vunpack.c.l.b16 %v537
        %v705 = vunpack.c.l.b16 %v538
        %v706 = vunpack.c.h.b16 %v538
        %v707 = vunpack.c.l.b16 %v539
        %v708 = vunpack.c.l.b16 %v540
        %v709 = vunpack.c.h.b16 %v540
        %v710 = vunpack.c.l.b16 %v541
        %v711 = vunpack.c.l.b16 %v542
        %v712 = vunpack.c.h.b16 %v542
        %v713 = vunpack.c.l.b16 %v543
        %v714 = vunpack.c.l.b16 %v544
        %v715 = vunpack.c.h.b16 %v544
        %v716 = vunpack.c.l.b16 %v545
        %v717 = vunpack.c.l.b16 %v546
        %v718 = vunpack.c.h.b16 %v546
        %v719 = vunpack.c.l.b16 %v547
        %v720 = vunpack.c.l.b16 %v548
        %v721 = vunpack.c.h.b16 %v548
        %v722 = vunpack.c.l.b16 %v549
        %v723 = vunpack.c.l.b16 %v550
        %v724 = vunpack.c.h.b16 %v550
        %v725 = vunpack.c.l.b16 %v551
        %v726 = vunpack.c.l.b16 %v552
        %v727 = vunpack.c.h.b16 %v552
        %v728 = vunpack.c.l.b16 %v553
        %v729 = vunpack.c.l.b16 %v554
        %v730 = vunpack.c.h.b16 %v554
        %v731 = vunpack.c.l.b16 %v555
        %v732 = vunpack.c.l.b16 %v556
        %v733 = vunpack.c.h.b16 %v556
        %v734 = vunpack.c.l.b16 %v557
        %v735 = vunpack.c.l.b16 %v558
        %v736 = vunpack.c.h.b16 %v558
        %v737 = vunpack.c.l.b16 %v559
        %v738 = vunpack.c.l.b16 %v560
        %v739 = vunpack.c.h.b16 %v560
        %v740 = vunpack.c.l.b16 %v561
        %v741 = vunpack.c.l.b16 %v562
        %v742 = vunpack.c.h.b16 %v562
        %v743 = vunpack.c.l.b16 %v563
        %v744 = vpack.c.b16 %v651, %v648
        %v745 = vpack.c.b16 %v652, %v649
        %v746 = vpack.c.b16 %v653, %v650
        %v747 = vpack.c.b16 %v657, %v654
        %v748 = vpack.c.b16 %v658, %v655
        %v749 = vpack.c.b16 %v659, %v656
        %v750 = vpack.c.b16 %v663, %v660
        %v751 = vpack.c.b16 %v664, %v661
        %v752 = vpack.c.b16 %v665, %v662
        %v753 = vpack.c.b16 %v669, %v666
        %v754 = vpack.c.b16 %v670, %v667
        %v755 = vpack.c.b16 %v671, %v668
        %v756 = vpack.c.b16 %v675, %v672
        %v757 = vpack.c.b16 %v676, %v673
        %v758 = vpack.c.b16 %v677, %v674
        %v759 = vpack.c.b16 %v681, %v678
        %v760 = vpack.c.b16 %v682, %v679
        %v761 = vpack.c.b16 %v683, %v680
        %v762 = vpack.c.b16 %v687, %v684
        %v763 = vpack.c.b16 %v688, %v685
        %v764 = vpack.c.b16 %v689, %v686
        %v765 = vpack.c.b16 %v693, %v690
        %v766 = vpack.c.b16 %v694, %v691
        %v767 = vpack.c.b16 %v695, %v692
        %v768 = vpack.c.b16 %v699, %v696
        %v769 = vpack.c.b16 %v700, %v697
        %v770 = vpack.c.b16 %v701, %v698
        %v771 = vpack.c.b16 %v705, %v702
        %v772 = vpack.c.b16 %v706, %v703
        %v773 = vpack.c.b16 %v707, %v704
        %v774 = vpack.c.b16 %v711, %v708
        %v775 = vpack.c.b16 %v712, %v709
        %v776 = vpack.c.b16 %v713, %v710
        %v777 = vpack.c.b16 %v717, %v714
        %v778 = vpack.c.b16 %v718, %v715
        %v779 = vpack.c.b16 %v719, %v716
        %v780 = vpack.c.b16 %v723, %v720
        %v781 = vpack.c.b16 %v724, %v721
        %v782 = vpack.c.b16 %v725, %v722
        %v783 = vpack.c.b16 %v729, %v726
        %v784 = vpack.c.b16 %v730, %v727
        %v785 = vpack.c.b16 %v731, %v728
        %v786 = vpack.c.b16 %v735, %v732
        %v787 = vpack.c.b16 %v736, %v733
        %v788 = vpack.c.b16 %v737, %v734
        %v789 = vpack.c.b16 %v741, %v738
        %v790 = vpack.c.b16 %v742, %v739
        %v791 = vpack.c.b16 %v743, %v740
        %840 = vmatpush.bf16.msra.mxu0 %v765
        %841 = vmatpush.bf16.msra.mxu0 %v762
        %842 = vmatpush.bf16.msra.mxu0 %v759
        %843 = vmatpush.bf16.msra.mxu0 %v756
        %844 = vmatpush.bf16.msra.mxu0 %v753
        %845 = vmatpush.bf16.msra.mxu0 %v750
        %846 = vmatpush.bf16.msra.mxu0 %v747
        %847 = vmatpush.bf16.msra.mxu0 %v744
        %848 = vmatmul.bf16.gmra.mxu0 %v576
        %v849 = vpop.f32.mrf.mxu0
        %v850 = vadd.f32 0.0, %v849
        %v851 = vpop.f32.mrf.mxu0
        %v852 = vadd.f32 0.0, %v851
        %853 = vmatmul.bf16.gmra.mxu0 %v578
        %v854 = vpop.f32.mrf.mxu0
        %v855 = vadd.f32 0.0, %v854
        %v856 = vpop.f32.mrf.mxu0
        %v857 = vadd.f32 0.0, %v856
        %858 = vdwg.mxu0
        %859 = vmatpush.bf16.msra.mxu0 %v789
        %860 = vmatpush.bf16.msra.mxu0 %v786
        %861 = vmatpush.bf16.msra.mxu0 %v783
        %862 = vmatpush.bf16.msra.mxu0 %v780
        %863 = vmatpush.bf16.msra.mxu0 %v777
        %864 = vmatpush.bf16.msra.mxu0 %v774
        %865 = vmatpush.bf16.msra.mxu0 %v771
        %866 = vmatpush.bf16.msra.mxu0 %v768
        %867 = vmatmul.bf16.gmra.mxu0 %v577
        %v868 = vpop.f32.mrf.mxu0
        %v869 = vadd.f32 %v850, %v868
        %v870 = vpop.f32.mrf.mxu0
        %v871 = vadd.f32 %v852, %v870
        %872 = vmatmul.bf16.gmra.mxu0 %v579
        %v873 = vpop.f32.mrf.mxu0
        %v874 = vadd.f32 %v855, %v873
        %v875 = vpop.f32.mrf.mxu0
        %v876 = vadd.f32 %v857, %v875
        %877 = vdwg.mxu0
        %878 = vmatpush.bf16.msra.mxu0 %v766
        %879 = vmatpush.bf16.msra.mxu0 %v763
        %880 = vmatpush.bf16.msra.mxu0 %v760
        %881 = vmatpush.bf16.msra.mxu0 %v757
        %882 = vmatpush.bf16.msra.mxu0 %v754
        %883 = vmatpush.bf16.msra.mxu0 %v751
        %884 = vmatpush.bf16.msra.mxu0 %v748
        %885 = vmatpush.bf16.msra.mxu0 %v745
        %886 = vmatmul.bf16.gmra.mxu0 %v576
        %v887 = vpop.f32.mrf.mxu0
        %v888 = vadd.f32 0.0, %v887
        %v889 = vpop.f32.mrf.mxu0
        %v890 = vadd.f32 0.0, %v889
        %891 = vmatmul.bf16.gmra.mxu0 %v578
        %v892 = vpop.f32.mrf.mxu0
        %v893 = vadd.f32 0.0, %v892
        %v894 = vpop.f32.mrf.mxu0
        %v895 = vadd.f32 0.0, %v894
        %896 = vdwg.mxu0
        %897 = vmatpush.bf16.msra.mxu0 %v790
        %898 = vmatpush.bf16.msra.mxu0 %v787
        %899 = vmatpush.bf16.msra.mxu0 %v784
        %900 = vmatpush.bf16.msra.mxu0 %v781
        %901 = vmatpush.bf16.msra.mxu0 %v778
        %902 = vmatpush.bf16.msra.mxu0 %v775
        %903 = vmatpush.bf16.msra.mxu0 %v772
        %904 = vmatpush.bf16.msra.mxu0 %v769
        %905 = vmatmul.bf16.gmra.mxu0 %v577
        %v906 = vpop.f32.mrf.mxu0
        %v907 = vadd.f32 %v888, %v906
        %v908 = vpop.f32.mrf.mxu0
        %v909 = vadd.f32 %v890, %v908
        %910 = vmatmul.bf16.gmra.mxu0 %v579
        %v911 = vpop.f32.mrf.mxu0
        %v912 = vadd.f32 %v893, %v911
        %v913 = vpop.f32.mrf.mxu0
        %v914 = vadd.f32 %v895, %v913
        %915 = vdwg.mxu0
        %916 = vmatpush.bf16.msra.mxu0 %v767
        %917 = vmatpush.bf16.msra.mxu0 %v764
        %918 = vmatpush.bf16.msra.mxu0 %v761
        %919 = vmatpush.bf16.msra.mxu0 %v758
        %920 = vmatpush.bf16.msra.mxu0 %v755
        %921 = vmatpush.bf16.msra.mxu0 %v752
        %922 = vmatpush.bf16.msra.mxu0 %v749
        %923 = vmatpush.bf16.msra.mxu0 %v746
        %924 = vmatmul.bf16.gmra.mxu0 %v576
        %v925 = vpop.f32.mrf.mxu0
        %v926 = vadd.f32 0.0, %v925
        %v927 = vpop.f32.mrf.mxu0
        %v928 = vadd.f32 0.0, %v927
        %929 = vmatmul.bf16.gmra.mxu0 %v578
        %v930 = vpop.f32.mrf.mxu0
        %v931 = vadd.f32 0.0, %v930
        %v932 = vpop.f32.mrf.mxu0
        %v933 = vadd.f32 0.0, %v932
        %934 = vdwg.mxu0
        %935 = vmatpush.bf16.msra.mxu0 %v791
        %936 = vmatpush.bf16.msra.mxu0 %v788
        %937 = vmatpush.bf16.msra.mxu0 %v785
        %938 = vmatpush.bf16.msra.mxu0 %v782
        %939 = vmatpush.bf16.msra.mxu0 %v779
        %940 = vmatpush.bf16.msra.mxu0 %v776
        %941 = vmatpush.bf16.msra.mxu0 %v773
        %942 = vmatpush.bf16.msra.mxu0 %v770
        %943 = vmatmul.bf16.gmra.mxu0 %v577
        %v944 = vpop.f32.mrf.mxu0
        %v945 = vadd.f32 %v926, %v944
        %v946 = vpop.f32.mrf.mxu0
        %v947 = vadd.f32 %v928, %v946
        %948 = vmatmul.bf16.gmra.mxu0 %v579
        %v949 = vpop.f32.mrf.mxu0
        %v950 = vadd.f32 %v931, %v949
        %v951 = vpop.f32.mrf.mxu0
        %v952 = vadd.f32 %v933, %v951
        %953 = vdwg.mxu0
        %v955 = vperm.slane %v493, 0
        %v956 = vperm.slane %v493, 1
        %v957 = vperm.slane %v493, 2
        %v961 = vmul.f32 %v869, %v955
        %v962 = vmul.f32 %v907, %v956
        %v963 = vmul.f32 %v945, %v957
        %v964 = vmul.f32 %v871, %v955
        %v965 = vmul.f32 %v909, %v956
        %v966 = vmul.f32 %v947, %v957
        %v967 = vmul.f32 %v874, %v955
        %v968 = vmul.f32 %v912, %v956
        %v969 = vmul.f32 %v950, %v957
        %v970 = vmul.f32 %v876, %v955
        %v971 = vmul.f32 %v914, %v956
        %v972 = vmul.f32 %v952, %v957
        %v974 = vperm.slane %v494, 0
        %v975 = vperm.slane %v494, 1
        %v976 = vperm.slane %v494, 2
        %v980 = vadd.f32 %v961, %v974
        %v981 = vadd.f32 %v962, %v975
        %v982 = vadd.f32 %v963, %v976
        %v983 = vadd.f32 %v964, %v974
        %v984 = vadd.f32 %v965, %v975
        %v985 = vadd.f32 %v966, %v976
        %v986 = vadd.f32 %v967, %v974
        %v987 = vadd.f32 %v968, %v975
        %v988 = vadd.f32 %v969, %v976
        %v989 = vadd.f32 %v970, %v974
        %v990 = vadd.f32 %v971, %v975
        %v991 = vadd.f32 %v972, %v976
        %v992 = vmax.f32 %v980, 0.0
        %v993 = vmax.f32 %v981, 0.0
        %v994 = vmax.f32 %v982, 0.0
        %v995 = vmax.f32 %v983, 0.0
        %v996 = vmax.f32 %v984, 0.0
        %v997 = vmax.f32 %v985, 0.0
        %v998 = vmax.f32 %v986, 0.0
        %v999 = vmax.f32 %v987, 0.0
        %v1000 = vmax.f32 %v988, 0.0
        %v1001 = vmax.f32 %v989, 0.0
        %v1002 = vmax.f32 %v990, 0.0
        %v1003 = vmax.f32 %v991, 0.0
        %v1004 = vpack.c.bf16 %v995, %v992
        %v1005 = vpack.c.bf16 %v996, %v993
        %v1006 = vpack.c.bf16 %v997, %v994
        %v1007 = vpack.c.bf16 %v1001, %v998
        %v1008 = vpack.c.bf16 %v1002, %v999
        %v1009 = vpack.c.bf16 %v1003, %v1000
        %v1010 = vld [vmem:[%s4] sm:$0xf]
        %v1011 = vld [vmem:[%s4 + $0x4] sm:$0xf]
        %v1012 = vld [vmem:[%s4 + $0x8] sm:$0xf]
        %v1013 = vld [vmem:[%s4 + $0xc] sm:$0xf]
        %v1014 = vld [vmem:[%s4 + $0x10] sm:$0xf]
        %v1015 = vld [vmem:[%s4 + $0x14] sm:$0xf]
        %v1016 = vld [vmem:[%s4 + $0x18] sm:$0xf]
        %v1017 = vld [vmem:[%s4 + $0x1c] sm:$0xf]
        %v1018 = vld [vmem:[%s4 + $0x20] sm:$0xf]
        %v1019 = vld [vmem:[%s4 + $0x24] sm:$0xf]
        %v1020 = vld [vmem:[%s4 + $0x28] sm:$0xf]
        %v1021 = vld [vmem:[%s4 + $0x2c] sm:$0xf]
        %v1022 = vld [vmem:[%s4 + $0x30] sm:$0xf]
        %v1023 = vld [vmem:[%s4 + $0x34] sm:$0xf]
        %v1024 = vld [vmem:[%s4 + $0x38] sm:$0xf]
        %v1025 = vld [vmem:[%s4 + $0x3c] sm:$0xf]
        %v1026 = vld [vmem:[%s4 + $0x40] sm:$0xf]
        %v1027 = vld [vmem:[%s4 + $0x44] sm:$0xf]
        %v1028 = vld [vmem:[%s4 + $0x48] sm:$0xf]
        %v1029 = vld [vmem:[%s4 + $0x4c] sm:$0xf]
        %v1030 = vld [vmem:[%s4 + $0x50] sm:$0xf]
        %v1031 = vld [vmem:[%s4 + $0x54] sm:$0xf]
        %v1032 = vld [vmem:[%s4 + $0x58] sm:$0xf]
        %v1033 = vld [vmem:[%s4 + $0x5c] sm:$0xf]
        %v1034 = vld [vmem:[%s4 + $0x60] sm:$0xf]
        %v1035 = vld [vmem:[%s4 + $0x64] sm:$0xf]
        %v1036 = vld [vmem:[%s4 + $0x68] sm:$0xf]
        %v1037 = vld [vmem:[%s4 + $0x6c] sm:$0xf]
        %v1038 = vld [vmem:[%s4 + $0x70] sm:$0xf]
        %v1039 = vld [vmem:[%s4 + $0x74] sm:$0xf]
        %v1040 = vld [vmem:[%s4 + $0x78] sm:$0xf]
        %v1041 = vld [vmem:[%s4 + $0x7c] sm:$0xf]
        %v1042 = vld [vmem:[%s4 + $0x80] sm:$0xf]
        %v1043 = vld [vmem:[%s4 + $0x84] sm:$0xf]
        %v1044 = vld [vmem:[%s4 + $0x88] sm:$0xf]
        %v1045 = vld [vmem:[%s4 + $0x8c] sm:$0xf]
        %v1082 = vunpack.c.l.b16 %v1010
        %v1083 = vunpack.c.l.b16 %v1011
        %v1084 = vunpack.c.l.b16 %v1012
        %v1085 = vunpack.c.l.b16 %v1013
        %v1086 = vunpack.c.l.b16 %v1014
        %v1087 = vunpack.c.l.b16 %v1015
        %v1088 = vunpack.c.l.b16 %v1016
        %v1089 = vunpack.c.l.b16 %v1017
        %v1090 = vunpack.c.l.b16 %v1018
        %v1091 = vunpack.c.l.b16 %v1019
        %v1092 = vunpack.c.l.b16 %v1020
        %v1093 = vunpack.c.l.b16 %v1021
        %v1094 = vunpack.c.l.b16 %v1022
        %v1095 = vunpack.c.l.b16 %v1023
        %v1096 = vunpack.c.l.b16 %v1024
        %v1097 = vunpack.c.l.b16 %v1025
        %v1098 = vunpack.c.l.b16 %v1026
        %v1099 = vunpack.c.l.b16 %v1027
        %v1100 = vunpack.c.l.b16 %v1028
        %v1101 = vunpack.c.l.b16 %v1029
        %v1102 = vunpack.c.l.b16 %v1030
        %v1103 = vunpack.c.l.b16 %v1031
        %v1104 = vunpack.c.l.b16 %v1032
        %v1105 = vunpack.c.l.b16 %v1033
        %v1106 = vunpack.c.l.b16 %v1034
        %v1107 = vunpack.c.l.b16 %v1035
        %v1108 = vunpack.c.l.b16 %v1036
        %v1109 = vunpack.c.l.b16 %v1037
        %v1110 = vunpack.c.l.b16 %v1038
        %v1111 = vunpack.c.l.b16 %v1039
        %v1112 = vunpack.c.l.b16 %v1040
        %v1113 = vunpack.c.l.b16 %v1041
        %v1114 = vunpack.c.l.b16 %v1042
        %v1115 = vunpack.c.l.b16 %v1043
        %v1116 = vunpack.c.l.b16 %v1044
        %v1117 = vunpack.c.l.b16 %v1045
        %v1118 = vpack.c.b16 %v1083, %v1082
        %v1119 = vpack.c.b16 %v1085, %v1084
        %v1120 = vpack.c.b16 %v1087, %v1086
        %v1121 = vpack.c.b16 %v1089, %v1088
        %v1122 = vpack.c.b16 %v1091, %v1090
        %v1123 = vpack.c.b16 %v1093, %v1092
        %v1124 = vpack.c.b16 %v1095, %v1094
        %v1125 = vpack.c.b16 %v1097, %v1096
        %v1126 = vpack.c.b16 %v1099, %v1098
        %v1127 = vpack.c.b16 %v1101, %v1100
        %v1128 = vpack.c.b16 %v1103, %v1102
        %v1129 = vpack.c.b16 %v1105, %v1104
        %v1130 = vpack.c.b16 %v1107, %v1106
        %v1131 = vpack.c.b16 %v1109, %v1108
        %v1132 = vpack.c.b16 %v1111, %v1110
        %v1133 = vpack.c.b16 %v1113, %v1112
        %v1134 = vpack.c.b16 %v1115, %v1114
        %v1135 = vpack.c.b16 %v1117, %v1116
        %vm1154 = vcmask 261120
        %v1156 = vsel %vm1154, %v1006, 0
        %v1159 = vsel %vm1154, %v1009, 0
        %1161 = vmatpush.bf16.msra.mxu0 %v1125
        %1162 = vmatpush.bf16.msra.mxu0 %v1124
        %1163 = vmatpush.bf16.msra.mxu0 %v1123
        %1164 = vmatpush.bf16.msra.mxu0 %v1122
        %1165 = vmatpush.bf16.msra.mxu0 %v1121
        %1166 = vmatpush.bf16.msra.mxu0 %v1120
        %1167 = vmatpush.bf16.msra.mxu0 %v1119
        %1168 = vmatpush.bf16.msra.mxu0 %v1118
        %1169 = vmatmul.bf16.gmra.mxu0 %v1004
        %v1170 = vpop.f32.mrf.mxu0
        %v1171 = vadd.f32 0.0, %v1170
        %v1172 = vpop.f32.mrf.mxu0
        %v1173 = vadd.f32 0.0, %v1172
        %1174 = vmatmul.bf16.gmra.mxu0 %v1007
        %v1175 = vpop.f32.mrf.mxu0
        %v1176 = vadd.f32 0.0, %v1175
        %v1177 = vpop.f32.mrf.mxu0
        %v1178 = vadd.f32 0.0, %v1177
        %1179 = vdwg.mxu0
        %1180 = vmatpush.bf16.msra.mxu0 %v1133
        %1181 = vmatpush.bf16.msra.mxu0 %v1132
        %1182 = vmatpush.bf16.msra.mxu0 %v1131
        %1183 = vmatpush.bf16.msra.mxu0 %v1130
        %1184 = vmatpush.bf16.msra.mxu0 %v1129
        %1185 = vmatpush.bf16.msra.mxu0 %v1128
        %1186 = vmatpush.bf16.msra.mxu0 %v1127
        %1187 = vmatpush.bf16.msra.mxu0 %v1126
        %1188 = vmatmul.bf16.gmra.mxu0 %v1005
        %v1189 = vpop.f32.mrf.mxu0
        %v1190 = vadd.f32 %v1171, %v1189
        %v1191 = vpop.f32.mrf.mxu0
        %v1192 = vadd.f32 %v1173, %v1191
        %1193 = vmatmul.bf16.gmra.mxu0 %v1008
        %v1194 = vpop.f32.mrf.mxu0
        %v1195 = vadd.f32 %v1176, %v1194
        %v1196 = vpop.f32.mrf.mxu0
        %v1197 = vadd.f32 %v1178, %v1196
        %1198 = vdwg.mxu0
        %1199 = vmatpush.bf16.msra.mxu0 0
        %1200 = vmatpush.bf16.msra.mxu0 0
        %1201 = vmatpush.bf16.msra.mxu0 0
        %1202 = vmatpush.bf16.msra.mxu0 0
        %1203 = vmatpush.bf16.msra.mxu0 0
        %1204 = vmatpush.bf16.msra.mxu0 0
        %1205 = vmatpush.bf16.msra.mxu0 %v1135
        %1206 = vmatpush.bf16.msra.mxu0 %v1134
        %1207 = vmatmul.bf16.gmra.mxu0 %v1156
        %v1208 = vpop.f32.mrf.mxu0
        %v1209 = vadd.f32 %v1190, %v1208
        %v1210 = vpop.f32.mrf.mxu0
        %v1211 = vadd.f32 %v1192, %v1210
        %1212 = vmatmul.bf16.gmra.mxu0 %v1159
        %v1213 = vpop.f32.mrf.mxu0
        %v1214 = vadd.f32 %v1195, %v1213
        %v1215 = vpop.f32.mrf.mxu0
        %v1216 = vadd.f32 %v1197, %v1215
        %1217 = vdwg.mxu0
        %v1219 = vperm.slane %v495, 0
        %v1221 = vmul.f32 %v1209, %v1219
        %v1222 = vmul.f32 %v1211, %v1219
        %v1223 = vmul.f32 %v1214, %v1219
        %v1224 = vmul.f32 %v1216, %v1219
        %v1225 = vld [vmem:[%s6] sm:$0xff]
        %v1226 = vld [vmem:[%s6 + $0x8] sm:$0xff]
        %v1227 = vld [vmem:[%s6 + $0x10] sm:$0xff]
        %v1228 = vld [vmem:[%s6 + $0x18] sm:$0xff]
        %v1229 = vadd.f32 %v1221, %v1225
        %v1230 = vadd.f32 %v1222, %v1226
        %v1231 = vadd.f32 %v1223, %v1227
        %v1232 = vadd.f32 %v1224, %v1228
        %v1233 = vmax.f32 %v1229, 0.0
        %v1234 = vmax.f32 %v1230, 0.0
        %v1235 = vmax.f32 %v1231, 0.0
        %v1236 = vmax.f32 %v1232, 0.0
        %vm1237 = vcmask 523264
        %1238 = vst.msk [vmem:[#allocation2] sm:$0xff] %vm1237, %v1233
        %1239 = vst.msk [vmem:[#allocation2 + $0x28] sm:$0xff] %vm1237, %v1234
        %1240 = vst.msk [vmem:[#allocation2 + $0x50] sm:$0xff] %vm1237, %v1235
        %1241 = vst.msk [vmem:[#allocation2 + $0x78] sm:$0xff] %vm1237, %v1236
        %v1242 = vld [vmem:[%s491 + $0x20] sm:$0xff]
        %v1243 = vld [vmem:[%s491 + $0x28] sm:$0xff]
        %v1244 = vld [vmem:[%s491 + $0x30] sm:$0xff]
        %v1245 = vld [vmem:[%s491 + $0x38] sm:$0xff]
        %v1246 = vld [vmem:[%s1] sm:$0xff]
        %v1247 = vld [vmem:[%s1 + $0x8] sm:$0xf]
        %v1248 = vld [vmem:[%s1 + $0xc] sm:$0xff]
        %v1249 = vld [vmem:[%s1 + $0x14] sm:$0xf]
        %v1250 = vld [vmem:[%s1 + $0x18] sm:$0xff]
        %v1251 = vld [vmem:[%s1 + $0x20] sm:$0xf]
        %v1252 = vld [vmem:[%s1 + $0x24] sm:$0xff]
        %v1253 = vld [vmem:[%s1 + $0x2c] sm:$0xf]
        %v1254 = vld [vmem:[%s1 + $0x30] sm:$0xff]
        %v1255 = vld [vmem:[%s1 + $0x38] sm:$0xf]
        %v1256 = vld [vmem:[%s1 + $0x3c] sm:$0xff]
        %v1257 = vld [vmem:[%s1 + $0x44] sm:$0xf]
        %v1258 = vld [vmem:[%s1 + $0x48] sm:$0xff]
        %v1259 = vld [vmem:[%s1 + $0x50] sm:$0xf]
        %v1260 = vld [vmem:[%s1 + $0x54] sm:$0xff]
        %v1261 = vld [vmem:[%s1 + $0x5c] sm:$0xf]
        %v1262 = vld [vmem:[%s1 + $0x60] sm:$0xff]
        %v1263 = vld [vmem:[%s1 + $0x68] sm:$0xf]
        %v1264 = vld [vmem:[%s1 + $0x6c] sm:$0xff]
        %v1265 = vld [vmem:[%s1 + $0x74] sm:$0xf]
        %v1266 = vld [vmem:[%s1 + $0x78] sm:$0xff]
        %v1267 = vld [vmem:[%s1 + $0x80] sm:$0xf]
        %v1268 = vld [vmem:[%s1 + $0x84] sm:$0xff]
        %v1269 = vld [vmem:[%s1 + $0x8c] sm:$0xf]
        %v1270 = vld [vmem:[%s1 + $0x90] sm:$0xff]
        %v1271 = vld [vmem:[%s1 + $0x98] sm:$0xf]
        %v1272 = vld [vmem:[%s1 + $0x9c] sm:$0xff]
        %v1273 = vld [vmem:[%s1 + $0xa4] sm:$0xf]
        %v1274 = vld [vmem:[%s1 + $0xa8] sm:$0xff]
        %v1275 = vld [vmem:[%s1 + $0xb0] sm:$0xf]
        %v1276 = vld [vmem:[%s1 + $0xb4] sm:$0xff]
        %v1277 = vld [vmem:[%s1 + $0xbc] sm:$0xf]
        %v1278 = vld [vmem:[%s1 + $0xc0] sm:$0xff]
        %v1279 = vld [vmem:[%s1 + $0xc8] sm:$0xf]
        %v1280 = vld [vmem:[%s1 + $0xcc] sm:$0xff]
        %v1281 = vld [vmem:[%s1 + $0xd4] sm:$0xf]
        %v1282 = vld [vmem:[%s1 + $0xd8] sm:$0xff]
        %v1283 = vld [vmem:[%s1 + $0xe0] sm:$0xf]
        %v1284 = vld [vmem:[%s1 + $0xe4] sm:$0xff]
        %v1285 = vld [vmem:[%s1 + $0xec] sm:$0xf]
        %v1286 = vld [vmem:[%s1 + $0xf0] sm:$0xff]
        %v1287 = vld [vmem:[%s1 + $0xf8] sm:$0xf]
        %v1288 = vld [vmem:[%s1 + $0xfc] sm:$0xff]
        %v1289 = vld [vmem:[%s1 + $0x104] sm:$0xf]
        %v1290 = vld [vmem:[%s1 + $0x108] sm:$0xff]
        %v1291 = vld [vmem:[%s1 + $0x110] sm:$0xf]
        %v1292 = vld [vmem:[%s1 + $0x114] sm:$0xff]
        %v1293 = vld [vmem:[%s1 + $0x11c] sm:$0xf]
        %v1294 = vld [vmem:[%s1 + $0x120] sm:$0xff]
        %v1295 = vld [vmem:[%s1 + $0x128] sm:$0xf]
        %v1296 = vld [vmem:[%s1 + $0x12c] sm:$0xff]
        %v1297 = vld [vmem:[%s1 + $0x134] sm:$0xf]
        %v1298 = vld [vmem:[%s1 + $0x138] sm:$0xff]
        %v1299 = vld [vmem:[%s1 + $0x140] sm:$0xf]
        %v1300 = vld [vmem:[%s1 + $0x144] sm:$0xff]
        %v1301 = vld [vmem:[%s1 + $0x14c] sm:$0xf]
        %v1302 = vld [vmem:[%s1 + $0x150] sm:$0xff]
        %v1303 = vld [vmem:[%s1 + $0x158] sm:$0xf]
        %v1304 = vld [vmem:[%s1 + $0x15c] sm:$0xff]
        %v1305 = vld [vmem:[%s1 + $0x164] sm:$0xf]
        %v1306 = vld [vmem:[%s1 + $0x168] sm:$0xff]
        %v1307 = vld [vmem:[%s1 + $0x170] sm:$0xf]
        %v1308 = vld [vmem:[%s1 + $0x174] sm:$0xff]
        %v1309 = vld [vmem:[%s1 + $0x17c] sm:$0xf]
        %v1314 = vunpack.c.l.b16 %v1242
        %v1315 = vunpack.c.h.b16 %v1242
        %v1316 = vunpack.c.l.b16 %v1243
        %v1317 = vunpack.c.h.b16 %v1243
        %v1318 = vunpack.c.l.b16 %v1244
        %v1319 = vunpack.c.h.b16 %v1244
        %v1320 = vunpack.c.l.b16 %v1245
        %v1321 = vunpack.c.h.b16 %v1245
        %v1322 = vpack.c.b16 %v1316, %v1314
        %v1323 = vpack.c.b16 %v1317, %v1315
        %v1324 = vpack.c.b16 %v1320, %v1318
        %v1325 = vpack.c.b16 %v1321, %v1319
        %v1394 = vunpack.c.l.b16 %v1246
        %v1395 = vunpack.c.h.b16 %v1246
        %v1396 = vunpack.c.l.b16 %v1247
        %v1397 = vunpack.c.l.b16 %v1248
        %v1398 = vunpack.c.h.b16 %v1248
        %v1399 = vunpack.c.l.b16 %v1249
        %v1400 = vunpack.c.l.b16 %v1250
        %v1401 = vunpack.c.h.b16 %v1250
        %v1402 = vunpack.c.l.b16 %v1251
        %v1403 = vunpack.c.l.b16 %v1252
        %v1404 = vunpack.c.h.b16 %v1252
        %v1405 = vunpack.c.l.b16 %v1253
        %v1406 = vunpack.c.l.b16 %v1254
        %v1407 = vunpack.c.h.b16 %v1254
        %v1408 = vunpack.c.l.b16 %v1255
        %v1409 = vunpack.c.l.b16 %v1256
        %v1410 = vunpack.c.h.b16 %v1256
        %v1411 = vunpack.c.l.b16 %v1257
        %v1412 = vunpack.c.l.b16 %v1258
        %v1413 = vunpack.c.h.b16 %v1258
        %v1414 = vunpack.c.l.b16 %v1259
        %v1415 = vunpack.c.l.b16 %v1260
        %v1416 = vunpack.c.h.b16 %v1260
        %v1417 = vunpack.c.l.b16 %v1261
        %v1418 = vunpack.c.l.b16 %v1262
        %v1419 = vunpack.c.h.b16 %v1262
        %v1420 = vunpack.c.l.b16 %v1263
        %v1421 = vunpack.c.l.b16 %v1264
        %v1422 = vunpack.c.h.b16 %v1264
        %v1423 = vunpack.c.l.b16 %v1265
        %v1424 = vunpack.c.l.b16 %v1266
        %v1425 = vunpack.c.h.b16 %v1266
        %v1426 = vunpack.c.l.b16 %v1267
        %v1427 = vunpack.c.l.b16 %v1268
        %v1428 = vunpack.c.h.b16 %v1268
        %v1429 = vunpack.c.l.b16 %v1269
        %v1430 = vunpack.c.l.b16 %v1270
        %v1431 = vunpack.c.h.b16 %v1270
        %v1432 = vunpack.c.l.b16 %v1271
        %v1433 = vunpack.c.l.b16 %v1272
        %v1434 = vunpack.c.h.b16 %v1272
        %v1435 = vunpack.c.l.b16 %v1273
        %v1436 = vunpack.c.l.b16 %v1274
        %v1437 = vunpack.c.h.b16 %v1274
        %v1438 = vunpack.c.l.b16 %v1275
        %v1439 = vunpack.c.l.b16 %v1276
        %v1440 = vunpack.c.h.b16 %v1276
        %v1441 = vunpack.c.l.b16 %v1277
        %v1442 = vunpack.c.l.b16 %v1278
        %v1443 = vunpack.c.h.b16 %v1278
        %v1444 = vunpack.c.l.b16 %v1279
        %v1445 = vunpack.c.l.b16 %v1280
        %v1446 = vunpack.c.h.b16 %v1280
        %v1447 = vunpack.c.l.b16 %v1281
        %v1448 = vunpack.c.l.b16 %v1282
        %v1449 = vunpack.c.h.b16 %v1282
        %v1450 = vunpack.c.l.b16 %v1283
        %v1451 = vunpack.c.l.b16 %v1284
        %v1452 = vunpack.c.h.b16 %v1284
        %v1453 = vunpack.c.l.b16 %v1285
        %v1454 = vunpack.c.l.b16 %v1286
        %v1455 = vunpack.c.h.b16 %v1286
        %v1456 = vunpack.c.l.b16 %v1287
        %v1457 = vunpack.c.l.b16 %v1288
        %v1458 = vunpack.c.h.b16 %v1288
        %v1459 = vunpack.c.l.b16 %v1289
        %v1460 = vunpack.c.l.b16 %v1290
        %v1461 = vunpack.c.h.b16 %v1290
        %v1462 = vunpack.c.l.b16 %v1291
        %v1463 = vunpack.c.l.b16 %v1292
        %v1464 = vunpack.c.h.b16 %v1292
        %v1465 = vunpack.c.l.b16 %v1293
        %v1466 = vunpack.c.l.b16 %v1294
        %v1467 = vunpack.c.h.b16 %v1294
        %v1468 = vunpack.c.l.b16 %v1295
        %v1469 = vunpack.c.l.b16 %v1296
        %v1470 = vunpack.c.h.b16 %v1296
        %v1471 = vunpack.c.l.b16 %v1297
        %v1472 = vunpack.c.l.b16 %v1298
        %v1473 = vunpack.c.h.b16 %v1298
        %v1474 = vunpack.c.l.b16 %v1299
        %v1475 = vunpack.c.l.b16 %v1300
        %v1476 = vunpack.c.h.b16 %v1300
        %v1477 = vunpack.c.l.b16 %v1301
        %v1478 = vunpack.c.l.b16 %v1302
        %v1479 = vunpack.c.h.b16 %v1302
        %v1480 = vunpack.c.l.b16 %v1303
        %v1481 = vunpack.c.l.b16 %v1304
        %v1482 = vunpack.c.h.b16 %v1304
        %v1483 = vunpack.c.l.b16 %v1305
        %v1484 = vunpack.c.l.b16 %v1306
        %v1485 = vunpack.c.h.b16 %v1306
        %v1486 = vunpack.c.l.b16 %v1307
        %v1487 = vunpack.c.l.b16 %v1308
        %v1488 = vunpack.c.h.b16 %v1308
        %v1489 = vunpack.c.l.b16 %v1309
        %v1490 = vpack.c.b16 %v1397, %v1394
        %v1491 = vpack.c.b16 %v1398, %v1395
        %v1492 = vpack.c.b16 %v1399, %v1396
        %v1493 = vpack.c.b16 %v1403, %v1400
        %v1494 = vpack.c.b16 %v1404, %v1401
        %v1495 = vpack.c.b16 %v1405, %v1402
        %v1496 = vpack.c.b16 %v1409, %v1406
        %v1497 = vpack.c.b16 %v1410, %v1407
        %v1498 = vpack.c.b16 %v1411, %v1408
        %v1499 = vpack.c.b16 %v1415, %v1412
        %v1500 = vpack.c.b16 %v1416, %v1413
        %v1501 = vpack.c.b16 %v1417, %v1414
        %v1502 = vpack.c.b16 %v1421, %v1418
        %v1503 = vpack.c.b16 %v1422, %v1419
        %v1504 = vpack.c.b16 %v1423, %v1420
        %v1505 = vpack.c.b16 %v1427, %v1424
        %v1506 = vpack.c.b16 %v1428, %v1425
        %v1507 = vpack.c.b16 %v1429, %v1426
        %v1508 = vpack.c.b16 %v1433, %v1430
        %v1509 = vpack.c.b16 %v1434, %v1431
        %v1510 = vpack.c.b16 %v1435, %v1432
        %v1511 = vpack.c.b16 %v1439, %v1436
        %v1512 = vpack.c.b16 %v1440, %v1437
        %v1513 = vpack.c.b16 %v1441, %v1438
        %v1514 = vpack.c.b16 %v1445, %v1442
        %v1515 = vpack.c.b16 %v1446, %v1443
        %v1516 = vpack.c.b16 %v1447, %v1444
        %v1517 = vpack.c.b16 %v1451, %v1448
        %v1518 = vpack.c.b16 %v1452, %v1449
        %v1519 = vpack.c.b16 %v1453, %v1450
        %v1520 = vpack.c.b16 %v1457, %v1454
        %v1521 = vpack.c.b16 %v1458, %v1455
        %v1522 = vpack.c.b16 %v1459, %v1456
        %v1523 = vpack.c.b16 %v1463, %v1460
        %v1524 = vpack.c.b16 %v1464, %v1461
        %v1525 = vpack.c.b16 %v1465, %v1462
        %v1526 = vpack.c.b16 %v1469, %v1466
        %v1527 = vpack.c.b16 %v1470, %v1467
        %v1528 = vpack.c.b16 %v1471, %v1468
        %v1529 = vpack.c.b16 %v1475, %v1472
        %v1530 = vpack.c.b16 %v1476, %v1473
        %v1531 = vpack.c.b16 %v1477, %v1474
        %v1532 = vpack.c.b16 %v1481, %v1478
        %v1533 = vpack.c.b16 %v1482, %v1479
        %v1534 = vpack.c.b16 %v1483, %v1480
        %v1535 = vpack.c.b16 %v1487, %v1484
        %v1536 = vpack.c.b16 %v1488, %v1485
        %v1537 = vpack.c.b16 %v1489, %v1486
        %1586 = vmatpush.bf16.msra.mxu0 %v1511
        %1587 = vmatpush.bf16.msra.mxu0 %v1508
        %1588 = vmatpush.bf16.msra.mxu0 %v1505
        %1589 = vmatpush.bf16.msra.mxu0 %v1502
        %1590 = vmatpush.bf16.msra.mxu0 %v1499
        %1591 = vmatpush.bf16.msra.mxu0 %v1496
        %1592 = vmatpush.bf16.msra.mxu0 %v1493
        %1593 = vmatpush.bf16.msra.mxu0 %v1490
        %1594 = vmatmul.bf16.gmra.mxu0 %v1322
        %v1595 = vpop.f32.mrf.mxu0
        %v1596 = vadd.f32 0.0, %v1595
        %v1597 = vpop.f32.mrf.mxu0
        %v1598 = vadd.f32 0.0, %v1597
        %1599 = vmatmul.bf16.gmra.mxu0 %v1324
        %v1600 = vpop.f32.mrf.mxu0
        %v1601 = vadd.f32 0.0, %v1600
        %v1602 = vpop.f32.mrf.mxu0
        %v1603 = vadd.f32 0.0, %v1602
        %1604 = vdwg.mxu0
        %1605 = vmatpush.bf16.msra.mxu0 %v1535
        %1606 = vmatpush.bf16.msra.mxu0 %v1532
        %1607 = vmatpush.bf16.msra.mxu0 %v1529
        %1608 = vmatpush.bf16.msra.mxu0 %v1526
        %1609 = vmatpush.bf16.msra.mxu0 %v1523
        %1610 = vmatpush.bf16.msra.mxu0 %v1520
        %1611 = vmatpush.bf16.msra.mxu0 %v1517
        %1612 = vmatpush.bf16.msra.mxu0 %v1514
        %1613 = vmatmul.bf16.gmra.mxu0 %v1323
        %v1614 = vpop.f32.mrf.mxu0
        %v1615 = vadd.f32 %v1596, %v1614
        %v1616 = vpop.f32.mrf.mxu0
        %v1617 = vadd.f32 %v1598, %v1616
        %1618 = vmatmul.bf16.gmra.mxu0 %v1325
        %v1619 = vpop.f32.mrf.mxu0
        %v1620 = vadd.f32 %v1601, %v1619
        %v1621 = vpop.f32.mrf.mxu0
        %v1622 = vadd.f32 %v1603, %v1621
        %1623 = vdwg.mxu0
        %1624 = vmatpush.bf16.msra.mxu0 %v1512
        %1625 = vmatpush.bf16.msra.mxu0 %v1509
        %1626 = vmatpush.bf16.msra.mxu0 %v1506
        %1627 = vmatpush.bf16.msra.mxu0 %v1503
        %1628 = vmatpush.bf16.msra.mxu0 %v1500
        %1629 = vmatpush.bf16.msra.mxu0 %v1497
        %1630 = vmatpush.bf16.msra.mxu0 %v1494
        %1631 = vmatpush.bf16.msra.mxu0 %v1491
        %1632 = vmatmul.bf16.gmra.mxu0 %v1322
        %v1633 = vpop.f32.mrf.mxu0
        %v1634 = vadd.f32 0.0, %v1633
        %v1635 = vpop.f32.mrf.mxu0
        %v1636 = vadd.f32 0.0, %v1635
        %1637 = vmatmul.bf16.gmra.mxu0 %v1324
        %v1638 = vpop.f32.mrf.mxu0
        %v1639 = vadd.f32 0.0, %v1638
        %v1640 = vpop.f32.mrf.mxu0
        %v1641 = vadd.f32 0.0, %v1640
        %1642 = vdwg.mxu0
        %1643 = vmatpush.bf16.msra.mxu0 %v1536
        %1644 = vmatpush.bf16.msra.mxu0 %v1533
        %1645 = vmatpush.bf16.msra.mxu0 %v1530
        %1646 = vmatpush.bf16.msra.mxu0 %v1527
        %1647 = vmatpush.bf16.msra.mxu0 %v1524
        %1648 = vmatpush.bf16.msra.mxu0 %v1521
        %1649 = vmatpush.bf16.msra.mxu0 %v1518
        %1650 = vmatpush.bf16.msra.mxu0 %v1515
        %1651 = vmatmul.bf16.gmra.mxu0 %v1323
        %v1652 = vpop.f32.mrf.mxu0
        %v1653 = vadd.f32 %v1634, %v1652
        %v1654 = vpop.f32.mrf.mxu0
        %v1655 = vadd.f32 %v1636, %v1654
        %1656 = vmatmul.bf16.gmra.mxu0 %v1325
        %v1657 = vpop.f32.mrf.mxu0
        %v1658 = vadd.f32 %v1639, %v1657
        %v1659 = vpop.f32.mrf.mxu0
        %v1660 = vadd.f32 %v1641, %v1659
        %1661 = vdwg.mxu0
        %1662 = vmatpush.bf16.msra.mxu0 %v1513
        %1663 = vmatpush.bf16.msra.mxu0 %v1510
        %1664 = vmatpush.bf16.msra.mxu0 %v1507
        %1665 = vmatpush.bf16.msra.mxu0 %v1504
        %1666 = vmatpush.bf16.msra.mxu0 %v1501
        %1667 = vmatpush.bf16.msra.mxu0 %v1498
        %1668 = vmatpush.bf16.msra.mxu0 %v1495
        %1669 = vmatpush.bf16.msra.mxu0 %v1492
        %1670 = vmatmul.bf16.gmra.mxu0 %v1322
        %v1671 = vpop.f32.mrf.mxu0
        %v1672 = vadd.f32 0.0, %v1671
        %v1673 = vpop.f32.mrf.mxu0
        %v1674 = vadd.f32 0.0, %v1673
        %1675 = vmatmul.bf16.gmra.mxu0 %v1324
        %v1676 = vpop.f32.mrf.mxu0
        %v1677 = vadd.f32 0.0, %v1676
        %v1678 = vpop.f32.mrf.mxu0
        %v1679 = vadd.f32 0.0, %v1678
        %1680 = vdwg.mxu0
        %1681 = vmatpush.bf16.msra.mxu0 %v1537
        %1682 = vmatpush.bf16.msra.mxu0 %v1534
        %1683 = vmatpush.bf16.msra.mxu0 %v1531
        %1684 = vmatpush.bf16.msra.mxu0 %v1528
        %1685 = vmatpush.bf16.msra.mxu0 %v1525
        %1686 = vmatpush.bf16.msra.mxu0 %v1522
        %1687 = vmatpush.bf16.msra.mxu0 %v1519
        %1688 = vmatpush.bf16.msra.mxu0 %v1516
        %1689 = vmatmul.bf16.gmra.mxu0 %v1323
        %v1690 = vpop.f32.mrf.mxu0
        %v1691 = vadd.f32 %v1672, %v1690
        %v1692 = vpop.f32.mrf.mxu0
        %v1693 = vadd.f32 %v1674, %v1692
        %1694 = vmatmul.bf16.gmra.mxu0 %v1325
        %v1695 = vpop.f32.mrf.mxu0
        %v1696 = vadd.f32 %v1677, %v1695
        %v1697 = vpop.f32.mrf.mxu0
        %v1698 = vadd.f32 %v1679, %v1697
        %1699 = vdwg.mxu0
        %v1700 = vmul.f32 %v1615, %v955
        %v1701 = vmul.f32 %v1653, %v956
        %v1702 = vmul.f32 %v1691, %v957
        %v1703 = vmul.f32 %v1617, %v955
        %v1704 = vmul.f32 %v1655, %v956
        %v1705 = vmul.f32 %v1693, %v957
        %v1706 = vmul.f32 %v1620, %v955
        %v1707 = vmul.f32 %v1658, %v956
        %v1708 = vmul.f32 %v1696, %v957
        %v1709 = vmul.f32 %v1622, %v955
        %v1710 = vmul.f32 %v1660, %v956
        %v1711 = vmul.f32 %v1698, %v957
        %v1712 = vadd.f32 %v1700, %v974
        %v1713 = vadd.f32 %v1701, %v975
        %v1714 = vadd.f32 %v1702, %v976
        %v1715 = vadd.f32 %v1703, %v974
        %v1716 = vadd.f32 %v1704, %v975
        %v1717 = vadd.f32 %v1705, %v976
        %v1718 = vadd.f32 %v1706, %v974
        %v1719 = vadd.f32 %v1707, %v975
        %v1720 = vadd.f32 %v1708, %v976
        %v1721 = vadd.f32 %v1709, %v974
        %v1722 = vadd.f32 %v1710, %v975
        %v1723 = vadd.f32 %v1711, %v976
        %v1724 = vmax.f32 %v1712, 0.0
        %v1725 = vmax.f32 %v1713, 0.0
        %v1726 = vmax.f32 %v1714, 0.0
        %v1727 = vmax.f32 %v1715, 0.0
        %v1728 = vmax.f32 %v1716, 0.0
        %v1729 = vmax.f32 %v1717, 0.0
        %v1730 = vmax.f32 %v1718, 0.0
        %v1731 = vmax.f32 %v1719, 0.0
        %v1732 = vmax.f32 %v1720, 0.0
        %v1733 = vmax.f32 %v1721, 0.0
        %v1734 = vmax.f32 %v1722, 0.0
        %v1735 = vmax.f32 %v1723, 0.0
        %v1736 = vpack.c.bf16 %v1727, %v1724
        %v1737 = vpack.c.bf16 %v1728, %v1725
        %v1738 = vpack.c.bf16 %v1729, %v1726
        %v1739 = vpack.c.bf16 %v1733, %v1730
        %v1740 = vpack.c.bf16 %v1734, %v1731
        %v1741 = vpack.c.bf16 %v1735, %v1732
        %v1742 = vld [vmem:[%s4] sm:$0xf]
        %v1743 = vld [vmem:[%s4 + $0x4] sm:$0xf]
        %v1744 = vld [vmem:[%s4 + $0x8] sm:$0xf]
        %v1745 = vld [vmem:[%s4 + $0xc] sm:$0xf]
        %v1746 = vld [vmem:[%s4 + $0x10] sm:$0xf]
        %v1747 = vld [vmem:[%s4 + $0x14] sm:$0xf]
        %v1748 = vld [vmem:[%s4 + $0x18] sm:$0xf]
        %v1749 = vld [vmem:[%s4 + $0x1c] sm:$0xf]
        %v1750 = vld [vmem:[%s4 + $0x20] sm:$0xf]
        %v1751 = vld [vmem:[%s4 + $0x24] sm:$0xf]
        %v1752 = vld [vmem:[%s4 + $0x28] sm:$0xf]
        %v1753 = vld [vmem:[%s4 + $0x2c] sm:$0xf]
        %v1754 = vld [vmem:[%s4 + $0x30] sm:$0xf]
        %v1755 = vld [vmem:[%s4 + $0x34] sm:$0xf]
        %v1756 = vld [vmem:[%s4 + $0x38] sm:$0xf]
        %v1757 = vld [vmem:[%s4 + $0x3c] sm:$0xf]
        %v1758 = vld [vmem:[%s4 + $0x40] sm:$0xf]
        %v1759 = vld [vmem:[%s4 + $0x44] sm:$0xf]
        %v1760 = vld [vmem:[%s4 + $0x48] sm:$0xf]
        %v1761 = vld [vmem:[%s4 + $0x4c] sm:$0xf]
        %v1762 = vld [vmem:[%s4 + $0x50] sm:$0xf]
        %v1763 = vld [vmem:[%s4 + $0x54] sm:$0xf]
        %v1764 = vld [vmem:[%s4 + $0x58] sm:$0xf]
        %v1765 = vld [vmem:[%s4 + $0x5c] sm:$0xf]
        %v1766 = vld [vmem:[%s4 + $0x60] sm:$0xf]
        %v1767 = vld [vmem:[%s4 + $0x64] sm:$0xf]
        %v1768 = vld [vmem:[%s4 + $0x68] sm:$0xf]
        %v1769 = vld [vmem:[%s4 + $0x6c] sm:$0xf]
        %v1770 = vld [vmem:[%s4 + $0x70] sm:$0xf]
        %v1771 = vld [vmem:[%s4 + $0x74] sm:$0xf]
        %v1772 = vld [vmem:[%s4 + $0x78] sm:$0xf]
        %v1773 = vld [vmem:[%s4 + $0x7c] sm:$0xf]
        %v1774 = vld [vmem:[%s4 + $0x80] sm:$0xf]
        %v1775 = vld [vmem:[%s4 + $0x84] sm:$0xf]
        %v1776 = vld [vmem:[%s4 + $0x88] sm:$0xf]
        %v1777 = vld [vmem:[%s4 + $0x8c] sm:$0xf]
        %v1814 = vunpack.c.l.b16 %v1742
        %v1815 = vunpack.c.l.b16 %v1743
        %v1816 = vunpack.c.l.b16 %v1744
        %v1817 = vunpack.c.l.b16 %v1745
        %v1818 = vunpack.c.l.b16 %v1746
        %v1819 = vunpack.c.l.b16 %v1747
        %v1820 = vunpack.c.l.b16 %v1748
        %v1821 = vunpack.c.l.b16 %v1749
        %v1822 = vunpack.c.l.b16 %v1750
        %v1823 = vunpack.c.l.b16 %v1751
        %v1824 = vunpack.c.l.b16 %v1752
        %v1825 = vunpack.c.l.b16 %v1753
        %v1826 = vunpack.c.l.b16 %v1754
        %v1827 = vunpack.c.l.b16 %v1755
        %v1828 = vunpack.c.l.b16 %v1756
        %v1829 = vunpack.c.l.b16 %v1757
        %v1830 = vunpack.c.l.b16 %v1758
        %v1831 = vunpack.c.l.b16 %v1759
        %v1832 = vunpack.c.l.b16 %v1760
        %v1833 = vunpack.c.l.b16 %v1761
        %v1834 = vunpack.c.l.b16 %v1762
        %v1835 = vunpack.c.l.b16 %v1763
        %v1836 = vunpack.c.l.b16 %v1764
        %v1837 = vunpack.c.l.b16 %v1765
        %v1838 = vunpack.c.l.b16 %v1766
        %v1839 = vunpack.c.l.b16 %v1767
        %v1840 = vunpack.c.l.b16 %v1768
        %v1841 = vunpack.c.l.b16 %v1769
        %v1842 = vunpack.c.l.b16 %v1770
        %v1843 = vunpack.c.l.b16 %v1771
        %v1844 = vunpack.c.l.b16 %v1772
        %v1845 = vunpack.c.l.b16 %v1773
        %v1846 = vunpack.c.l.b16 %v1774
        %v1847 = vunpack.c.l.b16 %v1775
        %v1848 = vunpack.c.l.b16 %v1776
        %v1849 = vunpack.c.l.b16 %v1777
        %v1850 = vpack.c.b16 %v1815, %v1814
        %v1851 = vpack.c.b16 %v1817, %v1816
        %v1852 = vpack.c.b16 %v1819, %v1818
        %v1853 = vpack.c.b16 %v1821, %v1820
        %v1854 = vpack.c.b16 %v1823, %v1822
        %v1855 = vpack.c.b16 %v1825, %v1824
        %v1856 = vpack.c.b16 %v1827, %v1826
        %v1857 = vpack.c.b16 %v1829, %v1828
        %v1858 = vpack.c.b16 %v1831, %v1830
        %v1859 = vpack.c.b16 %v1833, %v1832
        %v1860 = vpack.c.b16 %v1835, %v1834
        %v1861 = vpack.c.b16 %v1837, %v1836
        %v1862 = vpack.c.b16 %v1839, %v1838
        %v1863 = vpack.c.b16 %v1841, %v1840
        %v1864 = vpack.c.b16 %v1843, %v1842
        %v1865 = vpack.c.b16 %v1845, %v1844
        %v1866 = vpack.c.b16 %v1847, %v1846
        %v1867 = vpack.c.b16 %v1849, %v1848
        %v1887 = vsel %vm1154, %v1738, 0
        %v1890 = vsel %vm1154, %v1741, 0
        %1892 = vmatpush.bf16.msra.mxu0 %v1857
        %1893 = vmatpush.bf16.msra.mxu0 %v1856
        %1894 = vmatpush.bf16.msra.mxu0 %v1855
        %1895 = vmatpush.bf16.msra.mxu0 %v1854
        %1896 = vmatpush.bf16.msra.mxu0 %v1853
        %1897 = vmatpush.bf16.msra.mxu0 %v1852
        %1898 = vmatpush.bf16.msra.mxu0 %v1851
        %1899 = vmatpush.bf16.msra.mxu0 %v1850
        %1900 = vmatmul.bf16.gmra.mxu0 %v1736
        %v1901 = vpop.f32.mrf.mxu0
        %v1902 = vadd.f32 0.0, %v1901
        %v1903 = vpop.f32.mrf.mxu0
        %v1904 = vadd.f32 0.0, %v1903
        %1905 = vmatmul.bf16.gmra.mxu0 %v1739
        %v1906 = vpop.f32.mrf.mxu0
        %v1907 = vadd.f32 0.0, %v1906
        %v1908 = vpop.f32.mrf.mxu0
        %v1909 = vadd.f32 0.0, %v1908
        %1910 = vdwg.mxu0
        %1911 = vmatpush.bf16.msra.mxu0 %v1865
        %1912 = vmatpush.bf16.msra.mxu0 %v1864
        %1913 = vmatpush.bf16.msra.mxu0 %v1863
        %1914 = vmatpush.bf16.msra.mxu0 %v1862
        %1915 = vmatpush.bf16.msra.mxu0 %v1861
        %1916 = vmatpush.bf16.msra.mxu0 %v1860
        %1917 = vmatpush.bf16.msra.mxu0 %v1859
        %1918 = vmatpush.bf16.msra.mxu0 %v1858
        %1919 = vmatmul.bf16.gmra.mxu0 %v1737
        %v1920 = vpop.f32.mrf.mxu0
        %v1921 = vadd.f32 %v1902, %v1920
        %v1922 = vpop.f32.mrf.mxu0
        %v1923 = vadd.f32 %v1904, %v1922
        %1924 = vmatmul.bf16.gmra.mxu0 %v1740
        %v1925 = vpop.f32.mrf.mxu0
        %v1926 = vadd.f32 %v1907, %v1925
        %v1927 = vpop.f32.mrf.mxu0
        %v1928 = vadd.f32 %v1909, %v1927
        %1929 = vdwg.mxu0
        %1930 = vmatpush.bf16.msra.mxu0 0
        %1931 = vmatpush.bf16.msra.mxu0 0
        %1932 = vmatpush.bf16.msra.mxu0 0
        %1933 = vmatpush.bf16.msra.mxu0 0
        %1934 = vmatpush.bf16.msra.mxu0 0
        %1935 = vmatpush.bf16.msra.mxu0 0
        %1936 = vmatpush.bf16.msra.mxu0 %v1867
        %1937 = vmatpush.bf16.msra.mxu0 %v1866
        %1938 = vmatmul.bf16.gmra.mxu0 %v1887
        %v1939 = vpop.f32.mrf.mxu0
        %v1940 = vadd.f32 %v1921, %v1939
        %v1941 = vpop.f32.mrf.mxu0
        %v1942 = vadd.f32 %v1923, %v1941
        %1943 = vmatmul.bf16.gmra.mxu0 %v1890
        %v1944 = vpop.f32.mrf.mxu0
        %v1945 = vadd.f32 %v1926, %v1944
        %v1946 = vpop.f32.mrf.mxu0
        %v1947 = vadd.f32 %v1928, %v1946
        %1948 = vdwg.mxu0
        %v1949 = vmul.f32 %v1940, %v1219
        %v1950 = vmul.f32 %v1942, %v1219
        %v1951 = vmul.f32 %v1945, %v1219
        %v1952 = vmul.f32 %v1947, %v1219
        %v1953 = vld [vmem:[%s6 + $0x20] sm:$0xff]
        %v1954 = vld [vmem:[%s6 + $0x28] sm:$0xff]
        %v1955 = vld [vmem:[%s6 + $0x30] sm:$0xff]
        %v1956 = vld [vmem:[%s6 + $0x38] sm:$0xff]
        %v1957 = vadd.f32 %v1949, %v1953
        %v1958 = vadd.f32 %v1950, %v1954
        %v1959 = vadd.f32 %v1951, %v1955
        %v1960 = vadd.f32 %v1952, %v1956
        %v1961 = vmax.f32 %v1957, 0.0
        %v1962 = vmax.f32 %v1958, 0.0
        %v1963 = vmax.f32 %v1959, 0.0
        %v1964 = vmax.f32 %v1960, 0.0
        %1969 = vrot.lane.b32.xlu0 %v1961, 64
        %v1970 = vpop.permute.xlu0 %1969
        %1971 = vrot.lane.b32.xlu0 %v1962, 64
        %v1972 = vpop.permute.xlu0 %1971
        %1973 = vrot.lane.b32.xlu0 %v1963, 64
        %v1974 = vpop.permute.xlu0 %1973
        %1975 = vrot.lane.b32.xlu0 %v1964, 64
        %v1976 = vpop.permute.xlu0 %1975
        %vm1981 = vcmask 1048064
        %1982 = vst.msk [vmem:[#allocation2] sm:$0xff] %vm1981, %v1970
        %1983 = vst.msk [vmem:[#allocation2 + $0x28] sm:$0xff] %vm1981, %v1972
        %1984 = vst.msk [vmem:[#allocation2 + $0x50] sm:$0xff] %vm1981, %v1974
        %1985 = vst.msk [vmem:[#allocation2 + $0x78] sm:$0xff] %vm1981, %v1976
        %v1986 = vld [vmem:[%s491 + $0x40] sm:$0xff]
        %v1987 = vld [vmem:[%s491 + $0x48] sm:$0xff]
        %v1988 = vld [vmem:[%s491 + $0x50] sm:$0xff]
        %v1989 = vld [vmem:[%s491 + $0x58] sm:$0xff]
        %v1990 = vld [vmem:[%s1] sm:$0xff]
        %v1991 = vld [vmem:[%s1 + $0x8] sm:$0xf]
        %v1992 = vld [vmem:[%s1 + $0xc] sm:$0xff]
        %v1993 = vld [vmem:[%s1 + $0x14] sm:$0xf]
        %v1994 = vld [vmem:[%s1 + $0x18] sm:$0xff]
        %v1995 = vld [vmem:[%s1 + $0x20] sm:$0xf]
        %v1996 = vld [vmem:[%s1 + $0x24] sm:$0xff]
        %v1997 = vld [vmem:[%s1 + $0x2c] sm:$0xf]
        %v1998 = vld [vmem:[%s1 + $0x30] sm:$0xff]
        %v1999 = vld [vmem:[%s1 + $0x38] sm:$0xf]
        %v2000 = vld [vmem:[%s1 + $0x3c] sm:$0xff]
        %v2001 = vld [vmem:[%s1 + $0x44] sm:$0xf]
        %v2002 = vld [vmem:[%s1 + $0x48] sm:$0xff]
        %v2003 = vld [vmem:[%s1 + $0x50] sm:$0xf]
        %v2004 = vld [vmem:[%s1 + $0x54] sm:$0xff]
        %v2005 = vld [vmem:[%s1 + $0x5c] sm:$0xf]
        %v2006 = vld [vmem:[%s1 + $0x60] sm:$0xff]
        %v2007 = vld [vmem:[%s1 + $0x68] sm:$0xf]
        %v2008 = vld [vmem:[%s1 + $0x6c] sm:$0xff]
        %v2009 = vld [vmem:[%s1 + $0x74] sm:$0xf]
        %v2010 = vld [vmem:[%s1 + $0x78] sm:$0xff]
        %v2011 = vld [vmem:[%s1 + $0x80] sm:$0xf]
        %v2012 = vld [vmem:[%s1 + $0x84] sm:$0xff]
        %v2013 = vld [vmem:[%s1 + $0x8c] sm:$0xf]
        %v2014 = vld [vmem:[%s1 + $0x90] sm:$0xff]
        %v2015 = vld [vmem:[%s1 + $0x98] sm:$0xf]
        %v2016 = vld [vmem:[%s1 + $0x9c] sm:$0xff]
        %v2017 = vld [vmem:[%s1 + $0xa4] sm:$0xf]
        %v2018 = vld [vmem:[%s1 + $0xa8] sm:$0xff]
        %v2019 = vld [vmem:[%s1 + $0xb0] sm:$0xf]
        %v2020 = vld [vmem:[%s1 + $0xb4] sm:$0xff]
        %v2021 = vld [vmem:[%s1 + $0xbc] sm:$0xf]
        %v2022 = vld [vmem:[%s1 + $0xc0] sm:$0xff]
        %v2023 = vld [vmem:[%s1 + $0xc8] sm:$0xf]
        %v2024 = vld [vmem:[%s1 + $0xcc] sm:$0xff]
        %v2025 = vld [vmem:[%s1 + $0xd4] sm:$0xf]
        %v2026 = vld [vmem:[%s1 + $0xd8] sm:$0xff]
        %v2027 = vld [vmem:[%s1 + $0xe0] sm:$0xf]
        %v2028 = vld [vmem:[%s1 + $0xe4] sm:$0xff]
        %v2029 = vld [vmem:[%s1 + $0xec] sm:$0xf]
        %v2030 = vld [vmem:[%s1 + $0xf0] sm:$0xff]
        %v2031 = vld [vmem:[%s1 + $0xf8] sm:$0xf]
        %v2032 = vld [vmem:[%s1 + $0xfc] sm:$0xff]
        %v2033 = vld [vmem:[%s1 + $0x104] sm:$0xf]
        %v2034 = vld [vmem:[%s1 + $0x108] sm:$0xff]
        %v2035 = vld [vmem:[%s1 + $0x110] sm:$0xf]
        %v2036 = vld [vmem:[%s1 + $0x114] sm:$0xff]
        %v2037 = vld [vmem:[%s1 + $0x11c] sm:$0xf]
        %v2038 = vld [vmem:[%s1 + $0x120] sm:$0xff]
        %v2039 = vld [vmem:[%s1 + $0x128] sm:$0xf]
        %v2040 = vld [vmem:[%s1 + $0x12c] sm:$0xff]
        %v2041 = vld [vmem:[%s1 + $0x134] sm:$0xf]
        %v2042 = vld [vmem:[%s1 + $0x138] sm:$0xff]
        %v2043 = vld [vmem:[%s1 + $0x140] sm:$0xf]
        %v2044 = vld [vmem:[%s1 + $0x144] sm:$0xff]
        %v2045 = vld [vmem:[%s1 + $0x14c] sm:$0xf]
        %v2046 = vld [vmem:[%s1 + $0x150] sm:$0xff]
        %v2047 = vld [vmem:[%s1 + $0x158] sm:$0xf]
        %v2048 = vld [vmem:[%s1 + $0x15c] sm:$0xff]
        %v2049 = vld [vmem:[%s1 + $0x164] sm:$0xf]
        %v2050 = vld [vmem:[%s1 + $0x168] sm:$0xff]
        %v2051 = vld [vmem:[%s1 + $0x170] sm:$0xf]
        %v2052 = vld [vmem:[%s1 + $0x174] sm:$0xff]
        %v2053 = vld [vmem:[%s1 + $0x17c] sm:$0xf]
        %v2058 = vunpack.c.l.b16 %v1986
        %v2059 = vunpack.c.h.b16 %v1986
        %v2060 = vunpack.c.l.b16 %v1987
        %v2061 = vunpack.c.h.b16 %v1987
        %v2062 = vunpack.c.l.b16 %v1988
        %v2063 = vunpack.c.h.b16 %v1988
        %v2064 = vunpack.c.l.b16 %v1989
        %v2065 = vunpack.c.h.b16 %v1989
        %v2066 = vpack.c.b16 %v2060, %v2058
        %v2067 = vpack.c.b16 %v2061, %v2059
        %v2068 = vpack.c.b16 %v2064, %v2062
        %v2069 = vpack.c.b16 %v2065, %v2063
        %v2138 = vunpack.c.l.b16 %v1990
        %v2139 = vunpack.c.h.b16 %v1990
        %v2140 = vunpack.c.l.b16 %v1991
        %v2141 = vunpack.c.l.b16 %v1992
        %v2142 = vunpack.c.h.b16 %v1992
        %v2143 = vunpack.c.l.b16 %v1993
        %v2144 = vunpack.c.l.b16 %v1994
        %v2145 = vunpack.c.h.b16 %v1994
        %v2146 = vunpack.c.l.b16 %v1995
        %v2147 = vunpack.c.l.b16 %v1996
        %v2148 = vunpack.c.h.b16 %v1996
        %v2149 = vunpack.c.l.b16 %v1997
        %v2150 = vunpack.c.l.b16 %v1998
        %v2151 = vunpack.c.h.b16 %v1998
        %v2152 = vunpack.c.l.b16 %v1999
        %v2153 = vunpack.c.l.b16 %v2000
        %v2154 = vunpack.c.h.b16 %v2000
        %v2155 = vunpack.c.l.b16 %v2001
        %v2156 = vunpack.c.l.b16 %v2002
        %v2157 = vunpack.c.h.b16 %v2002
        %v2158 = vunpack.c.l.b16 %v2003
        %v2159 = vunpack.c.l.b16 %v2004
        %v2160 = vunpack.c.h.b16 %v2004
        %v2161 = vunpack.c.l.b16 %v2005
        %v2162 = vunpack.c.l.b16 %v2006
        %v2163 = vunpack.c.h.b16 %v2006
        %v2164 = vunpack.c.l.b16 %v2007
        %v2165 = vunpack.c.l.b16 %v2008
        %v2166 = vunpack.c.h.b16 %v2008
        %v2167 = vunpack.c.l.b16 %v2009
        %v2168 = vunpack.c.l.b16 %v2010
        %v2169 = vunpack.c.h.b16 %v2010
        %v2170 = vunpack.c.l.b16 %v2011
        %v2171 = vunpack.c.l.b16 %v2012
        %v2172 = vunpack.c.h.b16 %v2012
        %v2173 = vunpack.c.l.b16 %v2013
        %v2174 = vunpack.c.l.b16 %v2014
        %v2175 = vunpack.c.h.b16 %v2014
        %v2176 = vunpack.c.l.b16 %v2015
        %v2177 = vunpack.c.l.b16 %v2016
        %v2178 = vunpack.c.h.b16 %v2016
        %v2179 = vunpack.c.l.b16 %v2017
        %v2180 = vunpack.c.l.b16 %v2018
        %v2181 = vunpack.c.h.b16 %v2018
        %v2182 = vunpack.c.l.b16 %v2019
        %v2183 = vunpack.c.l.b16 %v2020
        %v2184 = vunpack.c.h.b16 %v2020
        %v2185 = vunpack.c.l.b16 %v2021
        %v2186 = vunpack.c.l.b16 %v2022
        %v2187 = vunpack.c.h.b16 %v2022
        %v2188 = vunpack.c.l.b16 %v2023
        %v2189 = vunpack.c.l.b16 %v2024
        %v2190 = vunpack.c.h.b16 %v2024
        %v2191 = vunpack.c.l.b16 %v2025
        %v2192 = vunpack.c.l.b16 %v2026
        %v2193 = vunpack.c.h.b16 %v2026
        %v2194 = vunpack.c.l.b16 %v2027
        %v2195 = vunpack.c.l.b16 %v2028
        %v2196 = vunpack.c.h.b16 %v2028
        %v2197 = vunpack.c.l.b16 %v2029
        %v2198 = vunpack.c.l.b16 %v2030
        %v2199 = vunpack.c.h.b16 %v2030
        %v2200 = vunpack.c.l.b16 %v2031
        %v2201 = vunpack.c.l.b16 %v2032
        %v2202 = vunpack.c.h.b16 %v2032
        %v2203 = vunpack.c.l.b16 %v2033
        %v2204 = vunpack.c.l.b16 %v2034
        %v2205 = vunpack.c.h.b16 %v2034
        %v2206 = vunpack.c.l.b16 %v2035
        %v2207 = vunpack.c.l.b16 %v2036
        %v2208 = vunpack.c.h.b16 %v2036
        %v2209 = vunpack.c.l.b16 %v2037
        %v2210 = vunpack.c.l.b16 %v2038
        %v2211 = vunpack.c.h.b16 %v2038
        %v2212 = vunpack.c.l.b16 %v2039
        %v2213 = vunpack.c.l.b16 %v2040
        %v2214 = vunpack.c.h.b16 %v2040
        %v2215 = vunpack.c.l.b16 %v2041
        %v2216 = vunpack.c.l.b16 %v2042
        %v2217 = vunpack.c.h.b16 %v2042
        %v2218 = vunpack.c.l.b16 %v2043
        %v2219 = vunpack.c.l.b16 %v2044
        %v2220 = vunpack.c.h.b16 %v2044
        %v2221 = vunpack.c.l.b16 %v2045
        %v2222 = vunpack.c.l.b16 %v2046
        %v2223 = vunpack.c.h.b16 %v2046
        %v2224 = vunpack.c.l.b16 %v2047
        %v2225 = vunpack.c.l.b16 %v2048
        %v2226 = vunpack.c.h.b16 %v2048
        %v2227 = vunpack.c.l.b16 %v2049
        %v2228 = vunpack.c.l.b16 %v2050
        %v2229 = vunpack.c.h.b16 %v2050
        %v2230 = vunpack.c.l.b16 %v2051
        %v2231 = vunpack.c.l.b16 %v2052
        %v2232 = vunpack.c.h.b16 %v2052
        %v2233 = vunpack.c.l.b16 %v2053
        %v2234 = vpack.c.b16 %v2141, %v2138
        %v2235 = vpack.c.b16 %v2142, %v2139
        %v2236 = vpack.c.b16 %v2143, %v2140
        %v2237 = vpack.c.b16 %v2147, %v2144
        %v2238 = vpack.c.b16 %v2148, %v2145
        %v2239 = vpack.c.b16 %v2149, %v2146
        %v2240 = vpack.c.b16 %v2153, %v2150
        %v2241 = vpack.c.b16 %v2154, %v2151
        %v2242 = vpack.c.b16 %v2155, %v2152
        %v2243 = vpack.c.b16 %v2159, %v2156
        %v2244 = vpack.c.b16 %v2160, %v2157
        %v2245 = vpack.c.b16 %v2161, %v2158
        %v2246 = vpack.c.b16 %v2165, %v2162
        %v2247 = vpack.c.b16 %v2166, %v2163
        %v2248 = vpack.c.b16 %v2167, %v2164
        %v2249 = vpack.c.b16 %v2171, %v2168
        %v2250 = vpack.c.b16 %v2172, %v2169
        %v2251 = vpack.c.b16 %v2173, %v2170
        %v2252 = vpack.c.b16 %v2177, %v2174
        %v2253 = vpack.c.b16 %v2178, %v2175
        %v2254 = vpack.c.b16 %v2179, %v2176
        %v2255 = vpack.c.b16 %v2183, %v2180
        %v2256 = vpack.c.b16 %v2184, %v2181
        %v2257 = vpack.c.b16 %v2185, %v2182
        %v2258 = vpack.c.b16 %v2189, %v2186
        %v2259 = vpack.c.b16 %v2190, %v2187
        %v2260 = vpack.c.b16 %v2191, %v2188
        %v2261 = vpack.c.b16 %v2195, %v2192
        %v2262 = vpack.c.b16 %v2196, %v2193
        %v2263 = vpack.c.b16 %v2197, %v2194
        %v2264 = vpack.c.b16 %v2201, %v2198
        %v2265 = vpack.c.b16 %v2202, %v2199
        %v2266 = vpack.c.b16 %v2203, %v2200
        %v2267 = vpack.c.b16 %v2207, %v2204
        %v2268 = vpack.c.b16 %v2208, %v2205
        %v2269 = vpack.c.b16 %v2209, %v2206
        %v2270 = vpack.c.b16 %v2213, %v2210
        %v2271 = vpack.c.b16 %v2214, %v2211
        %v2272 = vpack.c.b16 %v2215, %v2212
        %v2273 = vpack.c.b16 %v2219, %v2216
        %v2274 = vpack.c.b16 %v2220, %v2217
        %v2275 = vpack.c.b16 %v2221, %v2218
        %v2276 = vpack.c.b16 %v2225, %v2222
        %v2277 = vpack.c.b16 %v2226, %v2223
        %v2278 = vpack.c.b16 %v2227, %v2224
        %v2279 = vpack.c.b16 %v2231, %v2228
        %v2280 = vpack.c.b16 %v2232, %v2229
        %v2281 = vpack.c.b16 %v2233, %v2230
        %2330 = vmatpush.bf16.msra.mxu0 %v2255
        %2331 = vmatpush.bf16.msra.mxu0 %v2252
        %2332 = vmatpush.bf16.msra.mxu0 %v2249
        %2333 = vmatpush.bf16.msra.mxu0 %v2246
        %2334 = vmatpush.bf16.msra.mxu0 %v2243
        %2335 = vmatpush.bf16.msra.mxu0 %v2240
        %2336 = vmatpush.bf16.msra.mxu0 %v2237
        %2337 = vmatpush.bf16.msra.mxu0 %v2234
        %2338 = vmatmul.bf16.gmra.mxu0 %v2066
        %v2339 = vpop.f32.mrf.mxu0
        %v2340 = vadd.f32 0.0, %v2339
        %v2341 = vpop.f32.mrf.mxu0
        %v2342 = vadd.f32 0.0, %v2341
        %2343 = vmatmul.bf16.gmra.mxu0 %v2068
        %v2344 = vpop.f32.mrf.mxu0
        %v2345 = vadd.f32 0.0, %v2344
        %v2346 = vpop.f32.mrf.mxu0
        %v2347 = vadd.f32 0.0, %v2346
        %2348 = vdwg.mxu0
        %2349 = vmatpush.bf16.msra.mxu0 %v2279
        %2350 = vmatpush.bf16.msra.mxu0 %v2276
        %2351 = vmatpush.bf16.msra.mxu0 %v2273
        %2352 = vmatpush.bf16.msra.mxu0 %v2270
        %2353 = vmatpush.bf16.msra.mxu0 %v2267
        %2354 = vmatpush.bf16.msra.mxu0 %v2264
        %2355 = vmatpush.bf16.msra.mxu0 %v2261
        %2356 = vmatpush.bf16.msra.mxu0 %v2258
        %2357 = vmatmul.bf16.gmra.mxu0 %v2067
        %v2358 = vpop.f32.mrf.mxu0
        %v2359 = vadd.f32 %v2340, %v2358
        %v2360 = vpop.f32.mrf.mxu0
        %v2361 = vadd.f32 %v2342, %v2360
        %2362 = vmatmul.bf16.gmra.mxu0 %v2069
        %v2363 = vpop.f32.mrf.mxu0
        %v2364 = vadd.f32 %v2345, %v2363
        %v2365 = vpop.f32.mrf.mxu0
        %v2366 = vadd.f32 %v2347, %v2365
        %2367 = vdwg.mxu0
        %2368 = vmatpush.bf16.msra.mxu0 %v2256
        %2369 = vmatpush.bf16.msra.mxu0 %v2253
        %2370 = vmatpush.bf16.msra.mxu0 %v2250
        %2371 = vmatpush.bf16.msra.mxu0 %v2247
        %2372 = vmatpush.bf16.msra.mxu0 %v2244
        %2373 = vmatpush.bf16.msra.mxu0 %v2241
        %2374 = vmatpush.bf16.msra.mxu0 %v2238
        %2375 = vmatpush.bf16.msra.mxu0 %v2235
        %2376 = vmatmul.bf16.gmra.mxu0 %v2066
        %v2377 = vpop.f32.mrf.mxu0
        %v2378 = vadd.f32 0.0, %v2377
        %v2379 = vpop.f32.mrf.mxu0
        %v2380 = vadd.f32 0.0, %v2379
        %2381 = vmatmul.bf16.gmra.mxu0 %v2068
        %v2382 = vpop.f32.mrf.mxu0
        %v2383 = vadd.f32 0.0, %v2382
        %v2384 = vpop.f32.mrf.mxu0
        %v2385 = vadd.f32 0.0, %v2384
        %2386 = vdwg.mxu0
        %2387 = vmatpush.bf16.msra.mxu0 %v2280
        %2388 = vmatpush.bf16.msra.mxu0 %v2277
        %2389 = vmatpush.bf16.msra.mxu0 %v2274
        %2390 = vmatpush.bf16.msra.mxu0 %v2271
        %2391 = vmatpush.bf16.msra.mxu0 %v2268
        %2392 = vmatpush.bf16.msra.mxu0 %v2265
        %2393 = vmatpush.bf16.msra.mxu0 %v2262
        %2394 = vmatpush.bf16.msra.mxu0 %v2259
        %2395 = vmatmul.bf16.gmra.mxu0 %v2067
        %v2396 = vpop.f32.mrf.mxu0
        %v2397 = vadd.f32 %v2378, %v2396
        %v2398 = vpop.f32.mrf.mxu0
        %v2399 = vadd.f32 %v2380, %v2398
        %2400 = vmatmul.bf16.gmra.mxu0 %v2069
        %v2401 = vpop.f32.mrf.mxu0
        %v2402 = vadd.f32 %v2383, %v2401
        %v2403 = vpop.f32.mrf.mxu0
        %v2404 = vadd.f32 %v2385, %v2403
        %2405 = vdwg.mxu0
        %2406 = vmatpush.bf16.msra.mxu0 %v2257
        %2407 = vmatpush.bf16.msra.mxu0 %v2254
        %2408 = vmatpush.bf16.msra.mxu0 %v2251
        %2409 = vmatpush.bf16.msra.mxu0 %v2248
        %2410 = vmatpush.bf16.msra.mxu0 %v2245
        %2411 = vmatpush.bf16.msra.mxu0 %v2242
        %2412 = vmatpush.bf16.msra.mxu0 %v2239
        %2413 = vmatpush.bf16.msra.mxu0 %v2236
        %2414 = vmatmul.bf16.gmra.mxu0 %v2066
        %v2415 = vpop.f32.mrf.mxu0
        %v2416 = vadd.f32 0.0, %v2415
        %v2417 = vpop.f32.mrf.mxu0
        %v2418 = vadd.f32 0.0, %v2417
        %2419 = vmatmul.bf16.gmra.mxu0 %v2068
        %v2420 = vpop.f32.mrf.mxu0
        %v2421 = vadd.f32 0.0, %v2420
        %v2422 = vpop.f32.mrf.mxu0
        %v2423 = vadd.f32 0.0, %v2422
        %2424 = vdwg.mxu0
        %2425 = vmatpush.bf16.msra.mxu0 %v2281
        %2426 = vmatpush.bf16.msra.mxu0 %v2278
        %2427 = vmatpush.bf16.msra.mxu0 %v2275
        %2428 = vmatpush.bf16.msra.mxu0 %v2272
        %2429 = vmatpush.bf16.msra.mxu0 %v2269
        %2430 = vmatpush.bf16.msra.mxu0 %v2266
        %2431 = vmatpush.bf16.msra.mxu0 %v2263
        %2432 = vmatpush.bf16.msra.mxu0 %v2260
        %2433 = vmatmul.bf16.gmra.mxu0 %v2067
        %v2434 = vpop.f32.mrf.mxu0
        %v2435 = vadd.f32 %v2416, %v2434
        %v2436 = vpop.f32.mrf.mxu0
        %v2437 = vadd.f32 %v2418, %v2436
        %2438 = vmatmul.bf16.gmra.mxu0 %v2069
        %v2439 = vpop.f32.mrf.mxu0
        %v2440 = vadd.f32 %v2421, %v2439
        %v2441 = vpop.f32.mrf.mxu0
        %v2442 = vadd.f32 %v2423, %v2441
        %2443 = vdwg.mxu0
        %v2444 = vmul.f32 %v2359, %v955
        %v2445 = vmul.f32 %v2397, %v956
        %v2446 = vmul.f32 %v2435, %v957
        %v2447 = vmul.f32 %v2361, %v955
        %v2448 = vmul.f32 %v2399, %v956
        %v2449 = vmul.f32 %v2437, %v957
        %v2450 = vmul.f32 %v2364, %v955
        %v2451 = vmul.f32 %v2402, %v956
        %v2452 = vmul.f32 %v2440, %v957
        %v2453 = vmul.f32 %v2366, %v955
        %v2454 = vmul.f32 %v2404, %v956
        %v2455 = vmul.f32 %v2442, %v957
        %v2456 = vadd.f32 %v2444, %v974
        %v2457 = vadd.f32 %v2445, %v975
        %v2458 = vadd.f32 %v2446, %v976
        %v2459 = vadd.f32 %v2447, %v974
        %v2460 = vadd.f32 %v2448, %v975
        %v2461 = vadd.f32 %v2449, %v976
        %v2462 = vadd.f32 %v2450, %v974
        %v2463 = vadd.f32 %v2451, %v975
        %v2464 = vadd.f32 %v2452, %v976
        %v2465 = vadd.f32 %v2453, %v974
        %v2466 = vadd.f32 %v2454, %v975
        %v2467 = vadd.f32 %v2455, %v976
        %v2468 = vmax.f32 %v2456, 0.0
        %v2469 = vmax.f32 %v2457, 0.0
        %v2470 = vmax.f32 %v2458, 0.0
        %v2471 = vmax.f32 %v2459, 0.0
        %v2472 = vmax.f32 %v2460, 0.0
        %v2473 = vmax.f32 %v2461, 0.0
        %v2474 = vmax.f32 %v2462, 0.0
        %v2475 = vmax.f32 %v2463, 0.0
        %v2476 = vmax.f32 %v2464, 0.0
        %v2477 = vmax.f32 %v2465, 0.0
        %v2478 = vmax.f32 %v2466, 0.0
        %v2479 = vmax.f32 %v2467, 0.0
        %v2480 = vpack.c.bf16 %v2471, %v2468
        %v2481 = vpack.c.bf16 %v2472, %v2469
        %v2482 = vpack.c.bf16 %v2473, %v2470
        %v2483 = vpack.c.bf16 %v2477, %v2474
        %v2484 = vpack.c.bf16 %v2478, %v2475
        %v2485 = vpack.c.bf16 %v2479, %v2476
        %v2486 = vld [vmem:[%s4] sm:$0xf]
        %v2487 = vld [vmem:[%s4 + $0x4] sm:$0xf]
        %v2488 = vld [vmem:[%s4 + $0x8] sm:$0xf]
        %v2489 = vld [vmem:[%s4 + $0xc] sm:$0xf]
        %v2490 = vld [vmem:[%s4 + $0x10] sm:$0xf]
        %v2491 = vld [vmem:[%s4 + $0x14] sm:$0xf]
        %v2492 = vld [vmem:[%s4 + $0x18] sm:$0xf]
        %v2493 = vld [vmem:[%s4 + $0x1c] sm:$0xf]
        %v2494 = vld [vmem:[%s4 + $0x20] sm:$0xf]
        %v2495 = vld [vmem:[%s4 + $0x24] sm:$0xf]
        %v2496 = vld [vmem:[%s4 + $0x28] sm:$0xf]
        %v2497 = vld [vmem:[%s4 + $0x2c] sm:$0xf]
        %v2498 = vld [vmem:[%s4 + $0x30] sm:$0xf]
        %v2499 = vld [vmem:[%s4 + $0x34] sm:$0xf]
        %v2500 = vld [vmem:[%s4 + $0x38] sm:$0xf]
        %v2501 = vld [vmem:[%s4 + $0x3c] sm:$0xf]
        %v2502 = vld [vmem:[%s4 + $0x40] sm:$0xf]
        %v2503 = vld [vmem:[%s4 + $0x44] sm:$0xf]
        %v2504 = vld [vmem:[%s4 + $0x48] sm:$0xf]
        %v2505 = vld [vmem:[%s4 + $0x4c] sm:$0xf]
        %v2506 = vld [vmem:[%s4 + $0x50] sm:$0xf]
        %v2507 = vld [vmem:[%s4 + $0x54] sm:$0xf]
        %v2508 = vld [vmem:[%s4 + $0x58] sm:$0xf]
        %v2509 = vld [vmem:[%s4 + $0x5c] sm:$0xf]
        %v2510 = vld [vmem:[%s4 + $0x60] sm:$0xf]
        %v2511 = vld [vmem:[%s4 + $0x64] sm:$0xf]
        %v2512 = vld [vmem:[%s4 + $0x68] sm:$0xf]
        %v2513 = vld [vmem:[%s4 + $0x6c] sm:$0xf]
        %v2514 = vld [vmem:[%s4 + $0x70] sm:$0xf]
        %v2515 = vld [vmem:[%s4 + $0x74] sm:$0xf]
        %v2516 = vld [vmem:[%s4 + $0x78] sm:$0xf]
        %v2517 = vld [vmem:[%s4 + $0x7c] sm:$0xf]
        %v2518 = vld [vmem:[%s4 + $0x80] sm:$0xf]
        %v2519 = vld [vmem:[%s4 + $0x84] sm:$0xf]
        %v2520 = vld [vmem:[%s4 + $0x88] sm:$0xf]
        %v2521 = vld [vmem:[%s4 + $0x8c] sm:$0xf]
        %v2558 = vunpack.c.l.b16 %v2486
        %v2559 = vunpack.c.l.b16 %v2487
        %v2560 = vunpack.c.l.b16 %v2488
        %v2561 = vunpack.c.l.b16 %v2489
        %v2562 = vunpack.c.l.b16 %v2490
        %v2563 = vunpack.c.l.b16 %v2491
        %v2564 = vunpack.c.l.b16 %v2492
        %v2565 = vunpack.c.l.b16 %v2493
        %v2566 = vunpack.c.l.b16 %v2494
        %v2567 = vunpack.c.l.b16 %v2495
        %v2568 = vunpack.c.l.b16 %v2496
        %v2569 = vunpack.c.l.b16 %v2497
        %v2570 = vunpack.c.l.b16 %v2498
        %v2571 = vunpack.c.l.b16 %v2499
        %v2572 = vunpack.c.l.b16 %v2500
        %v2573 = vunpack.c.l.b16 %v2501
        %v2574 = vunpack.c.l.b16 %v2502
        %v2575 = vunpack.c.l.b16 %v2503
        %v2576 = vunpack.c.l.b16 %v2504
        %v2577 = vunpack.c.l.b16 %v2505
        %v2578 = vunpack.c.l.b16 %v2506
        %v2579 = vunpack.c.l.b16 %v2507
        %v2580 = vunpack.c.l.b16 %v2508
        %v2581 = vunpack.c.l.b16 %v2509
        %v2582 = vunpack.c.l.b16 %v2510
        %v2583 = vunpack.c.l.b16 %v2511
        %v2584 = vunpack.c.l.b16 %v2512
        %v2585 = vunpack.c.l.b16 %v2513
        %v2586 = vunpack.c.l.b16 %v2514
        %v2587 = vunpack.c.l.b16 %v2515
        %v2588 = vunpack.c.l.b16 %v2516
        %v2589 = vunpack.c.l.b16 %v2517
        %v2590 = vunpack.c.l.b16 %v2518
        %v2591 = vunpack.c.l.b16 %v2519
        %v2592 = vunpack.c.l.b16 %v2520
        %v2593 = vunpack.c.l.b16 %v2521
        %v2594 = vpack.c.b16 %v2559, %v2558
        %v2595 = vpack.c.b16 %v2561, %v2560
        %v2596 = vpack.c.b16 %v2563, %v2562
        %v2597 = vpack.c.b16 %v2565, %v2564
        %v2598 = vpack.c.b16 %v2567, %v2566
        %v2599 = vpack.c.b16 %v2569, %v2568
        %v2600 = vpack.c.b16 %v2571, %v2570
        %v2601 = vpack.c.b16 %v2573, %v2572
        %v2602 = vpack.c.b16 %v2575, %v2574
        %v2603 = vpack.c.b16 %v2577, %v2576
        %v2604 = vpack.c.b16 %v2579, %v2578
        %v2605 = vpack.c.b16 %v2581, %v2580
        %v2606 = vpack.c.b16 %v2583, %v2582
        %v2607 = vpack.c.b16 %v2585, %v2584
        %v2608 = vpack.c.b16 %v2587, %v2586
        %v2609 = vpack.c.b16 %v2589, %v2588
        %v2610 = vpack.c.b16 %v2591, %v2590
        %v2611 = vpack.c.b16 %v2593, %v2592
        %v2631 = vsel %vm1154, %v2482, 0
        %v2634 = vsel %vm1154, %v2485, 0
        %2636 = vmatpush.bf16.msra.mxu0 %v2601
        %2637 = vmatpush.bf16.msra.mxu0 %v2600
        %2638 = vmatpush.bf16.msra.mxu0 %v2599
        %2639 = vmatpush.bf16.msra.mxu0 %v2598
        %2640 = vmatpush.bf16.msra.mxu0 %v2597
        %2641 = vmatpush.bf16.msra.mxu0 %v2596
        %2642 = vmatpush.bf16.msra.mxu0 %v2595
        %2643 = vmatpush.bf16.msra.mxu0 %v2594
        %2644 = vmatmul.bf16.gmra.mxu0 %v2480
        %v2645 = vpop.f32.mrf.mxu0
        %v2646 = vadd.f32 0.0, %v2645
        %v2647 = vpop.f32.mrf.mxu0
        %v2648 = vadd.f32 0.0, %v2647
        %2649 = vmatmul.bf16.gmra.mxu0 %v2483
        %v2650 = vpop.f32.mrf.mxu0
        %v2651 = vadd.f32 0.0, %v2650
        %v2652 = vpop.f32.mrf.mxu0
        %v2653 = vadd.f32 0.0, %v2652
        %2654 = vdwg.mxu0
        %2655 = vmatpush.bf16.msra.mxu0 %v2609
        %2656 = vmatpush.bf16.msra.mxu0 %v2608
        %2657 = vmatpush.bf16.msra.mxu0 %v2607
        %2658 = vmatpush.bf16.msra.mxu0 %v2606
        %2659 = vmatpush.bf16.msra.mxu0 %v2605
        %2660 = vmatpush.bf16.msra.mxu0 %v2604
        %2661 = vmatpush.bf16.msra.mxu0 %v2603
        %2662 = vmatpush.bf16.msra.mxu0 %v2602
        %2663 = vmatmul.bf16.gmra.mxu0 %v2481
        %v2664 = vpop.f32.mrf.mxu0
        %v2665 = vadd.f32 %v2646, %v2664
        %v2666 = vpop.f32.mrf.mxu0
        %v2667 = vadd.f32 %v2648, %v2666
        %2668 = vmatmul.bf16.gmra.mxu0 %v2484
        %v2669 = vpop.f32.mrf.mxu0
        %v2670 = vadd.f32 %v2651, %v2669
        %v2671 = vpop.f32.mrf.mxu0
        %v2672 = vadd.f32 %v2653, %v2671
        %2673 = vdwg.mxu0
        %2674 = vmatpush.bf16.msra.mxu0 0
        %2675 = vmatpush.bf16.msra.mxu0 0
        %2676 = vmatpush.bf16.msra.mxu0 0
        %2677 = vmatpush.bf16.msra.mxu0 0
        %2678 = vmatpush.bf16.msra.mxu0 0
        %2679 = vmatpush.bf16.msra.mxu0 0
        %2680 = vmatpush.bf16.msra.mxu0 %v2611
        %2681 = vmatpush.bf16.msra.mxu0 %v2610
        %2682 = vmatmul.bf16.gmra.mxu0 %v2631
        %v2683 = vpop.f32.mrf.mxu0
        %v2684 = vadd.f32 %v2665, %v2683
        %v2685 = vpop.f32.mrf.mxu0
        %v2686 = vadd.f32 %v2667, %v2685
        %2687 = vmatmul.bf16.gmra.mxu0 %v2634
        %v2688 = vpop.f32.mrf.mxu0
        %v2689 = vadd.f32 %v2670, %v2688
        %v2690 = vpop.f32.mrf.mxu0
        %v2691 = vadd.f32 %v2672, %v2690
        %2692 = vdwg.mxu0
        %v2693 = vmul.f32 %v2684, %v1219
        %v2694 = vmul.f32 %v2686, %v1219
        %v2695 = vmul.f32 %v2689, %v1219
        %v2696 = vmul.f32 %v2691, %v1219
        %v2697 = vld [vmem:[%s6 + $0x40] sm:$0xff]
        %v2698 = vld [vmem:[%s6 + $0x48] sm:$0xff]
        %v2699 = vld [vmem:[%s6 + $0x50] sm:$0xff]
        %v2700 = vld [vmem:[%s6 + $0x58] sm:$0xff]
        %v2701 = vadd.f32 %v2693, %v2697
        %v2702 = vadd.f32 %v2694, %v2698
        %v2703 = vadd.f32 %v2695, %v2699
        %v2704 = vadd.f32 %v2696, %v2700
        %v2705 = vmax.f32 %v2701, 0.0
        %v2706 = vmax.f32 %v2702, 0.0
        %v2707 = vmax.f32 %v2703, 0.0
        %v2708 = vmax.f32 %v2704, 0.0
        %2709 = vst.msk [vmem:[#allocation2 + $0x8] sm:$0xff] %vm1237, %v2705
        %2710 = vst.msk [vmem:[#allocation2 + $0x30] sm:$0xff] %vm1237, %v2706
        %2711 = vst.msk [vmem:[#allocation2 + $0x58] sm:$0xff] %vm1237, %v2707
        %2712 = vst.msk [vmem:[#allocation2 + $0x80] sm:$0xff] %vm1237, %v2708
        %v2713 = vld [vmem:[%s491 + $0x60] sm:$0xff]
        %v2714 = vld [vmem:[%s491 + $0x68] sm:$0xff]
        %v2715 = vld [vmem:[%s491 + $0x70] sm:$0xff]
        %v2716 = vld [vmem:[%s491 + $0x78] sm:$0xff]
        %v2717 = vld [vmem:[%s1] sm:$0xff]
        %v2718 = vld [vmem:[%s1 + $0x8] sm:$0xf]
        %v2719 = vld [vmem:[%s1 + $0xc] sm:$0xff]
        %v2720 = vld [vmem:[%s1 + $0x14] sm:$0xf]
        %v2721 = vld [vmem:[%s1 + $0x18] sm:$0xff]
        %v2722 = vld [vmem:[%s1 + $0x20] sm:$0xf]
        %v2723 = vld [vmem:[%s1 + $0x24] sm:$0xff]
        %v2724 = vld [vmem:[%s1 + $0x2c] sm:$0xf]
        %v2725 = vld [vmem:[%s1 + $0x30] sm:$0xff]
        %v2726 = vld [vmem:[%s1 + $0x38] sm:$0xf]
        %v2727 = vld [vmem:[%s1 + $0x3c] sm:$0xff]
        %v2728 = vld [vmem:[%s1 + $0x44] sm:$0xf]
        %v2729 = vld [vmem:[%s1 + $0x48] sm:$0xff]
        %v2730 = vld [vmem:[%s1 + $0x50] sm:$0xf]
        %v2731 = vld [vmem:[%s1 + $0x54] sm:$0xff]
        %v2732 = vld [vmem:[%s1 + $0x5c] sm:$0xf]
        %v2733 = vld [vmem:[%s1 + $0x60] sm:$0xff]
        %v2734 = vld [vmem:[%s1 + $0x68] sm:$0xf]
        %v2735 = vld [vmem:[%s1 + $0x6c] sm:$0xff]
        %v2736 = vld [vmem:[%s1 + $0x74] sm:$0xf]
        %v2737 = vld [vmem:[%s1 + $0x78] sm:$0xff]
        %v2738 = vld [vmem:[%s1 + $0x80] sm:$0xf]
        %v2739 = vld [vmem:[%s1 + $0x84] sm:$0xff]
        %v2740 = vld [vmem:[%s1 + $0x8c] sm:$0xf]
        %v2741 = vld [vmem:[%s1 + $0x90] sm:$0xff]
        %v2742 = vld [vmem:[%s1 + $0x98] sm:$0xf]
        %v2743 = vld [vmem:[%s1 + $0x9c] sm:$0xff]
        %v2744 = vld [vmem:[%s1 + $0xa4] sm:$0xf]
        %v2745 = vld [vmem:[%s1 + $0xa8] sm:$0xff]
        %v2746 = vld [vmem:[%s1 + $0xb0] sm:$0xf]
        %v2747 = vld [vmem:[%s1 + $0xb4] sm:$0xff]
        %v2748 = vld [vmem:[%s1 + $0xbc] sm:$0xf]
        %v2749 = vld [vmem:[%s1 + $0xc0] sm:$0xff]
        %v2750 = vld [vmem:[%s1 + $0xc8] sm:$0xf]
        %v2751 = vld [vmem:[%s1 + $0xcc] sm:$0xff]
        %v2752 = vld [vmem:[%s1 + $0xd4] sm:$0xf]
        %v2753 = vld [vmem:[%s1 + $0xd8] sm:$0xff]
        %v2754 = vld [vmem:[%s1 + $0xe0] sm:$0xf]
        %v2755 = vld [vmem:[%s1 + $0xe4] sm:$0xff]
        %v2756 = vld [vmem:[%s1 + $0xec] sm:$0xf]
        %v2757 = vld [vmem:[%s1 + $0xf0] sm:$0xff]
        %v2758 = vld [vmem:[%s1 + $0xf8] sm:$0xf]
        %v2759 = vld [vmem:[%s1 + $0xfc] sm:$0xff]
        %v2760 = vld [vmem:[%s1 + $0x104] sm:$0xf]
        %v2761 = vld [vmem:[%s1 + $0x108] sm:$0xff]
        %v2762 = vld [vmem:[%s1 + $0x110] sm:$0xf]
        %v2763 = vld [vmem:[%s1 + $0x114] sm:$0xff]
        %v2764 = vld [vmem:[%s1 + $0x11c] sm:$0xf]
        %v2765 = vld [vmem:[%s1 + $0x120] sm:$0xff]
        %v2766 = vld [vmem:[%s1 + $0x128] sm:$0xf]
        %v2767 = vld [vmem:[%s1 + $0x12c] sm:$0xff]
        %v2768 = vld [vmem:[%s1 + $0x134] sm:$0xf]
        %v2769 = vld [vmem:[%s1 + $0x138] sm:$0xff]
        %v2770 = vld [vmem:[%s1 + $0x140] sm:$0xf]
        %v2771 = vld [vmem:[%s1 + $0x144] sm:$0xff]
        %v2772 = vld [vmem:[%s1 + $0x14c] sm:$0xf]
        %v2773 = vld [vmem:[%s1 + $0x150] sm:$0xff]
        %v2774 = vld [vmem:[%s1 + $0x158] sm:$0xf]
        %v2775 = vld [vmem:[%s1 + $0x15c] sm:$0xff]
        %v2776 = vld [vmem:[%s1 + $0x164] sm:$0xf]
        %v2777 = vld [vmem:[%s1 + $0x168] sm:$0xff]
        %v2778 = vld [vmem:[%s1 + $0x170] sm:$0xf]
        %v2779 = vld [vmem:[%s1 + $0x174] sm:$0xff]
        %v2780 = vld [vmem:[%s1 + $0x17c] sm:$0xf]
        %v2785 = vunpack.c.l.b16 %v2713
        %v2786 = vunpack.c.h.b16 %v2713
        %v2787 = vunpack.c.l.b16 %v2714
        %v2788 = vunpack.c.h.b16 %v2714
        %v2789 = vunpack.c.l.b16 %v2715
        %v2790 = vunpack.c.h.b16 %v2715
        %v2791 = vunpack.c.l.b16 %v2716
        %v2792 = vunpack.c.h.b16 %v2716
        %v2793 = vpack.c.b16 %v2787, %v2785
        %v2794 = vpack.c.b16 %v2788, %v2786
        %v2795 = vpack.c.b16 %v2791, %v2789
        %v2796 = vpack.c.b16 %v2792, %v2790
        %v2865 = vunpack.c.l.b16 %v2717
        %v2866 = vunpack.c.h.b16 %v2717
        %v2867 = vunpack.c.l.b16 %v2718
        %v2868 = vunpack.c.l.b16 %v2719
        %v2869 = vunpack.c.h.b16 %v2719
        %v2870 = vunpack.c.l.b16 %v2720
        %v2871 = vunpack.c.l.b16 %v2721
        %v2872 = vunpack.c.h.b16 %v2721
        %v2873 = vunpack.c.l.b16 %v2722
        %v2874 = vunpack.c.l.b16 %v2723
        %v2875 = vunpack.c.h.b16 %v2723
        %v2876 = vunpack.c.l.b16 %v2724
        %v2877 = vunpack.c.l.b16 %v2725
        %v2878 = vunpack.c.h.b16 %v2725
        %v2879 = vunpack.c.l.b16 %v2726
        %v2880 = vunpack.c.l.b16 %v2727
        %v2881 = vunpack.c.h.b16 %v2727
        %v2882 = vunpack.c.l.b16 %v2728
        %v2883 = vunpack.c.l.b16 %v2729
        %v2884 = vunpack.c.h.b16 %v2729
        %v2885 = vunpack.c.l.b16 %v2730
        %v2886 = vunpack.c.l.b16 %v2731
        %v2887 = vunpack.c.h.b16 %v2731
        %v2888 = vunpack.c.l.b16 %v2732
        %v2889 = vunpack.c.l.b16 %v2733
        %v2890 = vunpack.c.h.b16 %v2733
        %v2891 = vunpack.c.l.b16 %v2734
        %v2892 = vunpack.c.l.b16 %v2735
        %v2893 = vunpack.c.h.b16 %v2735
        %v2894 = vunpack.c.l.b16 %v2736
        %v2895 = vunpack.c.l.b16 %v2737
        %v2896 = vunpack.c.h.b16 %v2737
        %v2897 = vunpack.c.l.b16 %v2738
        %v2898 = vunpack.c.l.b16 %v2739
        %v2899 = vunpack.c.h.b16 %v2739
        %v2900 = vunpack.c.l.b16 %v2740
        %v2901 = vunpack.c.l.b16 %v2741
        %v2902 = vunpack.c.h.b16 %v2741
        %v2903 = vunpack.c.l.b16 %v2742
        %v2904 = vunpack.c.l.b16 %v2743
        %v2905 = vunpack.c.h.b16 %v2743
        %v2906 = vunpack.c.l.b16 %v2744
        %v2907 = vunpack.c.l.b16 %v2745
        %v2908 = vunpack.c.h.b16 %v2745
        %v2909 = vunpack.c.l.b16 %v2746
        %v2910 = vunpack.c.l.b16 %v2747
        %v2911 = vunpack.c.h.b16 %v2747
        %v2912 = vunpack.c.l.b16 %v2748
        %v2913 = vunpack.c.l.b16 %v2749
        %v2914 = vunpack.c.h.b16 %v2749
        %v2915 = vunpack.c.l.b16 %v2750
        %v2916 = vunpack.c.l.b16 %v2751
        %v2917 = vunpack.c.h.b16 %v2751
        %v2918 = vunpack.c.l.b16 %v2752
        %v2919 = vunpack.c.l.b16 %v2753
        %v2920 = vunpack.c.h.b16 %v2753
        %v2921 = vunpack.c.l.b16 %v2754
        %v2922 = vunpack.c.l.b16 %v2755
        %v2923 = vunpack.c.h.b16 %v2755
        %v2924 = vunpack.c.l.b16 %v2756
        %v2925 = vunpack.c.l.b16 %v2757
        %v2926 = vunpack.c.h.b16 %v2757
        %v2927 = vunpack.c.l.b16 %v2758
        %v2928 = vunpack.c.l.b16 %v2759
        %v2929 = vunpack.c.h.b16 %v2759
        %v2930 = vunpack.c.l.b16 %v2760
        %v2931 = vunpack.c.l.b16 %v2761
        %v2932 = vunpack.c.h.b16 %v2761
        %v2933 = vunpack.c.l.b16 %v2762
        %v2934 = vunpack.c.l.b16 %v2763
        %v2935 = vunpack.c.h.b16 %v2763
        %v2936 = vunpack.c.l.b16 %v2764
        %v2937 = vunpack.c.l.b16 %v2765
        %v2938 = vunpack.c.h.b16 %v2765
        %v2939 = vunpack.c.l.b16 %v2766
        %v2940 = vunpack.c.l.b16 %v2767
        %v2941 = vunpack.c.h.b16 %v2767
        %v2942 = vunpack.c.l.b16 %v2768
        %v2943 = vunpack.c.l.b16 %v2769
        %v2944 = vunpack.c.h.b16 %v2769
        %v2945 = vunpack.c.l.b16 %v2770
        %v2946 = vunpack.c.l.b16 %v2771
        %v2947 = vunpack.c.h.b16 %v2771
        %v2948 = vunpack.c.l.b16 %v2772
        %v2949 = vunpack.c.l.b16 %v2773
        %v2950 = vunpack.c.h.b16 %v2773
        %v2951 = vunpack.c.l.b16 %v2774
        %v2952 = vunpack.c.l.b16 %v2775
        %v2953 = vunpack.c.h.b16 %v2775
        %v2954 = vunpack.c.l.b16 %v2776
        %v2955 = vunpack.c.l.b16 %v2777
        %v2956 = vunpack.c.h.b16 %v2777
        %v2957 = vunpack.c.l.b16 %v2778
        %v2958 = vunpack.c.l.b16 %v2779
        %v2959 = vunpack.c.h.b16 %v2779
        %v2960 = vunpack.c.l.b16 %v2780
        %v2961 = vpack.c.b16 %v2868, %v2865
        %v2962 = vpack.c.b16 %v2869, %v2866
        %v2963 = vpack.c.b16 %v2870, %v2867
        %v2964 = vpack.c.b16 %v2874, %v2871
        %v2965 = vpack.c.b16 %v2875, %v2872
        %v2966 = vpack.c.b16 %v2876, %v2873
        %v2967 = vpack.c.b16 %v2880, %v2877
        %v2968 = vpack.c.b16 %v2881, %v2878
        %v2969 = vpack.c.b16 %v2882, %v2879
        %v2970 = vpack.c.b16 %v2886, %v2883
        %v2971 = vpack.c.b16 %v2887, %v2884
        %v2972 = vpack.c.b16 %v2888, %v2885
        %v2973 = vpack.c.b16 %v2892, %v2889
        %v2974 = vpack.c.b16 %v2893, %v2890
        %v2975 = vpack.c.b16 %v2894, %v2891
        %v2976 = vpack.c.b16 %v2898, %v2895
        %v2977 = vpack.c.b16 %v2899, %v2896
        %v2978 = vpack.c.b16 %v2900, %v2897
        %v2979 = vpack.c.b16 %v2904, %v2901
        %v2980 = vpack.c.b16 %v2905, %v2902
        %v2981 = vpack.c.b16 %v2906, %v2903
        %v2982 = vpack.c.b16 %v2910, %v2907
        %v2983 = vpack.c.b16 %v2911, %v2908
        %v2984 = vpack.c.b16 %v2912, %v2909
        %v2985 = vpack.c.b16 %v2916, %v2913
        %v2986 = vpack.c.b16 %v2917, %v2914
        %v2987 = vpack.c.b16 %v2918, %v2915
        %v2988 = vpack.c.b16 %v2922, %v2919
        %v2989 = vpack.c.b16 %v2923, %v2920
        %v2990 = vpack.c.b16 %v2924, %v2921
        %v2991 = vpack.c.b16 %v2928, %v2925
        %v2992 = vpack.c.b16 %v2929, %v2926
        %v2993 = vpack.c.b16 %v2930, %v2927
        %v2994 = vpack.c.b16 %v2934, %v2931
        %v2995 = vpack.c.b16 %v2935, %v2932
        %v2996 = vpack.c.b16 %v2936, %v2933
        %v2997 = vpack.c.b16 %v2940, %v2937
        %v2998 = vpack.c.b16 %v2941, %v2938
        %v2999 = vpack.c.b16 %v2942, %v2939
        %v3000 = vpack.c.b16 %v2946, %v2943
        %v3001 = vpack.c.b16 %v2947, %v2944
        %v3002 = vpack.c.b16 %v2948, %v2945
        %v3003 = vpack.c.b16 %v2952, %v2949
        %v3004 = vpack.c.b16 %v2953, %v2950
        %v3005 = vpack.c.b16 %v2954, %v2951
        %v3006 = vpack.c.b16 %v2958, %v2955
        %v3007 = vpack.c.b16 %v2959, %v2956
        %v3008 = vpack.c.b16 %v2960, %v2957
        %3057 = vmatpush.bf16.msra.mxu0 %v2982
        %3058 = vmatpush.bf16.msra.mxu0 %v2979
        %3059 = vmatpush.bf16.msra.mxu0 %v2976
        %3060 = vmatpush.bf16.msra.mxu0 %v2973
        %3061 = vmatpush.bf16.msra.mxu0 %v2970
        %3062 = vmatpush.bf16.msra.mxu0 %v2967
        %3063 = vmatpush.bf16.msra.mxu0 %v2964
        %3064 = vmatpush.bf16.msra.mxu0 %v2961
        %3065 = vmatmul.bf16.gmra.mxu0 %v2793
        %v3066 = vpop.f32.mrf.mxu0
        %v3067 = vadd.f32 0.0, %v3066
        %v3068 = vpop.f32.mrf.mxu0
        %v3069 = vadd.f32 0.0, %v3068
        %3070 = vmatmul.bf16.gmra.mxu0 %v2795
        %v3071 = vpop.f32.mrf.mxu0
        %v3072 = vadd.f32 0.0, %v3071
        %v3073 = vpop.f32.mrf.mxu0
        %v3074 = vadd.f32 0.0, %v3073
        %3075 = vdwg.mxu0
        %3076 = vmatpush.bf16.msra.mxu0 %v3006
        %3077 = vmatpush.bf16.msra.mxu0 %v3003
        %3078 = vmatpush.bf16.msra.mxu0 %v3000
        %3079 = vmatpush.bf16.msra.mxu0 %v2997
        %3080 = vmatpush.bf16.msra.mxu0 %v2994
        %3081 = vmatpush.bf16.msra.mxu0 %v2991
        %3082 = vmatpush.bf16.msra.mxu0 %v2988
        %3083 = vmatpush.bf16.msra.mxu0 %v2985
        %3084 = vmatmul.bf16.gmra.mxu0 %v2794
        %v3085 = vpop.f32.mrf.mxu0
        %v3086 = vadd.f32 %v3067, %v3085
        %v3087 = vpop.f32.mrf.mxu0
        %v3088 = vadd.f32 %v3069, %v3087
        %3089 = vmatmul.bf16.gmra.mxu0 %v2796
        %v3090 = vpop.f32.mrf.mxu0
        %v3091 = vadd.f32 %v3072, %v3090
        %v3092 = vpop.f32.mrf.mxu0
        %v3093 = vadd.f32 %v3074, %v3092
        %3094 = vdwg.mxu0
        %3095 = vmatpush.bf16.msra.mxu0 %v2983
        %3096 = vmatpush.bf16.msra.mxu0 %v2980
        %3097 = vmatpush.bf16.msra.mxu0 %v2977
        %3098 = vmatpush.bf16.msra.mxu0 %v2974
        %3099 = vmatpush.bf16.msra.mxu0 %v2971
        %3100 = vmatpush.bf16.msra.mxu0 %v2968
        %3101 = vmatpush.bf16.msra.mxu0 %v2965
        %3102 = vmatpush.bf16.msra.mxu0 %v2962
        %3103 = vmatmul.bf16.gmra.mxu0 %v2793
        %v3104 = vpop.f32.mrf.mxu0
        %v3105 = vadd.f32 0.0, %v3104
        %v3106 = vpop.f32.mrf.mxu0
        %v3107 = vadd.f32 0.0, %v3106
        %3108 = vmatmul.bf16.gmra.mxu0 %v2795
        %v3109 = vpop.f32.mrf.mxu0
        %v3110 = vadd.f32 0.0, %v3109
        %v3111 = vpop.f32.mrf.mxu0
        %v3112 = vadd.f32 0.0, %v3111
        %3113 = vdwg.mxu0
        %3114 = vmatpush.bf16.msra.mxu0 %v3007
        %3115 = vmatpush.bf16.msra.mxu0 %v3004
        %3116 = vmatpush.bf16.msra.mxu0 %v3001
        %3117 = vmatpush.bf16.msra.mxu0 %v2998
        %3118 = vmatpush.bf16.msra.mxu0 %v2995
        %3119 = vmatpush.bf16.msra.mxu0 %v2992
        %3120 = vmatpush.bf16.msra.mxu0 %v2989
        %3121 = vmatpush.bf16.msra.mxu0 %v2986
        %3122 = vmatmul.bf16.gmra.mxu0 %v2794
        %v3123 = vpop.f32.mrf.mxu0
        %v3124 = vadd.f32 %v3105, %v3123
        %v3125 = vpop.f32.mrf.mxu0
        %v3126 = vadd.f32 %v3107, %v3125
        %3127 = vmatmul.bf16.gmra.mxu0 %v2796
        %v3128 = vpop.f32.mrf.mxu0
        %v3129 = vadd.f32 %v3110, %v3128
        %v3130 = vpop.f32.mrf.mxu0
        %v3131 = vadd.f32 %v3112, %v3130
        %3132 = vdwg.mxu0
        %3133 = vmatpush.bf16.msra.mxu0 %v2984
        %3134 = vmatpush.bf16.msra.mxu0 %v2981
        %3135 = vmatpush.bf16.msra.mxu0 %v2978
        %3136 = vmatpush.bf16.msra.mxu0 %v2975
        %3137 = vmatpush.bf16.msra.mxu0 %v2972
        %3138 = vmatpush.bf16.msra.mxu0 %v2969
        %3139 = vmatpush.bf16.msra.mxu0 %v2966
        %3140 = vmatpush.bf16.msra.mxu0 %v2963
        %3141 = vmatmul.bf16.gmra.mxu0 %v2793
        %v3142 = vpop.f32.mrf.mxu0
        %v3143 = vadd.f32 0.0, %v3142
        %v3144 = vpop.f32.mrf.mxu0
        %v3145 = vadd.f32 0.0, %v3144
        %3146 = vmatmul.bf16.gmra.mxu0 %v2795
        %v3147 = vpop.f32.mrf.mxu0
        %v3148 = vadd.f32 0.0, %v3147
        %v3149 = vpop.f32.mrf.mxu0
        %v3150 = vadd.f32 0.0, %v3149
        %3151 = vdwg.mxu0
        %3152 = vmatpush.bf16.msra.mxu0 %v3008
        %3153 = vmatpush.bf16.msra.mxu0 %v3005
        %3154 = vmatpush.bf16.msra.mxu0 %v3002
        %3155 = vmatpush.bf16.msra.mxu0 %v2999
        %3156 = vmatpush.bf16.msra.mxu0 %v2996
        %3157 = vmatpush.bf16.msra.mxu0 %v2993
        %3158 = vmatpush.bf16.msra.mxu0 %v2990
        %3159 = vmatpush.bf16.msra.mxu0 %v2987
        %3160 = vmatmul.bf16.gmra.mxu0 %v2794
        %v3161 = vpop.f32.mrf.mxu0
        %v3162 = vadd.f32 %v3143, %v3161
        %v3163 = vpop.f32.mrf.mxu0
        %v3164 = vadd.f32 %v3145, %v3163
        %3165 = vmatmul.bf16.gmra.mxu0 %v2796
        %v3166 = vpop.f32.mrf.mxu0
        %v3167 = vadd.f32 %v3148, %v3166
        %v3168 = vpop.f32.mrf.mxu0
        %v3169 = vadd.f32 %v3150, %v3168
        %3170 = vdwg.mxu0
        %v3171 = vmul.f32 %v3086, %v955
        %v3172 = vmul.f32 %v3124, %v956
        %v3173 = vmul.f32 %v3162, %v957
        %v3174 = vmul.f32 %v3088, %v955
        %v3175 = vmul.f32 %v3126, %v956
        %v3176 = vmul.f32 %v3164, %v957
        %v3177 = vmul.f32 %v3091, %v955
        %v3178 = vmul.f32 %v3129, %v956
        %v3179 = vmul.f32 %v3167, %v957
        %v3180 = vmul.f32 %v3093, %v955
        %v3181 = vmul.f32 %v3131, %v956
        %v3182 = vmul.f32 %v3169, %v957
        %v3183 = vadd.f32 %v3171, %v974
        %v3184 = vadd.f32 %v3172, %v975
        %v3185 = vadd.f32 %v3173, %v976
        %v3186 = vadd.f32 %v3174, %v974
        %v3187 = vadd.f32 %v3175, %v975
        %v3188 = vadd.f32 %v3176, %v976
        %v3189 = vadd.f32 %v3177, %v974
        %v3190 = vadd.f32 %v3178, %v975
        %v3191 = vadd.f32 %v3179, %v976
        %v3192 = vadd.f32 %v3180, %v974
        %v3193 = vadd.f32 %v3181, %v975
        %v3194 = vadd.f32 %v3182, %v976
        %v3195 = vmax.f32 %v3183, 0.0
        %v3196 = vmax.f32 %v3184, 0.0
        %v3197 = vmax.f32 %v3185, 0.0
        %v3198 = vmax.f32 %v3186, 0.0
        %v3199 = vmax.f32 %v3187, 0.0
        %v3200 = vmax.f32 %v3188, 0.0
        %v3201 = vmax.f32 %v3189, 0.0
        %v3202 = vmax.f32 %v3190, 0.0
        %v3203 = vmax.f32 %v3191, 0.0
        %v3204 = vmax.f32 %v3192, 0.0
        %v3205 = vmax.f32 %v3193, 0.0
        %v3206 = vmax.f32 %v3194, 0.0
        %v3207 = vpack.c.bf16 %v3198, %v3195
        %v3208 = vpack.c.bf16 %v3199, %v3196
        %v3209 = vpack.c.bf16 %v3200, %v3197
        %v3210 = vpack.c.bf16 %v3204, %v3201
        %v3211 = vpack.c.bf16 %v3205, %v3202
        %v3212 = vpack.c.bf16 %v3206, %v3203
        %v3213 = vld [vmem:[%s4] sm:$0xf]
        %v3214 = vld [vmem:[%s4 + $0x4] sm:$0xf]
        %v3215 = vld [vmem:[%s4 + $0x8] sm:$0xf]
        %v3216 = vld [vmem:[%s4 + $0xc] sm:$0xf]
        %v3217 = vld [vmem:[%s4 + $0x10] sm:$0xf]
        %v3218 = vld [vmem:[%s4 + $0x14] sm:$0xf]
        %v3219 = vld [vmem:[%s4 + $0x18] sm:$0xf]
        %v3220 = vld [vmem:[%s4 + $0x1c] sm:$0xf]
        %v3221 = vld [vmem:[%s4 + $0x20] sm:$0xf]
        %v3222 = vld [vmem:[%s4 + $0x24] sm:$0xf]
        %v3223 = vld [vmem:[%s4 + $0x28] sm:$0xf]
        %v3224 = vld [vmem:[%s4 + $0x2c] sm:$0xf]
        %v3225 = vld [vmem:[%s4 + $0x30] sm:$0xf]
        %v3226 = vld [vmem:[%s4 + $0x34] sm:$0xf]
        %v3227 = vld [vmem:[%s4 + $0x38] sm:$0xf]
        %v3228 = vld [vmem:[%s4 + $0x3c] sm:$0xf]
        %v3229 = vld [vmem:[%s4 + $0x40] sm:$0xf]
        %v3230 = vld [vmem:[%s4 + $0x44] sm:$0xf]
        %v3231 = vld [vmem:[%s4 + $0x48] sm:$0xf]
        %v3232 = vld [vmem:[%s4 + $0x4c] sm:$0xf]
        %v3233 = vld [vmem:[%s4 + $0x50] sm:$0xf]
        %v3234 = vld [vmem:[%s4 + $0x54] sm:$0xf]
        %v3235 = vld [vmem:[%s4 + $0x58] sm:$0xf]
        %v3236 = vld [vmem:[%s4 + $0x5c] sm:$0xf]
        %v3237 = vld [vmem:[%s4 + $0x60] sm:$0xf]
        %v3238 = vld [vmem:[%s4 + $0x64] sm:$0xf]
        %v3239 = vld [vmem:[%s4 + $0x68] sm:$0xf]
        %v3240 = vld [vmem:[%s4 + $0x6c] sm:$0xf]
        %v3241 = vld [vmem:[%s4 + $0x70] sm:$0xf]
        %v3242 = vld [vmem:[%s4 + $0x74] sm:$0xf]
        %v3243 = vld [vmem:[%s4 + $0x78] sm:$0xf]
        %v3244 = vld [vmem:[%s4 + $0x7c] sm:$0xf]
        %v3245 = vld [vmem:[%s4 + $0x80] sm:$0xf]
        %v3246 = vld [vmem:[%s4 + $0x84] sm:$0xf]
        %v3247 = vld [vmem:[%s4 + $0x88] sm:$0xf]
        %v3248 = vld [vmem:[%s4 + $0x8c] sm:$0xf]
        %v3285 = vunpack.c.l.b16 %v3213
        %v3286 = vunpack.c.l.b16 %v3214
        %v3287 = vunpack.c.l.b16 %v3215
        %v3288 = vunpack.c.l.b16 %v3216
        %v3289 = vunpack.c.l.b16 %v3217
        %v3290 = vunpack.c.l.b16 %v3218
        %v3291 = vunpack.c.l.b16 %v3219
        %v3292 = vunpack.c.l.b16 %v3220
        %v3293 = vunpack.c.l.b16 %v3221
        %v3294 = vunpack.c.l.b16 %v3222
        %v3295 = vunpack.c.l.b16 %v3223
        %v3296 = vunpack.c.l.b16 %v3224
        %v3297 = vunpack.c.l.b16 %v3225
        %v3298 = vunpack.c.l.b16 %v3226
        %v3299 = vunpack.c.l.b16 %v3227
        %v3300 = vunpack.c.l.b16 %v3228
        %v3301 = vunpack.c.l.b16 %v3229
        %v3302 = vunpack.c.l.b16 %v3230
        %v3303 = vunpack.c.l.b16 %v3231
        %v3304 = vunpack.c.l.b16 %v3232
        %v3305 = vunpack.c.l.b16 %v3233
        %v3306 = vunpack.c.l.b16 %v3234
        %v3307 = vunpack.c.l.b16 %v3235
        %v3308 = vunpack.c.l.b16 %v3236
        %v3309 = vunpack.c.l.b16 %v3237
        %v3310 = vunpack.c.l.b16 %v3238
        %v3311 = vunpack.c.l.b16 %v3239
        %v3312 = vunpack.c.l.b16 %v3240
        %v3313 = vunpack.c.l.b16 %v3241
        %v3314 = vunpack.c.l.b16 %v3242
        %v3315 = vunpack.c.l.b16 %v3243
        %v3316 = vunpack.c.l.b16 %v3244
        %v3317 = vunpack.c.l.b16 %v3245
        %v3318 = vunpack.c.l.b16 %v3246
        %v3319 = vunpack.c.l.b16 %v3247
        %v3320 = vunpack.c.l.b16 %v3248
        %v3321 = vpack.c.b16 %v3286, %v3285
        %v3322 = vpack.c.b16 %v3288, %v3287
        %v3323 = vpack.c.b16 %v3290, %v3289
        %v3324 = vpack.c.b16 %v3292, %v3291
        %v3325 = vpack.c.b16 %v3294, %v3293
        %v3326 = vpack.c.b16 %v3296, %v3295
        %v3327 = vpack.c.b16 %v3298, %v3297
        %v3328 = vpack.c.b16 %v3300, %v3299
        %v3329 = vpack.c.b16 %v3302, %v3301
        %v3330 = vpack.c.b16 %v3304, %v3303
        %v3331 = vpack.c.b16 %v3306, %v3305
        %v3332 = vpack.c.b16 %v3308, %v3307
        %v3333 = vpack.c.b16 %v3310, %v3309
        %v3334 = vpack.c.b16 %v3312, %v3311
        %v3335 = vpack.c.b16 %v3314, %v3313
        %v3336 = vpack.c.b16 %v3316, %v3315
        %v3337 = vpack.c.b16 %v3318, %v3317
        %v3338 = vpack.c.b16 %v3320, %v3319
        %v3358 = vsel %vm1154, %v3209, 0
        %v3361 = vsel %vm1154, %v3212, 0
        %3363 = vmatpush.bf16.msra.mxu0 %v3328
        %3364 = vmatpush.bf16.msra.mxu0 %v3327
        %3365 = vmatpush.bf16.msra.mxu0 %v3326
        %3366 = vmatpush.bf16.msra.mxu0 %v3325
        %3367 = vmatpush.bf16.msra.mxu0 %v3324
        %3368 = vmatpush.bf16.msra.mxu0 %v3323
        %3369 = vmatpush.bf16.msra.mxu0 %v3322
        %3370 = vmatpush.bf16.msra.mxu0 %v3321
        %3371 = vmatmul.bf16.gmra.mxu0 %v3207
        %v3372 = vpop.f32.mrf.mxu0
        %v3373 = vadd.f32 0.0, %v3372
        %v3374 = vpop.f32.mrf.mxu0
        %v3375 = vadd.f32 0.0, %v3374
        %3376 = vmatmul.bf16.gmra.mxu0 %v3210
        %v3377 = vpop.f32.mrf.mxu0
        %v3378 = vadd.f32 0.0, %v3377
        %v3379 = vpop.f32.mrf.mxu0
        %v3380 = vadd.f32 0.0, %v3379
        %3381 = vdwg.mxu0
        %3382 = vmatpush.bf16.msra.mxu0 %v3336
        %3383 = vmatpush.bf16.msra.mxu0 %v3335
        %3384 = vmatpush.bf16.msra.mxu0 %v3334
        %3385 = vmatpush.bf16.msra.mxu0 %v3333
        %3386 = vmatpush.bf16.msra.mxu0 %v3332
        %3387 = vmatpush.bf16.msra.mxu0 %v3331
        %3388 = vmatpush.bf16.msra.mxu0 %v3330
        %3389 = vmatpush.bf16.msra.mxu0 %v3329
        %3390 = vmatmul.bf16.gmra.mxu0 %v3208
        %v3391 = vpop.f32.mrf.mxu0
        %v3392 = vadd.f32 %v3373, %v3391
        %v3393 = vpop.f32.mrf.mxu0
        %v3394 = vadd.f32 %v3375, %v3393
        %3395 = vmatmul.bf16.gmra.mxu0 %v3211
        %v3396 = vpop.f32.mrf.mxu0
        %v3397 = vadd.f32 %v3378, %v3396
        %v3398 = vpop.f32.mrf.mxu0
        %v3399 = vadd.f32 %v3380, %v3398
        %3400 = vdwg.mxu0
        %3401 = vmatpush.bf16.msra.mxu0 0
        %3402 = vmatpush.bf16.msra.mxu0 0
        %3403 = vmatpush.bf16.msra.mxu0 0
        %3404 = vmatpush.bf16.msra.mxu0 0
        %3405 = vmatpush.bf16.msra.mxu0 0
        %3406 = vmatpush.bf16.msra.mxu0 0
        %3407 = vmatpush.bf16.msra.mxu0 %v3338
        %3408 = vmatpush.bf16.msra.mxu0 %v3337
        %3409 = vmatmul.bf16.gmra.mxu0 %v3358
        %v3410 = vpop.f32.mrf.mxu0
        %v3411 = vadd.f32 %v3392, %v3410
        %v3412 = vpop.f32.mrf.mxu0
        %v3413 = vadd.f32 %v3394, %v3412
        %3414 = vmatmul.bf16.gmra.mxu0 %v3361
        %v3415 = vpop.f32.mrf.mxu0
        %v3416 = vadd.f32 %v3397, %v3415
        %v3417 = vpop.f32.mrf.mxu0
        %v3418 = vadd.f32 %v3399, %v3417
        %3419 = vdwg.mxu0
        %v3420 = vmul.f32 %v3411, %v1219
        %v3421 = vmul.f32 %v3413, %v1219
        %v3422 = vmul.f32 %v3416, %v1219
        %v3423 = vmul.f32 %v3418, %v1219
        %v3424 = vld [vmem:[%s6 + $0x60] sm:$0xff]
        %v3425 = vld [vmem:[%s6 + $0x68] sm:$0xff]
        %v3426 = vld [vmem:[%s6 + $0x70] sm:$0xff]
        %v3427 = vld [vmem:[%s6 + $0x78] sm:$0xff]
        %v3428 = vadd.f32 %v3420, %v3424
        %v3429 = vadd.f32 %v3421, %v3425
        %v3430 = vadd.f32 %v3422, %v3426
        %v3431 = vadd.f32 %v3423, %v3427
        %v3432 = vmax.f32 %v3428, 0.0
        %v3433 = vmax.f32 %v3429, 0.0
        %v3434 = vmax.f32 %v3430, 0.0
        %v3435 = vmax.f32 %v3431, 0.0
        %3440 = vrot.lane.b32.xlu0 %v3432, 64
        %v3441 = vpop.permute.xlu0 %3440
        %3442 = vrot.lane.b32.xlu0 %v3433, 64
        %v3443 = vpop.permute.xlu0 %3442
        %3444 = vrot.lane.b32.xlu0 %v3434, 64
        %v3445 = vpop.permute.xlu0 %3444
        %3446 = vrot.lane.b32.xlu0 %v3435, 64
        %v3447 = vpop.permute.xlu0 %3446
        %3452 = vst.msk [vmem:[#allocation2 + $0x8] sm:$0xff] %vm1981, %v3441
        %3453 = vst.msk [vmem:[#allocation2 + $0x30] sm:$0xff] %vm1981, %v3443
        %3454 = vst.msk [vmem:[#allocation2 + $0x58] sm:$0xff] %vm1981, %v3445
        %3455 = vst.msk [vmem:[#allocation2 + $0x80] sm:$0xff] %vm1981, %v3447
        %v3456 = vld [vmem:[%s491 + $0x80] sm:$0xff]
        %v3457 = vld [vmem:[%s491 + $0x88] sm:$0xff]
        %v3458 = vld [vmem:[%s491 + $0x90] sm:$0xff]
        %v3459 = vld [vmem:[%s491 + $0x98] sm:$0xff]
        %v3460 = vld [vmem:[%s1] sm:$0xff]
        %v3461 = vld [vmem:[%s1 + $0x8] sm:$0xf]
        %v3462 = vld [vmem:[%s1 + $0xc] sm:$0xff]
        %v3463 = vld [vmem:[%s1 + $0x14] sm:$0xf]
        %v3464 = vld [vmem:[%s1 + $0x18] sm:$0xff]
        %v3465 = vld [vmem:[%s1 + $0x20] sm:$0xf]
        %v3466 = vld [vmem:[%s1 + $0x24] sm:$0xff]
        %v3467 = vld [vmem:[%s1 + $0x2c] sm:$0xf]
        %v3468 = vld [vmem:[%s1 + $0x30] sm:$0xff]
        %v3469 = vld [vmem:[%s1 + $0x38] sm:$0xf]
        %v3470 = vld [vmem:[%s1 + $0x3c] sm:$0xff]
        %v3471 = vld [vmem:[%s1 + $0x44] sm:$0xf]
        %v3472 = vld [vmem:[%s1 + $0x48] sm:$0xff]
        %v3473 = vld [vmem:[%s1 + $0x50] sm:$0xf]
        %v3474 = vld [vmem:[%s1 + $0x54] sm:$0xff]
        %v3475 = vld [vmem:[%s1 + $0x5c] sm:$0xf]
        %v3476 = vld [vmem:[%s1 + $0x60] sm:$0xff]
        %v3477 = vld [vmem:[%s1 + $0x68] sm:$0xf]
        %v3478 = vld [vmem:[%s1 + $0x6c] sm:$0xff]
        %v3479 = vld [vmem:[%s1 + $0x74] sm:$0xf]
        %v3480 = vld [vmem:[%s1 + $0x78] sm:$0xff]
        %v3481 = vld [vmem:[%s1 + $0x80] sm:$0xf]
        %v3482 = vld [vmem:[%s1 + $0x84] sm:$0xff]
        %v3483 = vld [vmem:[%s1 + $0x8c] sm:$0xf]
        %v3484 = vld [vmem:[%s1 + $0x90] sm:$0xff]
        %v3485 = vld [vmem:[%s1 + $0x98] sm:$0xf]
        %v3486 = vld [vmem:[%s1 + $0x9c] sm:$0xff]
        %v3487 = vld [vmem:[%s1 + $0xa4] sm:$0xf]
        %v3488 = vld [vmem:[%s1 + $0xa8] sm:$0xff]
        %v3489 = vld [vmem:[%s1 + $0xb0] sm:$0xf]
        %v3490 = vld [vmem:[%s1 + $0xb4] sm:$0xff]
        %v3491 = vld [vmem:[%s1 + $0xbc] sm:$0xf]
        %v3492 = vld [vmem:[%s1 + $0xc0] sm:$0xff]
        %v3493 = vld [vmem:[%s1 + $0xc8] sm:$0xf]
        %v3494 = vld [vmem:[%s1 + $0xcc] sm:$0xff]
        %v3495 = vld [vmem:[%s1 + $0xd4] sm:$0xf]
        %v3496 = vld [vmem:[%s1 + $0xd8] sm:$0xff]
        %v3497 = vld [vmem:[%s1 + $0xe0] sm:$0xf]
        %v3498 = vld [vmem:[%s1 + $0xe4] sm:$0xff]
        %v3499 = vld [vmem:[%s1 + $0xec] sm:$0xf]
        %v3500 = vld [vmem:[%s1 + $0xf0] sm:$0xff]
        %v3501 = vld [vmem:[%s1 + $0xf8] sm:$0xf]
        %v3502 = vld [vmem:[%s1 + $0xfc] sm:$0xff]
        %v3503 = vld [vmem:[%s1 + $0x104] sm:$0xf]
        %v3504 = vld [vmem:[%s1 + $0x108] sm:$0xff]
        %v3505 = vld [vmem:[%s1 + $0x110] sm:$0xf]
        %v3506 = vld [vmem:[%s1 + $0x114] sm:$0xff]
        %v3507 = vld [vmem:[%s1 + $0x11c] sm:$0xf]
        %v3508 = vld [vmem:[%s1 + $0x120] sm:$0xff]
        %v3509 = vld [vmem:[%s1 + $0x128] sm:$0xf]
        %v3510 = vld [vmem:[%s1 + $0x12c] sm:$0xff]
        %v3511 = vld [vmem:[%s1 + $0x134] sm:$0xf]
        %v3512 = vld [vmem:[%s1 + $0x138] sm:$0xff]
        %v3513 = vld [vmem:[%s1 + $0x140] sm:$0xf]
        %v3514 = vld [vmem:[%s1 + $0x144] sm:$0xff]
        %v3515 = vld [vmem:[%s1 + $0x14c] sm:$0xf]
        %v3516 = vld [vmem:[%s1 + $0x150] sm:$0xff]
        %v3517 = vld [vmem:[%s1 + $0x158] sm:$0xf]
        %v3518 = vld [vmem:[%s1 + $0x15c] sm:$0xff]
        %v3519 = vld [vmem:[%s1 + $0x164] sm:$0xf]
        %v3520 = vld [vmem:[%s1 + $0x168] sm:$0xff]
        %v3521 = vld [vmem:[%s1 + $0x170] sm:$0xf]
        %v3522 = vld [vmem:[%s1 + $0x174] sm:$0xff]
        %v3523 = vld [vmem:[%s1 + $0x17c] sm:$0xf]
        %v3528 = vunpack.c.l.b16 %v3456
        %v3529 = vunpack.c.h.b16 %v3456
        %v3530 = vunpack.c.l.b16 %v3457
        %v3531 = vunpack.c.h.b16 %v3457
        %v3532 = vunpack.c.l.b16 %v3458
        %v3533 = vunpack.c.h.b16 %v3458
        %v3534 = vunpack.c.l.b16 %v3459
        %v3535 = vunpack.c.h.b16 %v3459
        %v3536 = vpack.c.b16 %v3530, %v3528
        %v3537 = vpack.c.b16 %v3531, %v3529
        %v3538 = vpack.c.b16 %v3534, %v3532
        %v3539 = vpack.c.b16 %v3535, %v3533
        %v3608 = vunpack.c.l.b16 %v3460
        %v3609 = vunpack.c.h.b16 %v3460
        %v3610 = vunpack.c.l.b16 %v3461
        %v3611 = vunpack.c.l.b16 %v3462
        %v3612 = vunpack.c.h.b16 %v3462
        %v3613 = vunpack.c.l.b16 %v3463
        %v3614 = vunpack.c.l.b16 %v3464
        %v3615 = vunpack.c.h.b16 %v3464
        %v3616 = vunpack.c.l.b16 %v3465
        %v3617 = vunpack.c.l.b16 %v3466
        %v3618 = vunpack.c.h.b16 %v3466
        %v3619 = vunpack.c.l.b16 %v3467
        %v3620 = vunpack.c.l.b16 %v3468
        %v3621 = vunpack.c.h.b16 %v3468
        %v3622 = vunpack.c.l.b16 %v3469
        %v3623 = vunpack.c.l.b16 %v3470
        %v3624 = vunpack.c.h.b16 %v3470
        %v3625 = vunpack.c.l.b16 %v3471
        %v3626 = vunpack.c.l.b16 %v3472
        %v3627 = vunpack.c.h.b16 %v3472
        %v3628 = vunpack.c.l.b16 %v3473
        %v3629 = vunpack.c.l.b16 %v3474
        %v3630 = vunpack.c.h.b16 %v3474
        %v3631 = vunpack.c.l.b16 %v3475
        %v3632 = vunpack.c.l.b16 %v3476
        %v3633 = vunpack.c.h.b16 %v3476
        %v3634 = vunpack.c.l.b16 %v3477
        %v3635 = vunpack.c.l.b16 %v3478
        %v3636 = vunpack.c.h.b16 %v3478
        %v3637 = vunpack.c.l.b16 %v3479
        %v3638 = vunpack.c.l.b16 %v3480
        %v3639 = vunpack.c.h.b16 %v3480
        %v3640 = vunpack.c.l.b16 %v3481
        %v3641 = vunpack.c.l.b16 %v3482
        %v3642 = vunpack.c.h.b16 %v3482
        %v3643 = vunpack.c.l.b16 %v3483
        %v3644 = vunpack.c.l.b16 %v3484
        %v3645 = vunpack.c.h.b16 %v3484
        %v3646 = vunpack.c.l.b16 %v3485
        %v3647 = vunpack.c.l.b16 %v3486
        %v3648 = vunpack.c.h.b16 %v3486
        %v3649 = vunpack.c.l.b16 %v3487
        %v3650 = vunpack.c.l.b16 %v3488
        %v3651 = vunpack.c.h.b16 %v3488
        %v3652 = vunpack.c.l.b16 %v3489
        %v3653 = vunpack.c.l.b16 %v3490
        %v3654 = vunpack.c.h.b16 %v3490
        %v3655 = vunpack.c.l.b16 %v3491
        %v3656 = vunpack.c.l.b16 %v3492
        %v3657 = vunpack.c.h.b16 %v3492
        %v3658 = vunpack.c.l.b16 %v3493
        %v3659 = vunpack.c.l.b16 %v3494
        %v3660 = vunpack.c.h.b16 %v3494
        %v3661 = vunpack.c.l.b16 %v3495
        %v3662 = vunpack.c.l.b16 %v3496
        %v3663 = vunpack.c.h.b16 %v3496
        %v3664 = vunpack.c.l.b16 %v3497
        %v3665 = vunpack.c.l.b16 %v3498
        %v3666 = vunpack.c.h.b16 %v3498
        %v3667 = vunpack.c.l.b16 %v3499
        %v3668 = vunpack.c.l.b16 %v3500
        %v3669 = vunpack.c.h.b16 %v3500
        %v3670 = vunpack.c.l.b16 %v3501
        %v3671 = vunpack.c.l.b16 %v3502
        %v3672 = vunpack.c.h.b16 %v3502
        %v3673 = vunpack.c.l.b16 %v3503
        %v3674 = vunpack.c.l.b16 %v3504
        %v3675 = vunpack.c.h.b16 %v3504
        %v3676 = vunpack.c.l.b16 %v3505
        %v3677 = vunpack.c.l.b16 %v3506
        %v3678 = vunpack.c.h.b16 %v3506
        %v3679 = vunpack.c.l.b16 %v3507
        %v3680 = vunpack.c.l.b16 %v3508
        %v3681 = vunpack.c.h.b16 %v3508
        %v3682 = vunpack.c.l.b16 %v3509
        %v3683 = vunpack.c.l.b16 %v3510
        %v3684 = vunpack.c.h.b16 %v3510
        %v3685 = vunpack.c.l.b16 %v3511
        %v3686 = vunpack.c.l.b16 %v3512
        %v3687 = vunpack.c.h.b16 %v3512
        %v3688 = vunpack.c.l.b16 %v3513
        %v3689 = vunpack.c.l.b16 %v3514
        %v3690 = vunpack.c.h.b16 %v3514
        %v3691 = vunpack.c.l.b16 %v3515
        %v3692 = vunpack.c.l.b16 %v3516
        %v3693 = vunpack.c.h.b16 %v3516
        %v3694 = vunpack.c.l.b16 %v3517
        %v3695 = vunpack.c.l.b16 %v3518
        %v3696 = vunpack.c.h.b16 %v3518
        %v3697 = vunpack.c.l.b16 %v3519
        %v3698 = vunpack.c.l.b16 %v3520
        %v3699 = vunpack.c.h.b16 %v3520
        %v3700 = vunpack.c.l.b16 %v3521
        %v3701 = vunpack.c.l.b16 %v3522
        %v3702 = vunpack.c.h.b16 %v3522
        %v3703 = vunpack.c.l.b16 %v3523
        %v3704 = vpack.c.b16 %v3611, %v3608
        %v3705 = vpack.c.b16 %v3612, %v3609
        %v3706 = vpack.c.b16 %v3613, %v3610
        %v3707 = vpack.c.b16 %v3617, %v3614
        %v3708 = vpack.c.b16 %v3618, %v3615
        %v3709 = vpack.c.b16 %v3619, %v3616
        %v3710 = vpack.c.b16 %v3623, %v3620
        %v3711 = vpack.c.b16 %v3624, %v3621
        %v3712 = vpack.c.b16 %v3625, %v3622
        %v3713 = vpack.c.b16 %v3629, %v3626
        %v3714 = vpack.c.b16 %v3630, %v3627
        %v3715 = vpack.c.b16 %v3631, %v3628
        %v3716 = vpack.c.b16 %v3635, %v3632
        %v3717 = vpack.c.b16 %v3636, %v3633
        %v3718 = vpack.c.b16 %v3637, %v3634
        %v3719 = vpack.c.b16 %v3641, %v3638
        %v3720 = vpack.c.b16 %v3642, %v3639
        %v3721 = vpack.c.b16 %v3643, %v3640
        %v3722 = vpack.c.b16 %v3647, %v3644
        %v3723 = vpack.c.b16 %v3648, %v3645
        %v3724 = vpack.c.b16 %v3649, %v3646
        %v3725 = vpack.c.b16 %v3653, %v3650
        %v3726 = vpack.c.b16 %v3654, %v3651
        %v3727 = vpack.c.b16 %v3655, %v3652
        %v3728 = vpack.c.b16 %v3659, %v3656
        %v3729 = vpack.c.b16 %v3660, %v3657
        %v3730 = vpack.c.b16 %v3661, %v3658
        %v3731 = vpack.c.b16 %v3665, %v3662
        %v3732 = vpack.c.b16 %v3666, %v3663
        %v3733 = vpack.c.b16 %v3667, %v3664
        %v3734 = vpack.c.b16 %v3671, %v3668
        %v3735 = vpack.c.b16 %v3672, %v3669
        %v3736 = vpack.c.b16 %v3673, %v3670
        %v3737 = vpack.c.b16 %v3677, %v3674
        %v3738 = vpack.c.b16 %v3678, %v3675
        %v3739 = vpack.c.b16 %v3679, %v3676
        %v3740 = vpack.c.b16 %v3683, %v3680
        %v3741 = vpack.c.b16 %v3684, %v3681
        %v3742 = vpack.c.b16 %v3685, %v3682
        %v3743 = vpack.c.b16 %v3689, %v3686
        %v3744 = vpack.c.b16 %v3690, %v3687
        %v3745 = vpack.c.b16 %v3691, %v3688
        %v3746 = vpack.c.b16 %v3695, %v3692
        %v3747 = vpack.c.b16 %v3696, %v3693
        %v3748 = vpack.c.b16 %v3697, %v3694
        %v3749 = vpack.c.b16 %v3701, %v3698
        %v3750 = vpack.c.b16 %v3702, %v3699
        %v3751 = vpack.c.b16 %v3703, %v3700
        %3800 = vmatpush.bf16.msra.mxu0 %v3725
        %3801 = vmatpush.bf16.msra.mxu0 %v3722
        %3802 = vmatpush.bf16.msra.mxu0 %v3719
        %3803 = vmatpush.bf16.msra.mxu0 %v3716
        %3804 = vmatpush.bf16.msra.mxu0 %v3713
        %3805 = vmatpush.bf16.msra.mxu0 %v3710
        %3806 = vmatpush.bf16.msra.mxu0 %v3707
        %3807 = vmatpush.bf16.msra.mxu0 %v3704
        %3808 = vmatmul.bf16.gmra.mxu0 %v3536
        %v3809 = vpop.f32.mrf.mxu0
        %v3810 = vadd.f32 0.0, %v3809
        %v3811 = vpop.f32.mrf.mxu0
        %v3812 = vadd.f32 0.0, %v3811
        %3813 = vmatmul.bf16.gmra.mxu0 %v3538
        %v3814 = vpop.f32.mrf.mxu0
        %v3815 = vadd.f32 0.0, %v3814
        %v3816 = vpop.f32.mrf.mxu0
        %v3817 = vadd.f32 0.0, %v3816
        %3818 = vdwg.mxu0
        %3819 = vmatpush.bf16.msra.mxu0 %v3749
        %3820 = vmatpush.bf16.msra.mxu0 %v3746
        %3821 = vmatpush.bf16.msra.mxu0 %v3743
        %3822 = vmatpush.bf16.msra.mxu0 %v3740
        %3823 = vmatpush.bf16.msra.mxu0 %v3737
        %3824 = vmatpush.bf16.msra.mxu0 %v3734
        %3825 = vmatpush.bf16.msra.mxu0 %v3731
        %3826 = vmatpush.bf16.msra.mxu0 %v3728
        %3827 = vmatmul.bf16.gmra.mxu0 %v3537
        %v3828 = vpop.f32.mrf.mxu0
        %v3829 = vadd.f32 %v3810, %v3828
        %v3830 = vpop.f32.mrf.mxu0
        %v3831 = vadd.f32 %v3812, %v3830
        %3832 = vmatmul.bf16.gmra.mxu0 %v3539
        %v3833 = vpop.f32.mrf.mxu0
        %v3834 = vadd.f32 %v3815, %v3833
        %v3835 = vpop.f32.mrf.mxu0
        %v3836 = vadd.f32 %v3817, %v3835
        %3837 = vdwg.mxu0
        %3838 = vmatpush.bf16.msra.mxu0 %v3726
        %3839 = vmatpush.bf16.msra.mxu0 %v3723
        %3840 = vmatpush.bf16.msra.mxu0 %v3720
        %3841 = vmatpush.bf16.msra.mxu0 %v3717
        %3842 = vmatpush.bf16.msra.mxu0 %v3714
        %3843 = vmatpush.bf16.msra.mxu0 %v3711
        %3844 = vmatpush.bf16.msra.mxu0 %v3708
        %3845 = vmatpush.bf16.msra.mxu0 %v3705
        %3846 = vmatmul.bf16.gmra.mxu0 %v3536
        %v3847 = vpop.f32.mrf.mxu0
        %v3848 = vadd.f32 0.0, %v3847
        %v3849 = vpop.f32.mrf.mxu0
        %v3850 = vadd.f32 0.0, %v3849
        %3851 = vmatmul.bf16.gmra.mxu0 %v3538
        %v3852 = vpop.f32.mrf.mxu0
        %v3853 = vadd.f32 0.0, %v3852
        %v3854 = vpop.f32.mrf.mxu0
        %v3855 = vadd.f32 0.0, %v3854
        %3856 = vdwg.mxu0
        %3857 = vmatpush.bf16.msra.mxu0 %v3750
        %3858 = vmatpush.bf16.msra.mxu0 %v3747
        %3859 = vmatpush.bf16.msra.mxu0 %v3744
        %3860 = vmatpush.bf16.msra.mxu0 %v3741
        %3861 = vmatpush.bf16.msra.mxu0 %v3738
        %3862 = vmatpush.bf16.msra.mxu0 %v3735
        %3863 = vmatpush.bf16.msra.mxu0 %v3732
        %3864 = vmatpush.bf16.msra.mxu0 %v3729
        %3865 = vmatmul.bf16.gmra.mxu0 %v3537
        %v3866 = vpop.f32.mrf.mxu0
        %v3867 = vadd.f32 %v3848, %v3866
        %v3868 = vpop.f32.mrf.mxu0
        %v3869 = vadd.f32 %v3850, %v3868
        %3870 = vmatmul.bf16.gmra.mxu0 %v3539
        %v3871 = vpop.f32.mrf.mxu0
        %v3872 = vadd.f32 %v3853, %v3871
        %v3873 = vpop.f32.mrf.mxu0
        %v3874 = vadd.f32 %v3855, %v3873
        %3875 = vdwg.mxu0
        %3876 = vmatpush.bf16.msra.mxu0 %v3727
        %3877 = vmatpush.bf16.msra.mxu0 %v3724
        %3878 = vmatpush.bf16.msra.mxu0 %v3721
        %3879 = vmatpush.bf16.msra.mxu0 %v3718
        %3880 = vmatpush.bf16.msra.mxu0 %v3715
        %3881 = vmatpush.bf16.msra.mxu0 %v3712
        %3882 = vmatpush.bf16.msra.mxu0 %v3709
        %3883 = vmatpush.bf16.msra.mxu0 %v3706
        %3884 = vmatmul.bf16.gmra.mxu0 %v3536
        %v3885 = vpop.f32.mrf.mxu0
        %v3886 = vadd.f32 0.0, %v3885
        %v3887 = vpop.f32.mrf.mxu0
        %v3888 = vadd.f32 0.0, %v3887
        %3889 = vmatmul.bf16.gmra.mxu0 %v3538
        %v3890 = vpop.f32.mrf.mxu0
        %v3891 = vadd.f32 0.0, %v3890
        %v3892 = vpop.f32.mrf.mxu0
        %v3893 = vadd.f32 0.0, %v3892
        %3894 = vdwg.mxu0
        %3895 = vmatpush.bf16.msra.mxu0 %v3751
        %3896 = vmatpush.bf16.msra.mxu0 %v3748
        %3897 = vmatpush.bf16.msra.mxu0 %v3745
        %3898 = vmatpush.bf16.msra.mxu0 %v3742
        %3899 = vmatpush.bf16.msra.mxu0 %v3739
        %3900 = vmatpush.bf16.msra.mxu0 %v3736
        %3901 = vmatpush.bf16.msra.mxu0 %v3733
        %3902 = vmatpush.bf16.msra.mxu0 %v3730
        %3903 = vmatmul.bf16.gmra.mxu0 %v3537
        %v3904 = vpop.f32.mrf.mxu0
        %v3905 = vadd.f32 %v3886, %v3904
        %v3906 = vpop.f32.mrf.mxu0
        %v3907 = vadd.f32 %v3888, %v3906
        %3908 = vmatmul.bf16.gmra.mxu0 %v3539
        %v3909 = vpop.f32.mrf.mxu0
        %v3910 = vadd.f32 %v3891, %v3909
        %v3911 = vpop.f32.mrf.mxu0
        %v3912 = vadd.f32 %v3893, %v3911
        %3913 = vdwg.mxu0
        %v3914 = vmul.f32 %v3829, %v955
        %v3915 = vmul.f32 %v3867, %v956
        %v3916 = vmul.f32 %v3905, %v957
        %v3917 = vmul.f32 %v3831, %v955
        %v3918 = vmul.f32 %v3869, %v956
        %v3919 = vmul.f32 %v3907, %v957
        %v3920 = vmul.f32 %v3834, %v955
        %v3921 = vmul.f32 %v3872, %v956
        %v3922 = vmul.f32 %v3910, %v957
        %v3923 = vmul.f32 %v3836, %v955
        %v3924 = vmul.f32 %v3874, %v956
        %v3925 = vmul.f32 %v3912, %v957
        %v3926 = vadd.f32 %v3914, %v974
        %v3927 = vadd.f32 %v3915, %v975
        %v3928 = vadd.f32 %v3916, %v976
        %v3929 = vadd.f32 %v3917, %v974
        %v3930 = vadd.f32 %v3918, %v975
        %v3931 = vadd.f32 %v3919, %v976
        %v3932 = vadd.f32 %v3920, %v974
        %v3933 = vadd.f32 %v3921, %v975
        %v3934 = vadd.f32 %v3922, %v976
        %v3935 = vadd.f32 %v3923, %v974
        %v3936 = vadd.f32 %v3924, %v975
        %v3937 = vadd.f32 %v3925, %v976
        %v3938 = vmax.f32 %v3926, 0.0
        %v3939 = vmax.f32 %v3927, 0.0
        %v3940 = vmax.f32 %v3928, 0.0
        %v3941 = vmax.f32 %v3929, 0.0
        %v3942 = vmax.f32 %v3930, 0.0
        %v3943 = vmax.f32 %v3931, 0.0
        %v3944 = vmax.f32 %v3932, 0.0
        %v3945 = vmax.f32 %v3933, 0.0
        %v3946 = vmax.f32 %v3934, 0.0
        %v3947 = vmax.f32 %v3935, 0.0
        %v3948 = vmax.f32 %v3936, 0.0
        %v3949 = vmax.f32 %v3937, 0.0
        %v3950 = vpack.c.bf16 %v3941, %v3938
        %v3951 = vpack.c.bf16 %v3942, %v3939
        %v3952 = vpack.c.bf16 %v3943, %v3940
        %v3953 = vpack.c.bf16 %v3947, %v3944
        %v3954 = vpack.c.bf16 %v3948, %v3945
        %v3955 = vpack.c.bf16 %v3949, %v3946
        %v3956 = vld [vmem:[%s4] sm:$0xf]
        %v3957 = vld [vmem:[%s4 + $0x4] sm:$0xf]
        %v3958 = vld [vmem:[%s4 + $0x8] sm:$0xf]
        %v3959 = vld [vmem:[%s4 + $0xc] sm:$0xf]
        %v3960 = vld [vmem:[%s4 + $0x10] sm:$0xf]
        %v3961 = vld [vmem:[%s4 + $0x14] sm:$0xf]
        %v3962 = vld [vmem:[%s4 + $0x18] sm:$0xf]
        %v3963 = vld [vmem:[%s4 + $0x1c] sm:$0xf]
        %v3964 = vld [vmem:[%s4 + $0x20] sm:$0xf]
        %v3965 = vld [vmem:[%s4 + $0x24] sm:$0xf]
        %v3966 = vld [vmem:[%s4 + $0x28] sm:$0xf]
        %v3967 = vld [vmem:[%s4 + $0x2c] sm:$0xf]
        %v3968 = vld [vmem:[%s4 + $0x30] sm:$0xf]
        %v3969 = vld [vmem:[%s4 + $0x34] sm:$0xf]
        %v3970 = vld [vmem:[%s4 + $0x38] sm:$0xf]
        %v3971 = vld [vmem:[%s4 + $0x3c] sm:$0xf]
        %v3972 = vld [vmem:[%s4 + $0x40] sm:$0xf]
        %v3973 = vld [vmem:[%s4 + $0x44] sm:$0xf]
        %v3974 = vld [vmem:[%s4 + $0x48] sm:$0xf]
        %v3975 = vld [vmem:[%s4 + $0x4c] sm:$0xf]
        %v3976 = vld [vmem:[%s4 + $0x50] sm:$0xf]
        %v3977 = vld [vmem:[%s4 + $0x54] sm:$0xf]
        %v3978 = vld [vmem:[%s4 + $0x58] sm:$0xf]
        %v3979 = vld [vmem:[%s4 + $0x5c] sm:$0xf]
        %v3980 = vld [vmem:[%s4 + $0x60] sm:$0xf]
        %v3981 = vld [vmem:[%s4 + $0x64] sm:$0xf]
        %v3982 = vld [vmem:[%s4 + $0x68] sm:$0xf]
        %v3983 = vld [vmem:[%s4 + $0x6c] sm:$0xf]
        %v3984 = vld [vmem:[%s4 + $0x70] sm:$0xf]
        %v3985 = vld [vmem:[%s4 + $0x74] sm:$0xf]
        %v3986 = vld [vmem:[%s4 + $0x78] sm:$0xf]
        %v3987 = vld [vmem:[%s4 + $0x7c] sm:$0xf]
        %v3988 = vld [vmem:[%s4 + $0x80] sm:$0xf]
        %v3989 = vld [vmem:[%s4 + $0x84] sm:$0xf]
        %v3990 = vld [vmem:[%s4 + $0x88] sm:$0xf]
        %v3991 = vld [vmem:[%s4 + $0x8c] sm:$0xf]
        %v4028 = vunpack.c.l.b16 %v3956
        %v4029 = vunpack.c.l.b16 %v3957
        %v4030 = vunpack.c.l.b16 %v3958
        %v4031 = vunpack.c.l.b16 %v3959
        %v4032 = vunpack.c.l.b16 %v3960
        %v4033 = vunpack.c.l.b16 %v3961
        %v4034 = vunpack.c.l.b16 %v3962
        %v4035 = vunpack.c.l.b16 %v3963
        %v4036 = vunpack.c.l.b16 %v3964
        %v4037 = vunpack.c.l.b16 %v3965
        %v4038 = vunpack.c.l.b16 %v3966
        %v4039 = vunpack.c.l.b16 %v3967
        %v4040 = vunpack.c.l.b16 %v3968
        %v4041 = vunpack.c.l.b16 %v3969
        %v4042 = vunpack.c.l.b16 %v3970
        %v4043 = vunpack.c.l.b16 %v3971
        %v4044 = vunpack.c.l.b16 %v3972
        %v4045 = vunpack.c.l.b16 %v3973
        %v4046 = vunpack.c.l.b16 %v3974
        %v4047 = vunpack.c.l.b16 %v3975
        %v4048 = vunpack.c.l.b16 %v3976
        %v4049 = vunpack.c.l.b16 %v3977
        %v4050 = vunpack.c.l.b16 %v3978
        %v4051 = vunpack.c.l.b16 %v3979
        %v4052 = vunpack.c.l.b16 %v3980
        %v4053 = vunpack.c.l.b16 %v3981
        %v4054 = vunpack.c.l.b16 %v3982
        %v4055 = vunpack.c.l.b16 %v3983
        %v4056 = vunpack.c.l.b16 %v3984
        %v4057 = vunpack.c.l.b16 %v3985
        %v4058 = vunpack.c.l.b16 %v3986
        %v4059 = vunpack.c.l.b16 %v3987
        %v4060 = vunpack.c.l.b16 %v3988
        %v4061 = vunpack.c.l.b16 %v3989
        %v4062 = vunpack.c.l.b16 %v3990
        %v4063 = vunpack.c.l.b16 %v3991
        %v4064 = vpack.c.b16 %v4029, %v4028
        %v4065 = vpack.c.b16 %v4031, %v4030
        %v4066 = vpack.c.b16 %v4033, %v4032
        %v4067 = vpack.c.b16 %v4035, %v4034
        %v4068 = vpack.c.b16 %v4037, %v4036
        %v4069 = vpack.c.b16 %v4039, %v4038
        %v4070 = vpack.c.b16 %v4041, %v4040
        %v4071 = vpack.c.b16 %v4043, %v4042
        %v4072 = vpack.c.b16 %v4045, %v4044
        %v4073 = vpack.c.b16 %v4047, %v4046
        %v4074 = vpack.c.b16 %v4049, %v4048
        %v4075 = vpack.c.b16 %v4051, %v4050
        %v4076 = vpack.c.b16 %v4053, %v4052
        %v4077 = vpack.c.b16 %v4055, %v4054
        %v4078 = vpack.c.b16 %v4057, %v4056
        %v4079 = vpack.c.b16 %v4059, %v4058
        %v4080 = vpack.c.b16 %v4061, %v4060
        %v4081 = vpack.c.b16 %v4063, %v4062
        %v4101 = vsel %vm1154, %v3952, 0
        %v4104 = vsel %vm1154, %v3955, 0
        %4106 = vmatpush.bf16.msra.mxu0 %v4071
        %4107 = vmatpush.bf16.msra.mxu0 %v4070
        %4108 = vmatpush.bf16.msra.mxu0 %v4069
        %4109 = vmatpush.bf16.msra.mxu0 %v4068
        %4110 = vmatpush.bf16.msra.mxu0 %v4067
        %4111 = vmatpush.bf16.msra.mxu0 %v4066
        %4112 = vmatpush.bf16.msra.mxu0 %v4065
        %4113 = vmatpush.bf16.msra.mxu0 %v4064
        %4114 = vmatmul.bf16.gmra.mxu0 %v3950
        %v4115 = vpop.f32.mrf.mxu0
        %v4116 = vadd.f32 0.0, %v4115
        %v4117 = vpop.f32.mrf.mxu0
        %v4118 = vadd.f32 0.0, %v4117
        %4119 = vmatmul.bf16.gmra.mxu0 %v3953
        %v4120 = vpop.f32.mrf.mxu0
        %v4121 = vadd.f32 0.0, %v4120
        %v4122 = vpop.f32.mrf.mxu0
        %v4123 = vadd.f32 0.0, %v4122
        %4124 = vdwg.mxu0
        %4125 = vmatpush.bf16.msra.mxu0 %v4079
        %4126 = vmatpush.bf16.msra.mxu0 %v4078
        %4127 = vmatpush.bf16.msra.mxu0 %v4077
        %4128 = vmatpush.bf16.msra.mxu0 %v4076
        %4129 = vmatpush.bf16.msra.mxu0 %v4075
        %4130 = vmatpush.bf16.msra.mxu0 %v4074
        %4131 = vmatpush.bf16.msra.mxu0 %v4073
        %4132 = vmatpush.bf16.msra.mxu0 %v4072
        %4133 = vmatmul.bf16.gmra.mxu0 %v3951
        %v4134 = vpop.f32.mrf.mxu0
        %v4135 = vadd.f32 %v4116, %v4134
        %v4136 = vpop.f32.mrf.mxu0
        %v4137 = vadd.f32 %v4118, %v4136
        %4138 = vmatmul.bf16.gmra.mxu0 %v3954
        %v4139 = vpop.f32.mrf.mxu0
        %v4140 = vadd.f32 %v4121, %v4139
        %v4141 = vpop.f32.mrf.mxu0
        %v4142 = vadd.f32 %v4123, %v4141
        %4143 = vdwg.mxu0
        %4144 = vmatpush.bf16.msra.mxu0 0
        %4145 = vmatpush.bf16.msra.mxu0 0
        %4146 = vmatpush.bf16.msra.mxu0 0
        %4147 = vmatpush.bf16.msra.mxu0 0
        %4148 = vmatpush.bf16.msra.mxu0 0
        %4149 = vmatpush.bf16.msra.mxu0 0
        %4150 = vmatpush.bf16.msra.mxu0 %v4081
        %4151 = vmatpush.bf16.msra.mxu0 %v4080
        %4152 = vmatmul.bf16.gmra.mxu0 %v4101
        %v4153 = vpop.f32.mrf.mxu0
        %v4154 = vadd.f32 %v4135, %v4153
        %v4155 = vpop.f32.mrf.mxu0
        %v4156 = vadd.f32 %v4137, %v4155
        %4157 = vmatmul.bf16.gmra.mxu0 %v4104
        %v4158 = vpop.f32.mrf.mxu0
        %v4159 = vadd.f32 %v4140, %v4158
        %v4160 = vpop.f32.mrf.mxu0
        %v4161 = vadd.f32 %v4142, %v4160
        %4162 = vdwg.mxu0
        %v4163 = vmul.f32 %v4154, %v1219
        %v4164 = vmul.f32 %v4156, %v1219
        %v4165 = vmul.f32 %v4159, %v1219
        %v4166 = vmul.f32 %v4161, %v1219
        %v4167 = vld [vmem:[%s6 + $0x80] sm:$0xff]
        %v4168 = vld [vmem:[%s6 + $0x88] sm:$0xff]
        %v4169 = vld [vmem:[%s6 + $0x90] sm:$0xff]
        %v4170 = vld [vmem:[%s6 + $0x98] sm:$0xff]
        %v4171 = vadd.f32 %v4163, %v4167
        %v4172 = vadd.f32 %v4164, %v4168
        %v4173 = vadd.f32 %v4165, %v4169
        %v4174 = vadd.f32 %v4166, %v4170
        %v4175 = vmax.f32 %v4171, 0.0
        %v4176 = vmax.f32 %v4172, 0.0
        %v4177 = vmax.f32 %v4173, 0.0
        %v4178 = vmax.f32 %v4174, 0.0
        %4179 = vst.msk [vmem:[#allocation2 + $0x10] sm:$0xff] %vm1237, %v4175
        %4180 = vst.msk [vmem:[#allocation2 + $0x38] sm:$0xff] %vm1237, %v4176
        %4181 = vst.msk [vmem:[#allocation2 + $0x60] sm:$0xff] %vm1237, %v4177
        %4182 = vst.msk [vmem:[#allocation2 + $0x88] sm:$0xff] %vm1237, %v4178
        %v4183 = vld [vmem:[%s491 + $0xa0] sm:$0xff]
        %v4184 = vld [vmem:[%s491 + $0xa8] sm:$0xff]
        %v4185 = vld [vmem:[%s491 + $0xb0] sm:$0xff]
        %v4186 = vld [vmem:[%s491 + $0xb8] sm:$0xff]
        %v4187 = vld [vmem:[%s1] sm:$0xff]
        %v4188 = vld [vmem:[%s1 + $0x8] sm:$0xf]
        %v4189 = vld [vmem:[%s1 + $0xc] sm:$0xff]
        %v4190 = vld [vmem:[%s1 + $0x14] sm:$0xf]
        %v4191 = vld [vmem:[%s1 + $0x18] sm:$0xff]
        %v4192 = vld [vmem:[%s1 + $0x20] sm:$0xf]
        %v4193 = vld [vmem:[%s1 + $0x24] sm:$0xff]
        %v4194 = vld [vmem:[%s1 + $0x2c] sm:$0xf]
        %v4195 = vld [vmem:[%s1 + $0x30] sm:$0xff]
        %v4196 = vld [vmem:[%s1 + $0x38] sm:$0xf]
        %v4197 = vld [vmem:[%s1 + $0x3c] sm:$0xff]
        %v4198 = vld [vmem:[%s1 + $0x44] sm:$0xf]
        %v4199 = vld [vmem:[%s1 + $0x48] sm:$0xff]
        %v4200 = vld [vmem:[%s1 + $0x50] sm:$0xf]
        %v4201 = vld [vmem:[%s1 + $0x54] sm:$0xff]
        %v4202 = vld [vmem:[%s1 + $0x5c] sm:$0xf]
        %v4203 = vld [vmem:[%s1 + $0x60] sm:$0xff]
        %v4204 = vld [vmem:[%s1 + $0x68] sm:$0xf]
        %v4205 = vld [vmem:[%s1 + $0x6c] sm:$0xff]
        %v4206 = vld [vmem:[%s1 + $0x74] sm:$0xf]
        %v4207 = vld [vmem:[%s1 + $0x78] sm:$0xff]
        %v4208 = vld [vmem:[%s1 + $0x80] sm:$0xf]
        %v4209 = vld [vmem:[%s1 + $0x84] sm:$0xff]
        %v4210 = vld [vmem:[%s1 + $0x8c] sm:$0xf]
        %v4211 = vld [vmem:[%s1 + $0x90] sm:$0xff]
        %v4212 = vld [vmem:[%s1 + $0x98] sm:$0xf]
        %v4213 = vld [vmem:[%s1 + $0x9c] sm:$0xff]
        %v4214 = vld [vmem:[%s1 + $0xa4] sm:$0xf]
        %v4215 = vld [vmem:[%s1 + $0xa8] sm:$0xff]
        %v4216 = vld [vmem:[%s1 + $0xb0] sm:$0xf]
        %v4217 = vld [vmem:[%s1 + $0xb4] sm:$0xff]
        %v4218 = vld [vmem:[%s1 + $0xbc] sm:$0xf]
        %v4219 = vld [vmem:[%s1 + $0xc0] sm:$0xff]
        %v4220 = vld [vmem:[%s1 + $0xc8] sm:$0xf]
        %v4221 = vld [vmem:[%s1 + $0xcc] sm:$0xff]
        %v4222 = vld [vmem:[%s1 + $0xd4] sm:$0xf]
        %v4223 = vld [vmem:[%s1 + $0xd8] sm:$0xff]
        %v4224 = vld [vmem:[%s1 + $0xe0] sm:$0xf]
        %v4225 = vld [vmem:[%s1 + $0xe4] sm:$0xff]
        %v4226 = vld [vmem:[%s1 + $0xec] sm:$0xf]
        %v4227 = vld [vmem:[%s1 + $0xf0] sm:$0xff]
        %v4228 = vld [vmem:[%s1 + $0xf8] sm:$0xf]
        %v4229 = vld [vmem:[%s1 + $0xfc] sm:$0xff]
        %v4230 = vld [vmem:[%s1 + $0x104] sm:$0xf]
        %v4231 = vld [vmem:[%s1 + $0x108] sm:$0xff]
        %v4232 = vld [vmem:[%s1 + $0x110] sm:$0xf]
        %v4233 = vld [vmem:[%s1 + $0x114] sm:$0xff]
        %v4234 = vld [vmem:[%s1 + $0x11c] sm:$0xf]
        %v4235 = vld [vmem:[%s1 + $0x120] sm:$0xff]
        %v4236 = vld [vmem:[%s1 + $0x128] sm:$0xf]
        %v4237 = vld [vmem:[%s1 + $0x12c] sm:$0xff]
        %v4238 = vld [vmem:[%s1 + $0x134] sm:$0xf]
        %v4239 = vld [vmem:[%s1 + $0x138] sm:$0xff]
        %v4240 = vld [vmem:[%s1 + $0x140] sm:$0xf]
        %v4241 = vld [vmem:[%s1 + $0x144] sm:$0xff]
        %v4242 = vld [vmem:[%s1 + $0x14c] sm:$0xf]
        %v4243 = vld [vmem:[%s1 + $0x150] sm:$0xff]
        %v4244 = vld [vmem:[%s1 + $0x158] sm:$0xf]
        %v4245 = vld [vmem:[%s1 + $0x15c] sm:$0xff]
        %v4246 = vld [vmem:[%s1 + $0x164] sm:$0xf]
        %v4247 = vld [vmem:[%s1 + $0x168] sm:$0xff]
        %v4248 = vld [vmem:[%s1 + $0x170] sm:$0xf]
        %v4249 = vld [vmem:[%s1 + $0x174] sm:$0xff]
        %v4250 = vld [vmem:[%s1 + $0x17c] sm:$0xf]
        %v4255 = vunpack.c.l.b16 %v4183
        %v4256 = vunpack.c.h.b16 %v4183
        %v4257 = vunpack.c.l.b16 %v4184
        %v4258 = vunpack.c.h.b16 %v4184
        %v4259 = vunpack.c.l.b16 %v4185
        %v4260 = vunpack.c.h.b16 %v4185
        %v4261 = vunpack.c.l.b16 %v4186
        %v4262 = vunpack.c.h.b16 %v4186
        %v4263 = vpack.c.b16 %v4257, %v4255
        %v4264 = vpack.c.b16 %v4258, %v4256
        %v4265 = vpack.c.b16 %v4261, %v4259
        %v4266 = vpack.c.b16 %v4262, %v4260
        %v4335 = vunpack.c.l.b16 %v4187
        %v4336 = vunpack.c.h.b16 %v4187
        %v4337 = vunpack.c.l.b16 %v4188
        %v4338 = vunpack.c.l.b16 %v4189
        %v4339 = vunpack.c.h.b16 %v4189
        %v4340 = vunpack.c.l.b16 %v4190
        %v4341 = vunpack.c.l.b16 %v4191
        %v4342 = vunpack.c.h.b16 %v4191
        %v4343 = vunpack.c.l.b16 %v4192
        %v4344 = vunpack.c.l.b16 %v4193
        %v4345 = vunpack.c.h.b16 %v4193
        %v4346 = vunpack.c.l.b16 %v4194
        %v4347 = vunpack.c.l.b16 %v4195
        %v4348 = vunpack.c.h.b16 %v4195
        %v4349 = vunpack.c.l.b16 %v4196
        %v4350 = vunpack.c.l.b16 %v4197
        %v4351 = vunpack.c.h.b16 %v4197
        %v4352 = vunpack.c.l.b16 %v4198
        %v4353 = vunpack.c.l.b16 %v4199
        %v4354 = vunpack.c.h.b16 %v4199
        %v4355 = vunpack.c.l.b16 %v4200
        %v4356 = vunpack.c.l.b16 %v4201
        %v4357 = vunpack.c.h.b16 %v4201
        %v4358 = vunpack.c.l.b16 %v4202
        %v4359 = vunpack.c.l.b16 %v4203
        %v4360 = vunpack.c.h.b16 %v4203
        %v4361 = vunpack.c.l.b16 %v4204
        %v4362 = vunpack.c.l.b16 %v4205
        %v4363 = vunpack.c.h.b16 %v4205
        %v4364 = vunpack.c.l.b16 %v4206
        %v4365 = vunpack.c.l.b16 %v4207
        %v4366 = vunpack.c.h.b16 %v4207
        %v4367 = vunpack.c.l.b16 %v4208
        %v4368 = vunpack.c.l.b16 %v4209
        %v4369 = vunpack.c.h.b16 %v4209
        %v4370 = vunpack.c.l.b16 %v4210
        %v4371 = vunpack.c.l.b16 %v4211
        %v4372 = vunpack.c.h.b16 %v4211
        %v4373 = vunpack.c.l.b16 %v4212
        %v4374 = vunpack.c.l.b16 %v4213
        %v4375 = vunpack.c.h.b16 %v4213
        %v4376 = vunpack.c.l.b16 %v4214
        %v4377 = vunpack.c.l.b16 %v4215
        %v4378 = vunpack.c.h.b16 %v4215
        %v4379 = vunpack.c.l.b16 %v4216
        %v4380 = vunpack.c.l.b16 %v4217
        %v4381 = vunpack.c.h.b16 %v4217
        %v4382 = vunpack.c.l.b16 %v4218
        %v4383 = vunpack.c.l.b16 %v4219
        %v4384 = vunpack.c.h.b16 %v4219
        %v4385 = vunpack.c.l.b16 %v4220
        %v4386 = vunpack.c.l.b16 %v4221
        %v4387 = vunpack.c.h.b16 %v4221
        %v4388 = vunpack.c.l.b16 %v4222
        %v4389 = vunpack.c.l.b16 %v4223
        %v4390 = vunpack.c.h.b16 %v4223
        %v4391 = vunpack.c.l.b16 %v4224
        %v4392 = vunpack.c.l.b16 %v4225
        %v4393 = vunpack.c.h.b16 %v4225
        %v4394 = vunpack.c.l.b16 %v4226
        %v4395 = vunpack.c.l.b16 %v4227
        %v4396 = vunpack.c.h.b16 %v4227
        %v4397 = vunpack.c.l.b16 %v4228
        %v4398 = vunpack.c.l.b16 %v4229
        %v4399 = vunpack.c.h.b16 %v4229
        %v4400 = vunpack.c.l.b16 %v4230
        %v4401 = vunpack.c.l.b16 %v4231
        %v4402 = vunpack.c.h.b16 %v4231
        %v4403 = vunpack.c.l.b16 %v4232
        %v4404 = vunpack.c.l.b16 %v4233
        %v4405 = vunpack.c.h.b16 %v4233
        %v4406 = vunpack.c.l.b16 %v4234
        %v4407 = vunpack.c.l.b16 %v4235
        %v4408 = vunpack.c.h.b16 %v4235
        %v4409 = vunpack.c.l.b16 %v4236
        %v4410 = vunpack.c.l.b16 %v4237
        %v4411 = vunpack.c.h.b16 %v4237
        %v4412 = vunpack.c.l.b16 %v4238
        %v4413 = vunpack.c.l.b16 %v4239
        %v4414 = vunpack.c.h.b16 %v4239
        %v4415 = vunpack.c.l.b16 %v4240
        %v4416 = vunpack.c.l.b16 %v4241
        %v4417 = vunpack.c.h.b16 %v4241
        %v4418 = vunpack.c.l.b16 %v4242
        %v4419 = vunpack.c.l.b16 %v4243
        %v4420 = vunpack.c.h.b16 %v4243
        %v4421 = vunpack.c.l.b16 %v4244
        %v4422 = vunpack.c.l.b16 %v4245
        %v4423 = vunpack.c.h.b16 %v4245
        %v4424 = vunpack.c.l.b16 %v4246
        %v4425 = vunpack.c.l.b16 %v4247
        %v4426 = vunpack.c.h.b16 %v4247
        %v4427 = vunpack.c.l.b16 %v4248
        %v4428 = vunpack.c.l.b16 %v4249
        %v4429 = vunpack.c.h.b16 %v4249
        %v4430 = vunpack.c.l.b16 %v4250
        %v4431 = vpack.c.b16 %v4338, %v4335
        %v4432 = vpack.c.b16 %v4339, %v4336
        %v4433 = vpack.c.b16 %v4340, %v4337
        %v4434 = vpack.c.b16 %v4344, %v4341
        %v4435 = vpack.c.b16 %v4345, %v4342
        %v4436 = vpack.c.b16 %v4346, %v4343
        %v4437 = vpack.c.b16 %v4350, %v4347
        %v4438 = vpack.c.b16 %v4351, %v4348
        %v4439 = vpack.c.b16 %v4352, %v4349
        %v4440 = vpack.c.b16 %v4356, %v4353
        %v4441 = vpack.c.b16 %v4357, %v4354
        %v4442 = vpack.c.b16 %v4358, %v4355
        %v4443 = vpack.c.b16 %v4362, %v4359
        %v4444 = vpack.c.b16 %v4363, %v4360
        %v4445 = vpack.c.b16 %v4364, %v4361
        %v4446 = vpack.c.b16 %v4368, %v4365
        %v4447 = vpack.c.b16 %v4369, %v4366
        %v4448 = vpack.c.b16 %v4370, %v4367
        %v4449 = vpack.c.b16 %v4374, %v4371
        %v4450 = vpack.c.b16 %v4375, %v4372
        %v4451 = vpack.c.b16 %v4376, %v4373
        %v4452 = vpack.c.b16 %v4380, %v4377
        %v4453 = vpack.c.b16 %v4381, %v4378
        %v4454 = vpack.c.b16 %v4382, %v4379
        %v4455 = vpack.c.b16 %v4386, %v4383
        %v4456 = vpack.c.b16 %v4387, %v4384
        %v4457 = vpack.c.b16 %v4388, %v4385
        %v4458 = vpack.c.b16 %v4392, %v4389
        %v4459 = vpack.c.b16 %v4393, %v4390
        %v4460 = vpack.c.b16 %v4394, %v4391
        %v4461 = vpack.c.b16 %v4398, %v4395
        %v4462 = vpack.c.b16 %v4399, %v4396
        %v4463 = vpack.c.b16 %v4400, %v4397
        %v4464 = vpack.c.b16 %v4404, %v4401
        %v4465 = vpack.c.b16 %v4405, %v4402
        %v4466 = vpack.c.b16 %v4406, %v4403
        %v4467 = vpack.c.b16 %v4410, %v4407
        %v4468 = vpack.c.b16 %v4411, %v4408
        %v4469 = vpack.c.b16 %v4412, %v4409
        %v4470 = vpack.c.b16 %v4416, %v4413
        %v4471 = vpack.c.b16 %v4417, %v4414
        %v4472 = vpack.c.b16 %v4418, %v4415
        %v4473 = vpack.c.b16 %v4422, %v4419
        %v4474 = vpack.c.b16 %v4423, %v4420
        %v4475 = vpack.c.b16 %v4424, %v4421
        %v4476 = vpack.c.b16 %v4428, %v4425
        %v4477 = vpack.c.b16 %v4429, %v4426
        %v4478 = vpack.c.b16 %v4430, %v4427
        %4527 = vmatpush.bf16.msra.mxu0 %v4452
        %4528 = vmatpush.bf16.msra.mxu0 %v4449
        %4529 = vmatpush.bf16.msra.mxu0 %v4446
        %4530 = vmatpush.bf16.msra.mxu0 %v4443
        %4531 = vmatpush.bf16.msra.mxu0 %v4440
        %4532 = vmatpush.bf16.msra.mxu0 %v4437
        %4533 = vmatpush.bf16.msra.mxu0 %v4434
        %4534 = vmatpush.bf16.msra.mxu0 %v4431
        %4535 = vmatmul.bf16.gmra.mxu0 %v4263
        %v4536 = vpop.f32.mrf.mxu0
        %v4537 = vadd.f32 0.0, %v4536
        %v4538 = vpop.f32.mrf.mxu0
        %v4539 = vadd.f32 0.0, %v4538
        %4540 = vmatmul.bf16.gmra.mxu0 %v4265
        %v4541 = vpop.f32.mrf.mxu0
        %v4542 = vadd.f32 0.0, %v4541
        %v4543 = vpop.f32.mrf.mxu0
        %v4544 = vadd.f32 0.0, %v4543
        %4545 = vdwg.mxu0
        %4546 = vmatpush.bf16.msra.mxu0 %v4476
        %4547 = vmatpush.bf16.msra.mxu0 %v4473
        %4548 = vmatpush.bf16.msra.mxu0 %v4470
        %4549 = vmatpush.bf16.msra.mxu0 %v4467
        %4550 = vmatpush.bf16.msra.mxu0 %v4464
        %4551 = vmatpush.bf16.msra.mxu0 %v4461
        %4552 = vmatpush.bf16.msra.mxu0 %v4458
        %4553 = vmatpush.bf16.msra.mxu0 %v4455
        %4554 = vmatmul.bf16.gmra.mxu0 %v4264
        %v4555 = vpop.f32.mrf.mxu0
        %v4556 = vadd.f32 %v4537, %v4555
        %v4557 = vpop.f32.mrf.mxu0
        %v4558 = vadd.f32 %v4539, %v4557
        %4559 = vmatmul.bf16.gmra.mxu0 %v4266
        %v4560 = vpop.f32.mrf.mxu0
        %v4561 = vadd.f32 %v4542, %v4560
        %v4562 = vpop.f32.mrf.mxu0
        %v4563 = vadd.f32 %v4544, %v4562
        %4564 = vdwg.mxu0
        %4565 = vmatpush.bf16.msra.mxu0 %v4453
        %4566 = vmatpush.bf16.msra.mxu0 %v4450
        %4567 = vmatpush.bf16.msra.mxu0 %v4447
        %4568 = vmatpush.bf16.msra.mxu0 %v4444
        %4569 = vmatpush.bf16.msra.mxu0 %v4441
        %4570 = vmatpush.bf16.msra.mxu0 %v4438
        %4571 = vmatpush.bf16.msra.mxu0 %v4435
        %4572 = vmatpush.bf16.msra.mxu0 %v4432
        %4573 = vmatmul.bf16.gmra.mxu0 %v4263
        %v4574 = vpop.f32.mrf.mxu0
        %v4575 = vadd.f32 0.0, %v4574
        %v4576 = vpop.f32.mrf.mxu0
        %v4577 = vadd.f32 0.0, %v4576
        %4578 = vmatmul.bf16.gmra.mxu0 %v4265
        %v4579 = vpop.f32.mrf.mxu0
        %v4580 = vadd.f32 0.0, %v4579
        %v4581 = vpop.f32.mrf.mxu0
        %v4582 = vadd.f32 0.0, %v4581
        %4583 = vdwg.mxu0
        %4584 = vmatpush.bf16.msra.mxu0 %v4477
        %4585 = vmatpush.bf16.msra.mxu0 %v4474
        %4586 = vmatpush.bf16.msra.mxu0 %v4471
        %4587 = vmatpush.bf16.msra.mxu0 %v4468
        %4588 = vmatpush.bf16.msra.mxu0 %v4465
        %4589 = vmatpush.bf16.msra.mxu0 %v4462
        %4590 = vmatpush.bf16.msra.mxu0 %v4459
        %4591 = vmatpush.bf16.msra.mxu0 %v4456
        %4592 = vmatmul.bf16.gmra.mxu0 %v4264
        %v4593 = vpop.f32.mrf.mxu0
        %v4594 = vadd.f32 %v4575, %v4593
        %v4595 = vpop.f32.mrf.mxu0
        %v4596 = vadd.f32 %v4577, %v4595
        %4597 = vmatmul.bf16.gmra.mxu0 %v4266
        %v4598 = vpop.f32.mrf.mxu0
        %v4599 = vadd.f32 %v4580, %v4598
        %v4600 = vpop.f32.mrf.mxu0
        %v4601 = vadd.f32 %v4582, %v4600
        %4602 = vdwg.mxu0
        %4603 = vmatpush.bf16.msra.mxu0 %v4454
        %4604 = vmatpush.bf16.msra.mxu0 %v4451
        %4605 = vmatpush.bf16.msra.mxu0 %v4448
        %4606 = vmatpush.bf16.msra.mxu0 %v4445
        %4607 = vmatpush.bf16.msra.mxu0 %v4442
        %4608 = vmatpush.bf16.msra.mxu0 %v4439
        %4609 = vmatpush.bf16.msra.mxu0 %v4436
        %4610 = vmatpush.bf16.msra.mxu0 %v4433
        %4611 = vmatmul.bf16.gmra.mxu0 %v4263
        %v4612 = vpop.f32.mrf.mxu0
        %v4613 = vadd.f32 0.0, %v4612
        %v4614 = vpop.f32.mrf.mxu0
        %v4615 = vadd.f32 0.0, %v4614
        %4616 = vmatmul.bf16.gmra.mxu0 %v4265
        %v4617 = vpop.f32.mrf.mxu0
        %v4618 = vadd.f32 0.0, %v4617
        %v4619 = vpop.f32.mrf.mxu0
        %v4620 = vadd.f32 0.0, %v4619
        %4621 = vdwg.mxu0
        %4622 = vmatpush.bf16.msra.mxu0 %v4478
        %4623 = vmatpush.bf16.msra.mxu0 %v4475
        %4624 = vmatpush.bf16.msra.mxu0 %v4472
        %4625 = vmatpush.bf16.msra.mxu0 %v4469
        %4626 = vmatpush.bf16.msra.mxu0 %v4466
        %4627 = vmatpush.bf16.msra.mxu0 %v4463
        %4628 = vmatpush.bf16.msra.mxu0 %v4460
        %4629 = vmatpush.bf16.msra.mxu0 %v4457
        %4630 = vmatmul.bf16.gmra.mxu0 %v4264
        %v4631 = vpop.f32.mrf.mxu0
        %v4632 = vadd.f32 %v4613, %v4631
        %v4633 = vpop.f32.mrf.mxu0
        %v4634 = vadd.f32 %v4615, %v4633
        %4635 = vmatmul.bf16.gmra.mxu0 %v4266
        %v4636 = vpop.f32.mrf.mxu0
        %v4637 = vadd.f32 %v4618, %v4636
        %v4638 = vpop.f32.mrf.mxu0
        %v4639 = vadd.f32 %v4620, %v4638
        %4640 = vdwg.mxu0
        %v4641 = vmul.f32 %v4556, %v955
        %v4642 = vmul.f32 %v4594, %v956
        %v4643 = vmul.f32 %v4632, %v957
        %v4644 = vmul.f32 %v4558, %v955
        %v4645 = vmul.f32 %v4596, %v956
        %v4646 = vmul.f32 %v4634, %v957
        %v4647 = vmul.f32 %v4561, %v955
        %v4648 = vmul.f32 %v4599, %v956
        %v4649 = vmul.f32 %v4637, %v957
        %v4650 = vmul.f32 %v4563, %v955
        %v4651 = vmul.f32 %v4601, %v956
        %v4652 = vmul.f32 %v4639, %v957
        %v4653 = vadd.f32 %v4641, %v974
        %v4654 = vadd.f32 %v4642, %v975
        %v4655 = vadd.f32 %v4643, %v976
        %v4656 = vadd.f32 %v4644, %v974
        %v4657 = vadd.f32 %v4645, %v975
        %v4658 = vadd.f32 %v4646, %v976
        %v4659 = vadd.f32 %v4647, %v974
        %v4660 = vadd.f32 %v4648, %v975
        %v4661 = vadd.f32 %v4649, %v976
        %v4662 = vadd.f32 %v4650, %v974
        %v4663 = vadd.f32 %v4651, %v975
        %v4664 = vadd.f32 %v4652, %v976
        %v4665 = vmax.f32 %v4653, 0.0
        %v4666 = vmax.f32 %v4654, 0.0
        %v4667 = vmax.f32 %v4655, 0.0
        %v4668 = vmax.f32 %v4656, 0.0
        %v4669 = vmax.f32 %v4657, 0.0
        %v4670 = vmax.f32 %v4658, 0.0
        %v4671 = vmax.f32 %v4659, 0.0
        %v4672 = vmax.f32 %v4660, 0.0
        %v4673 = vmax.f32 %v4661, 0.0
        %v4674 = vmax.f32 %v4662, 0.0
        %v4675 = vmax.f32 %v4663, 0.0
        %v4676 = vmax.f32 %v4664, 0.0
        %v4677 = vpack.c.bf16 %v4668, %v4665
        %v4678 = vpack.c.bf16 %v4669, %v4666
        %v4679 = vpack.c.bf16 %v4670, %v4667
        %v4680 = vpack.c.bf16 %v4674, %v4671
        %v4681 = vpack.c.bf16 %v4675, %v4672
        %v4682 = vpack.c.bf16 %v4676, %v4673
        %v4683 = vld [vmem:[%s4] sm:$0xf]
        %v4684 = vld [vmem:[%s4 + $0x4] sm:$0xf]
        %v4685 = vld [vmem:[%s4 + $0x8] sm:$0xf]
        %v4686 = vld [vmem:[%s4 + $0xc] sm:$0xf]
        %v4687 = vld [vmem:[%s4 + $0x10] sm:$0xf]
        %v4688 = vld [vmem:[%s4 + $0x14] sm:$0xf]
        %v4689 = vld [vmem:[%s4 + $0x18] sm:$0xf]
        %v4690 = vld [vmem:[%s4 + $0x1c] sm:$0xf]
        %v4691 = vld [vmem:[%s4 + $0x20] sm:$0xf]
        %v4692 = vld [vmem:[%s4 + $0x24] sm:$0xf]
        %v4693 = vld [vmem:[%s4 + $0x28] sm:$0xf]
        %v4694 = vld [vmem:[%s4 + $0x2c] sm:$0xf]
        %v4695 = vld [vmem:[%s4 + $0x30] sm:$0xf]
        %v4696 = vld [vmem:[%s4 + $0x34] sm:$0xf]
        %v4697 = vld [vmem:[%s4 + $0x38] sm:$0xf]
        %v4698 = vld [vmem:[%s4 + $0x3c] sm:$0xf]
        %v4699 = vld [vmem:[%s4 + $0x40] sm:$0xf]
        %v4700 = vld [vmem:[%s4 + $0x44] sm:$0xf]
        %v4701 = vld [vmem:[%s4 + $0x48] sm:$0xf]
        %v4702 = vld [vmem:[%s4 + $0x4c] sm:$0xf]
        %v4703 = vld [vmem:[%s4 + $0x50] sm:$0xf]
        %v4704 = vld [vmem:[%s4 + $0x54] sm:$0xf]
        %v4705 = vld [vmem:[%s4 + $0x58] sm:$0xf]
        %v4706 = vld [vmem:[%s4 + $0x5c] sm:$0xf]
        %v4707 = vld [vmem:[%s4 + $0x60] sm:$0xf]
        %v4708 = vld [vmem:[%s4 + $0x64] sm:$0xf]
        %v4709 = vld [vmem:[%s4 + $0x68] sm:$0xf]
        %v4710 = vld [vmem:[%s4 + $0x6c] sm:$0xf]
        %v4711 = vld [vmem:[%s4 + $0x70] sm:$0xf]
        %v4712 = vld [vmem:[%s4 + $0x74] sm:$0xf]
        %v4713 = vld [vmem:[%s4 + $0x78] sm:$0xf]
        %v4714 = vld [vmem:[%s4 + $0x7c] sm:$0xf]
        %v4715 = vld [vmem:[%s4 + $0x80] sm:$0xf]
        %v4716 = vld [vmem:[%s4 + $0x84] sm:$0xf]
        %v4717 = vld [vmem:[%s4 + $0x88] sm:$0xf]
        %v4718 = vld [vmem:[%s4 + $0x8c] sm:$0xf]
        %v4755 = vunpack.c.l.b16 %v4683
        %v4756 = vunpack.c.l.b16 %v4684
        %v4757 = vunpack.c.l.b16 %v4685
        %v4758 = vunpack.c.l.b16 %v4686
        %v4759 = vunpack.c.l.b16 %v4687
        %v4760 = vunpack.c.l.b16 %v4688
        %v4761 = vunpack.c.l.b16 %v4689
        %v4762 = vunpack.c.l.b16 %v4690
        %v4763 = vunpack.c.l.b16 %v4691
        %v4764 = vunpack.c.l.b16 %v4692
        %v4765 = vunpack.c.l.b16 %v4693
        %v4766 = vunpack.c.l.b16 %v4694
        %v4767 = vunpack.c.l.b16 %v4695
        %v4768 = vunpack.c.l.b16 %v4696
        %v4769 = vunpack.c.l.b16 %v4697
        %v4770 = vunpack.c.l.b16 %v4698
        %v4771 = vunpack.c.l.b16 %v4699
        %v4772 = vunpack.c.l.b16 %v4700
        %v4773 = vunpack.c.l.b16 %v4701
        %v4774 = vunpack.c.l.b16 %v4702
        %v4775 = vunpack.c.l.b16 %v4703
        %v4776 = vunpack.c.l.b16 %v4704
        %v4777 = vunpack.c.l.b16 %v4705
        %v4778 = vunpack.c.l.b16 %v4706
        %v4779 = vunpack.c.l.b16 %v4707
        %v4780 = vunpack.c.l.b16 %v4708
        %v4781 = vunpack.c.l.b16 %v4709
        %v4782 = vunpack.c.l.b16 %v4710
        %v4783 = vunpack.c.l.b16 %v4711
        %v4784 = vunpack.c.l.b16 %v4712
        %v4785 = vunpack.c.l.b16 %v4713
        %v4786 = vunpack.c.l.b16 %v4714
        %v4787 = vunpack.c.l.b16 %v4715
        %v4788 = vunpack.c.l.b16 %v4716
        %v4789 = vunpack.c.l.b16 %v4717
        %v4790 = vunpack.c.l.b16 %v4718
        %v4791 = vpack.c.b16 %v4756, %v4755
        %v4792 = vpack.c.b16 %v4758, %v4757
        %v4793 = vpack.c.b16 %v4760, %v4759
        %v4794 = vpack.c.b16 %v4762, %v4761
        %v4795 = vpack.c.b16 %v4764, %v4763
        %v4796 = vpack.c.b16 %v4766, %v4765
        %v4797 = vpack.c.b16 %v4768, %v4767
        %v4798 = vpack.c.b16 %v4770, %v4769
        %v4799 = vpack.c.b16 %v4772, %v4771
        %v4800 = vpack.c.b16 %v4774, %v4773
        %v4801 = vpack.c.b16 %v4776, %v4775
        %v4802 = vpack.c.b16 %v4778, %v4777
        %v4803 = vpack.c.b16 %v4780, %v4779
        %v4804 = vpack.c.b16 %v4782, %v4781
        %v4805 = vpack.c.b16 %v4784, %v4783
        %v4806 = vpack.c.b16 %v4786, %v4785
        %v4807 = vpack.c.b16 %v4788, %v4787
        %v4808 = vpack.c.b16 %v4790, %v4789
        %v4828 = vsel %vm1154, %v4679, 0
        %v4831 = vsel %vm1154, %v4682, 0
        %4833 = vmatpush.bf16.msra.mxu0 %v4798
        %4834 = vmatpush.bf16.msra.mxu0 %v4797
        %4835 = vmatpush.bf16.msra.mxu0 %v4796
        %4836 = vmatpush.bf16.msra.mxu0 %v4795
        %4837 = vmatpush.bf16.msra.mxu0 %v4794
        %4838 = vmatpush.bf16.msra.mxu0 %v4793
        %4839 = vmatpush.bf16.msra.mxu0 %v4792
        %4840 = vmatpush.bf16.msra.mxu0 %v4791
        %4841 = vmatmul.bf16.gmra.mxu0 %v4677
        %v4842 = vpop.f32.mrf.mxu0
        %v4843 = vadd.f32 0.0, %v4842
        %v4844 = vpop.f32.mrf.mxu0
        %v4845 = vadd.f32 0.0, %v4844
        %4846 = vmatmul.bf16.gmra.mxu0 %v4680
        %v4847 = vpop.f32.mrf.mxu0
        %v4848 = vadd.f32 0.0, %v4847
        %v4849 = vpop.f32.mrf.mxu0
        %v4850 = vadd.f32 0.0, %v4849
        %4851 = vdwg.mxu0
        %4852 = vmatpush.bf16.msra.mxu0 %v4806
        %4853 = vmatpush.bf16.msra.mxu0 %v4805
        %4854 = vmatpush.bf16.msra.mxu0 %v4804
        %4855 = vmatpush.bf16.msra.mxu0 %v4803
        %4856 = vmatpush.bf16.msra.mxu0 %v4802
        %4857 = vmatpush.bf16.msra.mxu0 %v4801
        %4858 = vmatpush.bf16.msra.mxu0 %v4800
        %4859 = vmatpush.bf16.msra.mxu0 %v4799
        %4860 = vmatmul.bf16.gmra.mxu0 %v4678
        %v4861 = vpop.f32.mrf.mxu0
        %v4862 = vadd.f32 %v4843, %v4861
        %v4863 = vpop.f32.mrf.mxu0
        %v4864 = vadd.f32 %v4845, %v4863
        %4865 = vmatmul.bf16.gmra.mxu0 %v4681
        %v4866 = vpop.f32.mrf.mxu0
        %v4867 = vadd.f32 %v4848, %v4866
        %v4868 = vpop.f32.mrf.mxu0
        %v4869 = vadd.f32 %v4850, %v4868
        %4870 = vdwg.mxu0
        %4871 = vmatpush.bf16.msra.mxu0 0
        %4872 = vmatpush.bf16.msra.mxu0 0
        %4873 = vmatpush.bf16.msra.mxu0 0
        %4874 = vmatpush.bf16.msra.mxu0 0
        %4875 = vmatpush.bf16.msra.mxu0 0
        %4876 = vmatpush.bf16.msra.mxu0 0
        %4877 = vmatpush.bf16.msra.mxu0 %v4808
        %4878 = vmatpush.bf16.msra.mxu0 %v4807
        %4879 = vmatmul.bf16.gmra.mxu0 %v4828
        %v4880 = vpop.f32.mrf.mxu0
        %v4881 = vadd.f32 %v4862, %v4880
        %v4882 = vpop.f32.mrf.mxu0
        %v4883 = vadd.f32 %v4864, %v4882
        %4884 = vmatmul.bf16.gmra.mxu0 %v4831
        %v4885 = vpop.f32.mrf.mxu0
        %v4886 = vadd.f32 %v4867, %v4885
        %v4887 = vpop.f32.mrf.mxu0
        %v4888 = vadd.f32 %v4869, %v4887
        %4889 = vdwg.mxu0
        %v4890 = vmul.f32 %v4881, %v1219
        %v4891 = vmul.f32 %v4883, %v1219
        %v4892 = vmul.f32 %v4886, %v1219
        %v4893 = vmul.f32 %v4888, %v1219
        %v4894 = vld [vmem:[%s6 + $0xa0] sm:$0xff]
        %v4895 = vld [vmem:[%s6 + $0xa8] sm:$0xff]
        %v4896 = vld [vmem:[%s6 + $0xb0] sm:$0xff]
        %v4897 = vld [vmem:[%s6 + $0xb8] sm:$0xff]
        %v4898 = vadd.f32 %v4890, %v4894
        %v4899 = vadd.f32 %v4891, %v4895
        %v4900 = vadd.f32 %v4892, %v4896
        %v4901 = vadd.f32 %v4893, %v4897
        %v4902 = vmax.f32 %v4898, 0.0
        %v4903 = vmax.f32 %v4899, 0.0
        %v4904 = vmax.f32 %v4900, 0.0
        %v4905 = vmax.f32 %v4901, 0.0
        %4910 = vrot.lane.b32.xlu0 %v4902, 64
        %v4911 = vpop.permute.xlu0 %4910
        %4912 = vrot.lane.b32.xlu0 %v4903, 64
        %v4913 = vpop.permute.xlu0 %4912
        %4914 = vrot.lane.b32.xlu0 %v4904, 64
        %v4915 = vpop.permute.xlu0 %4914
        %4916 = vrot.lane.b32.xlu0 %v4905, 64
        %v4917 = vpop.permute.xlu0 %4916
        %4922 = vst.msk [vmem:[#allocation2 + $0x10] sm:$0xff] %vm1981, %v4911
        %4923 = vst.msk [vmem:[#allocation2 + $0x38] sm:$0xff] %vm1981, %v4913
        %4924 = vst.msk [vmem:[#allocation2 + $0x60] sm:$0xff] %vm1981, %v4915
        %4925 = vst.msk [vmem:[#allocation2 + $0x88] sm:$0xff] %vm1981, %v4917
        %v4926 = vld [vmem:[%s491 + $0xc0] sm:$0xff]
        %v4927 = vld [vmem:[%s491 + $0xc8] sm:$0xff]
        %v4928 = vld [vmem:[%s491 + $0xd0] sm:$0xff]
        %v4929 = vld [vmem:[%s491 + $0xd8] sm:$0xff]
        %v4930 = vld [vmem:[%s1] sm:$0xff]
        %v4931 = vld [vmem:[%s1 + $0x8] sm:$0xf]
        %v4932 = vld [vmem:[%s1 + $0xc] sm:$0xff]
        %v4933 = vld [vmem:[%s1 + $0x14] sm:$0xf]
        %v4934 = vld [vmem:[%s1 + $0x18] sm:$0xff]
        %v4935 = vld [vmem:[%s1 + $0x20] sm:$0xf]
        %v4936 = vld [vmem:[%s1 + $0x24] sm:$0xff]
        %v4937 = vld [vmem:[%s1 + $0x2c] sm:$0xf]
        %v4938 = vld [vmem:[%s1 + $0x30] sm:$0xff]
        %v4939 = vld [vmem:[%s1 + $0x38] sm:$0xf]
        %v4940 = vld [vmem:[%s1 + $0x3c] sm:$0xff]
        %v4941 = vld [vmem:[%s1 + $0x44] sm:$0xf]
        %v4942 = vld [vmem:[%s1 + $0x48] sm:$0xff]
        %v4943 = vld [vmem:[%s1 + $0x50] sm:$0xf]
        %v4944 = vld [vmem:[%s1 + $0x54] sm:$0xff]
        %v4945 = vld [vmem:[%s1 + $0x5c] sm:$0xf]
        %v4946 = vld [vmem:[%s1 + $0x60] sm:$0xff]
        %v4947 = vld [vmem:[%s1 + $0x68] sm:$0xf]
        %v4948 = vld [vmem:[%s1 + $0x6c] sm:$0xff]
        %v4949 = vld [vmem:[%s1 + $0x74] sm:$0xf]
        %v4950 = vld [vmem:[%s1 + $0x78] sm:$0xff]
        %v4951 = vld [vmem:[%s1 + $0x80] sm:$0xf]
        %v4952 = vld [vmem:[%s1 + $0x84] sm:$0xff]
        %v4953 = vld [vmem:[%s1 + $0x8c] sm:$0xf]
        %v4954 = vld [vmem:[%s1 + $0x90] sm:$0xff]
        %v4955 = vld [vmem:[%s1 + $0x98] sm:$0xf]
        %v4956 = vld [vmem:[%s1 + $0x9c] sm:$0xff]
        %v4957 = vld [vmem:[%s1 + $0xa4] sm:$0xf]
        %v4958 = vld [vmem:[%s1 + $0xa8] sm:$0xff]
        %v4959 = vld [vmem:[%s1 + $0xb0] sm:$0xf]
        %v4960 = vld [vmem:[%s1 + $0xb4] sm:$0xff]
        %v4961 = vld [vmem:[%s1 + $0xbc] sm:$0xf]
        %v4962 = vld [vmem:[%s1 + $0xc0] sm:$0xff]
        %v4963 = vld [vmem:[%s1 + $0xc8] sm:$0xf]
        %v4964 = vld [vmem:[%s1 + $0xcc] sm:$0xff]
        %v4965 = vld [vmem:[%s1 + $0xd4] sm:$0xf]
        %v4966 = vld [vmem:[%s1 + $0xd8] sm:$0xff]
        %v4967 = vld [vmem:[%s1 + $0xe0] sm:$0xf]
        %v4968 = vld [vmem:[%s1 + $0xe4] sm:$0xff]
        %v4969 = vld [vmem:[%s1 + $0xec] sm:$0xf]
        %v4970 = vld [vmem:[%s1 + $0xf0] sm:$0xff]
        %v4971 = vld [vmem:[%s1 + $0xf8] sm:$0xf]
        %v4972 = vld [vmem:[%s1 + $0xfc] sm:$0xff]
        %v4973 = vld [vmem:[%s1 + $0x104] sm:$0xf]
        %v4974 = vld [vmem:[%s1 + $0x108] sm:$0xff]
        %v4975 = vld [vmem:[%s1 + $0x110] sm:$0xf]
        %v4976 = vld [vmem:[%s1 + $0x114] sm:$0xff]
        %v4977 = vld [vmem:[%s1 + $0x11c] sm:$0xf]
        %v4978 = vld [vmem:[%s1 + $0x120] sm:$0xff]
        %v4979 = vld [vmem:[%s1 + $0x128] sm:$0xf]
        %v4980 = vld [vmem:[%s1 + $0x12c] sm:$0xff]
        %v4981 = vld [vmem:[%s1 + $0x134] sm:$0xf]
        %v4982 = vld [vmem:[%s1 + $0x138] sm:$0xff]
        %v4983 = vld [vmem:[%s1 + $0x140] sm:$0xf]
        %v4984 = vld [vmem:[%s1 + $0x144] sm:$0xff]
        %v4985 = vld [vmem:[%s1 + $0x14c] sm:$0xf]
        %v4986 = vld [vmem:[%s1 + $0x150] sm:$0xff]
        %v4987 = vld [vmem:[%s1 + $0x158] sm:$0xf]
        %v4988 = vld [vmem:[%s1 + $0x15c] sm:$0xff]
        %v4989 = vld [vmem:[%s1 + $0x164] sm:$0xf]
        %v4990 = vld [vmem:[%s1 + $0x168] sm:$0xff]
        %v4991 = vld [vmem:[%s1 + $0x170] sm:$0xf]
        %v4992 = vld [vmem:[%s1 + $0x174] sm:$0xff]
        %v4993 = vld [vmem:[%s1 + $0x17c] sm:$0xf]
        %v4998 = vunpack.c.l.b16 %v4926
        %v4999 = vunpack.c.h.b16 %v4926
        %v5000 = vunpack.c.l.b16 %v4927
        %v5001 = vunpack.c.h.b16 %v4927
        %v5002 = vunpack.c.l.b16 %v4928
        %v5003 = vunpack.c.h.b16 %v4928
        %v5004 = vunpack.c.l.b16 %v4929
        %v5005 = vunpack.c.h.b16 %v4929
        %v5006 = vpack.c.b16 %v5000, %v4998
        %v5007 = vpack.c.b16 %v5001, %v4999
        %v5008 = vpack.c.b16 %v5004, %v5002
        %v5009 = vpack.c.b16 %v5005, %v5003
        %v5078 = vunpack.c.l.b16 %v4930
        %v5079 = vunpack.c.h.b16 %v4930
        %v5080 = vunpack.c.l.b16 %v4931
        %v5081 = vunpack.c.l.b16 %v4932
        %v5082 = vunpack.c.h.b16 %v4932
        %v5083 = vunpack.c.l.b16 %v4933
        %v5084 = vunpack.c.l.b16 %v4934
        %v5085 = vunpack.c.h.b16 %v4934
        %v5086 = vunpack.c.l.b16 %v4935
        %v5087 = vunpack.c.l.b16 %v4936
        %v5088 = vunpack.c.h.b16 %v4936
        %v5089 = vunpack.c.l.b16 %v4937
        %v5090 = vunpack.c.l.b16 %v4938
        %v5091 = vunpack.c.h.b16 %v4938
        %v5092 = vunpack.c.l.b16 %v4939
        %v5093 = vunpack.c.l.b16 %v4940
        %v5094 = vunpack.c.h.b16 %v4940
        %v5095 = vunpack.c.l.b16 %v4941
        %v5096 = vunpack.c.l.b16 %v4942
        %v5097 = vunpack.c.h.b16 %v4942
        %v5098 = vunpack.c.l.b16 %v4943
        %v5099 = vunpack.c.l.b16 %v4944
        %v5100 = vunpack.c.h.b16 %v4944
        %v5101 = vunpack.c.l.b16 %v4945
        %v5102 = vunpack.c.l.b16 %v4946
        %v5103 = vunpack.c.h.b16 %v4946
        %v5104 = vunpack.c.l.b16 %v4947
        %v5105 = vunpack.c.l.b16 %v4948
        %v5106 = vunpack.c.h.b16 %v4948
        %v5107 = vunpack.c.l.b16 %v4949
        %v5108 = vunpack.c.l.b16 %v4950
        %v5109 = vunpack.c.h.b16 %v4950
        %v5110 = vunpack.c.l.b16 %v4951
        %v5111 = vunpack.c.l.b16 %v4952
        %v5112 = vunpack.c.h.b16 %v4952
        %v5113 = vunpack.c.l.b16 %v4953
        %v5114 = vunpack.c.l.b16 %v4954
        %v5115 = vunpack.c.h.b16 %v4954
        %v5116 = vunpack.c.l.b16 %v4955
        %v5117 = vunpack.c.l.b16 %v4956
        %v5118 = vunpack.c.h.b16 %v4956
        %v5119 = vunpack.c.l.b16 %v4957
        %v5120 = vunpack.c.l.b16 %v4958
        %v5121 = vunpack.c.h.b16 %v4958
        %v5122 = vunpack.c.l.b16 %v4959
        %v5123 = vunpack.c.l.b16 %v4960
        %v5124 = vunpack.c.h.b16 %v4960
        %v5125 = vunpack.c.l.b16 %v4961
        %v5126 = vunpack.c.l.b16 %v4962
        %v5127 = vunpack.c.h.b16 %v4962
        %v5128 = vunpack.c.l.b16 %v4963
        %v5129 = vunpack.c.l.b16 %v4964
        %v5130 = vunpack.c.h.b16 %v4964
        %v5131 = vunpack.c.l.b16 %v4965
        %v5132 = vunpack.c.l.b16 %v4966
        %v5133 = vunpack.c.h.b16 %v4966
        %v5134 = vunpack.c.l.b16 %v4967
        %v5135 = vunpack.c.l.b16 %v4968
        %v5136 = vunpack.c.h.b16 %v4968
        %v5137 = vunpack.c.l.b16 %v4969
        %v5138 = vunpack.c.l.b16 %v4970
        %v5139 = vunpack.c.h.b16 %v4970
        %v5140 = vunpack.c.l.b16 %v4971
        %v5141 = vunpack.c.l.b16 %v4972
        %v5142 = vunpack.c.h.b16 %v4972
        %v5143 = vunpack.c.l.b16 %v4973
        %v5144 = vunpack.c.l.b16 %v4974
        %v5145 = vunpack.c.h.b16 %v4974
        %v5146 = vunpack.c.l.b16 %v4975
        %v5147 = vunpack.c.l.b16 %v4976
        %v5148 = vunpack.c.h.b16 %v4976
        %v5149 = vunpack.c.l.b16 %v4977
        %v5150 = vunpack.c.l.b16 %v4978
        %v5151 = vunpack.c.h.b16 %v4978
        %v5152 = vunpack.c.l.b16 %v4979
        %v5153 = vunpack.c.l.b16 %v4980
        %v5154 = vunpack.c.h.b16 %v4980
        %v5155 = vunpack.c.l.b16 %v4981
        %v5156 = vunpack.c.l.b16 %v4982
        %v5157 = vunpack.c.h.b16 %v4982
        %v5158 = vunpack.c.l.b16 %v4983
        %v5159 = vunpack.c.l.b16 %v4984
        %v5160 = vunpack.c.h.b16 %v4984
        %v5161 = vunpack.c.l.b16 %v4985
        %v5162 = vunpack.c.l.b16 %v4986
        %v5163 = vunpack.c.h.b16 %v4986
        %v5164 = vunpack.c.l.b16 %v4987
        %v5165 = vunpack.c.l.b16 %v4988
        %v5166 = vunpack.c.h.b16 %v4988
        %v5167 = vunpack.c.l.b16 %v4989
        %v5168 = vunpack.c.l.b16 %v4990
        %v5169 = vunpack.c.h.b16 %v4990
        %v5170 = vunpack.c.l.b16 %v4991
        %v5171 = vunpack.c.l.b16 %v4992
        %v5172 = vunpack.c.h.b16 %v4992
        %v5173 = vunpack.c.l.b16 %v4993
        %v5174 = vpack.c.b16 %v5081, %v5078
        %v5175 = vpack.c.b16 %v5082, %v5079
        %v5176 = vpack.c.b16 %v5083, %v5080
        %v5177 = vpack.c.b16 %v5087, %v5084
        %v5178 = vpack.c.b16 %v5088, %v5085
        %v5179 = vpack.c.b16 %v5089, %v5086
        %v5180 = vpack.c.b16 %v5093, %v5090
        %v5181 = vpack.c.b16 %v5094, %v5091
        %v5182 = vpack.c.b16 %v5095, %v5092
        %v5183 = vpack.c.b16 %v5099, %v5096
        %v5184 = vpack.c.b16 %v5100, %v5097
        %v5185 = vpack.c.b16 %v5101, %v5098
        %v5186 = vpack.c.b16 %v5105, %v5102
        %v5187 = vpack.c.b16 %v5106, %v5103
        %v5188 = vpack.c.b16 %v5107, %v5104
        %v5189 = vpack.c.b16 %v5111, %v5108
        %v5190 = vpack.c.b16 %v5112, %v5109
        %v5191 = vpack.c.b16 %v5113, %v5110
        %v5192 = vpack.c.b16 %v5117, %v5114
        %v5193 = vpack.c.b16 %v5118, %v5115
        %v5194 = vpack.c.b16 %v5119, %v5116
        %v5195 = vpack.c.b16 %v5123, %v5120
        %v5196 = vpack.c.b16 %v5124, %v5121
        %v5197 = vpack.c.b16 %v5125, %v5122
        %v5198 = vpack.c.b16 %v5129, %v5126
        %v5199 = vpack.c.b16 %v5130, %v5127
        %v5200 = vpack.c.b16 %v5131, %v5128
        %v5201 = vpack.c.b16 %v5135, %v5132
        %v5202 = vpack.c.b16 %v5136, %v5133
        %v5203 = vpack.c.b16 %v5137, %v5134
        %v5204 = vpack.c.b16 %v5141, %v5138
        %v5205 = vpack.c.b16 %v5142, %v5139
        %v5206 = vpack.c.b16 %v5143, %v5140
        %v5207 = vpack.c.b16 %v5147, %v5144
        %v5208 = vpack.c.b16 %v5148, %v5145
        %v5209 = vpack.c.b16 %v5149, %v5146
        %v5210 = vpack.c.b16 %v5153, %v5150
        %v5211 = vpack.c.b16 %v5154, %v5151
        %v5212 = vpack.c.b16 %v5155, %v5152
        %v5213 = vpack.c.b16 %v5159, %v5156
        %v5214 = vpack.c.b16 %v5160, %v5157
        %v5215 = vpack.c.b16 %v5161, %v5158
        %v5216 = vpack.c.b16 %v5165, %v5162
        %v5217 = vpack.c.b16 %v5166, %v5163
        %v5218 = vpack.c.b16 %v5167, %v5164
        %v5219 = vpack.c.b16 %v5171, %v5168
        %v5220 = vpack.c.b16 %v5172, %v5169
        %v5221 = vpack.c.b16 %v5173, %v5170
        %5270 = vmatpush.bf16.msra.mxu0 %v5195
        %5271 = vmatpush.bf16.msra.mxu0 %v5192
        %5272 = vmatpush.bf16.msra.mxu0 %v5189
        %5273 = vmatpush.bf16.msra.mxu0 %v5186
        %5274 = vmatpush.bf16.msra.mxu0 %v5183
        %5275 = vmatpush.bf16.msra.mxu0 %v5180
        %5276 = vmatpush.bf16.msra.mxu0 %v5177
        %5277 = vmatpush.bf16.msra.mxu0 %v5174
        %5278 = vmatmul.bf16.gmra.mxu0 %v5006
        %v5279 = vpop.f32.mrf.mxu0
        %v5280 = vadd.f32 0.0, %v5279
        %v5281 = vpop.f32.mrf.mxu0
        %v5282 = vadd.f32 0.0, %v5281
        %5283 = vmatmul.bf16.gmra.mxu0 %v5008
        %v5284 = vpop.f32.mrf.mxu0
        %v5285 = vadd.f32 0.0, %v5284
        %v5286 = vpop.f32.mrf.mxu0
        %v5287 = vadd.f32 0.0, %v5286
        %5288 = vdwg.mxu0
        %5289 = vmatpush.bf16.msra.mxu0 %v5219
        %5290 = vmatpush.bf16.msra.mxu0 %v5216
        %5291 = vmatpush.bf16.msra.mxu0 %v5213
        %5292 = vmatpush.bf16.msra.mxu0 %v5210
        %5293 = vmatpush.bf16.msra.mxu0 %v5207
        %5294 = vmatpush.bf16.msra.mxu0 %v5204
        %5295 = vmatpush.bf16.msra.mxu0 %v5201
        %5296 = vmatpush.bf16.msra.mxu0 %v5198
        %5297 = vmatmul.bf16.gmra.mxu0 %v5007
        %v5298 = vpop.f32.mrf.mxu0
        %v5299 = vadd.f32 %v5280, %v5298
        %v5300 = vpop.f32.mrf.mxu0
        %v5301 = vadd.f32 %v5282, %v5300
        %5302 = vmatmul.bf16.gmra.mxu0 %v5009
        %v5303 = vpop.f32.mrf.mxu0
        %v5304 = vadd.f32 %v5285, %v5303
        %v5305 = vpop.f32.mrf.mxu0
        %v5306 = vadd.f32 %v5287, %v5305
        %5307 = vdwg.mxu0
        %5308 = vmatpush.bf16.msra.mxu0 %v5196
        %5309 = vmatpush.bf16.msra.mxu0 %v5193
        %5310 = vmatpush.bf16.msra.mxu0 %v5190
        %5311 = vmatpush.bf16.msra.mxu0 %v5187
        %5312 = vmatpush.bf16.msra.mxu0 %v5184
        %5313 = vmatpush.bf16.msra.mxu0 %v5181
        %5314 = vmatpush.bf16.msra.mxu0 %v5178
        %5315 = vmatpush.bf16.msra.mxu0 %v5175
        %5316 = vmatmul.bf16.gmra.mxu0 %v5006
        %v5317 = vpop.f32.mrf.mxu0
        %v5318 = vadd.f32 0.0, %v5317
        %v5319 = vpop.f32.mrf.mxu0
        %v5320 = vadd.f32 0.0, %v5319
        %5321 = vmatmul.bf16.gmra.mxu0 %v5008
        %v5322 = vpop.f32.mrf.mxu0
        %v5323 = vadd.f32 0.0, %v5322
        %v5324 = vpop.f32.mrf.mxu0
        %v5325 = vadd.f32 0.0, %v5324
        %5326 = vdwg.mxu0
        %5327 = vmatpush.bf16.msra.mxu0 %v5220
        %5328 = vmatpush.bf16.msra.mxu0 %v5217
        %5329 = vmatpush.bf16.msra.mxu0 %v5214
        %5330 = vmatpush.bf16.msra.mxu0 %v5211
        %5331 = vmatpush.bf16.msra.mxu0 %v5208
        %5332 = vmatpush.bf16.msra.mxu0 %v5205
        %5333 = vmatpush.bf16.msra.mxu0 %v5202
        %5334 = vmatpush.bf16.msra.mxu0 %v5199
        %5335 = vmatmul.bf16.gmra.mxu0 %v5007
        %v5336 = vpop.f32.mrf.mxu0
        %v5337 = vadd.f32 %v5318, %v5336
        %v5338 = vpop.f32.mrf.mxu0
        %v5339 = vadd.f32 %v5320, %v5338
        %5340 = vmatmul.bf16.gmra.mxu0 %v5009
        %v5341 = vpop.f32.mrf.mxu0
        %v5342 = vadd.f32 %v5323, %v5341
        %v5343 = vpop.f32.mrf.mxu0
        %v5344 = vadd.f32 %v5325, %v5343
        %5345 = vdwg.mxu0
        %5346 = vmatpush.bf16.msra.mxu0 %v5197
        %5347 = vmatpush.bf16.msra.mxu0 %v5194
        %5348 = vmatpush.bf16.msra.mxu0 %v5191
        %5349 = vmatpush.bf16.msra.mxu0 %v5188
        %5350 = vmatpush.bf16.msra.mxu0 %v5185
        %5351 = vmatpush.bf16.msra.mxu0 %v5182
        %5352 = vmatpush.bf16.msra.mxu0 %v5179
        %5353 = vmatpush.bf16.msra.mxu0 %v5176
        %5354 = vmatmul.bf16.gmra.mxu0 %v5006
        %v5355 = vpop.f32.mrf.mxu0
        %v5356 = vadd.f32 0.0, %v5355
        %v5357 = vpop.f32.mrf.mxu0
        %v5358 = vadd.f32 0.0, %v5357
        %5359 = vmatmul.bf16.gmra.mxu0 %v5008
        %v5360 = vpop.f32.mrf.mxu0
        %v5361 = vadd.f32 0.0, %v5360
        %v5362 = vpop.f32.mrf.mxu0
        %v5363 = vadd.f32 0.0, %v5362
        %5364 = vdwg.mxu0
        %5365 = vmatpush.bf16.msra.mxu0 %v5221
        %5366 = vmatpush.bf16.msra.mxu0 %v5218
        %5367 = vmatpush.bf16.msra.mxu0 %v5215
        %5368 = vmatpush.bf16.msra.mxu0 %v5212
        %5369 = vmatpush.bf16.msra.mxu0 %v5209
        %5370 = vmatpush.bf16.msra.mxu0 %v5206
        %5371 = vmatpush.bf16.msra.mxu0 %v5203
        %5372 = vmatpush.bf16.msra.mxu0 %v5200
        %5373 = vmatmul.bf16.gmra.mxu0 %v5007
        %v5374 = vpop.f32.mrf.mxu0
        %v5375 = vadd.f32 %v5356, %v5374
        %v5376 = vpop.f32.mrf.mxu0
        %v5377 = vadd.f32 %v5358, %v5376
        %5378 = vmatmul.bf16.gmra.mxu0 %v5009
        %v5379 = vpop.f32.mrf.mxu0
        %v5380 = vadd.f32 %v5361, %v5379
        %v5381 = vpop.f32.mrf.mxu0
        %v5382 = vadd.f32 %v5363, %v5381
        %5383 = vdwg.mxu0
        %v5384 = vmul.f32 %v5299, %v955
        %v5385 = vmul.f32 %v5337, %v956
        %v5386 = vmul.f32 %v5375, %v957
        %v5387 = vmul.f32 %v5301, %v955
        %v5388 = vmul.f32 %v5339, %v956
        %v5389 = vmul.f32 %v5377, %v957
        %v5390 = vmul.f32 %v5304, %v955
        %v5391 = vmul.f32 %v5342, %v956
        %v5392 = vmul.f32 %v5380, %v957
        %v5393 = vmul.f32 %v5306, %v955
        %v5394 = vmul.f32 %v5344, %v956
        %v5395 = vmul.f32 %v5382, %v957
        %v5396 = vadd.f32 %v5384, %v974
        %v5397 = vadd.f32 %v5385, %v975
        %v5398 = vadd.f32 %v5386, %v976
        %v5399 = vadd.f32 %v5387, %v974
        %v5400 = vadd.f32 %v5388, %v975
        %v5401 = vadd.f32 %v5389, %v976
        %v5402 = vadd.f32 %v5390, %v974
        %v5403 = vadd.f32 %v5391, %v975
        %v5404 = vadd.f32 %v5392, %v976
        %v5405 = vadd.f32 %v5393, %v974
        %v5406 = vadd.f32 %v5394, %v975
        %v5407 = vadd.f32 %v5395, %v976
        %v5408 = vmax.f32 %v5396, 0.0
        %v5409 = vmax.f32 %v5397, 0.0
        %v5410 = vmax.f32 %v5398, 0.0
        %v5411 = vmax.f32 %v5399, 0.0
        %v5412 = vmax.f32 %v5400, 0.0
        %v5413 = vmax.f32 %v5401, 0.0
        %v5414 = vmax.f32 %v5402, 0.0
        %v5415 = vmax.f32 %v5403, 0.0
        %v5416 = vmax.f32 %v5404, 0.0
        %v5417 = vmax.f32 %v5405, 0.0
        %v5418 = vmax.f32 %v5406, 0.0
        %v5419 = vmax.f32 %v5407, 0.0
        %v5420 = vpack.c.bf16 %v5411, %v5408
        %v5421 = vpack.c.bf16 %v5412, %v5409
        %v5422 = vpack.c.bf16 %v5413, %v5410
        %v5423 = vpack.c.bf16 %v5417, %v5414
        %v5424 = vpack.c.bf16 %v5418, %v5415
        %v5425 = vpack.c.bf16 %v5419, %v5416
        %v5426 = vld [vmem:[%s4] sm:$0xf]
        %v5427 = vld [vmem:[%s4 + $0x4] sm:$0xf]
        %v5428 = vld [vmem:[%s4 + $0x8] sm:$0xf]
        %v5429 = vld [vmem:[%s4 + $0xc] sm:$0xf]
        %v5430 = vld [vmem:[%s4 + $0x10] sm:$0xf]
        %v5431 = vld [vmem:[%s4 + $0x14] sm:$0xf]
        %v5432 = vld [vmem:[%s4 + $0x18] sm:$0xf]
        %v5433 = vld [vmem:[%s4 + $0x1c] sm:$0xf]
        %v5434 = vld [vmem:[%s4 + $0x20] sm:$0xf]
        %v5435 = vld [vmem:[%s4 + $0x24] sm:$0xf]
        %v5436 = vld [vmem:[%s4 + $0x28] sm:$0xf]
        %v5437 = vld [vmem:[%s4 + $0x2c] sm:$0xf]
        %v5438 = vld [vmem:[%s4 + $0x30] sm:$0xf]
        %v5439 = vld [vmem:[%s4 + $0x34] sm:$0xf]
        %v5440 = vld [vmem:[%s4 + $0x38] sm:$0xf]
        %v5441 = vld [vmem:[%s4 + $0x3c] sm:$0xf]
        %v5442 = vld [vmem:[%s4 + $0x40] sm:$0xf]
        %v5443 = vld [vmem:[%s4 + $0x44] sm:$0xf]
        %v5444 = vld [vmem:[%s4 + $0x48] sm:$0xf]
        %v5445 = vld [vmem:[%s4 + $0x4c] sm:$0xf]
        %v5446 = vld [vmem:[%s4 + $0x50] sm:$0xf]
        %v5447 = vld [vmem:[%s4 + $0x54] sm:$0xf]
        %v5448 = vld [vmem:[%s4 + $0x58] sm:$0xf]
        %v5449 = vld [vmem:[%s4 + $0x5c] sm:$0xf]
        %v5450 = vld [vmem:[%s4 + $0x60] sm:$0xf]
        %v5451 = vld [vmem:[%s4 + $0x64] sm:$0xf]
        %v5452 = vld [vmem:[%s4 + $0x68] sm:$0xf]
        %v5453 = vld [vmem:[%s4 + $0x6c] sm:$0xf]
        %v5454 = vld [vmem:[%s4 + $0x70] sm:$0xf]
        %v5455 = vld [vmem:[%s4 + $0x74] sm:$0xf]
        %v5456 = vld [vmem:[%s4 + $0x78] sm:$0xf]
        %v5457 = vld [vmem:[%s4 + $0x7c] sm:$0xf]
        %v5458 = vld [vmem:[%s4 + $0x80] sm:$0xf]
        %v5459 = vld [vmem:[%s4 + $0x84] sm:$0xf]
        %v5460 = vld [vmem:[%s4 + $0x88] sm:$0xf]
        %v5461 = vld [vmem:[%s4 + $0x8c] sm:$0xf]
        %v5498 = vunpack.c.l.b16 %v5426
        %v5499 = vunpack.c.l.b16 %v5427
        %v5500 = vunpack.c.l.b16 %v5428
        %v5501 = vunpack.c.l.b16 %v5429
        %v5502 = vunpack.c.l.b16 %v5430
        %v5503 = vunpack.c.l.b16 %v5431
        %v5504 = vunpack.c.l.b16 %v5432
        %v5505 = vunpack.c.l.b16 %v5433
        %v5506 = vunpack.c.l.b16 %v5434
        %v5507 = vunpack.c.l.b16 %v5435
        %v5508 = vunpack.c.l.b16 %v5436
        %v5509 = vunpack.c.l.b16 %v5437
        %v5510 = vunpack.c.l.b16 %v5438
        %v5511 = vunpack.c.l.b16 %v5439
        %v5512 = vunpack.c.l.b16 %v5440
        %v5513 = vunpack.c.l.b16 %v5441
        %v5514 = vunpack.c.l.b16 %v5442
        %v5515 = vunpack.c.l.b16 %v5443
        %v5516 = vunpack.c.l.b16 %v5444
        %v5517 = vunpack.c.l.b16 %v5445
        %v5518 = vunpack.c.l.b16 %v5446
        %v5519 = vunpack.c.l.b16 %v5447
        %v5520 = vunpack.c.l.b16 %v5448
        %v5521 = vunpack.c.l.b16 %v5449
        %v5522 = vunpack.c.l.b16 %v5450
        %v5523 = vunpack.c.l.b16 %v5451
        %v5524 = vunpack.c.l.b16 %v5452
        %v5525 = vunpack.c.l.b16 %v5453
        %v5526 = vunpack.c.l.b16 %v5454
        %v5527 = vunpack.c.l.b16 %v5455
        %v5528 = vunpack.c.l.b16 %v5456
        %v5529 = vunpack.c.l.b16 %v5457
        %v5530 = vunpack.c.l.b16 %v5458
        %v5531 = vunpack.c.l.b16 %v5459
        %v5532 = vunpack.c.l.b16 %v5460
        %v5533 = vunpack.c.l.b16 %v5461
        %v5534 = vpack.c.b16 %v5499, %v5498
        %v5535 = vpack.c.b16 %v5501, %v5500
        %v5536 = vpack.c.b16 %v5503, %v5502
        %v5537 = vpack.c.b16 %v5505, %v5504
        %v5538 = vpack.c.b16 %v5507, %v5506
        %v5539 = vpack.c.b16 %v5509, %v5508
        %v5540 = vpack.c.b16 %v5511, %v5510
        %v5541 = vpack.c.b16 %v5513, %v5512
        %v5542 = vpack.c.b16 %v5515, %v5514
        %v5543 = vpack.c.b16 %v5517, %v5516
        %v5544 = vpack.c.b16 %v5519, %v5518
        %v5545 = vpack.c.b16 %v5521, %v5520
        %v5546 = vpack.c.b16 %v5523, %v5522
        %v5547 = vpack.c.b16 %v5525, %v5524
        %v5548 = vpack.c.b16 %v5527, %v5526
        %v5549 = vpack.c.b16 %v5529, %v5528
        %v5550 = vpack.c.b16 %v5531, %v5530
        %v5551 = vpack.c.b16 %v5533, %v5532
        %v5571 = vsel %vm1154, %v5422, 0
        %v5574 = vsel %vm1154, %v5425, 0
        %5576 = vmatpush.bf16.msra.mxu0 %v5541
        %5577 = vmatpush.bf16.msra.mxu0 %v5540
        %5578 = vmatpush.bf16.msra.mxu0 %v5539
        %5579 = vmatpush.bf16.msra.mxu0 %v5538
        %5580 = vmatpush.bf16.msra.mxu0 %v5537
        %5581 = vmatpush.bf16.msra.mxu0 %v5536
        %5582 = vmatpush.bf16.msra.mxu0 %v5535
        %5583 = vmatpush.bf16.msra.mxu0 %v5534
        %5584 = vmatmul.bf16.gmra.mxu0 %v5420
        %v5585 = vpop.f32.mrf.mxu0
        %v5586 = vadd.f32 0.0, %v5585
        %v5587 = vpop.f32.mrf.mxu0
        %v5588 = vadd.f32 0.0, %v5587
        %5589 = vmatmul.bf16.gmra.mxu0 %v5423
        %v5590 = vpop.f32.mrf.mxu0
        %v5591 = vadd.f32 0.0, %v5590
        %v5592 = vpop.f32.mrf.mxu0
        %v5593 = vadd.f32 0.0, %v5592
        %5594 = vdwg.mxu0
        %5595 = vmatpush.bf16.msra.mxu0 %v5549
        %5596 = vmatpush.bf16.msra.mxu0 %v5548
        %5597 = vmatpush.bf16.msra.mxu0 %v5547
        %5598 = vmatpush.bf16.msra.mxu0 %v5546
        %5599 = vmatpush.bf16.msra.mxu0 %v5545
        %5600 = vmatpush.bf16.msra.mxu0 %v5544
        %5601 = vmatpush.bf16.msra.mxu0 %v5543
        %5602 = vmatpush.bf16.msra.mxu0 %v5542
        %5603 = vmatmul.bf16.gmra.mxu0 %v5421
        %v5604 = vpop.f32.mrf.mxu0
        %v5605 = vadd.f32 %v5586, %v5604
        %v5606 = vpop.f32.mrf.mxu0
        %v5607 = vadd.f32 %v5588, %v5606
        %5608 = vmatmul.bf16.gmra.mxu0 %v5424
        %v5609 = vpop.f32.mrf.mxu0
        %v5610 = vadd.f32 %v5591, %v5609
        %v5611 = vpop.f32.mrf.mxu0
        %v5612 = vadd.f32 %v5593, %v5611
        %5613 = vdwg.mxu0
        %5614 = vmatpush.bf16.msra.mxu0 0
        %5615 = vmatpush.bf16.msra.mxu0 0
        %5616 = vmatpush.bf16.msra.mxu0 0
        %5617 = vmatpush.bf16.msra.mxu0 0
        %5618 = vmatpush.bf16.msra.mxu0 0
        %5619 = vmatpush.bf16.msra.mxu0 0
        %5620 = vmatpush.bf16.msra.mxu0 %v5551
        %5621 = vmatpush.bf16.msra.mxu0 %v5550
        %5622 = vmatmul.bf16.gmra.mxu0 %v5571
        %v5623 = vpop.f32.mrf.mxu0
        %v5624 = vadd.f32 %v5605, %v5623
        %v5625 = vpop.f32.mrf.mxu0
        %v5626 = vadd.f32 %v5607, %v5625
        %5627 = vmatmul.bf16.gmra.mxu0 %v5574
        %v5628 = vpop.f32.mrf.mxu0
        %v5629 = vadd.f32 %v5610, %v5628
        %v5630 = vpop.f32.mrf.mxu0
        %v5631 = vadd.f32 %v5612, %v5630
        %5632 = vdwg.mxu0
        %v5633 = vmul.f32 %v5624, %v1219
        %v5634 = vmul.f32 %v5626, %v1219
        %v5635 = vmul.f32 %v5629, %v1219
        %v5636 = vmul.f32 %v5631, %v1219
        %v5637 = vld [vmem:[%s6 + $0xc0] sm:$0xff]
        %v5638 = vld [vmem:[%s6 + $0xc8] sm:$0xff]
        %v5639 = vld [vmem:[%s6 + $0xd0] sm:$0xff]
        %v5640 = vld [vmem:[%s6 + $0xd8] sm:$0xff]
        %v5641 = vadd.f32 %v5633, %v5637
        %v5642 = vadd.f32 %v5634, %v5638
        %v5643 = vadd.f32 %v5635, %v5639
        %v5644 = vadd.f32 %v5636, %v5640
        %v5645 = vmax.f32 %v5641, 0.0
        %v5646 = vmax.f32 %v5642, 0.0
        %v5647 = vmax.f32 %v5643, 0.0
        %v5648 = vmax.f32 %v5644, 0.0
        %5649 = vst.msk [vmem:[#allocation2 + $0x18] sm:$0xff] %vm1237, %v5645
        %5650 = vst.msk [vmem:[#allocation2 + $0x40] sm:$0xff] %vm1237, %v5646
        %5651 = vst.msk [vmem:[#allocation2 + $0x68] sm:$0xff] %vm1237, %v5647
        %5652 = vst.msk [vmem:[#allocation2 + $0x90] sm:$0xff] %vm1237, %v5648
        %v5653 = vld [vmem:[%s491 + $0xe0] sm:$0xff]
        %v5654 = vld [vmem:[%s491 + $0xe8] sm:$0xff]
        %v5655 = vld [vmem:[%s491 + $0xf0] sm:$0xff]
        %v5656 = vld [vmem:[%s491 + $0xf8] sm:$0xff]
        %v5657 = vld [vmem:[%s1] sm:$0xff]
        %v5658 = vld [vmem:[%s1 + $0x8] sm:$0xf]
        %v5659 = vld [vmem:[%s1 + $0xc] sm:$0xff]
        %v5660 = vld [vmem:[%s1 + $0x14] sm:$0xf]
        %v5661 = vld [vmem:[%s1 + $0x18] sm:$0xff]
        %v5662 = vld [vmem:[%s1 + $0x20] sm:$0xf]
        %v5663 = vld [vmem:[%s1 + $0x24] sm:$0xff]
        %v5664 = vld [vmem:[%s1 + $0x2c] sm:$0xf]
        %v5665 = vld [vmem:[%s1 + $0x30] sm:$0xff]
        %v5666 = vld [vmem:[%s1 + $0x38] sm:$0xf]
        %v5667 = vld [vmem:[%s1 + $0x3c] sm:$0xff]
        %v5668 = vld [vmem:[%s1 + $0x44] sm:$0xf]
        %v5669 = vld [vmem:[%s1 + $0x48] sm:$0xff]
        %v5670 = vld [vmem:[%s1 + $0x50] sm:$0xf]
        %v5671 = vld [vmem:[%s1 + $0x54] sm:$0xff]
        %v5672 = vld [vmem:[%s1 + $0x5c] sm:$0xf]
        %v5673 = vld [vmem:[%s1 + $0x60] sm:$0xff]
        %v5674 = vld [vmem:[%s1 + $0x68] sm:$0xf]
        %v5675 = vld [vmem:[%s1 + $0x6c] sm:$0xff]
        %v5676 = vld [vmem:[%s1 + $0x74] sm:$0xf]
        %v5677 = vld [vmem:[%s1 + $0x78] sm:$0xff]
        %v5678 = vld [vmem:[%s1 + $0x80] sm:$0xf]
        %v5679 = vld [vmem:[%s1 + $0x84] sm:$0xff]
        %v5680 = vld [vmem:[%s1 + $0x8c] sm:$0xf]
        %v5681 = vld [vmem:[%s1 + $0x90] sm:$0xff]
        %v5682 = vld [vmem:[%s1 + $0x98] sm:$0xf]
        %v5683 = vld [vmem:[%s1 + $0x9c] sm:$0xff]
        %v5684 = vld [vmem:[%s1 + $0xa4] sm:$0xf]
        %v5685 = vld [vmem:[%s1 + $0xa8] sm:$0xff]
        %v5686 = vld [vmem:[%s1 + $0xb0] sm:$0xf]
        %v5687 = vld [vmem:[%s1 + $0xb4] sm:$0xff]
        %v5688 = vld [vmem:[%s1 + $0xbc] sm:$0xf]
        %v5689 = vld [vmem:[%s1 + $0xc0] sm:$0xff]
        %v5690 = vld [vmem:[%s1 + $0xc8] sm:$0xf]
        %v5691 = vld [vmem:[%s1 + $0xcc] sm:$0xff]
        %v5692 = vld [vmem:[%s1 + $0xd4] sm:$0xf]
        %v5693 = vld [vmem:[%s1 + $0xd8] sm:$0xff]
        %v5694 = vld [vmem:[%s1 + $0xe0] sm:$0xf]
        %v5695 = vld [vmem:[%s1 + $0xe4] sm:$0xff]
        %v5696 = vld [vmem:[%s1 + $0xec] sm:$0xf]
        %v5697 = vld [vmem:[%s1 + $0xf0] sm:$0xff]
        %v5698 = vld [vmem:[%s1 + $0xf8] sm:$0xf]
        %v5699 = vld [vmem:[%s1 + $0xfc] sm:$0xff]
        %v5700 = vld [vmem:[%s1 + $0x104] sm:$0xf]
        %v5701 = vld [vmem:[%s1 + $0x108] sm:$0xff]
        %v5702 = vld [vmem:[%s1 + $0x110] sm:$0xf]
        %v5703 = vld [vmem:[%s1 + $0x114] sm:$0xff]
        %v5704 = vld [vmem:[%s1 + $0x11c] sm:$0xf]
        %v5705 = vld [vmem:[%s1 + $0x120] sm:$0xff]
        %v5706 = vld [vmem:[%s1 + $0x128] sm:$0xf]
        %v5707 = vld [vmem:[%s1 + $0x12c] sm:$0xff]
        %v5708 = vld [vmem:[%s1 + $0x134] sm:$0xf]
        %v5709 = vld [vmem:[%s1 + $0x138] sm:$0xff]
        %v5710 = vld [vmem:[%s1 + $0x140] sm:$0xf]
        %v5711 = vld [vmem:[%s1 + $0x144] sm:$0xff]
        %v5712 = vld [vmem:[%s1 + $0x14c] sm:$0xf]
        %v5713 = vld [vmem:[%s1 + $0x150] sm:$0xff]
        %v5714 = vld [vmem:[%s1 + $0x158] sm:$0xf]
        %v5715 = vld [vmem:[%s1 + $0x15c] sm:$0xff]
        %v5716 = vld [vmem:[%s1 + $0x164] sm:$0xf]
        %v5717 = vld [vmem:[%s1 + $0x168] sm:$0xff]
        %v5718 = vld [vmem:[%s1 + $0x170] sm:$0xf]
        %v5719 = vld [vmem:[%s1 + $0x174] sm:$0xff]
        %v5720 = vld [vmem:[%s1 + $0x17c] sm:$0xf]
        %v5725 = vunpack.c.l.b16 %v5653
        %v5726 = vunpack.c.h.b16 %v5653
        %v5727 = vunpack.c.l.b16 %v5654
        %v5728 = vunpack.c.h.b16 %v5654
        %v5729 = vunpack.c.l.b16 %v5655
        %v5730 = vunpack.c.h.b16 %v5655
        %v5731 = vunpack.c.l.b16 %v5656
        %v5732 = vunpack.c.h.b16 %v5656
        %v5733 = vpack.c.b16 %v5727, %v5725
        %v5734 = vpack.c.b16 %v5728, %v5726
        %v5735 = vpack.c.b16 %v5731, %v5729
        %v5736 = vpack.c.b16 %v5732, %v5730
        %v5805 = vunpack.c.l.b16 %v5657
        %v5806 = vunpack.c.h.b16 %v5657
        %v5807 = vunpack.c.l.b16 %v5658
        %v5808 = vunpack.c.l.b16 %v5659
        %v5809 = vunpack.c.h.b16 %v5659
        %v5810 = vunpack.c.l.b16 %v5660
        %v5811 = vunpack.c.l.b16 %v5661
        %v5812 = vunpack.c.h.b16 %v5661
        %v5813 = vunpack.c.l.b16 %v5662
        %v5814 = vunpack.c.l.b16 %v5663
        %v5815 = vunpack.c.h.b16 %v5663
        %v5816 = vunpack.c.l.b16 %v5664
        %v5817 = vunpack.c.l.b16 %v5665
        %v5818 = vunpack.c.h.b16 %v5665
        %v5819 = vunpack.c.l.b16 %v5666
        %v5820 = vunpack.c.l.b16 %v5667
        %v5821 = vunpack.c.h.b16 %v5667
        %v5822 = vunpack.c.l.b16 %v5668
        %v5823 = vunpack.c.l.b16 %v5669
        %v5824 = vunpack.c.h.b16 %v5669
        %v5825 = vunpack.c.l.b16 %v5670
        %v5826 = vunpack.c.l.b16 %v5671
        %v5827 = vunpack.c.h.b16 %v5671
        %v5828 = vunpack.c.l.b16 %v5672
        %v5829 = vunpack.c.l.b16 %v5673
        %v5830 = vunpack.c.h.b16 %v5673
        %v5831 = vunpack.c.l.b16 %v5674
        %v5832 = vunpack.c.l.b16 %v5675
        %v5833 = vunpack.c.h.b16 %v5675
        %v5834 = vunpack.c.l.b16 %v5676
        %v5835 = vunpack.c.l.b16 %v5677
        %v5836 = vunpack.c.h.b16 %v5677
        %v5837 = vunpack.c.l.b16 %v5678
        %v5838 = vunpack.c.l.b16 %v5679
        %v5839 = vunpack.c.h.b16 %v5679
        %v5840 = vunpack.c.l.b16 %v5680
        %v5841 = vunpack.c.l.b16 %v5681
        %v5842 = vunpack.c.h.b16 %v5681
        %v5843 = vunpack.c.l.b16 %v5682
        %v5844 = vunpack.c.l.b16 %v5683
        %v5845 = vunpack.c.h.b16 %v5683
        %v5846 = vunpack.c.l.b16 %v5684
        %v5847 = vunpack.c.l.b16 %v5685
        %v5848 = vunpack.c.h.b16 %v5685
        %v5849 = vunpack.c.l.b16 %v5686
        %v5850 = vunpack.c.l.b16 %v5687
        %v5851 = vunpack.c.h.b16 %v5687
        %v5852 = vunpack.c.l.b16 %v5688
        %v5853 = vunpack.c.l.b16 %v5689
        %v5854 = vunpack.c.h.b16 %v5689
        %v5855 = vunpack.c.l.b16 %v5690
        %v5856 = vunpack.c.l.b16 %v5691
        %v5857 = vunpack.c.h.b16 %v5691
        %v5858 = vunpack.c.l.b16 %v5692
        %v5859 = vunpack.c.l.b16 %v5693
        %v5860 = vunpack.c.h.b16 %v5693
        %v5861 = vunpack.c.l.b16 %v5694
        %v5862 = vunpack.c.l.b16 %v5695
        %v5863 = vunpack.c.h.b16 %v5695
        %v5864 = vunpack.c.l.b16 %v5696
        %v5865 = vunpack.c.l.b16 %v5697
        %v5866 = vunpack.c.h.b16 %v5697
        %v5867 = vunpack.c.l.b16 %v5698
        %v5868 = vunpack.c.l.b16 %v5699
        %v5869 = vunpack.c.h.b16 %v5699
        %v5870 = vunpack.c.l.b16 %v5700
        %v5871 = vunpack.c.l.b16 %v5701
        %v5872 = vunpack.c.h.b16 %v5701
        %v5873 = vunpack.c.l.b16 %v5702
        %v5874 = vunpack.c.l.b16 %v5703
        %v5875 = vunpack.c.h.b16 %v5703
        %v5876 = vunpack.c.l.b16 %v5704
        %v5877 = vunpack.c.l.b16 %v5705
        %v5878 = vunpack.c.h.b16 %v5705
        %v5879 = vunpack.c.l.b16 %v5706
        %v5880 = vunpack.c.l.b16 %v5707
        %v5881 = vunpack.c.h.b16 %v5707
        %v5882 = vunpack.c.l.b16 %v5708
        %v5883 = vunpack.c.l.b16 %v5709
        %v5884 = vunpack.c.h.b16 %v5709
        %v5885 = vunpack.c.l.b16 %v5710
        %v5886 = vunpack.c.l.b16 %v5711
        %v5887 = vunpack.c.h.b16 %v5711
        %v5888 = vunpack.c.l.b16 %v5712
        %v5889 = vunpack.c.l.b16 %v5713
        %v5890 = vunpack.c.h.b16 %v5713
        %v5891 = vunpack.c.l.b16 %v5714
        %v5892 = vunpack.c.l.b16 %v5715
        %v5893 = vunpack.c.h.b16 %v5715
        %v5894 = vunpack.c.l.b16 %v5716
        %v5895 = vunpack.c.l.b16 %v5717
        %v5896 = vunpack.c.h.b16 %v5717
        %v5897 = vunpack.c.l.b16 %v5718
        %v5898 = vunpack.c.l.b16 %v5719
        %v5899 = vunpack.c.h.b16 %v5719
        %v5900 = vunpack.c.l.b16 %v5720
        %v5901 = vpack.c.b16 %v5808, %v5805
        %v5902 = vpack.c.b16 %v5809, %v5806
        %v5903 = vpack.c.b16 %v5810, %v5807
        %v5904 = vpack.c.b16 %v5814, %v5811
        %v5905 = vpack.c.b16 %v5815, %v5812
        %v5906 = vpack.c.b16 %v5816, %v5813
        %v5907 = vpack.c.b16 %v5820, %v5817
        %v5908 = vpack.c.b16 %v5821, %v5818
        %v5909 = vpack.c.b16 %v5822, %v5819
        %v5910 = vpack.c.b16 %v5826, %v5823
        %v5911 = vpack.c.b16 %v5827, %v5824
        %v5912 = vpack.c.b16 %v5828, %v5825
        %v5913 = vpack.c.b16 %v5832, %v5829
        %v5914 = vpack.c.b16 %v5833, %v5830
        %v5915 = vpack.c.b16 %v5834, %v5831
        %v5916 = vpack.c.b16 %v5838, %v5835
        %v5917 = vpack.c.b16 %v5839, %v5836
        %v5918 = vpack.c.b16 %v5840, %v5837
        %v5919 = vpack.c.b16 %v5844, %v5841
        %v5920 = vpack.c.b16 %v5845, %v5842
        %v5921 = vpack.c.b16 %v5846, %v5843
        %v5922 = vpack.c.b16 %v5850, %v5847
        %v5923 = vpack.c.b16 %v5851, %v5848
        %v5924 = vpack.c.b16 %v5852, %v5849
        %v5925 = vpack.c.b16 %v5856, %v5853
        %v5926 = vpack.c.b16 %v5857, %v5854
        %v5927 = vpack.c.b16 %v5858, %v5855
        %v5928 = vpack.c.b16 %v5862, %v5859
        %v5929 = vpack.c.b16 %v5863, %v5860
        %v5930 = vpack.c.b16 %v5864, %v5861
        %v5931 = vpack.c.b16 %v5868, %v5865
        %v5932 = vpack.c.b16 %v5869, %v5866
        %v5933 = vpack.c.b16 %v5870, %v5867
        %v5934 = vpack.c.b16 %v5874, %v5871
        %v5935 = vpack.c.b16 %v5875, %v5872
        %v5936 = vpack.c.b16 %v5876, %v5873
        %v5937 = vpack.c.b16 %v5880, %v5877
        %v5938 = vpack.c.b16 %v5881, %v5878
        %v5939 = vpack.c.b16 %v5882, %v5879
        %v5940 = vpack.c.b16 %v5886, %v5883
        %v5941 = vpack.c.b16 %v5887, %v5884
        %v5942 = vpack.c.b16 %v5888, %v5885
        %v5943 = vpack.c.b16 %v5892, %v5889
        %v5944 = vpack.c.b16 %v5893, %v5890
        %v5945 = vpack.c.b16 %v5894, %v5891
        %v5946 = vpack.c.b16 %v5898, %v5895
        %v5947 = vpack.c.b16 %v5899, %v5896
        %v5948 = vpack.c.b16 %v5900, %v5897
        %5997 = vmatpush.bf16.msra.mxu0 %v5922
        %5998 = vmatpush.bf16.msra.mxu0 %v5919
        %5999 = vmatpush.bf16.msra.mxu0 %v5916
        %6000 = vmatpush.bf16.msra.mxu0 %v5913
        %6001 = vmatpush.bf16.msra.mxu0 %v5910
        %6002 = vmatpush.bf16.msra.mxu0 %v5907
        %6003 = vmatpush.bf16.msra.mxu0 %v5904
        %6004 = vmatpush.bf16.msra.mxu0 %v5901
        %6005 = vmatmul.bf16.gmra.mxu0 %v5733
        %v6006 = vpop.f32.mrf.mxu0
        %v6007 = vadd.f32 0.0, %v6006
        %v6008 = vpop.f32.mrf.mxu0
        %v6009 = vadd.f32 0.0, %v6008
        %6010 = vmatmul.bf16.gmra.mxu0 %v5735
        %v6011 = vpop.f32.mrf.mxu0
        %v6012 = vadd.f32 0.0, %v6011
        %v6013 = vpop.f32.mrf.mxu0
        %v6014 = vadd.f32 0.0, %v6013
        %6015 = vdwg.mxu0
        %6016 = vmatpush.bf16.msra.mxu0 %v5946
        %6017 = vmatpush.bf16.msra.mxu0 %v5943
        %6018 = vmatpush.bf16.msra.mxu0 %v5940
        %6019 = vmatpush.bf16.msra.mxu0 %v5937
        %6020 = vmatpush.bf16.msra.mxu0 %v5934
        %6021 = vmatpush.bf16.msra.mxu0 %v5931
        %6022 = vmatpush.bf16.msra.mxu0 %v5928
        %6023 = vmatpush.bf16.msra.mxu0 %v5925
        %6024 = vmatmul.bf16.gmra.mxu0 %v5734
        %v6025 = vpop.f32.mrf.mxu0
        %v6026 = vadd.f32 %v6007, %v6025
        %v6027 = vpop.f32.mrf.mxu0
        %v6028 = vadd.f32 %v6009, %v6027
        %6029 = vmatmul.bf16.gmra.mxu0 %v5736
        %v6030 = vpop.f32.mrf.mxu0
        %v6031 = vadd.f32 %v6012, %v6030
        %v6032 = vpop.f32.mrf.mxu0
        %v6033 = vadd.f32 %v6014, %v6032
        %6034 = vdwg.mxu0
        %6035 = vmatpush.bf16.msra.mxu0 %v5923
        %6036 = vmatpush.bf16.msra.mxu0 %v5920
        %6037 = vmatpush.bf16.msra.mxu0 %v5917
        %6038 = vmatpush.bf16.msra.mxu0 %v5914
        %6039 = vmatpush.bf16.msra.mxu0 %v5911
        %6040 = vmatpush.bf16.msra.mxu0 %v5908
        %6041 = vmatpush.bf16.msra.mxu0 %v5905
        %6042 = vmatpush.bf16.msra.mxu0 %v5902
        %6043 = vmatmul.bf16.gmra.mxu0 %v5733
        %v6044 = vpop.f32.mrf.mxu0
        %v6045 = vadd.f32 0.0, %v6044
        %v6046 = vpop.f32.mrf.mxu0
        %v6047 = vadd.f32 0.0, %v6046
        %6048 = vmatmul.bf16.gmra.mxu0 %v5735
        %v6049 = vpop.f32.mrf.mxu0
        %v6050 = vadd.f32 0.0, %v6049
        %v6051 = vpop.f32.mrf.mxu0
        %v6052 = vadd.f32 0.0, %v6051
        %6053 = vdwg.mxu0
        %6054 = vmatpush.bf16.msra.mxu0 %v5947
        %6055 = vmatpush.bf16.msra.mxu0 %v5944
        %6056 = vmatpush.bf16.msra.mxu0 %v5941
        %6057 = vmatpush.bf16.msra.mxu0 %v5938
        %6058 = vmatpush.bf16.msra.mxu0 %v5935
        %6059 = vmatpush.bf16.msra.mxu0 %v5932
        %6060 = vmatpush.bf16.msra.mxu0 %v5929
        %6061 = vmatpush.bf16.msra.mxu0 %v5926
        %6062 = vmatmul.bf16.gmra.mxu0 %v5734
        %v6063 = vpop.f32.mrf.mxu0
        %v6064 = vadd.f32 %v6045, %v6063
        %v6065 = vpop.f32.mrf.mxu0
        %v6066 = vadd.f32 %v6047, %v6065
        %6067 = vmatmul.bf16.gmra.mxu0 %v5736
        %v6068 = vpop.f32.mrf.mxu0
        %v6069 = vadd.f32 %v6050, %v6068
        %v6070 = vpop.f32.mrf.mxu0
        %v6071 = vadd.f32 %v6052, %v6070
        %6072 = vdwg.mxu0
        %6073 = vmatpush.bf16.msra.mxu0 %v5924
        %6074 = vmatpush.bf16.msra.mxu0 %v5921
        %6075 = vmatpush.bf16.msra.mxu0 %v5918
        %6076 = vmatpush.bf16.msra.mxu0 %v5915
        %6077 = vmatpush.bf16.msra.mxu0 %v5912
        %6078 = vmatpush.bf16.msra.mxu0 %v5909
        %6079 = vmatpush.bf16.msra.mxu0 %v5906
        %6080 = vmatpush.bf16.msra.mxu0 %v5903
        %6081 = vmatmul.bf16.gmra.mxu0 %v5733
        %v6082 = vpop.f32.mrf.mxu0
        %v6083 = vadd.f32 0.0, %v6082
        %v6084 = vpop.f32.mrf.mxu0
        %v6085 = vadd.f32 0.0, %v6084
        %6086 = vmatmul.bf16.gmra.mxu0 %v5735
        %v6087 = vpop.f32.mrf.mxu0
        %v6088 = vadd.f32 0.0, %v6087
        %v6089 = vpop.f32.mrf.mxu0
        %v6090 = vadd.f32 0.0, %v6089
        %6091 = vdwg.mxu0
        %6092 = vmatpush.bf16.msra.mxu0 %v5948
        %6093 = vmatpush.bf16.msra.mxu0 %v5945
        %6094 = vmatpush.bf16.msra.mxu0 %v5942
        %6095 = vmatpush.bf16.msra.mxu0 %v5939
        %6096 = vmatpush.bf16.msra.mxu0 %v5936
        %6097 = vmatpush.bf16.msra.mxu0 %v5933
        %6098 = vmatpush.bf16.msra.mxu0 %v5930
        %6099 = vmatpush.bf16.msra.mxu0 %v5927
        %6100 = vmatmul.bf16.gmra.mxu0 %v5734
        %v6101 = vpop.f32.mrf.mxu0
        %v6102 = vadd.f32 %v6083, %v6101
        %v6103 = vpop.f32.mrf.mxu0
        %v6104 = vadd.f32 %v6085, %v6103
        %6105 = vmatmul.bf16.gmra.mxu0 %v5736
        %v6106 = vpop.f32.mrf.mxu0
        %v6107 = vadd.f32 %v6088, %v6106
        %v6108 = vpop.f32.mrf.mxu0
        %v6109 = vadd.f32 %v6090, %v6108
        %6110 = vdwg.mxu0
        %v6111 = vmul.f32 %v6026, %v955
        %v6112 = vmul.f32 %v6064, %v956
        %v6113 = vmul.f32 %v6102, %v957
        %v6114 = vmul.f32 %v6028, %v955
        %v6115 = vmul.f32 %v6066, %v956
        %v6116 = vmul.f32 %v6104, %v957
        %v6117 = vmul.f32 %v6031, %v955
        %v6118 = vmul.f32 %v6069, %v956
        %v6119 = vmul.f32 %v6107, %v957
        %v6120 = vmul.f32 %v6033, %v955
        %v6121 = vmul.f32 %v6071, %v956
        %v6122 = vmul.f32 %v6109, %v957
        %v6123 = vadd.f32 %v6111, %v974
        %v6124 = vadd.f32 %v6112, %v975
        %v6125 = vadd.f32 %v6113, %v976
        %v6126 = vadd.f32 %v6114, %v974
        %v6127 = vadd.f32 %v6115, %v975
        %v6128 = vadd.f32 %v6116, %v976
        %v6129 = vadd.f32 %v6117, %v974
        %v6130 = vadd.f32 %v6118, %v975
        %v6131 = vadd.f32 %v6119, %v976
        %v6132 = vadd.f32 %v6120, %v974
        %v6133 = vadd.f32 %v6121, %v975
        %v6134 = vadd.f32 %v6122, %v976
        %v6135 = vmax.f32 %v6123, 0.0
        %v6136 = vmax.f32 %v6124, 0.0
        %v6137 = vmax.f32 %v6125, 0.0
        %v6138 = vmax.f32 %v6126, 0.0
        %v6139 = vmax.f32 %v6127, 0.0
        %v6140 = vmax.f32 %v6128, 0.0
        %v6141 = vmax.f32 %v6129, 0.0
        %v6142 = vmax.f32 %v6130, 0.0
        %v6143 = vmax.f32 %v6131, 0.0
        %v6144 = vmax.f32 %v6132, 0.0
        %v6145 = vmax.f32 %v6133, 0.0
        %v6146 = vmax.f32 %v6134, 0.0
        %v6147 = vpack.c.bf16 %v6138, %v6135
        %v6148 = vpack.c.bf16 %v6139, %v6136
        %v6149 = vpack.c.bf16 %v6140, %v6137
        %v6150 = vpack.c.bf16 %v6144, %v6141
        %v6151 = vpack.c.bf16 %v6145, %v6142
        %v6152 = vpack.c.bf16 %v6146, %v6143
        %v6153 = vld [vmem:[%s4] sm:$0xf]
        %v6154 = vld [vmem:[%s4 + $0x4] sm:$0xf]
        %v6155 = vld [vmem:[%s4 + $0x8] sm:$0xf]
        %v6156 = vld [vmem:[%s4 + $0xc] sm:$0xf]
        %v6157 = vld [vmem:[%s4 + $0x10] sm:$0xf]
        %v6158 = vld [vmem:[%s4 + $0x14] sm:$0xf]
        %v6159 = vld [vmem:[%s4 + $0x18] sm:$0xf]
        %v6160 = vld [vmem:[%s4 + $0x1c] sm:$0xf]
        %v6161 = vld [vmem:[%s4 + $0x20] sm:$0xf]
        %v6162 = vld [vmem:[%s4 + $0x24] sm:$0xf]
        %v6163 = vld [vmem:[%s4 + $0x28] sm:$0xf]
        %v6164 = vld [vmem:[%s4 + $0x2c] sm:$0xf]
        %v6165 = vld [vmem:[%s4 + $0x30] sm:$0xf]
        %v6166 = vld [vmem:[%s4 + $0x34] sm:$0xf]
        %v6167 = vld [vmem:[%s4 + $0x38] sm:$0xf]
        %v6168 = vld [vmem:[%s4 + $0x3c] sm:$0xf]
        %v6169 = vld [vmem:[%s4 + $0x40] sm:$0xf]
        %v6170 = vld [vmem:[%s4 + $0x44] sm:$0xf]
        %v6171 = vld [vmem:[%s4 + $0x48] sm:$0xf]
        %v6172 = vld [vmem:[%s4 + $0x4c] sm:$0xf]
        %v6173 = vld [vmem:[%s4 + $0x50] sm:$0xf]
        %v6174 = vld [vmem:[%s4 + $0x54] sm:$0xf]
        %v6175 = vld [vmem:[%s4 + $0x58] sm:$0xf]
        %v6176 = vld [vmem:[%s4 + $0x5c] sm:$0xf]
        %v6177 = vld [vmem:[%s4 + $0x60] sm:$0xf]
        %v6178 = vld [vmem:[%s4 + $0x64] sm:$0xf]
        %v6179 = vld [vmem:[%s4 + $0x68] sm:$0xf]
        %v6180 = vld [vmem:[%s4 + $0x6c] sm:$0xf]
        %v6181 = vld [vmem:[%s4 + $0x70] sm:$0xf]
        %v6182 = vld [vmem:[%s4 + $0x74] sm:$0xf]
        %v6183 = vld [vmem:[%s4 + $0x78] sm:$0xf]
        %v6184 = vld [vmem:[%s4 + $0x7c] sm:$0xf]
        %v6185 = vld [vmem:[%s4 + $0x80] sm:$0xf]
        %v6186 = vld [vmem:[%s4 + $0x84] sm:$0xf]
        %v6187 = vld [vmem:[%s4 + $0x88] sm:$0xf]
        %v6188 = vld [vmem:[%s4 + $0x8c] sm:$0xf]
        %v6225 = vunpack.c.l.b16 %v6153
        %v6226 = vunpack.c.l.b16 %v6154
        %v6227 = vunpack.c.l.b16 %v6155
        %v6228 = vunpack.c.l.b16 %v6156
        %v6229 = vunpack.c.l.b16 %v6157
        %v6230 = vunpack.c.l.b16 %v6158
        %v6231 = vunpack.c.l.b16 %v6159
        %v6232 = vunpack.c.l.b16 %v6160
        %v6233 = vunpack.c.l.b16 %v6161
        %v6234 = vunpack.c.l.b16 %v6162
        %v6235 = vunpack.c.l.b16 %v6163
        %v6236 = vunpack.c.l.b16 %v6164
        %v6237 = vunpack.c.l.b16 %v6165
        %v6238 = vunpack.c.l.b16 %v6166
        %v6239 = vunpack.c.l.b16 %v6167
        %v6240 = vunpack.c.l.b16 %v6168
        %v6241 = vunpack.c.l.b16 %v6169
        %v6242 = vunpack.c.l.b16 %v6170
        %v6243 = vunpack.c.l.b16 %v6171
        %v6244 = vunpack.c.l.b16 %v6172
        %v6245 = vunpack.c.l.b16 %v6173
        %v6246 = vunpack.c.l.b16 %v6174
        %v6247 = vunpack.c.l.b16 %v6175
        %v6248 = vunpack.c.l.b16 %v6176
        %v6249 = vunpack.c.l.b16 %v6177
        %v6250 = vunpack.c.l.b16 %v6178
        %v6251 = vunpack.c.l.b16 %v6179
        %v6252 = vunpack.c.l.b16 %v6180
        %v6253 = vunpack.c.l.b16 %v6181
        %v6254 = vunpack.c.l.b16 %v6182
        %v6255 = vunpack.c.l.b16 %v6183
        %v6256 = vunpack.c.l.b16 %v6184
        %v6257 = vunpack.c.l.b16 %v6185
        %v6258 = vunpack.c.l.b16 %v6186
        %v6259 = vunpack.c.l.b16 %v6187
        %v6260 = vunpack.c.l.b16 %v6188
        %v6261 = vpack.c.b16 %v6226, %v6225
        %v6262 = vpack.c.b16 %v6228, %v6227
        %v6263 = vpack.c.b16 %v6230, %v6229
        %v6264 = vpack.c.b16 %v6232, %v6231
        %v6265 = vpack.c.b16 %v6234, %v6233
        %v6266 = vpack.c.b16 %v6236, %v6235
        %v6267 = vpack.c.b16 %v6238, %v6237
        %v6268 = vpack.c.b16 %v6240, %v6239
        %v6269 = vpack.c.b16 %v6242, %v6241
        %v6270 = vpack.c.b16 %v6244, %v6243
        %v6271 = vpack.c.b16 %v6246, %v6245
        %v6272 = vpack.c.b16 %v6248, %v6247
        %v6273 = vpack.c.b16 %v6250, %v6249
        %v6274 = vpack.c.b16 %v6252, %v6251
        %v6275 = vpack.c.b16 %v6254, %v6253
        %v6276 = vpack.c.b16 %v6256, %v6255
        %v6277 = vpack.c.b16 %v6258, %v6257
        %v6278 = vpack.c.b16 %v6260, %v6259
        %v6298 = vsel %vm1154, %v6149, 0
        %v6301 = vsel %vm1154, %v6152, 0
        %6303 = vmatpush.bf16.msra.mxu0 %v6268
        %6304 = vmatpush.bf16.msra.mxu0 %v6267
        %6305 = vmatpush.bf16.msra.mxu0 %v6266
        %6306 = vmatpush.bf16.msra.mxu0 %v6265
        %6307 = vmatpush.bf16.msra.mxu0 %v6264
        %6308 = vmatpush.bf16.msra.mxu0 %v6263
        %6309 = vmatpush.bf16.msra.mxu0 %v6262
        %6310 = vmatpush.bf16.msra.mxu0 %v6261
        %6311 = vmatmul.bf16.gmra.mxu0 %v6147
        %v6312 = vpop.f32.mrf.mxu0
        %v6313 = vadd.f32 0.0, %v6312
        %v6314 = vpop.f32.mrf.mxu0
        %v6315 = vadd.f32 0.0, %v6314
        %6316 = vmatmul.bf16.gmra.mxu0 %v6150
        %v6317 = vpop.f32.mrf.mxu0
        %v6318 = vadd.f32 0.0, %v6317
        %v6319 = vpop.f32.mrf.mxu0
        %v6320 = vadd.f32 0.0, %v6319
        %6321 = vdwg.mxu0
        %6322 = vmatpush.bf16.msra.mxu0 %v6276
        %6323 = vmatpush.bf16.msra.mxu0 %v6275
        %6324 = vmatpush.bf16.msra.mxu0 %v6274
        %6325 = vmatpush.bf16.msra.mxu0 %v6273
        %6326 = vmatpush.bf16.msra.mxu0 %v6272
        %6327 = vmatpush.bf16.msra.mxu0 %v6271
        %6328 = vmatpush.bf16.msra.mxu0 %v6270
        %6329 = vmatpush.bf16.msra.mxu0 %v6269
        %6330 = vmatmul.bf16.gmra.mxu0 %v6148
        %v6331 = vpop.f32.mrf.mxu0
        %v6332 = vadd.f32 %v6313, %v6331
        %v6333 = vpop.f32.mrf.mxu0
        %v6334 = vadd.f32 %v6315, %v6333
        %6335 = vmatmul.bf16.gmra.mxu0 %v6151
        %v6336 = vpop.f32.mrf.mxu0
        %v6337 = vadd.f32 %v6318, %v6336
        %v6338 = vpop.f32.mrf.mxu0
        %v6339 = vadd.f32 %v6320, %v6338
        %6340 = vdwg.mxu0
        %6341 = vmatpush.bf16.msra.mxu0 0
        %6342 = vmatpush.bf16.msra.mxu0 0
        %6343 = vmatpush.bf16.msra.mxu0 0
        %6344 = vmatpush.bf16.msra.mxu0 0
        %6345 = vmatpush.bf16.msra.mxu0 0
        %6346 = vmatpush.bf16.msra.mxu0 0
        %6347 = vmatpush.bf16.msra.mxu0 %v6278
        %6348 = vmatpush.bf16.msra.mxu0 %v6277
        %6349 = vmatmul.bf16.gmra.mxu0 %v6298
        %v6350 = vpop.f32.mrf.mxu0
        %v6351 = vadd.f32 %v6332, %v6350
        %v6352 = vpop.f32.mrf.mxu0
        %v6353 = vadd.f32 %v6334, %v6352
        %6354 = vmatmul.bf16.gmra.mxu0 %v6301
        %v6355 = vpop.f32.mrf.mxu0
        %v6356 = vadd.f32 %v6337, %v6355
        %v6357 = vpop.f32.mrf.mxu0
        %v6358 = vadd.f32 %v6339, %v6357
        %6359 = vdwg.mxu0
        %v6360 = vmul.f32 %v6351, %v1219
        %v6361 = vmul.f32 %v6353, %v1219
        %v6362 = vmul.f32 %v6356, %v1219
        %v6363 = vmul.f32 %v6358, %v1219
        %v6364 = vld [vmem:[%s6 + $0xe0] sm:$0xff]
        %v6365 = vld [vmem:[%s6 + $0xe8] sm:$0xff]
        %v6366 = vld [vmem:[%s6 + $0xf0] sm:$0xff]
        %v6367 = vld [vmem:[%s6 + $0xf8] sm:$0xff]
        %v6368 = vadd.f32 %v6360, %v6364
        %v6369 = vadd.f32 %v6361, %v6365
        %v6370 = vadd.f32 %v6362, %v6366
        %v6371 = vadd.f32 %v6363, %v6367
        %v6372 = vmax.f32 %v6368, 0.0
        %v6373 = vmax.f32 %v6369, 0.0
        %v6374 = vmax.f32 %v6370, 0.0
        %v6375 = vmax.f32 %v6371, 0.0
        %6380 = vrot.lane.b32.xlu0 %v6372, 64
        %v6381 = vpop.permute.xlu0 %6380
        %6382 = vrot.lane.b32.xlu0 %v6373, 64
        %v6383 = vpop.permute.xlu0 %6382
        %6384 = vrot.lane.b32.xlu0 %v6374, 64
        %v6385 = vpop.permute.xlu0 %6384
        %6386 = vrot.lane.b32.xlu0 %v6375, 64
        %v6387 = vpop.permute.xlu0 %6386
        %6392 = vst.msk [vmem:[#allocation2 + $0x18] sm:$0xff] %vm1981, %v6381
        %6393 = vst.msk [vmem:[#allocation2 + $0x40] sm:$0xff] %vm1981, %v6383
        %6394 = vst.msk [vmem:[#allocation2 + $0x68] sm:$0xff] %vm1981, %v6385
        %6395 = vst.msk [vmem:[#allocation2 + $0x90] sm:$0xff] %vm1981, %v6387
        %v6396 = vld [vmem:[%s491 + $0x100] sm:$0xff]
        %v6397 = vld [vmem:[%s491 + $0x108] sm:$0xff]
        %v6398 = vld [vmem:[%s491 + $0x110] sm:$0xff]
        %v6399 = vld [vmem:[%s491 + $0x118] sm:$0xff]
        %v6400 = vld [vmem:[%s1] sm:$0xff]
        %v6401 = vld [vmem:[%s1 + $0x8] sm:$0xf]
        %v6402 = vld [vmem:[%s1 + $0xc] sm:$0xff]
        %v6403 = vld [vmem:[%s1 + $0x14] sm:$0xf]
        %v6404 = vld [vmem:[%s1 + $0x18] sm:$0xff]
        %v6405 = vld [vmem:[%s1 + $0x20] sm:$0xf]
        %v6406 = vld [vmem:[%s1 + $0x24] sm:$0xff]
        %v6407 = vld [vmem:[%s1 + $0x2c] sm:$0xf]
        %v6408 = vld [vmem:[%s1 + $0x30] sm:$0xff]
        %v6409 = vld [vmem:[%s1 + $0x38] sm:$0xf]
        %v6410 = vld [vmem:[%s1 + $0x3c] sm:$0xff]
        %v6411 = vld [vmem:[%s1 + $0x44] sm:$0xf]
        %v6412 = vld [vmem:[%s1 + $0x48] sm:$0xff]
        %v6413 = vld [vmem:[%s1 + $0x50] sm:$0xf]
        %v6414 = vld [vmem:[%s1 + $0x54] sm:$0xff]
        %v6415 = vld [vmem:[%s1 + $0x5c] sm:$0xf]
        %v6416 = vld [vmem:[%s1 + $0x60] sm:$0xff]
        %v6417 = vld [vmem:[%s1 + $0x68] sm:$0xf]
        %v6418 = vld [vmem:[%s1 + $0x6c] sm:$0xff]
        %v6419 = vld [vmem:[%s1 + $0x74] sm:$0xf]
        %v6420 = vld [vmem:[%s1 + $0x78] sm:$0xff]
        %v6421 = vld [vmem:[%s1 + $0x80] sm:$0xf]
        %v6422 = vld [vmem:[%s1 + $0x84] sm:$0xff]
        %v6423 = vld [vmem:[%s1 + $0x8c] sm:$0xf]
        %v6424 = vld [vmem:[%s1 + $0x90] sm:$0xff]
        %v6425 = vld [vmem:[%s1 + $0x98] sm:$0xf]
        %v6426 = vld [vmem:[%s1 + $0x9c] sm:$0xff]
        %v6427 = vld [vmem:[%s1 + $0xa4] sm:$0xf]
        %v6428 = vld [vmem:[%s1 + $0xa8] sm:$0xff]
        %v6429 = vld [vmem:[%s1 + $0xb0] sm:$0xf]
        %v6430 = vld [vmem:[%s1 + $0xb4] sm:$0xff]
        %v6431 = vld [vmem:[%s1 + $0xbc] sm:$0xf]
        %v6432 = vld [vmem:[%s1 + $0xc0] sm:$0xff]
        %v6433 = vld [vmem:[%s1 + $0xc8] sm:$0xf]
        %v6434 = vld [vmem:[%s1 + $0xcc] sm:$0xff]
        %v6435 = vld [vmem:[%s1 + $0xd4] sm:$0xf]
        %v6436 = vld [vmem:[%s1 + $0xd8] sm:$0xff]
        %v6437 = vld [vmem:[%s1 + $0xe0] sm:$0xf]
        %v6438 = vld [vmem:[%s1 + $0xe4] sm:$0xff]
        %v6439 = vld [vmem:[%s1 + $0xec] sm:$0xf]
        %v6440 = vld [vmem:[%s1 + $0xf0] sm:$0xff]
        %v6441 = vld [vmem:[%s1 + $0xf8] sm:$0xf]
        %v6442 = vld [vmem:[%s1 + $0xfc] sm:$0xff]
        %v6443 = vld [vmem:[%s1 + $0x104] sm:$0xf]
        %v6444 = vld [vmem:[%s1 + $0x108] sm:$0xff]
        %v6445 = vld [vmem:[%s1 + $0x110] sm:$0xf]
        %v6446 = vld [vmem:[%s1 + $0x114] sm:$0xff]
        %v6447 = vld [vmem:[%s1 + $0x11c] sm:$0xf]
        %v6448 = vld [vmem:[%s1 + $0x120] sm:$0xff]
        %v6449 = vld [vmem:[%s1 + $0x128] sm:$0xf]
        %v6450 = vld [vmem:[%s1 + $0x12c] sm:$0xff]
        %v6451 = vld [vmem:[%s1 + $0x134] sm:$0xf]
        %v6452 = vld [vmem:[%s1 + $0x138] sm:$0xff]
        %v6453 = vld [vmem:[%s1 + $0x140] sm:$0xf]
        %v6454 = vld [vmem:[%s1 + $0x144] sm:$0xff]
        %v6455 = vld [vmem:[%s1 + $0x14c] sm:$0xf]
        %v6456 = vld [vmem:[%s1 + $0x150] sm:$0xff]
        %v6457 = vld [vmem:[%s1 + $0x158] sm:$0xf]
        %v6458 = vld [vmem:[%s1 + $0x15c] sm:$0xff]
        %v6459 = vld [vmem:[%s1 + $0x164] sm:$0xf]
        %v6460 = vld [vmem:[%s1 + $0x168] sm:$0xff]
        %v6461 = vld [vmem:[%s1 + $0x170] sm:$0xf]
        %v6462 = vld [vmem:[%s1 + $0x174] sm:$0xff]
        %v6463 = vld [vmem:[%s1 + $0x17c] sm:$0xf]
        %v6468 = vunpack.c.l.b16 %v6396
        %v6469 = vunpack.c.h.b16 %v6396
        %v6470 = vunpack.c.l.b16 %v6397
        %v6471 = vunpack.c.h.b16 %v6397
        %v6472 = vunpack.c.l.b16 %v6398
        %v6473 = vunpack.c.h.b16 %v6398
        %v6474 = vunpack.c.l.b16 %v6399
        %v6475 = vunpack.c.h.b16 %v6399
        %v6476 = vpack.c.b16 %v6470, %v6468
        %v6477 = vpack.c.b16 %v6471, %v6469
        %v6478 = vpack.c.b16 %v6474, %v6472
        %v6479 = vpack.c.b16 %v6475, %v6473
        %v6548 = vunpack.c.l.b16 %v6400
        %v6549 = vunpack.c.h.b16 %v6400
        %v6550 = vunpack.c.l.b16 %v6401
        %v6551 = vunpack.c.l.b16 %v6402
        %v6552 = vunpack.c.h.b16 %v6402
        %v6553 = vunpack.c.l.b16 %v6403
        %v6554 = vunpack.c.l.b16 %v6404
        %v6555 = vunpack.c.h.b16 %v6404
        %v6556 = vunpack.c.l.b16 %v6405
        %v6557 = vunpack.c.l.b16 %v6406
        %v6558 = vunpack.c.h.b16 %v6406
        %v6559 = vunpack.c.l.b16 %v6407
        %v6560 = vunpack.c.l.b16 %v6408
        %v6561 = vunpack.c.h.b16 %v6408
        %v6562 = vunpack.c.l.b16 %v6409
        %v6563 = vunpack.c.l.b16 %v6410
        %v6564 = vunpack.c.h.b16 %v6410
        %v6565 = vunpack.c.l.b16 %v6411
        %v6566 = vunpack.c.l.b16 %v6412
        %v6567 = vunpack.c.h.b16 %v6412
        %v6568 = vunpack.c.l.b16 %v6413
        %v6569 = vunpack.c.l.b16 %v6414
        %v6570 = vunpack.c.h.b16 %v6414
        %v6571 = vunpack.c.l.b16 %v6415
        %v6572 = vunpack.c.l.b16 %v6416
        %v6573 = vunpack.c.h.b16 %v6416
        %v6574 = vunpack.c.l.b16 %v6417
        %v6575 = vunpack.c.l.b16 %v6418
        %v6576 = vunpack.c.h.b16 %v6418
        %v6577 = vunpack.c.l.b16 %v6419
        %v6578 = vunpack.c.l.b16 %v6420
        %v6579 = vunpack.c.h.b16 %v6420
        %v6580 = vunpack.c.l.b16 %v6421
        %v6581 = vunpack.c.l.b16 %v6422
        %v6582 = vunpack.c.h.b16 %v6422
        %v6583 = vunpack.c.l.b16 %v6423
        %v6584 = vunpack.c.l.b16 %v6424
        %v6585 = vunpack.c.h.b16 %v6424
        %v6586 = vunpack.c.l.b16 %v6425
        %v6587 = vunpack.c.l.b16 %v6426
        %v6588 = vunpack.c.h.b16 %v6426
        %v6589 = vunpack.c.l.b16 %v6427
        %v6590 = vunpack.c.l.b16 %v6428
        %v6591 = vunpack.c.h.b16 %v6428
        %v6592 = vunpack.c.l.b16 %v6429
        %v6593 = vunpack.c.l.b16 %v6430
        %v6594 = vunpack.c.h.b16 %v6430
        %v6595 = vunpack.c.l.b16 %v6431
        %v6596 = vunpack.c.l.b16 %v6432
        %v6597 = vunpack.c.h.b16 %v6432
        %v6598 = vunpack.c.l.b16 %v6433
        %v6599 = vunpack.c.l.b16 %v6434
        %v6600 = vunpack.c.h.b16 %v6434
        %v6601 = vunpack.c.l.b16 %v6435
        %v6602 = vunpack.c.l.b16 %v6436
        %v6603 = vunpack.c.h.b16 %v6436
        %v6604 = vunpack.c.l.b16 %v6437
        %v6605 = vunpack.c.l.b16 %v6438
        %v6606 = vunpack.c.h.b16 %v6438
        %v6607 = vunpack.c.l.b16 %v6439
        %v6608 = vunpack.c.l.b16 %v6440
        %v6609 = vunpack.c.h.b16 %v6440
        %v6610 = vunpack.c.l.b16 %v6441
        %v6611 = vunpack.c.l.b16 %v6442
        %v6612 = vunpack.c.h.b16 %v6442
        %v6613 = vunpack.c.l.b16 %v6443
        %v6614 = vunpack.c.l.b16 %v6444
        %v6615 = vunpack.c.h.b16 %v6444
        %v6616 = vunpack.c.l.b16 %v6445
        %v6617 = vunpack.c.l.b16 %v6446
        %v6618 = vunpack.c.h.b16 %v6446
        %v6619 = vunpack.c.l.b16 %v6447
        %v6620 = vunpack.c.l.b16 %v6448
        %v6621 = vunpack.c.h.b16 %v6448
        %v6622 = vunpack.c.l.b16 %v6449
        %v6623 = vunpack.c.l.b16 %v6450
        %v6624 = vunpack.c.h.b16 %v6450
        %v6625 = vunpack.c.l.b16 %v6451
        %v6626 = vunpack.c.l.b16 %v6452
        %v6627 = vunpack.c.h.b16 %v6452
        %v6628 = vunpack.c.l.b16 %v6453
        %v6629 = vunpack.c.l.b16 %v6454
        %v6630 = vunpack.c.h.b16 %v6454
        %v6631 = vunpack.c.l.b16 %v6455
        %v6632 = vunpack.c.l.b16 %v6456
        %v6633 = vunpack.c.h.b16 %v6456
        %v6634 = vunpack.c.l.b16 %v6457
        %v6635 = vunpack.c.l.b16 %v6458
        %v6636 = vunpack.c.h.b16 %v6458
        %v6637 = vunpack.c.l.b16 %v6459
        %v6638 = vunpack.c.l.b16 %v6460
        %v6639 = vunpack.c.h.b16 %v6460
        %v6640 = vunpack.c.l.b16 %v6461
        %v6641 = vunpack.c.l.b16 %v6462
        %v6642 = vunpack.c.h.b16 %v6462
        %v6643 = vunpack.c.l.b16 %v6463
        %v6644 = vpack.c.b16 %v6551, %v6548
        %v6645 = vpack.c.b16 %v6552, %v6549
        %v6646 = vpack.c.b16 %v6553, %v6550
        %v6647 = vpack.c.b16 %v6557, %v6554
        %v6648 = vpack.c.b16 %v6558, %v6555
        %v6649 = vpack.c.b16 %v6559, %v6556
        %v6650 = vpack.c.b16 %v6563, %v6560
        %v6651 = vpack.c.b16 %v6564, %v6561
        %v6652 = vpack.c.b16 %v6565, %v6562
        %v6653 = vpack.c.b16 %v6569, %v6566
        %v6654 = vpack.c.b16 %v6570, %v6567
        %v6655 = vpack.c.b16 %v6571, %v6568
        %v6656 = vpack.c.b16 %v6575, %v6572
        %v6657 = vpack.c.b16 %v6576, %v6573
        %v6658 = vpack.c.b16 %v6577, %v6574
        %v6659 = vpack.c.b16 %v6581, %v6578
        %v6660 = vpack.c.b16 %v6582, %v6579
        %v6661 = vpack.c.b16 %v6583, %v6580
        %v6662 = vpack.c.b16 %v6587, %v6584
        %v6663 = vpack.c.b16 %v6588, %v6585
        %v6664 = vpack.c.b16 %v6589, %v6586
        %v6665 = vpack.c.b16 %v6593, %v6590
        %v6666 = vpack.c.b16 %v6594, %v6591
        %v6667 = vpack.c.b16 %v6595, %v6592
        %v6668 = vpack.c.b16 %v6599, %v6596
        %v6669 = vpack.c.b16 %v6600, %v6597
        %v6670 = vpack.c.b16 %v6601, %v6598
        %v6671 = vpack.c.b16 %v6605, %v6602
        %v6672 = vpack.c.b16 %v6606, %v6603
        %v6673 = vpack.c.b16 %v6607, %v6604
        %v6674 = vpack.c.b16 %v6611, %v6608
        %v6675 = vpack.c.b16 %v6612, %v6609
        %v6676 = vpack.c.b16 %v6613, %v6610
        %v6677 = vpack.c.b16 %v6617, %v6614
        %v6678 = vpack.c.b16 %v6618, %v6615
        %v6679 = vpack.c.b16 %v6619, %v6616
        %v6680 = vpack.c.b16 %v6623, %v6620
        %v6681 = vpack.c.b16 %v6624, %v6621
        %v6682 = vpack.c.b16 %v6625, %v6622
        %v6683 = vpack.c.b16 %v6629, %v6626
        %v6684 = vpack.c.b16 %v6630, %v6627
        %v6685 = vpack.c.b16 %v6631, %v6628
        %v6686 = vpack.c.b16 %v6635, %v6632
        %v6687 = vpack.c.b16 %v6636, %v6633
        %v6688 = vpack.c.b16 %v6637, %v6634
        %v6689 = vpack.c.b16 %v6641, %v6638
        %v6690 = vpack.c.b16 %v6642, %v6639
        %v6691 = vpack.c.b16 %v6643, %v6640
        %6740 = vmatpush.bf16.msra.mxu0 %v6665
        %6741 = vmatpush.bf16.msra.mxu0 %v6662
        %6742 = vmatpush.bf16.msra.mxu0 %v6659
        %6743 = vmatpush.bf16.msra.mxu0 %v6656
        %6744 = vmatpush.bf16.msra.mxu0 %v6653
        %6745 = vmatpush.bf16.msra.mxu0 %v6650
        %6746 = vmatpush.bf16.msra.mxu0 %v6647
        %6747 = vmatpush.bf16.msra.mxu0 %v6644
        %6748 = vmatmul.bf16.gmra.mxu0 %v6476
        %v6749 = vpop.f32.mrf.mxu0
        %v6750 = vadd.f32 0.0, %v6749
        %v6751 = vpop.f32.mrf.mxu0
        %v6752 = vadd.f32 0.0, %v6751
        %6753 = vmatmul.bf16.gmra.mxu0 %v6478
        %v6754 = vpop.f32.mrf.mxu0
        %v6755 = vadd.f32 0.0, %v6754
        %v6756 = vpop.f32.mrf.mxu0
        %v6757 = vadd.f32 0.0, %v6756
        %6758 = vdwg.mxu0
        %6759 = vmatpush.bf16.msra.mxu0 %v6689
        %6760 = vmatpush.bf16.msra.mxu0 %v6686
        %6761 = vmatpush.bf16.msra.mxu0 %v6683
        %6762 = vmatpush.bf16.msra.mxu0 %v6680
        %6763 = vmatpush.bf16.msra.mxu0 %v6677
        %6764 = vmatpush.bf16.msra.mxu0 %v6674
        %6765 = vmatpush.bf16.msra.mxu0 %v6671
        %6766 = vmatpush.bf16.msra.mxu0 %v6668
        %6767 = vmatmul.bf16.gmra.mxu0 %v6477
        %v6768 = vpop.f32.mrf.mxu0
        %v6769 = vadd.f32 %v6750, %v6768
        %v6770 = vpop.f32.mrf.mxu0
        %v6771 = vadd.f32 %v6752, %v6770
        %6772 = vmatmul.bf16.gmra.mxu0 %v6479
        %v6773 = vpop.f32.mrf.mxu0
        %v6774 = vadd.f32 %v6755, %v6773
        %v6775 = vpop.f32.mrf.mxu0
        %v6776 = vadd.f32 %v6757, %v6775
        %6777 = vdwg.mxu0
        %6778 = vmatpush.bf16.msra.mxu0 %v6666
        %6779 = vmatpush.bf16.msra.mxu0 %v6663
        %6780 = vmatpush.bf16.msra.mxu0 %v6660
        %6781 = vmatpush.bf16.msra.mxu0 %v6657
        %6782 = vmatpush.bf16.msra.mxu0 %v6654
        %6783 = vmatpush.bf16.msra.mxu0 %v6651
        %6784 = vmatpush.bf16.msra.mxu0 %v6648
        %6785 = vmatpush.bf16.msra.mxu0 %v6645
        %6786 = vmatmul.bf16.gmra.mxu0 %v6476
        %v6787 = vpop.f32.mrf.mxu0
        %v6788 = vadd.f32 0.0, %v6787
        %v6789 = vpop.f32.mrf.mxu0
        %v6790 = vadd.f32 0.0, %v6789
        %6791 = vmatmul.bf16.gmra.mxu0 %v6478
        %v6792 = vpop.f32.mrf.mxu0
        %v6793 = vadd.f32 0.0, %v6792
        %v6794 = vpop.f32.mrf.mxu0
        %v6795 = vadd.f32 0.0, %v6794
        %6796 = vdwg.mxu0
        %6797 = vmatpush.bf16.msra.mxu0 %v6690
        %6798 = vmatpush.bf16.msra.mxu0 %v6687
        %6799 = vmatpush.bf16.msra.mxu0 %v6684
        %6800 = vmatpush.bf16.msra.mxu0 %v6681
        %6801 = vmatpush.bf16.msra.mxu0 %v6678
        %6802 = vmatpush.bf16.msra.mxu0 %v6675
        %6803 = vmatpush.bf16.msra.mxu0 %v6672
        %6804 = vmatpush.bf16.msra.mxu0 %v6669
        %6805 = vmatmul.bf16.gmra.mxu0 %v6477
        %v6806 = vpop.f32.mrf.mxu0
        %v6807 = vadd.f32 %v6788, %v6806
        %v6808 = vpop.f32.mrf.mxu0
        %v6809 = vadd.f32 %v6790, %v6808
        %6810 = vmatmul.bf16.gmra.mxu0 %v6479
        %v6811 = vpop.f32.mrf.mxu0
        %v6812 = vadd.f32 %v6793, %v6811
        %v6813 = vpop.f32.mrf.mxu0
        %v6814 = vadd.f32 %v6795, %v6813
        %6815 = vdwg.mxu0
        %6816 = vmatpush.bf16.msra.mxu0 %v6667
        %6817 = vmatpush.bf16.msra.mxu0 %v6664
        %6818 = vmatpush.bf16.msra.mxu0 %v6661
        %6819 = vmatpush.bf16.msra.mxu0 %v6658
        %6820 = vmatpush.bf16.msra.mxu0 %v6655
        %6821 = vmatpush.bf16.msra.mxu0 %v6652
        %6822 = vmatpush.bf16.msra.mxu0 %v6649
        %6823 = vmatpush.bf16.msra.mxu0 %v6646
        %6824 = vmatmul.bf16.gmra.mxu0 %v6476
        %v6825 = vpop.f32.mrf.mxu0
        %v6826 = vadd.f32 0.0, %v6825
        %v6827 = vpop.f32.mrf.mxu0
        %v6828 = vadd.f32 0.0, %v6827
        %6829 = vmatmul.bf16.gmra.mxu0 %v6478
        %v6830 = vpop.f32.mrf.mxu0
        %v6831 = vadd.f32 0.0, %v6830
        %v6832 = vpop.f32.mrf.mxu0
        %v6833 = vadd.f32 0.0, %v6832
        %6834 = vdwg.mxu0
        %6835 = vmatpush.bf16.msra.mxu0 %v6691
        %6836 = vmatpush.bf16.msra.mxu0 %v6688
        %6837 = vmatpush.bf16.msra.mxu0 %v6685
        %6838 = vmatpush.bf16.msra.mxu0 %v6682
        %6839 = vmatpush.bf16.msra.mxu0 %v6679
        %6840 = vmatpush.bf16.msra.mxu0 %v6676
        %6841 = vmatpush.bf16.msra.mxu0 %v6673
        %6842 = vmatpush.bf16.msra.mxu0 %v6670
        %6843 = vmatmul.bf16.gmra.mxu0 %v6477
        %v6844 = vpop.f32.mrf.mxu0
        %v6845 = vadd.f32 %v6826, %v6844
        %v6846 = vpop.f32.mrf.mxu0
        %v6847 = vadd.f32 %v6828, %v6846
        %6848 = vmatmul.bf16.gmra.mxu0 %v6479
        %v6849 = vpop.f32.mrf.mxu0
        %v6850 = vadd.f32 %v6831, %v6849
        %v6851 = vpop.f32.mrf.mxu0
        %v6852 = vadd.f32 %v6833, %v6851
        %6853 = vdwg.mxu0
        %v6854 = vmul.f32 %v6769, %v955
        %v6855 = vmul.f32 %v6807, %v956
        %v6856 = vmul.f32 %v6845, %v957
        %v6857 = vmul.f32 %v6771, %v955
        %v6858 = vmul.f32 %v6809, %v956
        %v6859 = vmul.f32 %v6847, %v957
        %v6860 = vmul.f32 %v6774, %v955
        %v6861 = vmul.f32 %v6812, %v956
        %v6862 = vmul.f32 %v6850, %v957
        %v6863 = vmul.f32 %v6776, %v955
        %v6864 = vmul.f32 %v6814, %v956
        %v6865 = vmul.f32 %v6852, %v957
        %v6866 = vadd.f32 %v6854, %v974
        %v6867 = vadd.f32 %v6855, %v975
        %v6868 = vadd.f32 %v6856, %v976
        %v6869 = vadd.f32 %v6857, %v974
        %v6870 = vadd.f32 %v6858, %v975
        %v6871 = vadd.f32 %v6859, %v976
        %v6872 = vadd.f32 %v6860, %v974
        %v6873 = vadd.f32 %v6861, %v975
        %v6874 = vadd.f32 %v6862, %v976
        %v6875 = vadd.f32 %v6863, %v974
        %v6876 = vadd.f32 %v6864, %v975
        %v6877 = vadd.f32 %v6865, %v976
        %v6878 = vmax.f32 %v6866, 0.0
        %v6879 = vmax.f32 %v6867, 0.0
        %v6880 = vmax.f32 %v6868, 0.0
        %v6881 = vmax.f32 %v6869, 0.0
        %v6882 = vmax.f32 %v6870, 0.0
        %v6883 = vmax.f32 %v6871, 0.0
        %v6884 = vmax.f32 %v6872, 0.0
        %v6885 = vmax.f32 %v6873, 0.0
        %v6886 = vmax.f32 %v6874, 0.0
        %v6887 = vmax.f32 %v6875, 0.0
        %v6888 = vmax.f32 %v6876, 0.0
        %v6889 = vmax.f32 %v6877, 0.0
        %v6890 = vpack.c.bf16 %v6881, %v6878
        %v6891 = vpack.c.bf16 %v6882, %v6879
        %v6892 = vpack.c.bf16 %v6883, %v6880
        %v6893 = vpack.c.bf16 %v6887, %v6884
        %v6894 = vpack.c.bf16 %v6888, %v6885
        %v6895 = vpack.c.bf16 %v6889, %v6886
        %v6896 = vld [vmem:[%s4] sm:$0xf]
        %v6897 = vld [vmem:[%s4 + $0x4] sm:$0xf]
        %v6898 = vld [vmem:[%s4 + $0x8] sm:$0xf]
        %v6899 = vld [vmem:[%s4 + $0xc] sm:$0xf]
        %v6900 = vld [vmem:[%s4 + $0x10] sm:$0xf]
        %v6901 = vld [vmem:[%s4 + $0x14] sm:$0xf]
        %v6902 = vld [vmem:[%s4 + $0x18] sm:$0xf]
        %v6903 = vld [vmem:[%s4 + $0x1c] sm:$0xf]
        %v6904 = vld [vmem:[%s4 + $0x20] sm:$0xf]
        %v6905 = vld [vmem:[%s4 + $0x24] sm:$0xf]
        %v6906 = vld [vmem:[%s4 + $0x28] sm:$0xf]
        %v6907 = vld [vmem:[%s4 + $0x2c] sm:$0xf]
        %v6908 = vld [vmem:[%s4 + $0x30] sm:$0xf]
        %v6909 = vld [vmem:[%s4 + $0x34] sm:$0xf]
        %v6910 = vld [vmem:[%s4 + $0x38] sm:$0xf]
        %v6911 = vld [vmem:[%s4 + $0x3c] sm:$0xf]
        %v6912 = vld [vmem:[%s4 + $0x40] sm:$0xf]
        %v6913 = vld [vmem:[%s4 + $0x44] sm:$0xf]
        %v6914 = vld [vmem:[%s4 + $0x48] sm:$0xf]
        %v6915 = vld [vmem:[%s4 + $0x4c] sm:$0xf]
        %v6916 = vld [vmem:[%s4 + $0x50] sm:$0xf]
        %v6917 = vld [vmem:[%s4 + $0x54] sm:$0xf]
        %v6918 = vld [vmem:[%s4 + $0x58] sm:$0xf]
        %v6919 = vld [vmem:[%s4 + $0x5c] sm:$0xf]
        %v6920 = vld [vmem:[%s4 + $0x60] sm:$0xf]
        %v6921 = vld [vmem:[%s4 + $0x64] sm:$0xf]
        %v6922 = vld [vmem:[%s4 + $0x68] sm:$0xf]
        %v6923 = vld [vmem:[%s4 + $0x6c] sm:$0xf]
        %v6924 = vld [vmem:[%s4 + $0x70] sm:$0xf]
        %v6925 = vld [vmem:[%s4 + $0x74] sm:$0xf]
        %v6926 = vld [vmem:[%s4 + $0x78] sm:$0xf]
        %v6927 = vld [vmem:[%s4 + $0x7c] sm:$0xf]
        %v6928 = vld [vmem:[%s4 + $0x80] sm:$0xf]
        %v6929 = vld [vmem:[%s4 + $0x84] sm:$0xf]
        %v6930 = vld [vmem:[%s4 + $0x88] sm:$0xf]
        %v6931 = vld [vmem:[%s4 + $0x8c] sm:$0xf]
        %v6968 = vunpack.c.l.b16 %v6896
        %v6969 = vunpack.c.l.b16 %v6897
        %v6970 = vunpack.c.l.b16 %v6898
        %v6971 = vunpack.c.l.b16 %v6899
        %v6972 = vunpack.c.l.b16 %v6900
        %v6973 = vunpack.c.l.b16 %v6901
        %v6974 = vunpack.c.l.b16 %v6902
        %v6975 = vunpack.c.l.b16 %v6903
        %v6976 = vunpack.c.l.b16 %v6904
        %v6977 = vunpack.c.l.b16 %v6905
        %v6978 = vunpack.c.l.b16 %v6906
        %v6979 = vunpack.c.l.b16 %v6907
        %v6980 = vunpack.c.l.b16 %v6908
        %v6981 = vunpack.c.l.b16 %v6909
        %v6982 = vunpack.c.l.b16 %v6910
        %v6983 = vunpack.c.l.b16 %v6911
        %v6984 = vunpack.c.l.b16 %v6912
        %v6985 = vunpack.c.l.b16 %v6913
        %v6986 = vunpack.c.l.b16 %v6914
        %v6987 = vunpack.c.l.b16 %v6915
        %v6988 = vunpack.c.l.b16 %v6916
        %v6989 = vunpack.c.l.b16 %v6917
        %v6990 = vunpack.c.l.b16 %v6918
        %v6991 = vunpack.c.l.b16 %v6919
        %v6992 = vunpack.c.l.b16 %v6920
        %v6993 = vunpack.c.l.b16 %v6921
        %v6994 = vunpack.c.l.b16 %v6922
        %v6995 = vunpack.c.l.b16 %v6923
        %v6996 = vunpack.c.l.b16 %v6924
        %v6997 = vunpack.c.l.b16 %v6925
        %v6998 = vunpack.c.l.b16 %v6926
        %v6999 = vunpack.c.l.b16 %v6927
        %v7000 = vunpack.c.l.b16 %v6928
        %v7001 = vunpack.c.l.b16 %v6929
        %v7002 = vunpack.c.l.b16 %v6930
        %v7003 = vunpack.c.l.b16 %v6931
        %v7004 = vpack.c.b16 %v6969, %v6968
        %v7005 = vpack.c.b16 %v6971, %v6970
        %v7006 = vpack.c.b16 %v6973, %v6972
        %v7007 = vpack.c.b16 %v6975, %v6974
        %v7008 = vpack.c.b16 %v6977, %v6976
        %v7009 = vpack.c.b16 %v6979, %v6978
        %v7010 = vpack.c.b16 %v6981, %v6980
        %v7011 = vpack.c.b16 %v6983, %v6982
        %v7012 = vpack.c.b16 %v6985, %v6984
        %v7013 = vpack.c.b16 %v6987, %v6986
        %v7014 = vpack.c.b16 %v6989, %v6988
        %v7015 = vpack.c.b16 %v6991, %v6990
        %v7016 = vpack.c.b16 %v6993, %v6992
        %v7017 = vpack.c.b16 %v6995, %v6994
        %v7018 = vpack.c.b16 %v6997, %v6996
        %v7019 = vpack.c.b16 %v6999, %v6998
        %v7020 = vpack.c.b16 %v7001, %v7000
        %v7021 = vpack.c.b16 %v7003, %v7002
        %v7041 = vsel %vm1154, %v6892, 0
        %v7044 = vsel %vm1154, %v6895, 0
        %7046 = vmatpush.bf16.msra.mxu0 %v7011
        %7047 = vmatpush.bf16.msra.mxu0 %v7010
        %7048 = vmatpush.bf16.msra.mxu0 %v7009
        %7049 = vmatpush.bf16.msra.mxu0 %v7008
        %7050 = vmatpush.bf16.msra.mxu0 %v7007
        %7051 = vmatpush.bf16.msra.mxu0 %v7006
        %7052 = vmatpush.bf16.msra.mxu0 %v7005
        %7053 = vmatpush.bf16.msra.mxu0 %v7004
        %7054 = vmatmul.bf16.gmra.mxu0 %v6890
        %v7055 = vpop.f32.mrf.mxu0
        %v7056 = vadd.f32 0.0, %v7055
        %v7057 = vpop.f32.mrf.mxu0
        %v7058 = vadd.f32 0.0, %v7057
        %7059 = vmatmul.bf16.gmra.mxu0 %v6893
        %v7060 = vpop.f32.mrf.mxu0
        %v7061 = vadd.f32 0.0, %v7060
        %v7062 = vpop.f32.mrf.mxu0
        %v7063 = vadd.f32 0.0, %v7062
        %7064 = vdwg.mxu0
        %7065 = vmatpush.bf16.msra.mxu0 %v7019
        %7066 = vmatpush.bf16.msra.mxu0 %v7018
        %7067 = vmatpush.bf16.msra.mxu0 %v7017
        %7068 = vmatpush.bf16.msra.mxu0 %v7016
        %7069 = vmatpush.bf16.msra.mxu0 %v7015
        %7070 = vmatpush.bf16.msra.mxu0 %v7014
        %7071 = vmatpush.bf16.msra.mxu0 %v7013
        %7072 = vmatpush.bf16.msra.mxu0 %v7012
        %7073 = vmatmul.bf16.gmra.mxu0 %v6891
        %v7074 = vpop.f32.mrf.mxu0
        %v7075 = vadd.f32 %v7056, %v7074
        %v7076 = vpop.f32.mrf.mxu0
        %v7077 = vadd.f32 %v7058, %v7076
        %7078 = vmatmul.bf16.gmra.mxu0 %v6894
        %v7079 = vpop.f32.mrf.mxu0
        %v7080 = vadd.f32 %v7061, %v7079
        %v7081 = vpop.f32.mrf.mxu0
        %v7082 = vadd.f32 %v7063, %v7081
        %7083 = vdwg.mxu0
        %7084 = vmatpush.bf16.msra.mxu0 0
        %7085 = vmatpush.bf16.msra.mxu0 0
        %7086 = vmatpush.bf16.msra.mxu0 0
        %7087 = vmatpush.bf16.msra.mxu0 0
        %7088 = vmatpush.bf16.msra.mxu0 0
        %7089 = vmatpush.bf16.msra.mxu0 0
        %7090 = vmatpush.bf16.msra.mxu0 %v7021
        %7091 = vmatpush.bf16.msra.mxu0 %v7020
        %7092 = vmatmul.bf16.gmra.mxu0 %v7041
        %v7093 = vpop.f32.mrf.mxu0
        %v7094 = vadd.f32 %v7075, %v7093
        %v7095 = vpop.f32.mrf.mxu0
        %v7096 = vadd.f32 %v7077, %v7095
        %7097 = vmatmul.bf16.gmra.mxu0 %v7044
        %v7098 = vpop.f32.mrf.mxu0
        %v7099 = vadd.f32 %v7080, %v7098
        %v7100 = vpop.f32.mrf.mxu0
        %v7101 = vadd.f32 %v7082, %v7100
        %7102 = vdwg.mxu0
        %v7103 = vmul.f32 %v7094, %v1219
        %v7104 = vmul.f32 %v7096, %v1219
        %v7105 = vmul.f32 %v7099, %v1219
        %v7106 = vmul.f32 %v7101, %v1219
        %v7107 = vld [vmem:[%s6 + $0x100] sm:$0xff]
        %v7108 = vld [vmem:[%s6 + $0x108] sm:$0xff]
        %v7109 = vld [vmem:[%s6 + $0x110] sm:$0xff]
        %v7110 = vld [vmem:[%s6 + $0x118] sm:$0xff]
        %v7111 = vadd.f32 %v7103, %v7107
        %v7112 = vadd.f32 %v7104, %v7108
        %v7113 = vadd.f32 %v7105, %v7109
        %v7114 = vadd.f32 %v7106, %v7110
        %v7115 = vmax.f32 %v7111, 0.0
        %v7116 = vmax.f32 %v7112, 0.0
        %v7117 = vmax.f32 %v7113, 0.0
        %v7118 = vmax.f32 %v7114, 0.0
        %7119 = vst.msk [vmem:[#allocation2 + $0x20] sm:$0xff] %vm1237, %v7115
        %7120 = vst.msk [vmem:[#allocation2 + $0x48] sm:$0xff] %vm1237, %v7116
        %7121 = vst.msk [vmem:[#allocation2 + $0x70] sm:$0xff] %vm1237, %v7117
        %7122 = vst.msk [vmem:[#allocation2 + $0x98] sm:$0xff] %vm1237, %v7118
        %v7123 = vld [vmem:[#allocation2] sm:$0xff]
        %v7124 = vld [vmem:[#allocation2 + $0x8] sm:$0xff]
        %v7125 = vld [vmem:[#allocation2 + $0x10] sm:$0xff]
        %v7126 = vld [vmem:[#allocation2 + $0x18] sm:$0xff]
        %v7127 = vld [vmem:[#allocation2 + $0x20] sm:$0xff]
        %v7128 = vld [vmem:[#allocation2 + $0x28] sm:$0xff]
        %v7129 = vld [vmem:[#allocation2 + $0x30] sm:$0xff]
        %v7130 = vld [vmem:[#allocation2 + $0x38] sm:$0xff]
        %v7131 = vld [vmem:[#allocation2 + $0x40] sm:$0xff]
        %v7132 = vld [vmem:[#allocation2 + $0x48] sm:$0xff]
        %v7133 = vld [vmem:[#allocation2 + $0x50] sm:$0xff]
        %v7134 = vld [vmem:[#allocation2 + $0x58] sm:$0xff]
        %v7135 = vld [vmem:[#allocation2 + $0x60] sm:$0xff]
        %v7136 = vld [vmem:[#allocation2 + $0x68] sm:$0xff]
        %v7137 = vld [vmem:[#allocation2 + $0x70] sm:$0xff]
        %v7138 = vld [vmem:[#allocation2 + $0x78] sm:$0xff]
        %v7139 = vld [vmem:[#allocation2 + $0x80] sm:$0xff]
        %v7140 = vld [vmem:[#allocation2 + $0x88] sm:$0xff]
        %v7141 = vld [vmem:[#allocation2 + $0x90] sm:$0xff]
        %v7142 = vld [vmem:[#allocation2 + $0x98] sm:$0xff]
        %v7143 = vpack.c.bf16 %v7128, %v7123
        %v7144 = vpack.c.bf16 %v7129, %v7124
        %v7145 = vpack.c.bf16 %v7130, %v7125
        %v7146 = vpack.c.bf16 %v7131, %v7126
        %v7147 = vpack.c.bf16 %v7132, %v7127
        %v7148 = vpack.c.bf16 %v7138, %v7133
        %v7149 = vpack.c.bf16 %v7139, %v7134
        %v7150 = vpack.c.bf16 %v7140, %v7135
        %v7151 = vpack.c.bf16 %v7141, %v7136
        %v7152 = vpack.c.bf16 %v7142, %v7137
        %v7153 = vld [vmem:[%s7] sm:$0xf]
        %v7154 = vld [vmem:[%s7 + $0x4] sm:$0xf]
        %v7155 = vld [vmem:[%s7 + $0x8] sm:$0xf]
        %v7156 = vld [vmem:[%s7 + $0xc] sm:$0xf]
        %v7157 = vld [vmem:[%s7 + $0x10] sm:$0xf]
        %v7158 = vld [vmem:[%s7 + $0x14] sm:$0xf]
        %v7159 = vld [vmem:[%s7 + $0x18] sm:$0xf]
        %v7160 = vld [vmem:[%s7 + $0x1c] sm:$0xf]
        %v7161 = vld [vmem:[%s7 + $0x20] sm:$0xf]
        %v7162 = vld [vmem:[%s7 + $0x24] sm:$0xf]
        %v7163 = vld [vmem:[%s7 + $0x28] sm:$0xf]
        %v7164 = vld [vmem:[%s7 + $0x2c] sm:$0xf]
        %v7165 = vld [vmem:[%s7 + $0x30] sm:$0xf]
        %v7166 = vld [vmem:[%s7 + $0x34] sm:$0xf]
        %v7167 = vld [vmem:[%s7 + $0x38] sm:$0xf]
        %v7168 = vld [vmem:[%s7 + $0x3c] sm:$0xf]
        %v7169 = vld [vmem:[%s7 + $0x40] sm:$0xf]
        %v7170 = vld [vmem:[%s7 + $0x44] sm:$0xf]
        %v7171 = vld [vmem:[%s7 + $0x48] sm:$0xf]
        %v7172 = vld [vmem:[%s7 + $0x4c] sm:$0xf]
        %v7173 = vld [vmem:[%s7 + $0x50] sm:$0xf]
        %v7174 = vld [vmem:[%s7 + $0x54] sm:$0xf]
        %v7175 = vld [vmem:[%s7 + $0x58] sm:$0xf]
        %v7176 = vld [vmem:[%s7 + $0x5c] sm:$0xf]
        %v7177 = vld [vmem:[%s7 + $0x60] sm:$0xf]
        %v7178 = vld [vmem:[%s7 + $0x64] sm:$0xf]
        %v7179 = vld [vmem:[%s7 + $0x68] sm:$0xf]
        %v7180 = vld [vmem:[%s7 + $0x6c] sm:$0xf]
        %v7181 = vld [vmem:[%s7 + $0x70] sm:$0xf]
        %v7182 = vld [vmem:[%s7 + $0x74] sm:$0xf]
        %v7183 = vld [vmem:[%s7 + $0x78] sm:$0xf]
        %v7184 = vld [vmem:[%s7 + $0x7c] sm:$0xf]
        %v7185 = vld [vmem:[%s7 + $0x80] sm:$0xf]
        %v7186 = vld [vmem:[%s7 + $0x84] sm:$0xf]
        %v7187 = vld [vmem:[%s7 + $0x88] sm:$0xf]
        %v7188 = vld [vmem:[%s7 + $0x8c] sm:$0xf]
        %v7189 = vld [vmem:[%s7 + $0x90] sm:$0xf]
        %v7190 = vld [vmem:[%s7 + $0x94] sm:$0xf]
        %v7191 = vld [vmem:[%s7 + $0x98] sm:$0xf]
        %v7192 = vld [vmem:[%s7 + $0x9c] sm:$0xf]
        %v7193 = vld [vmem:[%s7 + $0xa0] sm:$0xf]
        %v7194 = vld [vmem:[%s7 + $0xa4] sm:$0xf]
        %v7195 = vld [vmem:[%s7 + $0xa8] sm:$0xf]
        %v7196 = vld [vmem:[%s7 + $0xac] sm:$0xf]
        %v7197 = vld [vmem:[%s7 + $0xb0] sm:$0xf]
        %v7198 = vld [vmem:[%s7 + $0xb4] sm:$0xf]
        %v7199 = vld [vmem:[%s7 + $0xb8] sm:$0xf]
        %v7200 = vld [vmem:[%s7 + $0xbc] sm:$0xf]
        %v7201 = vld [vmem:[%s7 + $0xc0] sm:$0xf]
        %v7202 = vld [vmem:[%s7 + $0xc4] sm:$0xf]
        %v7203 = vld [vmem:[%s7 + $0xc8] sm:$0xf]
        %v7204 = vld [vmem:[%s7 + $0xcc] sm:$0xf]
        %v7205 = vld [vmem:[%s7 + $0xd0] sm:$0xf]
        %v7206 = vld [vmem:[%s7 + $0xd4] sm:$0xf]
        %v7207 = vld [vmem:[%s7 + $0xd8] sm:$0xf]
        %v7208 = vld [vmem:[%s7 + $0xdc] sm:$0xf]
        %v7209 = vld [vmem:[%s7 + $0xe0] sm:$0xf]
        %v7210 = vld [vmem:[%s7 + $0xe4] sm:$0xf]
        %v7211 = vld [vmem:[%s7 + $0xe8] sm:$0xf]
        %v7212 = vld [vmem:[%s7 + $0xec] sm:$0xf]
        %v7213 = vld [vmem:[%s7 + $0xf0] sm:$0xf]
        %v7214 = vld [vmem:[%s7 + $0xf4] sm:$0xf]
        %v7215 = vld [vmem:[%s7 + $0xf8] sm:$0xf]
        %v7216 = vld [vmem:[%s7 + $0xfc] sm:$0xf]
        %v7217 = vld [vmem:[%s7 + $0x100] sm:$0xf]
        %v7218 = vld [vmem:[%s7 + $0x104] sm:$0xf]
        %v7219 = vld [vmem:[%s7 + $0x108] sm:$0xf]
        %v7220 = vld [vmem:[%s7 + $0x10c] sm:$0xf]
        %v7221 = vld [vmem:[%s7 + $0x110] sm:$0xf]
        %v7222 = vld [vmem:[%s7 + $0x114] sm:$0xf]
        %v7223 = vld [vmem:[%s7 + $0x118] sm:$0xf]
        %v7224 = vld [vmem:[%s7 + $0x11c] sm:$0xf]
        %v7297 = vunpack.c.l.b16 %v7153
        %v7298 = vunpack.c.l.b16 %v7154
        %v7299 = vunpack.c.l.b16 %v7155
        %v7300 = vunpack.c.l.b16 %v7156
        %v7301 = vunpack.c.l.b16 %v7157
        %v7302 = vunpack.c.l.b16 %v7158
        %v7303 = vunpack.c.l.b16 %v7159
        %v7304 = vunpack.c.l.b16 %v7160
        %v7305 = vunpack.c.l.b16 %v7161
        %v7306 = vunpack.c.l.b16 %v7162
        %v7307 = vunpack.c.l.b16 %v7163
        %v7308 = vunpack.c.l.b16 %v7164
        %v7309 = vunpack.c.l.b16 %v7165
        %v7310 = vunpack.c.l.b16 %v7166
        %v7311 = vunpack.c.l.b16 %v7167
        %v7312 = vunpack.c.l.b16 %v7168
        %v7313 = vunpack.c.l.b16 %v7169
        %v7314 = vunpack.c.l.b16 %v7170
        %v7315 = vunpack.c.l.b16 %v7171
        %v7316 = vunpack.c.l.b16 %v7172
        %v7317 = vunpack.c.l.b16 %v7173
        %v7318 = vunpack.c.l.b16 %v7174
        %v7319 = vunpack.c.l.b16 %v7175
        %v7320 = vunpack.c.l.b16 %v7176
        %v7321 = vunpack.c.l.b16 %v7177
        %v7322 = vunpack.c.l.b16 %v7178
        %v7323 = vunpack.c.l.b16 %v7179
        %v7324 = vunpack.c.l.b16 %v7180
        %v7325 = vunpack.c.l.b16 %v7181
        %v7326 = vunpack.c.l.b16 %v7182
        %v7327 = vunpack.c.l.b16 %v7183
        %v7328 = vunpack.c.l.b16 %v7184
        %v7329 = vunpack.c.l.b16 %v7185
        %v7330 = vunpack.c.l.b16 %v7186
        %v7331 = vunpack.c.l.b16 %v7187
        %v7332 = vunpack.c.l.b16 %v7188
        %v7333 = vunpack.c.l.b16 %v7189
        %v7334 = vunpack.c.l.b16 %v7190
        %v7335 = vunpack.c.l.b16 %v7191
        %v7336 = vunpack.c.l.b16 %v7192
        %v7337 = vunpack.c.l.b16 %v7193
        %v7338 = vunpack.c.l.b16 %v7194
        %v7339 = vunpack.c.l.b16 %v7195
        %v7340 = vunpack.c.l.b16 %v7196
        %v7341 = vunpack.c.l.b16 %v7197
        %v7342 = vunpack.c.l.b16 %v7198
        %v7343 = vunpack.c.l.b16 %v7199
        %v7344 = vunpack.c.l.b16 %v7200
        %v7345 = vunpack.c.l.b16 %v7201
        %v7346 = vunpack.c.l.b16 %v7202
        %v7347 = vunpack.c.l.b16 %v7203
        %v7348 = vunpack.c.l.b16 %v7204
        %v7349 = vunpack.c.l.b16 %v7205
        %v7350 = vunpack.c.l.b16 %v7206
        %v7351 = vunpack.c.l.b16 %v7207
        %v7352 = vunpack.c.l.b16 %v7208
        %v7353 = vunpack.c.l.b16 %v7209
        %v7354 = vunpack.c.l.b16 %v7210
        %v7355 = vunpack.c.l.b16 %v7211
        %v7356 = vunpack.c.l.b16 %v7212
        %v7357 = vunpack.c.l.b16 %v7213
        %v7358 = vunpack.c.l.b16 %v7214
        %v7359 = vunpack.c.l.b16 %v7215
        %v7360 = vunpack.c.l.b16 %v7216
        %v7361 = vunpack.c.l.b16 %v7217
        %v7362 = vunpack.c.l.b16 %v7218
        %v7363 = vunpack.c.l.b16 %v7219
        %v7364 = vunpack.c.l.b16 %v7220
        %v7365 = vunpack.c.l.b16 %v7221
        %v7366 = vunpack.c.l.b16 %v7222
        %v7367 = vunpack.c.l.b16 %v7223
        %v7368 = vunpack.c.l.b16 %v7224
        %v7369 = vpack.c.b16 %v7298, %v7297
        %v7370 = vpack.c.b16 %v7300, %v7299
        %v7371 = vpack.c.b16 %v7302, %v7301
        %v7372 = vpack.c.b16 %v7304, %v7303
        %v7373 = vpack.c.b16 %v7306, %v7305
        %v7374 = vpack.c.b16 %v7308, %v7307
        %v7375 = vpack.c.b16 %v7310, %v7309
        %v7376 = vpack.c.b16 %v7312, %v7311
        %v7377 = vpack.c.b16 %v7314, %v7313
        %v7378 = vpack.c.b16 %v7316, %v7315
        %v7379 = vpack.c.b16 %v7318, %v7317
        %v7380 = vpack.c.b16 %v7320, %v7319
        %v7381 = vpack.c.b16 %v7322, %v7321
        %v7382 = vpack.c.b16 %v7324, %v7323
        %v7383 = vpack.c.b16 %v7326, %v7325
        %v7384 = vpack.c.b16 %v7328, %v7327
        %v7385 = vpack.c.b16 %v7330, %v7329
        %v7386 = vpack.c.b16 %v7332, %v7331
        %v7387 = vpack.c.b16 %v7334, %v7333
        %v7388 = vpack.c.b16 %v7336, %v7335
        %v7389 = vpack.c.b16 %v7338, %v7337
        %v7390 = vpack.c.b16 %v7340, %v7339
        %v7391 = vpack.c.b16 %v7342, %v7341
        %v7392 = vpack.c.b16 %v7344, %v7343
        %v7393 = vpack.c.b16 %v7346, %v7345
        %v7394 = vpack.c.b16 %v7348, %v7347
        %v7395 = vpack.c.b16 %v7350, %v7349
        %v7396 = vpack.c.b16 %v7352, %v7351
        %v7397 = vpack.c.b16 %v7354, %v7353
        %v7398 = vpack.c.b16 %v7356, %v7355
        %v7399 = vpack.c.b16 %v7358, %v7357
        %v7400 = vpack.c.b16 %v7360, %v7359
        %v7401 = vpack.c.b16 %v7362, %v7361
        %v7402 = vpack.c.b16 %v7364, %v7363
        %v7403 = vpack.c.b16 %v7366, %v7365
        %v7404 = vpack.c.b16 %v7368, %v7367
        %v7442 = vsel %vm1237, %v7147, 0
        %v7445 = vsel %vm1237, %v7152, 0
        %7447 = vmatpush.bf16.msra.mxu0 %v7376
        %7448 = vmatpush.bf16.msra.mxu0 %v7375
        %7449 = vmatpush.bf16.msra.mxu0 %v7374
        %7450 = vmatpush.bf16.msra.mxu0 %v7373
        %7451 = vmatpush.bf16.msra.mxu0 %v7372
        %7452 = vmatpush.bf16.msra.mxu0 %v7371
        %7453 = vmatpush.bf16.msra.mxu0 %v7370
        %7454 = vmatpush.bf16.msra.mxu0 %v7369
        %7455 = vmatmul.bf16.gmra.mxu0 %v7143
        %v7456 = vpop.f32.mrf.mxu0
        %v7457 = vadd.f32 0.0, %v7456
        %v7458 = vpop.f32.mrf.mxu0
        %v7459 = vadd.f32 0.0, %v7458
        %7460 = vmatmul.bf16.gmra.mxu0 %v7148
        %v7461 = vpop.f32.mrf.mxu0
        %v7462 = vadd.f32 0.0, %v7461
        %v7463 = vpop.f32.mrf.mxu0
        %v7464 = vadd.f32 0.0, %v7463
        %7465 = vdwg.mxu0
        %7466 = vmatpush.bf16.msra.mxu0 %v7384
        %7467 = vmatpush.bf16.msra.mxu0 %v7383
        %7468 = vmatpush.bf16.msra.mxu0 %v7382
        %7469 = vmatpush.bf16.msra.mxu0 %v7381
        %7470 = vmatpush.bf16.msra.mxu0 %v7380
        %7471 = vmatpush.bf16.msra.mxu0 %v7379
        %7472 = vmatpush.bf16.msra.mxu0 %v7378
        %7473 = vmatpush.bf16.msra.mxu0 %v7377
        %7474 = vmatmul.bf16.gmra.mxu0 %v7144
        %v7475 = vpop.f32.mrf.mxu0
        %v7476 = vadd.f32 %v7457, %v7475
        %v7477 = vpop.f32.mrf.mxu0
        %v7478 = vadd.f32 %v7459, %v7477
        %7479 = vmatmul.bf16.gmra.mxu0 %v7149
        %v7480 = vpop.f32.mrf.mxu0
        %v7481 = vadd.f32 %v7462, %v7480
        %v7482 = vpop.f32.mrf.mxu0
        %v7483 = vadd.f32 %v7464, %v7482
        %7484 = vdwg.mxu0
        %7485 = vmatpush.bf16.msra.mxu0 %v7392
        %7486 = vmatpush.bf16.msra.mxu0 %v7391
        %7487 = vmatpush.bf16.msra.mxu0 %v7390
        %7488 = vmatpush.bf16.msra.mxu0 %v7389
        %7489 = vmatpush.bf16.msra.mxu0 %v7388
        %7490 = vmatpush.bf16.msra.mxu0 %v7387
        %7491 = vmatpush.bf16.msra.mxu0 %v7386
        %7492 = vmatpush.bf16.msra.mxu0 %v7385
        %7493 = vmatmul.bf16.gmra.mxu0 %v7145
        %v7494 = vpop.f32.mrf.mxu0
        %v7495 = vadd.f32 %v7476, %v7494
        %v7496 = vpop.f32.mrf.mxu0
        %v7497 = vadd.f32 %v7478, %v7496
        %7498 = vmatmul.bf16.gmra.mxu0 %v7150
        %v7499 = vpop.f32.mrf.mxu0
        %v7500 = vadd.f32 %v7481, %v7499
        %v7501 = vpop.f32.mrf.mxu0
        %v7502 = vadd.f32 %v7483, %v7501
        %7503 = vdwg.mxu0
        %7504 = vmatpush.bf16.msra.mxu0 %v7400
        %7505 = vmatpush.bf16.msra.mxu0 %v7399
        %7506 = vmatpush.bf16.msra.mxu0 %v7398
        %7507 = vmatpush.bf16.msra.mxu0 %v7397
        %7508 = vmatpush.bf16.msra.mxu0 %v7396
        %7509 = vmatpush.bf16.msra.mxu0 %v7395
        %7510 = vmatpush.bf16.msra.mxu0 %v7394
        %7511 = vmatpush.bf16.msra.mxu0 %v7393
        %7512 = vmatmul.bf16.gmra.mxu0 %v7146
        %v7513 = vpop.f32.mrf.mxu0
        %v7514 = vadd.f32 %v7495, %v7513
        %v7515 = vpop.f32.mrf.mxu0
        %v7516 = vadd.f32 %v7497, %v7515
        %7517 = vmatmul.bf16.gmra.mxu0 %v7151
        %v7518 = vpop.f32.mrf.mxu0
        %v7519 = vadd.f32 %v7500, %v7518
        %v7520 = vpop.f32.mrf.mxu0
        %v7521 = vadd.f32 %v7502, %v7520
        %7522 = vdwg.mxu0
        %7523 = vmatpush.bf16.msra.mxu0 0
        %7524 = vmatpush.bf16.msra.mxu0 0
        %7525 = vmatpush.bf16.msra.mxu0 0
        %7526 = vmatpush.bf16.msra.mxu0 0
        %7527 = vmatpush.bf16.msra.mxu0 %v7404
        %7528 = vmatpush.bf16.msra.mxu0 %v7403
        %7529 = vmatpush.bf16.msra.mxu0 %v7402
        %7530 = vmatpush.bf16.msra.mxu0 %v7401
        %7531 = vmatmul.bf16.gmra.mxu0 %v7442
        %v7532 = vpop.f32.mrf.mxu0
        %v7533 = vadd.f32 %v7514, %v7532
        %v7534 = vpop.f32.mrf.mxu0
        %v7535 = vadd.f32 %v7516, %v7534
        %7536 = vmatmul.bf16.gmra.mxu0 %v7445
        %v7537 = vpop.f32.mrf.mxu0
        %v7538 = vadd.f32 %v7519, %v7537
        %v7539 = vpop.f32.mrf.mxu0
        %v7540 = vadd.f32 %v7521, %v7539
        %7541 = vdwg.mxu0
        %v7542 = vld [vmem:[%s8] sm:$0x1]
        %v7544 = vperm.slane %v7542, 0
        %v7546 = vmul.f32 %v7533, %v7544
        %v7547 = vmul.f32 %v7535, %v7544
        %v7548 = vmul.f32 %v7538, %v7544
        %v7549 = vmul.f32 %v7540, %v7544
        %v7550 = vld [vmem:[%s9] sm:$0x1]
        %v7552 = vperm.slane %v7550, 0
        %v7554 = vadd.f32 %v7546, %v7552
        %v7555 = vadd.f32 %v7547, %v7552
        %v7556 = vadd.f32 %v7548, %v7552
        %v7557 = vadd.f32 %v7549, %v7552
        %v7558 = vmax.f32 %v7554, 0.0
        %v7559 = vmax.f32 %v7555, 0.0
        %v7560 = vmax.f32 %v7556, 0.0
        %v7561 = vmax.f32 %v7557, 0.0
        %v7562 = vpack.c.bf16 %v7558, %v7558
        %v7563 = vld [vmem:[%s10] sm:$0xf]
        %v7564 = vld [vmem:[%s10 + $0x4] sm:$0xf]
        %v7565 = vld [vmem:[%s10 + $0x8] sm:$0xf]
        %v7566 = vld [vmem:[%s10 + $0xc] sm:$0xf]
        %v7567 = vld [vmem:[%s10 + $0x10] sm:$0xf]
        %v7568 = vld [vmem:[%s10 + $0x14] sm:$0xf]
        %v7569 = vld [vmem:[%s10 + $0x18] sm:$0xf]
        %v7570 = vld [vmem:[%s10 + $0x1c] sm:$0xf]
        %s7571 = scalar_lea.vmem %s10, 32
        %v7572 = vld [vmem:[%s7571] sm:$0xf]
        %v7573 = vld [vmem:[%s7571 + $0x4] sm:$0xf]
        %v7574 = vld [vmem:[%s7571 + $0x8] sm:$0xf]
        %v7575 = vld [vmem:[%s7571 + $0xc] sm:$0xf]
        %v7576 = vld [vmem:[%s7571 + $0x10] sm:$0xf]
        %v7577 = vld [vmem:[%s7571 + $0x14] sm:$0xf]
        %v7578 = vld [vmem:[%s7571 + $0x18] sm:$0xf]
        %v7579 = vld [vmem:[%s7571 + $0x1c] sm:$0xf]
        %s7580 = scalar_lea.vmem %s10, 64
        %v7581 = vld [vmem:[%s7580] sm:$0xf]
        %v7582 = vld [vmem:[%s7580 + $0x4] sm:$0xf]
        %v7583 = vld [vmem:[%s7580 + $0x8] sm:$0xf]
        %v7584 = vld [vmem:[%s7580 + $0xc] sm:$0xf]
        %v7585 = vld [vmem:[%s7580 + $0x10] sm:$0xf]
        %v7586 = vld [vmem:[%s7580 + $0x14] sm:$0xf]
        %v7587 = vld [vmem:[%s7580 + $0x18] sm:$0xf]
        %v7588 = vld [vmem:[%s7580 + $0x1c] sm:$0xf]
        %s7589 = scalar_lea.vmem %s10, 96
        %v7590 = vld [vmem:[%s7589] sm:$0xf]
        %v7591 = vld [vmem:[%s7589 + $0x4] sm:$0xf]
        %v7592 = vld [vmem:[%s7589 + $0x8] sm:$0xf]
        %v7593 = vld [vmem:[%s7589 + $0xc] sm:$0xf]
        %v7594 = vld [vmem:[%s7589 + $0x10] sm:$0xf]
        %v7595 = vld [vmem:[%s7589 + $0x14] sm:$0xf]
        %v7596 = vld [vmem:[%s7589 + $0x18] sm:$0xf]
        %v7597 = vld [vmem:[%s7589 + $0x1c] sm:$0xf]
        %s7598 = scalar_lea.vmem %s10, 128
        %v7599 = vld [vmem:[%s7598] sm:$0xf]
        %v7600 = vld [vmem:[%s7598 + $0x4] sm:$0xf]
        %v7601 = vld [vmem:[%s7598 + $0x8] sm:$0xf]
        %v7602 = vld [vmem:[%s7598 + $0xc] sm:$0xf]
        %v7603 = vld [vmem:[%s7598 + $0x10] sm:$0xf]
        %v7604 = vld [vmem:[%s7598 + $0x14] sm:$0xf]
        %v7605 = vld [vmem:[%s7598 + $0x18] sm:$0xf]
        %v7606 = vld [vmem:[%s7598 + $0x1c] sm:$0xf]
        %s7607 = scalar_lea.vmem %s10, 160
        %v7608 = vld [vmem:[%s7607] sm:$0xf]
        %v7609 = vld [vmem:[%s7607 + $0x4] sm:$0xf]
        %v7610 = vld [vmem:[%s7607 + $0x8] sm:$0xf]
        %v7611 = vld [vmem:[%s7607 + $0xc] sm:$0xf]
        %v7612 = vld [vmem:[%s7607 + $0x10] sm:$0xf]
        %v7613 = vld [vmem:[%s7607 + $0x14] sm:$0xf]
        %v7614 = vld [vmem:[%s7607 + $0x18] sm:$0xf]
        %v7615 = vld [vmem:[%s7607 + $0x1c] sm:$0xf]
        %v7617 = vshrl.u32 %v7562, 16
        %v7619 = vrot.slane %v7617, 2
        %v7628 = vunpack.c.l.b16 %v7608
        %v7629 = vunpack.c.l.b16 %v7609
        %v7630 = vunpack.c.l.b16 %v7610
        %v7631 = vunpack.c.l.b16 %v7611
        %v7632 = vunpack.c.l.b16 %v7612
        %v7633 = vunpack.c.l.b16 %v7613
        %v7634 = vunpack.c.l.b16 %v7614
        %v7635 = vunpack.c.l.b16 %v7615
        %v7636 = vpack.c.b16 %v7629, %v7628
        %v7637 = vpack.c.b16 %v7631, %v7630
        %v7638 = vpack.c.b16 %v7633, %v7632
        %v7639 = vpack.c.b16 %v7635, %v7634
        %v7645 = vsel %vm1237, %v7619, 0
        %7647 = vmatpush.bf16.msra.mxu0 0
        %7648 = vmatpush.bf16.msra.mxu0 0
        %7649 = vmatpush.bf16.msra.mxu0 0
        %7650 = vmatpush.bf16.msra.mxu0 0
        %7651 = vmatpush.bf16.msra.mxu0 %v7639
        %7652 = vmatpush.bf16.msra.mxu0 %v7638
        %7653 = vmatpush.bf16.msra.mxu0 %v7637
        %7654 = vmatpush.bf16.msra.mxu0 %v7636
        %7655 = vmatmul.bf16.gmra.mxu0 %v7645
        %v7656 = vpop.f32.mrf.mxu0
        %v7657 = vadd.f32 0.0, %v7656
        %v7658 = vpop.f32.mrf.mxu0
        %7659 = vdwg.mxu0
        %v7668 = vunpack.c.l.b16 %v7563
        %v7669 = vunpack.c.l.b16 %v7564
        %v7670 = vunpack.c.l.b16 %v7565
        %v7671 = vunpack.c.l.b16 %v7566
        %v7672 = vunpack.c.l.b16 %v7567
        %v7673 = vunpack.c.l.b16 %v7568
        %v7674 = vunpack.c.l.b16 %v7569
        %v7675 = vunpack.c.l.b16 %v7570
        %v7676 = vpack.c.b16 %v7669, %v7668
        %v7677 = vpack.c.b16 %v7671, %v7670
        %v7678 = vpack.c.b16 %v7673, %v7672
        %v7679 = vpack.c.b16 %v7675, %v7674
        %v7684 = vsel %vm1237, %v7562, 0
        %7686 = vmatpush.bf16.msra.mxu0 0
        %7687 = vmatpush.bf16.msra.mxu0 0
        %7688 = vmatpush.bf16.msra.mxu0 0
        %7689 = vmatpush.bf16.msra.mxu0 0
        %7690 = vmatpush.bf16.msra.mxu0 %v7679
        %7691 = vmatpush.bf16.msra.mxu0 %v7678
        %7692 = vmatpush.bf16.msra.mxu0 %v7677
        %7693 = vmatpush.bf16.msra.mxu0 %v7676
        %7694 = vmatmul.bf16.gmra.mxu0 %v7684
        %v7695 = vpop.f32.mrf.mxu0
        %v7696 = vadd.f32 %v7657, %v7695
        %v7697 = vpop.f32.mrf.mxu0
        %7698 = vdwg.mxu0
        %s7699 = scalar_lea.vmem %s10, 192
        %v7700 = vld [vmem:[%s7699] sm:$0xf]
        %v7701 = vld [vmem:[%s7699 + $0x4] sm:$0xf]
        %v7702 = vld [vmem:[%s7699 + $0x8] sm:$0xf]
        %v7703 = vld [vmem:[%s7699 + $0xc] sm:$0xf]
        %v7704 = vld [vmem:[%s7699 + $0x10] sm:$0xf]
        %v7705 = vld [vmem:[%s7699 + $0x14] sm:$0xf]
        %v7706 = vld [vmem:[%s7699 + $0x18] sm:$0xf]
        %v7707 = vld [vmem:[%s7699 + $0x1c] sm:$0xf]
        %v7709 = vrot.slane %v7562, 3
        %v7718 = vunpack.c.l.b16 %v7700
        %v7719 = vunpack.c.l.b16 %v7701
        %v7720 = vunpack.c.l.b16 %v7702
        %v7721 = vunpack.c.l.b16 %v7703
        %v7722 = vunpack.c.l.b16 %v7704
        %v7723 = vunpack.c.l.b16 %v7705
        %v7724 = vunpack.c.l.b16 %v7706
        %v7725 = vunpack.c.l.b16 %v7707
        %v7726 = vpack.c.b16 %v7719, %v7718
        %v7727 = vpack.c.b16 %v7721, %v7720
        %v7728 = vpack.c.b16 %v7723, %v7722
        %v7729 = vpack.c.b16 %v7725, %v7724
        %v7735 = vsel %vm1237, %v7709, 0
        %7737 = vmatpush.bf16.msra.mxu0 0
        %7738 = vmatpush.bf16.msra.mxu0 0
        %7739 = vmatpush.bf16.msra.mxu0 0
        %7740 = vmatpush.bf16.msra.mxu0 0
        %7741 = vmatpush.bf16.msra.mxu0 %v7729
        %7742 = vmatpush.bf16.msra.mxu0 %v7728
        %7743 = vmatpush.bf16.msra.mxu0 %v7727
        %7744 = vmatpush.bf16.msra.mxu0 %v7726
        %7745 = vmatmul.bf16.gmra.mxu0 %v7735
        %v7746 = vpop.f32.mrf.mxu0
        %v7747 = vadd.f32 0.0, %v7746
        %v7748 = vpop.f32.mrf.mxu0
        %7749 = vdwg.mxu0
        %v7758 = vunpack.c.l.b16 %v7572
        %v7759 = vunpack.c.l.b16 %v7573
        %v7760 = vunpack.c.l.b16 %v7574
        %v7761 = vunpack.c.l.b16 %v7575
        %v7762 = vunpack.c.l.b16 %v7576
        %v7763 = vunpack.c.l.b16 %v7577
        %v7764 = vunpack.c.l.b16 %v7578
        %v7765 = vunpack.c.l.b16 %v7579
        %v7766 = vpack.c.b16 %v7759, %v7758
        %v7767 = vpack.c.b16 %v7761, %v7760
        %v7768 = vpack.c.b16 %v7763, %v7762
        %v7769 = vpack.c.b16 %v7765, %v7764
        %v7775 = vsel %vm1237, %v7617, 0
        %7777 = vmatpush.bf16.msra.mxu0 0
        %7778 = vmatpush.bf16.msra.mxu0 0
        %7779 = vmatpush.bf16.msra.mxu0 0
        %7780 = vmatpush.bf16.msra.mxu0 0
        %7781 = vmatpush.bf16.msra.mxu0 %v7769
        %7782 = vmatpush.bf16.msra.mxu0 %v7768
        %7783 = vmatpush.bf16.msra.mxu0 %v7767
        %7784 = vmatpush.bf16.msra.mxu0 %v7766
        %7785 = vmatmul.bf16.gmra.mxu0 %v7775
        %v7786 = vpop.f32.mrf.mxu0
        %v7787 = vadd.f32 %v7747, %v7786
        %v7788 = vpop.f32.mrf.mxu0
        %7789 = vdwg.mxu0
        %s7790 = scalar_lea.vmem %s10, 224
        %v7791 = vld [vmem:[%s7790] sm:$0xf]
        %v7792 = vld [vmem:[%s7790 + $0x4] sm:$0xf]
        %v7793 = vld [vmem:[%s7790 + $0x8] sm:$0xf]
        %v7794 = vld [vmem:[%s7790 + $0xc] sm:$0xf]
        %v7795 = vld [vmem:[%s7790 + $0x10] sm:$0xf]
        %v7796 = vld [vmem:[%s7790 + $0x14] sm:$0xf]
        %v7797 = vld [vmem:[%s7790 + $0x18] sm:$0xf]
        %v7798 = vld [vmem:[%s7790 + $0x1c] sm:$0xf]
        %v7799 = vrot.slane %v7617, 3
        %v7808 = vunpack.c.l.b16 %v7791
        %v7809 = vunpack.c.l.b16 %v7792
        %v7810 = vunpack.c.l.b16 %v7793
        %v7811 = vunpack.c.l.b16 %v7794
        %v7812 = vunpack.c.l.b16 %v7795
        %v7813 = vunpack.c.l.b16 %v7796
        %v7814 = vunpack.c.l.b16 %v7797
        %v7815 = vunpack.c.l.b16 %v7798
        %v7816 = vpack.c.b16 %v7809, %v7808
        %v7817 = vpack.c.b16 %v7811, %v7810
        %v7818 = vpack.c.b16 %v7813, %v7812
        %v7819 = vpack.c.b16 %v7815, %v7814
        %v7825 = vsel %vm1237, %v7799, 0
        %7827 = vmatpush.bf16.msra.mxu0 0
        %7828 = vmatpush.bf16.msra.mxu0 0
        %7829 = vmatpush.bf16.msra.mxu0 0
        %7830 = vmatpush.bf16.msra.mxu0 0
        %7831 = vmatpush.bf16.msra.mxu0 %v7819
        %7832 = vmatpush.bf16.msra.mxu0 %v7818
        %7833 = vmatpush.bf16.msra.mxu0 %v7817
        %7834 = vmatpush.bf16.msra.mxu0 %v7816
        %7835 = vmatmul.bf16.gmra.mxu0 %v7825
        %v7836 = vpop.f32.mrf.mxu0
        %v7837 = vadd.f32 0.0, %v7836
        %v7838 = vpop.f32.mrf.mxu0
        %7839 = vdwg.mxu0
        %v7840 = vrot.slane %v7562, 1
        %v7849 = vunpack.c.l.b16 %v7581
        %v7850 = vunpack.c.l.b16 %v7582
        %v7851 = vunpack.c.l.b16 %v7583
        %v7852 = vunpack.c.l.b16 %v7584
        %v7853 = vunpack.c.l.b16 %v7585
        %v7854 = vunpack.c.l.b16 %v7586
        %v7855 = vunpack.c.l.b16 %v7587
        %v7856 = vunpack.c.l.b16 %v7588
        %v7857 = vpack.c.b16 %v7850, %v7849
        %v7858 = vpack.c.b16 %v7852, %v7851
        %v7859 = vpack.c.b16 %v7854, %v7853
        %v7860 = vpack.c.b16 %v7856, %v7855
        %v7866 = vsel %vm1237, %v7840, 0
        %7868 = vmatpush.bf16.msra.mxu0 0
        %7869 = vmatpush.bf16.msra.mxu0 0
        %7870 = vmatpush.bf16.msra.mxu0 0
        %7871 = vmatpush.bf16.msra.mxu0 0
        %7872 = vmatpush.bf16.msra.mxu0 %v7860
        %7873 = vmatpush.bf16.msra.mxu0 %v7859
        %7874 = vmatpush.bf16.msra.mxu0 %v7858
        %7875 = vmatpush.bf16.msra.mxu0 %v7857
        %7876 = vmatmul.bf16.gmra.mxu0 %v7866
        %v7877 = vpop.f32.mrf.mxu0
        %v7878 = vadd.f32 %v7837, %v7877
        %v7879 = vpop.f32.mrf.mxu0
        %7880 = vdwg.mxu0
        %v7881 = vpack.c.bf16 %v7559, %v7559
        %s7882 = scalar_lea.vmem %s10, 256
        %v7883 = vld [vmem:[%s7882] sm:$0xf]
        %v7884 = vld [vmem:[%s7882 + $0x4] sm:$0xf]
        %v7885 = vld [vmem:[%s7882 + $0x8] sm:$0xf]
        %v7886 = vld [vmem:[%s7882 + $0xc] sm:$0xf]
        %v7887 = vld [vmem:[%s7882 + $0x10] sm:$0xf]
        %v7888 = vld [vmem:[%s7882 + $0x14] sm:$0xf]
        %v7889 = vld [vmem:[%s7882 + $0x18] sm:$0xf]
        %v7890 = vld [vmem:[%s7882 + $0x1c] sm:$0xf]
        %v7899 = vunpack.c.l.b16 %v7883
        %v7900 = vunpack.c.l.b16 %v7884
        %v7901 = vunpack.c.l.b16 %v7885
        %v7902 = vunpack.c.l.b16 %v7886
        %v7903 = vunpack.c.l.b16 %v7887
        %v7904 = vunpack.c.l.b16 %v7888
        %v7905 = vunpack.c.l.b16 %v7889
        %v7906 = vunpack.c.l.b16 %v7890
        %v7907 = vpack.c.b16 %v7900, %v7899
        %v7908 = vpack.c.b16 %v7902, %v7901
        %v7909 = vpack.c.b16 %v7904, %v7903
        %v7910 = vpack.c.b16 %v7906, %v7905
        %v7916 = vsel %vm1237, %v7881, 0
        %7918 = vmatpush.bf16.msra.mxu0 0
        %7919 = vmatpush.bf16.msra.mxu0 0
        %7920 = vmatpush.bf16.msra.mxu0 0
        %7921 = vmatpush.bf16.msra.mxu0 0
        %7922 = vmatpush.bf16.msra.mxu0 %v7910
        %7923 = vmatpush.bf16.msra.mxu0 %v7909
        %7924 = vmatpush.bf16.msra.mxu0 %v7908
        %7925 = vmatpush.bf16.msra.mxu0 %v7907
        %7926 = vmatmul.bf16.gmra.mxu0 %v7916
        %v7927 = vpop.f32.mrf.mxu0
        %v7928 = vadd.f32 0.0, %v7927
        %v7929 = vpop.f32.mrf.mxu0
        %7930 = vdwg.mxu0
        %v7931 = vrot.slane %v7617, 1
        %v7940 = vunpack.c.l.b16 %v7590
        %v7941 = vunpack.c.l.b16 %v7591
        %v7942 = vunpack.c.l.b16 %v7592
        %v7943 = vunpack.c.l.b16 %v7593
        %v7944 = vunpack.c.l.b16 %v7594
        %v7945 = vunpack.c.l.b16 %v7595
        %v7946 = vunpack.c.l.b16 %v7596
        %v7947 = vunpack.c.l.b16 %v7597
        %v7948 = vpack.c.b16 %v7941, %v7940
        %v7949 = vpack.c.b16 %v7943, %v7942
        %v7950 = vpack.c.b16 %v7945, %v7944
        %v7951 = vpack.c.b16 %v7947, %v7946
        %v7957 = vsel %vm1237, %v7931, 0
        %7959 = vmatpush.bf16.msra.mxu0 0
        %7960 = vmatpush.bf16.msra.mxu0 0
        %7961 = vmatpush.bf16.msra.mxu0 0
        %7962 = vmatpush.bf16.msra.mxu0 0
        %7963 = vmatpush.bf16.msra.mxu0 %v7951
        %7964 = vmatpush.bf16.msra.mxu0 %v7950
        %7965 = vmatpush.bf16.msra.mxu0 %v7949
        %7966 = vmatpush.bf16.msra.mxu0 %v7948
        %7967 = vmatmul.bf16.gmra.mxu0 %v7957
        %v7968 = vpop.f32.mrf.mxu0
        %v7969 = vadd.f32 %v7928, %v7968
        %v7970 = vpop.f32.mrf.mxu0
        %7971 = vdwg.mxu0
        %s7972 = scalar_lea.vmem %s10, 288
        %v7973 = vld [vmem:[%s7972] sm:$0xf]
        %v7974 = vld [vmem:[%s7972 + $0x4] sm:$0xf]
        %v7975 = vld [vmem:[%s7972 + $0x8] sm:$0xf]
        %v7976 = vld [vmem:[%s7972 + $0xc] sm:$0xf]
        %v7977 = vld [vmem:[%s7972 + $0x10] sm:$0xf]
        %v7978 = vld [vmem:[%s7972 + $0x14] sm:$0xf]
        %v7979 = vld [vmem:[%s7972 + $0x18] sm:$0xf]
        %v7980 = vld [vmem:[%s7972 + $0x1c] sm:$0xf]
        %v7981 = vshrl.u32 %v7881, 16
        %v7991 = vunpack.c.l.b16 %v7973
        %v7992 = vunpack.c.l.b16 %v7974
        %v7993 = vunpack.c.l.b16 %v7975
        %v7994 = vunpack.c.l.b16 %v7976
        %v7995 = vunpack.c.l.b16 %v7977
        %v7996 = vunpack.c.l.b16 %v7978
        %v7997 = vunpack.c.l.b16 %v7979
        %v7998 = vunpack.c.l.b16 %v7980
        %v7999 = vpack.c.b16 %v7992, %v7991
        %v8000 = vpack.c.b16 %v7994, %v7993
        %v8001 = vpack.c.b16 %v7996, %v7995
        %v8002 = vpack.c.b16 %v7998, %v7997
        %v8008 = vsel %vm1237, %v7981, 0
        %8010 = vmatpush.bf16.msra.mxu0 0
        %8011 = vmatpush.bf16.msra.mxu0 0
        %8012 = vmatpush.bf16.msra.mxu0 0
        %8013 = vmatpush.bf16.msra.mxu0 0
        %8014 = vmatpush.bf16.msra.mxu0 %v8002
        %8015 = vmatpush.bf16.msra.mxu0 %v8001
        %8016 = vmatpush.bf16.msra.mxu0 %v8000
        %8017 = vmatpush.bf16.msra.mxu0 %v7999
        %8018 = vmatmul.bf16.gmra.mxu0 %v8008
        %v8019 = vpop.f32.mrf.mxu0
        %v8020 = vadd.f32 0.0, %v8019
        %v8021 = vpop.f32.mrf.mxu0
        %8022 = vdwg.mxu0
        %v8023 = vrot.slane %v7562, 2
        %v8032 = vunpack.c.l.b16 %v7599
        %v8033 = vunpack.c.l.b16 %v7600
        %v8034 = vunpack.c.l.b16 %v7601
        %v8035 = vunpack.c.l.b16 %v7602
        %v8036 = vunpack.c.l.b16 %v7603
        %v8037 = vunpack.c.l.b16 %v7604
        %v8038 = vunpack.c.l.b16 %v7605
        %v8039 = vunpack.c.l.b16 %v7606
        %v8040 = vpack.c.b16 %v8033, %v8032
        %v8041 = vpack.c.b16 %v8035, %v8034
        %v8042 = vpack.c.b16 %v8037, %v8036
        %v8043 = vpack.c.b16 %v8039, %v8038
        %v8049 = vsel %vm1237, %v8023, 0
        %8051 = vmatpush.bf16.msra.mxu0 0
        %8052 = vmatpush.bf16.msra.mxu0 0
        %8053 = vmatpush.bf16.msra.mxu0 0
        %8054 = vmatpush.bf16.msra.mxu0 0
        %8055 = vmatpush.bf16.msra.mxu0 %v8043
        %8056 = vmatpush.bf16.msra.mxu0 %v8042
        %8057 = vmatpush.bf16.msra.mxu0 %v8041
        %8058 = vmatpush.bf16.msra.mxu0 %v8040
        %8059 = vmatmul.bf16.gmra.mxu0 %v8049
        %v8060 = vpop.f32.mrf.mxu0
        %v8061 = vadd.f32 %v8020, %v8060
        %v8062 = vpop.f32.mrf.mxu0
        %8063 = vdwg.mxu0
        %s8064 = scalar_lea.vmem %s10, 320
        %v8065 = vld [vmem:[%s8064] sm:$0xf]
        %v8066 = vld [vmem:[%s8064 + $0x4] sm:$0xf]
        %v8067 = vld [vmem:[%s8064 + $0x8] sm:$0xf]
        %v8068 = vld [vmem:[%s8064 + $0xc] sm:$0xf]
        %v8069 = vld [vmem:[%s8064 + $0x10] sm:$0xf]
        %v8070 = vld [vmem:[%s8064 + $0x14] sm:$0xf]
        %v8071 = vld [vmem:[%s8064 + $0x18] sm:$0xf]
        %v8072 = vld [vmem:[%s8064 + $0x1c] sm:$0xf]
        %v8074 = vrot.slane %v7881, 1
        %v8083 = vunpack.c.l.b16 %v8065
        %v8084 = vunpack.c.l.b16 %v8066
        %v8085 = vunpack.c.l.b16 %v8067
        %v8086 = vunpack.c.l.b16 %v8068
        %v8087 = vunpack.c.l.b16 %v8069
        %v8088 = vunpack.c.l.b16 %v8070
        %v8089 = vunpack.c.l.b16 %v8071
        %v8090 = vunpack.c.l.b16 %v8072
        %v8091 = vpack.c.b16 %v8084, %v8083
        %v8092 = vpack.c.b16 %v8086, %v8085
        %v8093 = vpack.c.b16 %v8088, %v8087
        %v8094 = vpack.c.b16 %v8090, %v8089
        %v8100 = vsel %vm1237, %v8074, 0
        %8102 = vmatpush.bf16.msra.mxu0 0
        %8103 = vmatpush.bf16.msra.mxu0 0
        %8104 = vmatpush.bf16.msra.mxu0 0
        %8105 = vmatpush.bf16.msra.mxu0 0
        %8106 = vmatpush.bf16.msra.mxu0 %v8094
        %8107 = vmatpush.bf16.msra.mxu0 %v8093
        %8108 = vmatpush.bf16.msra.mxu0 %v8092
        %8109 = vmatpush.bf16.msra.mxu0 %v8091
        %8110 = vmatmul.bf16.gmra.mxu0 %v8100
        %v8111 = vpop.f32.mrf.mxu0
        %v8112 = vadd.f32 0.0, %v8111
        %v8113 = vpop.f32.mrf.mxu0
        %8114 = vdwg.mxu0
        %v8115 = vadd.f32 %v7696, %v8112
        %s8116 = scalar_lea.vmem %s10, 352
        %v8117 = vld [vmem:[%s8116] sm:$0xf]
        %v8118 = vld [vmem:[%s8116 + $0x4] sm:$0xf]
        %v8119 = vld [vmem:[%s8116 + $0x8] sm:$0xf]
        %v8120 = vld [vmem:[%s8116 + $0xc] sm:$0xf]
        %v8121 = vld [vmem:[%s8116 + $0x10] sm:$0xf]
        %v8122 = vld [vmem:[%s8116 + $0x14] sm:$0xf]
        %v8123 = vld [vmem:[%s8116 + $0x18] sm:$0xf]
        %v8124 = vld [vmem:[%s8116 + $0x1c] sm:$0xf]
        %v8125 = vrot.slane %v7981, 1
        %v8134 = vunpack.c.l.b16 %v8117
        %v8135 = vunpack.c.l.b16 %v8118
        %v8136 = vunpack.c.l.b16 %v8119
        %v8137 = vunpack.c.l.b16 %v8120
        %v8138 = vunpack.c.l.b16 %v8121
        %v8139 = vunpack.c.l.b16 %v8122
        %v8140 = vunpack.c.l.b16 %v8123
        %v8141 = vunpack.c.l.b16 %v8124
        %v8142 = vpack.c.b16 %v8135, %v8134
        %v8143 = vpack.c.b16 %v8137, %v8136
        %v8144 = vpack.c.b16 %v8139, %v8138
        %v8145 = vpack.c.b16 %v8141, %v8140
        %v8151 = vsel %vm1237, %v8125, 0
        %8153 = vmatpush.bf16.msra.mxu0 0
        %8154 = vmatpush.bf16.msra.mxu0 0
        %8155 = vmatpush.bf16.msra.mxu0 0
        %8156 = vmatpush.bf16.msra.mxu0 0
        %8157 = vmatpush.bf16.msra.mxu0 %v8145
        %8158 = vmatpush.bf16.msra.mxu0 %v8144
        %8159 = vmatpush.bf16.msra.mxu0 %v8143
        %8160 = vmatpush.bf16.msra.mxu0 %v8142
        %8161 = vmatmul.bf16.gmra.mxu0 %v8151
        %v8162 = vpop.f32.mrf.mxu0
        %v8163 = vadd.f32 0.0, %v8162
        %v8164 = vpop.f32.mrf.mxu0
        %8165 = vdwg.mxu0
        %v8166 = vadd.f32 %v7787, %v8163
        %s8167 = scalar_lea.vmem %s10, 384
        %v8168 = vld [vmem:[%s8167] sm:$0xf]
        %v8169 = vld [vmem:[%s8167 + $0x4] sm:$0xf]
        %v8170 = vld [vmem:[%s8167 + $0x8] sm:$0xf]
        %v8171 = vld [vmem:[%s8167 + $0xc] sm:$0xf]
        %v8172 = vld [vmem:[%s8167 + $0x10] sm:$0xf]
        %v8173 = vld [vmem:[%s8167 + $0x14] sm:$0xf]
        %v8174 = vld [vmem:[%s8167 + $0x18] sm:$0xf]
        %v8175 = vld [vmem:[%s8167 + $0x1c] sm:$0xf]
        %v8176 = vrot.slane %v7881, 2
        %v8185 = vunpack.c.l.b16 %v8168
        %v8186 = vunpack.c.l.b16 %v8169
        %v8187 = vunpack.c.l.b16 %v8170
        %v8188 = vunpack.c.l.b16 %v8171
        %v8189 = vunpack.c.l.b16 %v8172
        %v8190 = vunpack.c.l.b16 %v8173
        %v8191 = vunpack.c.l.b16 %v8174
        %v8192 = vunpack.c.l.b16 %v8175
        %v8193 = vpack.c.b16 %v8186, %v8185
        %v8194 = vpack.c.b16 %v8188, %v8187
        %v8195 = vpack.c.b16 %v8190, %v8189
        %v8196 = vpack.c.b16 %v8192, %v8191
        %v8202 = vsel %vm1237, %v8176, 0
        %8204 = vmatpush.bf16.msra.mxu0 0
        %8205 = vmatpush.bf16.msra.mxu0 0
        %8206 = vmatpush.bf16.msra.mxu0 0
        %8207 = vmatpush.bf16.msra.mxu0 0
        %8208 = vmatpush.bf16.msra.mxu0 %v8196
        %8209 = vmatpush.bf16.msra.mxu0 %v8195
        %8210 = vmatpush.bf16.msra.mxu0 %v8194
        %8211 = vmatpush.bf16.msra.mxu0 %v8193
        %8212 = vmatmul.bf16.gmra.mxu0 %v8202
        %v8213 = vpop.f32.mrf.mxu0
        %v8214 = vadd.f32 0.0, %v8213
        %v8215 = vpop.f32.mrf.mxu0
        %8216 = vdwg.mxu0
        %v8217 = vadd.f32 %v7878, %v8214
        %s8218 = scalar_lea.vmem %s10, 416
        %v8219 = vld [vmem:[%s8218] sm:$0xf]
        %v8220 = vld [vmem:[%s8218 + $0x4] sm:$0xf]
        %v8221 = vld [vmem:[%s8218 + $0x8] sm:$0xf]
        %v8222 = vld [vmem:[%s8218 + $0xc] sm:$0xf]
        %v8223 = vld [vmem:[%s8218 + $0x10] sm:$0xf]
        %v8224 = vld [vmem:[%s8218 + $0x14] sm:$0xf]
        %v8225 = vld [vmem:[%s8218 + $0x18] sm:$0xf]
        %v8226 = vld [vmem:[%s8218 + $0x1c] sm:$0xf]
        %v8227 = vrot.slane %v7981, 2
        %v8236 = vunpack.c.l.b16 %v8219
        %v8237 = vunpack.c.l.b16 %v8220
        %v8238 = vunpack.c.l.b16 %v8221
        %v8239 = vunpack.c.l.b16 %v8222
        %v8240 = vunpack.c.l.b16 %v8223
        %v8241 = vunpack.c.l.b16 %v8224
        %v8242 = vunpack.c.l.b16 %v8225
        %v8243 = vunpack.c.l.b16 %v8226
        %v8244 = vpack.c.b16 %v8237, %v8236
        %v8245 = vpack.c.b16 %v8239, %v8238
        %v8246 = vpack.c.b16 %v8241, %v8240
        %v8247 = vpack.c.b16 %v8243, %v8242
        %v8253 = vsel %vm1237, %v8227, 0
        %8255 = vmatpush.bf16.msra.mxu0 0
        %8256 = vmatpush.bf16.msra.mxu0 0
        %8257 = vmatpush.bf16.msra.mxu0 0
        %8258 = vmatpush.bf16.msra.mxu0 0
        %8259 = vmatpush.bf16.msra.mxu0 %v8247
        %8260 = vmatpush.bf16.msra.mxu0 %v8246
        %8261 = vmatpush.bf16.msra.mxu0 %v8245
        %8262 = vmatpush.bf16.msra.mxu0 %v8244
        %8263 = vmatmul.bf16.gmra.mxu0 %v8253
        %v8264 = vpop.f32.mrf.mxu0
        %v8265 = vadd.f32 0.0, %v8264
        %v8266 = vpop.f32.mrf.mxu0
        %8267 = vdwg.mxu0
        %v8268 = vadd.f32 %v7969, %v8265
        %s8269 = scalar_lea.vmem %s10, 448
        %v8270 = vld [vmem:[%s8269] sm:$0xf]
        %v8271 = vld [vmem:[%s8269 + $0x4] sm:$0xf]
        %v8272 = vld [vmem:[%s8269 + $0x8] sm:$0xf]
        %v8273 = vld [vmem:[%s8269 + $0xc] sm:$0xf]
        %v8274 = vld [vmem:[%s8269 + $0x10] sm:$0xf]
        %v8275 = vld [vmem:[%s8269 + $0x14] sm:$0xf]
        %v8276 = vld [vmem:[%s8269 + $0x18] sm:$0xf]
        %v8277 = vld [vmem:[%s8269 + $0x1c] sm:$0xf]
        %v8278 = vrot.slane %v7881, 3
        %v8287 = vunpack.c.l.b16 %v8270
        %v8288 = vunpack.c.l.b16 %v8271
        %v8289 = vunpack.c.l.b16 %v8272
        %v8290 = vunpack.c.l.b16 %v8273
        %v8291 = vunpack.c.l.b16 %v8274
        %v8292 = vunpack.c.l.b16 %v8275
        %v8293 = vunpack.c.l.b16 %v8276
        %v8294 = vunpack.c.l.b16 %v8277
        %v8295 = vpack.c.b16 %v8288, %v8287
        %v8296 = vpack.c.b16 %v8290, %v8289
        %v8297 = vpack.c.b16 %v8292, %v8291
        %v8298 = vpack.c.b16 %v8294, %v8293
        %v8304 = vsel %vm1237, %v8278, 0
        %8306 = vmatpush.bf16.msra.mxu0 0
        %8307 = vmatpush.bf16.msra.mxu0 0
        %8308 = vmatpush.bf16.msra.mxu0 0
        %8309 = vmatpush.bf16.msra.mxu0 0
        %8310 = vmatpush.bf16.msra.mxu0 %v8298
        %8311 = vmatpush.bf16.msra.mxu0 %v8297
        %8312 = vmatpush.bf16.msra.mxu0 %v8296
        %8313 = vmatpush.bf16.msra.mxu0 %v8295
        %8314 = vmatmul.bf16.gmra.mxu0 %v8304
        %v8315 = vpop.f32.mrf.mxu0
        %v8316 = vadd.f32 0.0, %v8315
        %v8317 = vpop.f32.mrf.mxu0
        %8318 = vdwg.mxu0
        %v8319 = vadd.f32 %v8061, %v8316
        %s8320 = scalar_lea.vmem %s10, 480
        %v8321 = vld [vmem:[%s8320] sm:$0xf]
        %v8322 = vld [vmem:[%s8320 + $0x4] sm:$0xf]
        %v8323 = vld [vmem:[%s8320 + $0x8] sm:$0xf]
        %v8324 = vld [vmem:[%s8320 + $0xc] sm:$0xf]
        %v8325 = vld [vmem:[%s8320 + $0x10] sm:$0xf]
        %v8326 = vld [vmem:[%s8320 + $0x14] sm:$0xf]
        %v8327 = vld [vmem:[%s8320 + $0x18] sm:$0xf]
        %v8328 = vld [vmem:[%s8320 + $0x1c] sm:$0xf]
        %v8329 = vrot.slane %v7981, 3
        %v8338 = vunpack.c.l.b16 %v8321
        %v8339 = vunpack.c.l.b16 %v8322
        %v8340 = vunpack.c.l.b16 %v8323
        %v8341 = vunpack.c.l.b16 %v8324
        %v8342 = vunpack.c.l.b16 %v8325
        %v8343 = vunpack.c.l.b16 %v8326
        %v8344 = vunpack.c.l.b16 %v8327
        %v8345 = vunpack.c.l.b16 %v8328
        %v8346 = vpack.c.b16 %v8339, %v8338
        %v8347 = vpack.c.b16 %v8341, %v8340
        %v8348 = vpack.c.b16 %v8343, %v8342
        %v8349 = vpack.c.b16 %v8345, %v8344
        %v8355 = vsel %vm1237, %v8329, 0
        %8357 = vmatpush.bf16.msra.mxu0 0
        %8358 = vmatpush.bf16.msra.mxu0 0
        %8359 = vmatpush.bf16.msra.mxu0 0
        %8360 = vmatpush.bf16.msra.mxu0 0
        %8361 = vmatpush.bf16.msra.mxu0 %v8349
        %8362 = vmatpush.bf16.msra.mxu0 %v8348
        %8363 = vmatpush.bf16.msra.mxu0 %v8347
        %8364 = vmatpush.bf16.msra.mxu0 %v8346
        %8365 = vmatmul.bf16.gmra.mxu0 %v8355
        %v8366 = vpop.f32.mrf.mxu0
        %v8367 = vadd.f32 0.0, %v8366
        %v8368 = vpop.f32.mrf.mxu0
        %8369 = vdwg.mxu0
        %v8370 = vadd.f32 %v8115, %v8367
        %v8371 = vpack.c.bf16 %v7560, %v7560
        %s8372 = scalar_lea.vmem %s10, 512
        %v8373 = vld [vmem:[%s8372] sm:$0xf]
        %v8374 = vld [vmem:[%s8372 + $0x4] sm:$0xf]
        %v8375 = vld [vmem:[%s8372 + $0x8] sm:$0xf]
        %v8376 = vld [vmem:[%s8372 + $0xc] sm:$0xf]
        %v8377 = vld [vmem:[%s8372 + $0x10] sm:$0xf]
        %v8378 = vld [vmem:[%s8372 + $0x14] sm:$0xf]
        %v8379 = vld [vmem:[%s8372 + $0x18] sm:$0xf]
        %v8380 = vld [vmem:[%s8372 + $0x1c] sm:$0xf]
        %v8389 = vunpack.c.l.b16 %v8373
        %v8390 = vunpack.c.l.b16 %v8374
        %v8391 = vunpack.c.l.b16 %v8375
        %v8392 = vunpack.c.l.b16 %v8376
        %v8393 = vunpack.c.l.b16 %v8377
        %v8394 = vunpack.c.l.b16 %v8378
        %v8395 = vunpack.c.l.b16 %v8379
        %v8396 = vunpack.c.l.b16 %v8380
        %v8397 = vpack.c.b16 %v8390, %v8389
        %v8398 = vpack.c.b16 %v8392, %v8391
        %v8399 = vpack.c.b16 %v8394, %v8393
        %v8400 = vpack.c.b16 %v8396, %v8395
        %v8406 = vsel %vm1237, %v8371, 0
        %8408 = vmatpush.bf16.msra.mxu0 0
        %8409 = vmatpush.bf16.msra.mxu0 0
        %8410 = vmatpush.bf16.msra.mxu0 0
        %8411 = vmatpush.bf16.msra.mxu0 0
        %8412 = vmatpush.bf16.msra.mxu0 %v8400
        %8413 = vmatpush.bf16.msra.mxu0 %v8399
        %8414 = vmatpush.bf16.msra.mxu0 %v8398
        %8415 = vmatpush.bf16.msra.mxu0 %v8397
        %8416 = vmatmul.bf16.gmra.mxu0 %v8406
        %v8417 = vpop.f32.mrf.mxu0
        %v8418 = vadd.f32 0.0, %v8417
        %v8419 = vpop.f32.mrf.mxu0
        %8420 = vdwg.mxu0
        %v8421 = vadd.f32 %v8166, %v8418
        %s8422 = scalar_lea.vmem %s10, 544
        %v8423 = vld [vmem:[%s8422] sm:$0xf]
        %v8424 = vld [vmem:[%s8422 + $0x4] sm:$0xf]
        %v8425 = vld [vmem:[%s8422 + $0x8] sm:$0xf]
        %v8426 = vld [vmem:[%s8422 + $0xc] sm:$0xf]
        %v8427 = vld [vmem:[%s8422 + $0x10] sm:$0xf]
        %v8428 = vld [vmem:[%s8422 + $0x14] sm:$0xf]
        %v8429 = vld [vmem:[%s8422 + $0x18] sm:$0xf]
        %v8430 = vld [vmem:[%s8422 + $0x1c] sm:$0xf]
        %v8431 = vshrl.u32 %v8371, 16
        %v8441 = vunpack.c.l.b16 %v8423
        %v8442 = vunpack.c.l.b16 %v8424
        %v8443 = vunpack.c.l.b16 %v8425
        %v8444 = vunpack.c.l.b16 %v8426
        %v8445 = vunpack.c.l.b16 %v8427
        %v8446 = vunpack.c.l.b16 %v8428
        %v8447 = vunpack.c.l.b16 %v8429
        %v8448 = vunpack.c.l.b16 %v8430
        %v8449 = vpack.c.b16 %v8442, %v8441
        %v8450 = vpack.c.b16 %v8444, %v8443
        %v8451 = vpack.c.b16 %v8446, %v8445
        %v8452 = vpack.c.b16 %v8448, %v8447
        %v8458 = vsel %vm1237, %v8431, 0
        %8460 = vmatpush.bf16.msra.mxu0 0
        %8461 = vmatpush.bf16.msra.mxu0 0
        %8462 = vmatpush.bf16.msra.mxu0 0
        %8463 = vmatpush.bf16.msra.mxu0 0
        %8464 = vmatpush.bf16.msra.mxu0 %v8452
        %8465 = vmatpush.bf16.msra.mxu0 %v8451
        %8466 = vmatpush.bf16.msra.mxu0 %v8450
        %8467 = vmatpush.bf16.msra.mxu0 %v8449
        %8468 = vmatmul.bf16.gmra.mxu0 %v8458
        %v8469 = vpop.f32.mrf.mxu0
        %v8470 = vadd.f32 0.0, %v8469
        %v8471 = vpop.f32.mrf.mxu0
        %8472 = vdwg.mxu0
        %v8473 = vadd.f32 %v8217, %v8470
        %s8474 = scalar_lea.vmem %s10, 576
        %v8475 = vld [vmem:[%s8474] sm:$0xf]
        %v8476 = vld [vmem:[%s8474 + $0x4] sm:$0xf]
        %v8477 = vld [vmem:[%s8474 + $0x8] sm:$0xf]
        %v8478 = vld [vmem:[%s8474 + $0xc] sm:$0xf]
        %v8479 = vld [vmem:[%s8474 + $0x10] sm:$0xf]
        %v8480 = vld [vmem:[%s8474 + $0x14] sm:$0xf]
        %v8481 = vld [vmem:[%s8474 + $0x18] sm:$0xf]
        %v8482 = vld [vmem:[%s8474 + $0x1c] sm:$0xf]
        %v8484 = vrot.slane %v8371, 1
        %v8493 = vunpack.c.l.b16 %v8475
        %v8494 = vunpack.c.l.b16 %v8476
        %v8495 = vunpack.c.l.b16 %v8477
        %v8496 = vunpack.c.l.b16 %v8478
        %v8497 = vunpack.c.l.b16 %v8479
        %v8498 = vunpack.c.l.b16 %v8480
        %v8499 = vunpack.c.l.b16 %v8481
        %v8500 = vunpack.c.l.b16 %v8482
        %v8501 = vpack.c.b16 %v8494, %v8493
        %v8502 = vpack.c.b16 %v8496, %v8495
        %v8503 = vpack.c.b16 %v8498, %v8497
        %v8504 = vpack.c.b16 %v8500, %v8499
        %v8510 = vsel %vm1237, %v8484, 0
        %8512 = vmatpush.bf16.msra.mxu0 0
        %8513 = vmatpush.bf16.msra.mxu0 0
        %8514 = vmatpush.bf16.msra.mxu0 0
        %8515 = vmatpush.bf16.msra.mxu0 0
        %8516 = vmatpush.bf16.msra.mxu0 %v8504
        %8517 = vmatpush.bf16.msra.mxu0 %v8503
        %8518 = vmatpush.bf16.msra.mxu0 %v8502
        %8519 = vmatpush.bf16.msra.mxu0 %v8501
        %8520 = vmatmul.bf16.gmra.mxu0 %v8510
        %v8521 = vpop.f32.mrf.mxu0
        %v8522 = vadd.f32 0.0, %v8521
        %v8523 = vpop.f32.mrf.mxu0
        %8524 = vdwg.mxu0
        %v8525 = vadd.f32 %v8268, %v8522
        %s8526 = scalar_lea.vmem %s10, 608
        %v8527 = vld [vmem:[%s8526] sm:$0xf]
        %v8528 = vld [vmem:[%s8526 + $0x4] sm:$0xf]
        %v8529 = vld [vmem:[%s8526 + $0x8] sm:$0xf]
        %v8530 = vld [vmem:[%s8526 + $0xc] sm:$0xf]
        %v8531 = vld [vmem:[%s8526 + $0x10] sm:$0xf]
        %v8532 = vld [vmem:[%s8526 + $0x14] sm:$0xf]
        %v8533 = vld [vmem:[%s8526 + $0x18] sm:$0xf]
        %v8534 = vld [vmem:[%s8526 + $0x1c] sm:$0xf]
        %v8535 = vrot.slane %v8431, 1
        %v8544 = vunpack.c.l.b16 %v8527
        %v8545 = vunpack.c.l.b16 %v8528
        %v8546 = vunpack.c.l.b16 %v8529
        %v8547 = vunpack.c.l.b16 %v8530
        %v8548 = vunpack.c.l.b16 %v8531
        %v8549 = vunpack.c.l.b16 %v8532
        %v8550 = vunpack.c.l.b16 %v8533
        %v8551 = vunpack.c.l.b16 %v8534
        %v8552 = vpack.c.b16 %v8545, %v8544
        %v8553 = vpack.c.b16 %v8547, %v8546
        %v8554 = vpack.c.b16 %v8549, %v8548
        %v8555 = vpack.c.b16 %v8551, %v8550
        %v8561 = vsel %vm1237, %v8535, 0
        %8563 = vmatpush.bf16.msra.mxu0 0
        %8564 = vmatpush.bf16.msra.mxu0 0
        %8565 = vmatpush.bf16.msra.mxu0 0
        %8566 = vmatpush.bf16.msra.mxu0 0
        %8567 = vmatpush.bf16.msra.mxu0 %v8555
        %8568 = vmatpush.bf16.msra.mxu0 %v8554
        %8569 = vmatpush.bf16.msra.mxu0 %v8553
        %8570 = vmatpush.bf16.msra.mxu0 %v8552
        %8571 = vmatmul.bf16.gmra.mxu0 %v8561
        %v8572 = vpop.f32.mrf.mxu0
        %v8573 = vadd.f32 0.0, %v8572
        %v8574 = vpop.f32.mrf.mxu0
        %8575 = vdwg.mxu0
        %v8576 = vadd.f32 %v8319, %v8573
        %s8577 = scalar_lea.vmem %s10, 640
        %v8578 = vld [vmem:[%s8577] sm:$0xf]
        %v8579 = vld [vmem:[%s8577 + $0x4] sm:$0xf]
        %v8580 = vld [vmem:[%s8577 + $0x8] sm:$0xf]
        %v8581 = vld [vmem:[%s8577 + $0xc] sm:$0xf]
        %v8582 = vld [vmem:[%s8577 + $0x10] sm:$0xf]
        %v8583 = vld [vmem:[%s8577 + $0x14] sm:$0xf]
        %v8584 = vld [vmem:[%s8577 + $0x18] sm:$0xf]
        %v8585 = vld [vmem:[%s8577 + $0x1c] sm:$0xf]
        %v8586 = vrot.slane %v8371, 2
        %v8595 = vunpack.c.l.b16 %v8578
        %v8596 = vunpack.c.l.b16 %v8579
        %v8597 = vunpack.c.l.b16 %v8580
        %v8598 = vunpack.c.l.b16 %v8581
        %v8599 = vunpack.c.l.b16 %v8582
        %v8600 = vunpack.c.l.b16 %v8583
        %v8601 = vunpack.c.l.b16 %v8584
        %v8602 = vunpack.c.l.b16 %v8585
        %v8603 = vpack.c.b16 %v8596, %v8595
        %v8604 = vpack.c.b16 %v8598, %v8597
        %v8605 = vpack.c.b16 %v8600, %v8599
        %v8606 = vpack.c.b16 %v8602, %v8601
        %v8612 = vsel %vm1237, %v8586, 0
        %8614 = vmatpush.bf16.msra.mxu0 0
        %8615 = vmatpush.bf16.msra.mxu0 0
        %8616 = vmatpush.bf16.msra.mxu0 0
        %8617 = vmatpush.bf16.msra.mxu0 0
        %8618 = vmatpush.bf16.msra.mxu0 %v8606
        %8619 = vmatpush.bf16.msra.mxu0 %v8605
        %8620 = vmatpush.bf16.msra.mxu0 %v8604
        %8621 = vmatpush.bf16.msra.mxu0 %v8603
        %8622 = vmatmul.bf16.gmra.mxu0 %v8612
        %v8623 = vpop.f32.mrf.mxu0
        %v8624 = vadd.f32 0.0, %v8623
        %v8625 = vpop.f32.mrf.mxu0
        %8626 = vdwg.mxu0
        %v8627 = vadd.f32 %v8370, %v8624
        %s8628 = scalar_lea.vmem %s10, 672
        %v8629 = vld [vmem:[%s8628] sm:$0xf]
        %v8630 = vld [vmem:[%s8628 + $0x4] sm:$0xf]
        %v8631 = vld [vmem:[%s8628 + $0x8] sm:$0xf]
        %v8632 = vld [vmem:[%s8628 + $0xc] sm:$0xf]
        %v8633 = vld [vmem:[%s8628 + $0x10] sm:$0xf]
        %v8634 = vld [vmem:[%s8628 + $0x14] sm:$0xf]
        %v8635 = vld [vmem:[%s8628 + $0x18] sm:$0xf]
        %v8636 = vld [vmem:[%s8628 + $0x1c] sm:$0xf]
        %v8637 = vrot.slane %v8431, 2
        %v8646 = vunpack.c.l.b16 %v8629
        %v8647 = vunpack.c.l.b16 %v8630
        %v8648 = vunpack.c.l.b16 %v8631
        %v8649 = vunpack.c.l.b16 %v8632
        %v8650 = vunpack.c.l.b16 %v8633
        %v8651 = vunpack.c.l.b16 %v8634
        %v8652 = vunpack.c.l.b16 %v8635
        %v8653 = vunpack.c.l.b16 %v8636
        %v8654 = vpack.c.b16 %v8647, %v8646
        %v8655 = vpack.c.b16 %v8649, %v8648
        %v8656 = vpack.c.b16 %v8651, %v8650
        %v8657 = vpack.c.b16 %v8653, %v8652
        %v8663 = vsel %vm1237, %v8637, 0
        %8665 = vmatpush.bf16.msra.mxu0 0
        %8666 = vmatpush.bf16.msra.mxu0 0
        %8667 = vmatpush.bf16.msra.mxu0 0
        %8668 = vmatpush.bf16.msra.mxu0 0
        %8669 = vmatpush.bf16.msra.mxu0 %v8657
        %8670 = vmatpush.bf16.msra.mxu0 %v8656
        %8671 = vmatpush.bf16.msra.mxu0 %v8655
        %8672 = vmatpush.bf16.msra.mxu0 %v8654
        %8673 = vmatmul.bf16.gmra.mxu0 %v8663
        %v8674 = vpop.f32.mrf.mxu0
        %v8675 = vadd.f32 0.0, %v8674
        %v8676 = vpop.f32.mrf.mxu0
        %8677 = vdwg.mxu0
        %v8678 = vadd.f32 %v8421, %v8675
        %s8679 = scalar_lea.vmem %s10, 704
        %v8680 = vld [vmem:[%s8679] sm:$0xf]
        %v8681 = vld [vmem:[%s8679 + $0x4] sm:$0xf]
        %v8682 = vld [vmem:[%s8679 + $0x8] sm:$0xf]
        %v8683 = vld [vmem:[%s8679 + $0xc] sm:$0xf]
        %v8684 = vld [vmem:[%s8679 + $0x10] sm:$0xf]
        %v8685 = vld [vmem:[%s8679 + $0x14] sm:$0xf]
        %v8686 = vld [vmem:[%s8679 + $0x18] sm:$0xf]
        %v8687 = vld [vmem:[%s8679 + $0x1c] sm:$0xf]
        %v8688 = vrot.slane %v8371, 3
        %v8697 = vunpack.c.l.b16 %v8680
        %v8698 = vunpack.c.l.b16 %v8681
        %v8699 = vunpack.c.l.b16 %v8682
        %v8700 = vunpack.c.l.b16 %v8683
        %v8701 = vunpack.c.l.b16 %v8684
        %v8702 = vunpack.c.l.b16 %v8685
        %v8703 = vunpack.c.l.b16 %v8686
        %v8704 = vunpack.c.l.b16 %v8687
        %v8705 = vpack.c.b16 %v8698, %v8697
        %v8706 = vpack.c.b16 %v8700, %v8699
        %v8707 = vpack.c.b16 %v8702, %v8701
        %v8708 = vpack.c.b16 %v8704, %v8703
        %v8714 = vsel %vm1237, %v8688, 0
        %8716 = vmatpush.bf16.msra.mxu0 0
        %8717 = vmatpush.bf16.msra.mxu0 0
        %8718 = vmatpush.bf16.msra.mxu0 0
        %8719 = vmatpush.bf16.msra.mxu0 0
        %8720 = vmatpush.bf16.msra.mxu0 %v8708
        %8721 = vmatpush.bf16.msra.mxu0 %v8707
        %8722 = vmatpush.bf16.msra.mxu0 %v8706
        %8723 = vmatpush.bf16.msra.mxu0 %v8705
        %8724 = vmatmul.bf16.gmra.mxu0 %v8714
        %v8725 = vpop.f32.mrf.mxu0
        %v8726 = vadd.f32 0.0, %v8725
        %v8727 = vpop.f32.mrf.mxu0
        %8728 = vdwg.mxu0
        %v8729 = vadd.f32 %v8473, %v8726
        %s8730 = scalar_lea.vmem %s10, 736
        %v8731 = vld [vmem:[%s8730] sm:$0xf]
        %v8732 = vld [vmem:[%s8730 + $0x4] sm:$0xf]
        %v8733 = vld [vmem:[%s8730 + $0x8] sm:$0xf]
        %v8734 = vld [vmem:[%s8730 + $0xc] sm:$0xf]
        %v8735 = vld [vmem:[%s8730 + $0x10] sm:$0xf]
        %v8736 = vld [vmem:[%s8730 + $0x14] sm:$0xf]
        %v8737 = vld [vmem:[%s8730 + $0x18] sm:$0xf]
        %v8738 = vld [vmem:[%s8730 + $0x1c] sm:$0xf]
        %v8739 = vrot.slane %v8431, 3
        %v8748 = vunpack.c.l.b16 %v8731
        %v8749 = vunpack.c.l.b16 %v8732
        %v8750 = vunpack.c.l.b16 %v8733
        %v8751 = vunpack.c.l.b16 %v8734
        %v8752 = vunpack.c.l.b16 %v8735
        %v8753 = vunpack.c.l.b16 %v8736
        %v8754 = vunpack.c.l.b16 %v8737
        %v8755 = vunpack.c.l.b16 %v8738
        %v8756 = vpack.c.b16 %v8749, %v8748
        %v8757 = vpack.c.b16 %v8751, %v8750
        %v8758 = vpack.c.b16 %v8753, %v8752
        %v8759 = vpack.c.b16 %v8755, %v8754
        %v8765 = vsel %vm1237, %v8739, 0
        %8767 = vmatpush.bf16.msra.mxu0 0
        %8768 = vmatpush.bf16.msra.mxu0 0
        %8769 = vmatpush.bf16.msra.mxu0 0
        %8770 = vmatpush.bf16.msra.mxu0 0
        %8771 = vmatpush.bf16.msra.mxu0 %v8759
        %8772 = vmatpush.bf16.msra.mxu0 %v8758
        %8773 = vmatpush.bf16.msra.mxu0 %v8757
        %8774 = vmatpush.bf16.msra.mxu0 %v8756
        %8775 = vmatmul.bf16.gmra.mxu0 %v8765
        %v8776 = vpop.f32.mrf.mxu0
        %v8777 = vadd.f32 0.0, %v8776
        %v8778 = vpop.f32.mrf.mxu0
        %8779 = vdwg.mxu0
        %v8780 = vadd.f32 %v8525, %v8777
        %v8781 = vpack.c.bf16 %v7561, %v7561
        %s8782 = scalar_lea.vmem %s10, 768
        %v8783 = vld [vmem:[%s8782] sm:$0xf]
        %v8784 = vld [vmem:[%s8782 + $0x4] sm:$0xf]
        %v8785 = vld [vmem:[%s8782 + $0x8] sm:$0xf]
        %v8786 = vld [vmem:[%s8782 + $0xc] sm:$0xf]
        %v8787 = vld [vmem:[%s8782 + $0x10] sm:$0xf]
        %v8788 = vld [vmem:[%s8782 + $0x14] sm:$0xf]
        %v8789 = vld [vmem:[%s8782 + $0x18] sm:$0xf]
        %v8790 = vld [vmem:[%s8782 + $0x1c] sm:$0xf]
        %v8799 = vunpack.c.l.b16 %v8783
        %v8800 = vunpack.c.l.b16 %v8784
        %v8801 = vunpack.c.l.b16 %v8785
        %v8802 = vunpack.c.l.b16 %v8786
        %v8803 = vunpack.c.l.b16 %v8787
        %v8804 = vunpack.c.l.b16 %v8788
        %v8805 = vunpack.c.l.b16 %v8789
        %v8806 = vunpack.c.l.b16 %v8790
        %v8807 = vpack.c.b16 %v8800, %v8799
        %v8808 = vpack.c.b16 %v8802, %v8801
        %v8809 = vpack.c.b16 %v8804, %v8803
        %v8810 = vpack.c.b16 %v8806, %v8805
        %v8816 = vsel %vm1237, %v8781, 0
        %8818 = vmatpush.bf16.msra.mxu0 0
        %8819 = vmatpush.bf16.msra.mxu0 0
        %8820 = vmatpush.bf16.msra.mxu0 0
        %8821 = vmatpush.bf16.msra.mxu0 0
        %8822 = vmatpush.bf16.msra.mxu0 %v8810
        %8823 = vmatpush.bf16.msra.mxu0 %v8809
        %8824 = vmatpush.bf16.msra.mxu0 %v8808
        %8825 = vmatpush.bf16.msra.mxu0 %v8807
        %8826 = vmatmul.bf16.gmra.mxu0 %v8816
        %v8827 = vpop.f32.mrf.mxu0
        %v8828 = vadd.f32 0.0, %v8827
        %v8829 = vpop.f32.mrf.mxu0
        %8830 = vdwg.mxu0
        %v8831 = vadd.f32 %v8576, %v8828
        %v8832 = vadd.f32 %v8627, %v8678
        %v8833 = vadd.f32 %v8832, %v8729
        %v8834 = vadd.f32 %v8833, %v8780
        %v8835 = vadd.f32 %v8834, %v8831
        %v8836 = vld [vmem:[%s11] sm:$0x1]
        %v8837 = vmul.f32 %v8835, %v8836
        %v8838 = vld [vmem:[%s12] sm:$0x1]
        %v8839 = vadd.f32 %v8837, %v8838
        %v8840 = vmax.f32 %v8839, 0.0
        %v8841 = vpack.c.bf16 %v8840, %v8840
        %v8842 = vld [vmem:[%s13] sm:$0xf]
        %v8843 = vld [vmem:[%s13 + $0x4] sm:$0xf]
        %v8844 = vld [vmem:[%s13 + $0x8] sm:$0xf]
        %v8845 = vld [vmem:[%s13 + $0xc] sm:$0xf]
        %v8846 = vld [vmem:[%s13 + $0x10] sm:$0xf]
        %v8847 = vld [vmem:[%s13 + $0x14] sm:$0xf]
        %v8848 = vld [vmem:[%s13 + $0x18] sm:$0xf]
        %v8849 = vld [vmem:[%s13 + $0x1c] sm:$0xf]
        %v8850 = vld [vmem:[%s13 + $0x20] sm:$0xf]
        %v8851 = vld [vmem:[%s13 + $0x24] sm:$0xf]
        %v8852 = vld [vmem:[%s13 + $0x28] sm:$0xf]
        %v8853 = vld [vmem:[%s13 + $0x2c] sm:$0xf]
        %v8854 = vld [vmem:[%s13 + $0x30] sm:$0xf]
        %v8855 = vld [vmem:[%s13 + $0x34] sm:$0xf]
        %v8856 = vld [vmem:[%s13 + $0x38] sm:$0xf]
        %v8857 = vld [vmem:[%s13 + $0x3c] sm:$0xf]
        %v8858 = vld [vmem:[%s14] sm:$0x1]
        %v8875 = vunpack.c.l.b16 %v8842
        %v8876 = vunpack.c.l.b16 %v8843
        %v8877 = vunpack.c.l.b16 %v8844
        %v8878 = vunpack.c.l.b16 %v8845
        %v8879 = vunpack.c.l.b16 %v8846
        %v8880 = vunpack.c.l.b16 %v8847
        %v8881 = vunpack.c.l.b16 %v8848
        %v8882 = vunpack.c.l.b16 %v8849
        %v8883 = vunpack.c.l.b16 %v8850
        %v8884 = vunpack.c.l.b16 %v8851
        %v8885 = vunpack.c.l.b16 %v8852
        %v8886 = vunpack.c.l.b16 %v8853
        %v8887 = vunpack.c.l.b16 %v8854
        %v8888 = vunpack.c.l.b16 %v8855
        %v8889 = vunpack.c.l.b16 %v8856
        %v8890 = vunpack.c.l.b16 %v8857
        %v8891 = vpack.c.b16 %v8876, %v8875
        %v8892 = vpack.c.b16 %v8878, %v8877
        %v8893 = vpack.c.b16 %v8880, %v8879
        %v8894 = vpack.c.b16 %v8882, %v8881
        %v8895 = vpack.c.b16 %v8884, %v8883
        %v8896 = vpack.c.b16 %v8886, %v8885
        %v8897 = vpack.c.b16 %v8888, %v8887
        %v8898 = vpack.c.b16 %v8890, %v8889
        %8907 = vmatpush.bf16.msra.mxu0 %v8898
        %8908 = vmatpush.bf16.msra.mxu0 %v8897
        %8909 = vmatpush.bf16.msra.mxu0 %v8896
        %8910 = vmatpush.bf16.msra.mxu0 %v8895
        %8911 = vmatpush.bf16.msra.mxu0 %v8894
        %8912 = vmatpush.bf16.msra.mxu0 %v8893
        %8913 = vmatpush.bf16.msra.mxu0 %v8892
        %8914 = vmatpush.bf16.msra.mxu0 %v8891
        %8915 = vmatmul.bf16.gmra.mxu0 %v8841
        %v8916 = vpop.f32.mrf.mxu0
        %v8917 = vadd.f32 %v8858, %v8916
        %v8918 = vpop.f32.mrf.mxu0
        %8919 = vdwg.mxu0
        %8920 = vst [vmem:[%s486] sm:$0x1] %v8917
        %s8921 = sand.u32 %s357, 1
        %s8922 = scalar_lea.sflag [#allocation4], %s8921
        %s8923 = sand.u32 %s357, 1
        %s8924 = scalar_lea.vmem [#allocation3], %s8923
        // Predicated region
        $region81: #{net_s_forward.1} parent=79 // pred_check
          %p8925 = pneg %p367
        $region82: #{net_s_forward.1} parent=79 // pred_check_branch
          %8927 = sbr.rel (%p8925) target = $region84
        $region83: #{net_s_forward.1} parent=79 // pred_region
          %8929 = vsyncadd %s8922, 0
          %s8930 = scalar_lea.hbm %s15, %s29
          %s8932 = sshll.u32 %s8924, 4
          %s8933 = int_to_ptr.vmem [resolvable:$true] %s8932
          %s8934 = sshll.u32 %s8930, 4
          %s8935 = int_to_ptr.hbm [resolvable:$true] %s8934
          %8937 = dma.vmem_to_hbm [thread:$0]  %s8933, 16, %s8935, %s8922
        $region84: #{net_s_forward.1} parent=79 // pred_fallthru
          _
      $region80: #{net_s_forward.1} parent=5 // pred_fallthru
        _
      %p8938 = scmp.le.s32.totalorder 2, %s24
      // Predicated region
      $region85: #{net_s_forward.1} parent=5 // pred_check
        %p8939 = pneg %p8938
      $region86: #{net_s_forward.1} parent=5 // pred_check_branch
        %8941 = sbr.rel (%p8939) target = $region88
      $region87: #{net_s_forward.1} parent=5 // pred_region
        %s8942 = ssub.s32 %s24, 2
        // Predicated region
        $region89: #{net_s_forward.1} parent=87 // pred_check
          %p8943 = pneg %p373
        $region90: #{net_s_forward.1} parent=87 // pred_check_branch
          %8945 = sbr.rel (%p8943) target = $region92
        $region91: #{net_s_forward.1} parent=87 // pred_region
          %s8946 = sand.u32 %s358, 1
          %s8947 = scalar_lea.sflag [#allocation4], %s8946
          %s8948 = sand.u32 %s358, 1
          %s8949 = scalar_lea.vmem [#allocation3], %s8948
          %8951 = dma.done %s8947, 16
        $region92: #{net_s_forward.1} parent=87 // pred_fallthru
          _
      $region88: #{net_s_forward.1} parent=5 // pred_fallthru
        _
    $region6: #{net_s_forward.1} parent=1 // loop_footer
      %s28 = sadd.s32 1, %s24
    $region7: #{net_s_forward.1} parent=1 // loop_footer_branch
      %23 = sbr.rel target = $region3
    $region8: #{net_s_forward.1} parent=1 // loop_exit
      _
    %8952 = vsyncpa [#allocation4], 1
    %s8953 = scalar_lea.sflag [#allocation4], 1
    %8954 = vsyncpa %s8953, 1

</llo_original>
